<compile_context>
chip_gen: v6e
topology: v6e:2x2x1
jax: 0.10.0
libtpu: 0.0.40
codegen_flags: <defaults>
</compile_context>

<pallas_src>
import jax
import jax.numpy as jnp
from jax import lax
from jax.experimental import pallas as pl
from jax.experimental.pallas import tpu as pltpu

HIDDEN = 128
LM_DIM = 1024
NUM_REL = 3
NUM_CLASSES = 8
LN_EPS = 1e-5
NEG_SLOPE = 0.2                        # RGATConv default negative_slope
PROJ_COLS = NUM_REL * HIDDEN + HIDDEN  # 3*128 h-columns + 128 padded cols holding q/k scores
MASK_VAL = -1e30                       # logit for non-edges
M_FLOOR = -1e4                         # finite floor for the running max (keeps exp exact-0)
VMEM_LIMIT = 32 * 1024 * 1024


def _round_up(x, m):
    return ((x + m - 1) // m) * m


def _pick_tile(npad, pref):
    """Largest multiple of 128 that divides npad and is <= pref (>=128)."""
    t = max(min(pref, npad), 128)
    t -= t % 128
    while t > 128 and npad % t != 0:
        t -= 128
    return t


# ---------------------------------------------------------------------------
# Kernel 1: LM branch (relu -> lm_head -> relu -> LayerNorm) + layer-1 projection
# ---------------------------------------------------------------------------
def lm_proj_kernel(lm_ref, wlm_ref, blm_ref, lng_ref, lnb_ref, wbig_ref,
                   lmout_ref, h_ref, qk_ref):
    x = jnp.maximum(lm_ref[...], 0)                                    # bf16
    y = jnp.dot(x, wlm_ref[...], preferred_element_type=jnp.float32) + blm_ref[...]
    y = jnp.maximum(y, 0.0)
    mu = jnp.mean(y, axis=-1, keepdims=True)
    var = jnp.mean((y - mu) ** 2, axis=-1, keepdims=True)
    lm_out = (y - mu) * lax.rsqrt(var + LN_EPS) * lng_ref[...] + lnb_ref[...]
    lmout_ref[...] = lm_out

    hp = jnp.dot(lm_out.astype(jnp.bfloat16), wbig_ref[...],
                 preferred_element_type=jnp.float32)                   # [tile, 512]
    h_ref[...] = hp[:, :NUM_REL * HIDDEN].astype(jnp.bfloat16)         # per-relation h
    qk_ref[...] = hp[:, NUM_REL * HIDDEN:]                             # cols 0..2 = q.h_r, 3..5 = k.h_r


# ---------------------------------------------------------------------------
# Shared RGAT online-softmax body: each relation is one online-update block.
# Only a single [tm, tk] f32 tile is live at any time (no logits/masks lists).
# ---------------------------------------------------------------------------
def _rgat_online_update(adj_ref, qk_ref, kst_ref, h_ref, m_sc, l_sc, acc_sc):
    qk = qk_ref[...]                     # [tm, 128]  cols 0..2 = q-scores of dst nodes
    kst = kst_ref[...]                   # [8, tk]    rows 0..2 = k-scores of src nodes
    for r in range(NUM_REL):
        lg = qk[:, r:r + 1] + kst[r:r + 1, :]                          # [tm, tk]
        lg = jnp.maximum(lg, NEG_SLOPE * lg)                           # leaky_relu
        lg = jnp.where(adj_ref[r] != 0, lg, MASK_VAL)                  # mask non-edges
        m_prev = m_sc[...]
        m_new = jnp.maximum(m_prev, jnp.max(lg, axis=-1, keepdims=True))
        # m_new >= M_FLOOR (init), so exp(MASK_VAL - m_new) underflows to exactly 0:
        e = jnp.exp(lg - m_new)
        alpha = jnp.exp(m_prev - m_new)
        l_sc[...] = alpha * l_sc[...] + jnp.sum(e, axis=-1, keepdims=True)
        acc_sc[...] = alpha * acc_sc[...] + jnp.dot(
            e.astype(jnp.bfloat16), h_ref[:, r * HIDDEN:(r + 1) * HIDDEN],
            preferred_element_type=jnp.float32)
        m_sc[...] = m_new


def _rgat_init(m_sc, l_sc, acc_sc):
    m_sc[...] = jnp.full(m_sc.shape, M_FLOOR, jnp.float32)
    l_sc[...] = jnp.zeros_like(l_sc)
    acc_sc[...] = jnp.zeros_like(acc_sc)


def _rgat_gnn_out(b_ref, l_sc, acc_sc):
    l = l_sc[...]
    inv = jnp.where(l > 0, pl.reciprocal(l, approx=True), 0.0)   # isolated dst -> 0
    return jnp.maximum(acc_sc[...] * inv + b_ref[...], 0.0)      # ReLU (dropout = identity)


# ---------------------------------------------------------------------------
# Kernel 2: RGAT layer 1, layer-2 relation projection fused into finalize
# ---------------------------------------------------------------------------
def rgat1_proj_kernel(adj_ref, qk_ref, kst_ref, h_ref, b_ref, wbig2_ref,
                      h2_ref, qk2_ref, m_sc, l_sc, acc_sc):
    j = pl.program_id(1)

    @pl.when(j == 0)
    def _init():
        _rgat_init(m_sc, l_sc, acc_sc)

    _rgat_online_update(adj_ref, qk_ref, kst_ref, h_ref, m_sc, l_sc, acc_sc)

    @pl.when(j == pl.num_programs(1) - 1)
    def _finalize():
        g = _rgat_gnn_out(b_ref, l_sc, acc_sc)                          # [tm, 128] f32
        hp = jnp.dot(g.astype(jnp.bfloat16), wbig2_ref[...],
                     preferred_element_type=jnp.float32)                # [tm, 512]
        h2_ref[...] = hp[:, :NUM_REL * HIDDEN].astype(jnp.bfloat16)
        qk2_ref[...] = hp[:, NUM_REL * HIDDEN:]


# ---------------------------------------------------------------------------
# Kernel 3: RGAT layer 2, cls head fused into finalize (lane-dense 128-wide out)
# ---------------------------------------------------------------------------
def rgat2_cls_kernel(adj_ref, qk_ref, kst_ref, h_ref, b_ref, lm_ref,
                     wclm_ref, wcg_ref, bc_ref, out_ref, m_sc, l_sc, acc_sc):
    j = pl.program_id(1)

    @pl.when(j == 0)
    def _init():
        _rgat_init(m_sc, l_sc, acc_sc)

    _rgat_online_update(adj_ref, qk_ref, kst_ref, h_ref, m_sc, l_sc, acc_sc)

    @pl.when(j == pl.num_programs(1) - 1)
    def _finalize():
        g = _rgat_gnn_out(b_ref, l_sc, acc_sc)                          # [tm, 128] f32
        out_ref[...] = (
            jnp.dot(lm_ref[...], wclm_ref[...], preferred_element_type=jnp.float32)
            + jnp.dot(g, wcg_ref[...], preferred_element_type=jnp.float32)
            + bc_ref[...])


# ---------------------------------------------------------------------------
# Wrappers
# ---------------------------------------------------------------------------
def _pack_rel_weights(w, q, k):
    """Pack [W_1|W_2|W_3 | W_r q | W_r k | 0-pad] into one [128, 512] matrix so that
    per-relation h and the q/k attention scores come from a single MXU matmul."""
    h_cols = jnp.concatenate([w[r] for r in range(NUM_REL)], axis=1)                    # [H, 3H]
    wq = jnp.concatenate([w[r] @ q.reshape(HIDDEN, 1) for r in range(NUM_REL)], axis=1)  # [H, 3]
    wk = jnp.concatenate([w[r] @ k.reshape(HIDDEN, 1) for r in range(NUM_REL)], axis=1)  # [H, 3]
    pad = jnp.zeros((HIDDEN, HIDDEN - 2 * NUM_REL), jnp.float32)
    return jnp.concatenate([h_cols, wq, wk, pad], axis=1)                                # [H, 512]


def _ks_transposed(qk, npad):
    # k-scores transposed to lanes so logits[d, s] = qs[d, r] + ks_t[r, s]
    return jnp.pad(jnp.transpose(qk[:, NUM_REL:2 * NUM_REL]), ((0, 8 - NUM_REL), (0, 0)))


def lm_concat_rgat_forward(last_hidden_state, adj, params):
    B, S, _ = last_hidden_state.shape
    N = B * S
    npad = _round_up(N, 128)

    # Row tile (LM / projection kernel) decoupled from attention tiles; prefer >=2
    # grid steps along the "parallel" axes so both v7x TensorCores are used.
    row_tile = _pick_tile(npad, max(min(1024, npad // 2), 128))
    attn_tm = _pick_tile(npad, max(min(512, npad // 2), 128))
    attn_tk = _pick_tile(npad, 512)
    grid_rows = npad // row_tile

    # Cast to bf16 BEFORE padding (no f32 round trip / extra HBM copy).
    lm_flat = jnp.pad(last_hidden_state.reshape(N, LM_DIM).astype(jnp.bfloat16),
                      ((0, npad - N), (0, 0)))
    adj_i8 = jnp.pad(adj.astype(jnp.int8), ((0, 0), (0, npad - N), (0, npad - N)))

    wlm = params["wlm"].astype(jnp.bfloat16)
    wbig1 = _pack_rel_weights(params["w1"], params["q1"], params["k1"]).astype(jnp.bfloat16)
    wbig2 = _pack_rel_weights(params["w2"], params["q2"], params["k2"]).astype(jnp.bfloat16)
    wc_lm = jnp.pad(params["wc_lm"], ((0, 0), (0, HIDDEN - NUM_CLASSES)))
    wc_g = jnp.pad(params["wc_g"], ((0, 0), (0, HIDDEN - NUM_CLASSES)))
    bc = jnp.pad(params["bc"], ((0, 0), (0, HIDDEN - NUM_CLASSES)))

    row_params = pltpu.CompilerParams(dimension_semantics=("parallel",),
                                      vmem_limit_bytes=VMEM_LIMIT)
    attn_params = pltpu.CompilerParams(dimension_semantics=("parallel", "arbitrary"),
                                       vmem_limit_bytes=VMEM_LIMIT)

    # ---- call 1: LM branch + layer-1 projection --------------------------------
    lm_out, h1, qk1 = pl.pallas_call(
        lm_proj_kernel,
        out_shape=(jax.ShapeDtypeStruct((npad, HIDDEN), jnp.float32),
                   jax.ShapeDtypeStruct((npad, NUM_REL * HIDDEN), jnp.bfloat16),
                   jax.ShapeDtypeStruct((npad, HIDDEN), jnp.float32)),
        grid_spec=pltpu.PrefetchScalarGridSpec(
            num_scalar_prefetch=0, grid=(grid_rows,),
            in_specs=[pl.BlockSpec((row_tile, LM_DIM), lambda i: (i, 0)),
                      pl.BlockSpec((LM_DIM, HIDDEN), lambda i: (0, 0)),
                      pl.BlockSpec((1, HIDDEN), lambda i: (0, 0)),
                      pl.BlockSpec((1, HIDDEN), lambda i: (0, 0)),
                      pl.BlockSpec((1, HIDDEN), lambda i: (0, 0)),
                      pl.BlockSpec((HIDDEN, PROJ_COLS), lambda i: (0, 0))],
            out_specs=[pl.BlockSpec((row_tile, HIDDEN), lambda i: (i, 0)),
                       pl.BlockSpec((row_tile, NUM_REL * HIDDEN), lambda i: (i, 0)),
                       pl.BlockSpec((row_tile, HIDDEN), lambda i: (i, 0))]),
        compiler_params=row_params,
    )(lm_flat, wlm, params["blm"], params["ln_g"], params["ln_b"], wbig1)

    attn_grid = (npad // attn_tm, npad // attn_tk)
    attn_scratch = [pltpu.VMEM((attn_tm, 1), jnp.float32),       # running max
                    pltpu.VMEM((attn_tm, 1), jnp.float32),       # running denom
                    pltpu.VMEM((attn_tm, HIDDEN), jnp.float32)]  # running acc

    # ---- call 2: RGAT layer 1 (+ layer-2 projection in finalize) ----------------
    ks1_t = _ks_transposed(qk1, npad)                                             # [8, npad]
    h2, qk2 = pl.pallas_call(
        rgat1_proj_kernel,
        out_shape=(jax.ShapeDtypeStruct((npad, NUM_REL * HIDDEN), jnp.bfloat16),
                   jax.ShapeDtypeStruct((npad, HIDDEN), jnp.float32)),
        grid_spec=pltpu.PrefetchScalarGridSpec(
            num_scalar_prefetch=0, grid=attn_grid,
            in_specs=[
                pl.BlockSpec((NUM_REL, attn_tm, attn_tk), lambda i, j: (0, i, j)),  # adj
                pl.BlockSpec((attn_tm, HIDDEN), lambda i, j: (i, 0)),               # qk (dst)
                pl.BlockSpec((8, attn_tk), lambda i, j: (0, j)),                    # ks_t (src)
                pl.BlockSpec((attn_tk, NUM_REL * HIDDEN), lambda i, j: (j, 0)),     # h (src)
                pl.BlockSpec((1, HIDDEN), lambda i, j: (0, 0)),                     # bias
                pl.BlockSpec((HIDDEN, PROJ_COLS), lambda i, j: (0, 0)),             # wbig2
            ],
            out_specs=[pl.BlockSpec((attn_tm, NUM_REL * HIDDEN), lambda i, j: (i, 0)),
                       pl.BlockSpec((attn_tm, HIDDEN), lambda i, j: (i, 0))],
            scratch_shapes=attn_scratch),
        compiler_params=attn_params,
    )(adj_i8, qk1, ks1_t, h1, params["b1"], wbig2)

    # ---- call 3: RGAT layer 2 (+ cls head in finalize), lane-dense padded output -
    ks2_t = _ks_transposed(qk2, npad)
    logits_p = pl.pallas_call(
        rgat2_cls_kernel,
        out_shape=jax.ShapeDtypeStruct((npad, HIDDEN), jnp.float32),
        grid_spec=pltpu.PrefetchScalarGridSpec(
            num_scalar_prefetch=0, grid=attn_grid,
            in_specs=[
                pl.BlockSpec((NUM_REL, attn_tm, attn_tk), lambda i, j: (0, i, j)),
                pl.BlockSpec((attn_tm, HIDDEN), lambda i, j: (i, 0)),
                pl.BlockSpec((8, attn_tk), lambda i, j: (0, j)),
                pl.BlockSpec((attn_tk, NUM_REL * HIDDEN), lambda i, j: (j, 0)),
                pl.BlockSpec((1, HIDDEN), lambda i, j: (0, 0)),
                pl.BlockSpec((attn_tm, HIDDEN), lambda i, j: (i, 0)),               # lm_out (dst)
                pl.BlockSpec((HIDDEN, HIDDEN), lambda i, j: (0, 0)),                # wc_lm
                pl.BlockSpec((HIDDEN, HIDDEN), lambda i, j: (0, 0)),                # wc_g
                pl.BlockSpec((1, HIDDEN), lambda i, j: (0, 0)),                     # bc
            ],
            out_specs=pl.BlockSpec((attn_tm, HIDDEN), lambda i, j: (i, 0)),
            scratch_shapes=attn_scratch),
        compiler_params=attn_params,
    )(adj_i8, qk2, ks2_t, h2, params["b2"], lm_out, wc_lm, wc_g, bc)

    return logits_p[:N, :NUM_CLASSES].reshape(B, S, NUM_CLASSES)


# ---------------------------------------------------------------------------
# Pure-JAX f32 reference (same semantics, used only for validation)
# ---------------------------------------------------------------------------
def reference_forward(last_hidden_state, adj, params):
    B, S, _ = last_hidden_state.shape
    N = B * S
    x = jnp.maximum(last_hidden_state.reshape(N, LM_DIM).astype(jnp.float32), 0.0)
    y = jnp.maximum(x @ params["wlm"] + params["blm"], 0.0)
    mu = y.mean(-1, keepdims=True)
    var = ((y - mu) ** 2).mean(-1, keepdims=True)
    lm_out = (y - mu) * lax.rsqrt(var + LN_EPS) * params["ln_g"] + params["ln_b"]

    def rgat(xin, w, q, k, b):
        hs, lgs = [], []
        for r in range(NUM_REL):
            h = xin @ w[r]
            qs = jnp.sum(h * q, -1, keepdims=True)
            ks = jnp.sum(h * k, -1, keepdims=True)
            lg = qs + ks.T
            lg = jnp.where(lg > 0, lg, NEG_SLOPE * lg)
            lg = jnp.where(adj[r] > 0, lg, -1e30)
            hs.append(h)
            lgs.append(lg)
        m = lgs[0].max(-1, keepdims=True)
        for r in range(1, NUM_REL):
            m = jnp.maximum(m, lgs[r].max(-1, keepdims=True))
        den = jnp.zeros_like(m)
        acc = jnp.zeros_like(xin)
        for r in range(NUM_REL):
            e = jnp.exp(lgs[r] - m) * (adj[r] > 0)
            den = den + e.sum(-1, keepdims=True)
            acc = acc + e @ hs[r]
        inv = jnp.where(den > 0, 1.0 / den, 0.0)
        return jnp.maximum(acc * inv + b, 0.0)

    g = rgat(lm_out, params["w1"], params["q1"], params["k1"], params["b1"])
    g = rgat(g, params["w2"], params["q2"], params["k2"], params["b2"])
    logits = lm_out @ params["wc_lm"] + g @ params["wc_g"] + params["bc"]
    return logits.reshape(B, S, NUM_CLASSES)


def xavier_uniform(key, shape, fan_in, fan_out):
    limit = (6.0 / (fan_in + fan_out)) ** 0.5
    return jax.random.uniform(key, shape, jnp.float32, -limit, limit)


if __name__ == "__main__":
    B, S = 2, 64
    N = B * S
    VOCAB = 30

    key = jax.random.PRNGKey(0)
    keys = jax.random.split(key, 16)

    # ---- synthetic batch (stand-in for batch.seq_encodings) ----
    input_ids = jax.random.randint(keys[0], (B, S), 0, VOCAB)
    attention_mask = (jax.random.uniform(keys[1], (B, S)) > 0.1).astype(jnp.int32)
    labels = jax.random.randint(keys[2], (B, S), 0, NUM_CLASSES)

    # TODO(synk): the pretrained DistilProtBert encoder stack is not reproduced;
    # its last_hidden_state ([B, S, 1024]) is emulated by a deterministic
    # embedding lookup so the downstream kernel path is exercised end to end.
    emb_table = 0.02 * jax.random.normal(keys[3], (VOCAB, LM_DIM), jnp.float32)
    last_hidden_state = emb_table[input_ids]                      # [B, S, 1024]

    # ---- deterministic graph over the flattened N nodes, 3 relation types (int8 masks) ----
    dst = jnp.arange(N)
    adj = jnp.zeros((NUM_REL, N, N), jnp.int8)
    for t, off in enumerate((1, 3, 7)):
        src = (dst + off) % N
        rel = (dst + t) % NUM_REL
        adj = adj.at[rel, dst, src].set(1)

    # ---- deterministic parameters (shapes from the module __init__) ----
    cls_limit = 1.0 / (2 * HIDDEN) ** 0.5
    wc = jax.random.uniform(keys[10], (2 * HIDDEN, NUM_CLASSES), jnp.float32,
                            -cls_limit, cls_limit)
    params = dict(
        wlm=xavier_uniform(keys[4], (LM_DIM, HIDDEN), LM_DIM, HIDDEN),
        blm=jnp.zeros((1, HIDDEN), jnp.float32),
        ln_g=jnp.ones((1, HIDDEN), jnp.float32),
        ln_b=jnp.zeros((1, HIDDEN), jnp.float32),
        w1=xavier_uniform(keys[5], (NUM_REL, HIDDEN, HIDDEN), HIDDEN, HIDDEN),
        q1=xavier_uniform(keys[6], (1, HIDDEN), HIDDEN, 1),
        k1=xavier_uniform(keys[7], (1, HIDDEN), HIDDEN, 1),
        b1=jnp.zeros((1, HIDDEN), jnp.float32),
        w2=xavier_uniform(keys[8], (NUM_REL, HIDDEN, HIDDEN), HIDDEN, HIDDEN),
        q2=xavier_uniform(keys[9], (1, HIDDEN), HIDDEN, 1),
        k2=xavier_uniform(keys[11], (1, HIDDEN), HIDDEN, 1),
        b2=jnp.zeros((1, HIDDEN), jnp.float32),
        wc_lm=wc[:HIDDEN],
        wc_g=wc[HIDDEN:],
        bc=jax.random.uniform(keys[12], (1, NUM_CLASSES), jnp.float32,
                              -cls_limit, cls_limit),
    )

    # ---- forward (hot path in the Pallas kernels) ----
    logits = jax.jit(lm_concat_rgat_forward)(last_hidden_state, adj, params)   # [B, S, 8]
    ref = reference_forward(last_hidden_state, adj, params)
    jax.block_until_ready((logits, ref))

    err = float(jnp.max(jnp.abs(logits - ref)) / (jnp.max(jnp.abs(ref)) + 1e-6))
    assert err < 0.1, f"kernel vs f32 reference mismatch: normalized max err = {err}"

    # ---- loss glue (CrossEntropyLoss with ignore_index on inactive tokens) ----
    logp = jax.nn.log_softmax(logits.reshape(-1, NUM_CLASSES), axis=-1)
    flat_labels = labels.reshape(-1)
    active = attention_mask.reshape(-1) == 1
    nll = -jnp.take_along_axis(logp, flat_labels[:, None], axis=-1)[:, 0]
    loss = jnp.sum(jnp.where(active, nll, 0.0)) / jnp.maximum(
        jnp.sum(active), 1).astype(jnp.float32)

    jax.block_until_ready((logits, loss))
    assert logits.shape == (B, S, NUM_CLASSES)
    assert bool(jnp.isfinite(loss))
    print("KERNEL_OK")
</pallas_src>

<mosaic_0001>
module attributes {stable_mosaic.version = 11 : i64} {
  func.func @lm_proj_kernel(%arg0: i32, %arg1: memref<128x1024xbf16, #tpu.memory_space<vmem>>, %arg2: memref<1024x128xbf16, #tpu.memory_space<vmem>>, %arg3: memref<1x128xf32, #tpu.memory_space<vmem>>, %arg4: memref<1x128xf32, #tpu.memory_space<vmem>>, %arg5: memref<1x128xf32, #tpu.memory_space<vmem>>, %arg6: memref<128x512xbf16, #tpu.memory_space<vmem>>, %arg7: memref<128x128xf32, #tpu.memory_space<vmem>>, %arg8: memref<128x384xbf16, #tpu.memory_space<vmem>>, %arg9: memref<128x128xf32, #tpu.memory_space<vmem>>) attributes {dimension_semantics = [#tpu.dimension_semantics<parallel>], iteration_bounds = array<i64: 1>, scalar_prefetch = 0 : i64, scratch_operands = 0 : i64, tpu.core_type = #tpu.core_type<tc>, window_params = [{transform_indices = @transform_0, window_bounds = array<i64: 128, 1024>}, {pipeline_mode = #tpu.pipeline_mode<synchronous>, transform_indices = @transform_1, window_bounds = array<i64: 1024, 128>}, {pipeline_mode = #tpu.pipeline_mode<synchronous>, transform_indices = @transform_2, window_bounds = array<i64: 1, 128>}, {pipeline_mode = #tpu.pipeline_mode<synchronous>, transform_indices = @transform_3, window_bounds = array<i64: 1, 128>}, {pipeline_mode = #tpu.pipeline_mode<synchronous>, transform_indices = @transform_4, window_bounds = array<i64: 1, 128>}, {pipeline_mode = #tpu.pipeline_mode<synchronous>, transform_indices = @transform_5, window_bounds = array<i64: 128, 512>}, {transform_indices = @transform_6, window_bounds = array<i64: 128, 128>}, {transform_indices = @transform_7, window_bounds = array<i64: 128, 384>}, {transform_indices = @transform_8, window_bounds = array<i64: 128, 128>}]} {
    %c0 = arith.constant 0 : index
    %c0_0 = arith.constant 0 : index
    %0 = vector.load %arg1[%c0, %c0_0] : memref<128x1024xbf16, #tpu.memory_space<vmem>>, vector<128x1024xbf16>
    %cst = arith.constant 0.000000e+00 : bf16
    %1 = vector.broadcast %cst : bf16 to vector<128x1024xbf16>
    %2 = arith.maximumf %0, %1 : vector<128x1024xbf16>
    %c0_1 = arith.constant 0 : index
    %c0_2 = arith.constant 0 : index
    %3 = vector.load %arg2[%c0_1, %c0_2] : memref<1024x128xbf16, #tpu.memory_space<vmem>>, vector<1024x128xbf16>
    %cst_3 = arith.constant dense<0.000000e+00> : vector<128x128xf32>
    %4 = tpu.matmul %2, %3, %cst_3 {dimension_numbers = #tpu.dot_dimension_numbers<[1], [0], [0], [1], [0, 0, 1, 1], [], []>} : vector<128x1024xbf16>, vector<1024x128xbf16>, vector<128x128xf32> -> vector<128x128xf32>
    %c0_4 = arith.constant 0 : index
    %c0_5 = arith.constant 0 : index
    %5 = vector.load %arg3[%c0_4, %c0_5] : memref<1x128xf32, #tpu.memory_space<vmem>>, vector<1x128xf32>
    %6 = vector.broadcast %5 : vector<1x128xf32> to vector<128x128xf32>
    %7 = arith.addf %4, %6 : vector<128x128xf32>
    %cst_6 = arith.constant 0.000000e+00 : f32
    %8 = vector.broadcast %cst_6 : f32 to vector<128x128xf32>
    %9 = arith.maximumf %7, %8 : vector<128x128xf32>
    %cst_7 = arith.constant dense<0.000000e+00> : vector<128xf32>
    %10 = vector.multi_reduction <add>, %9, %cst_7 [1] : vector<128x128xf32> to vector<128xf32>
    %11 = vector.shape_cast %10 : vector<128xf32> to vector<128x1xf32>
    %cst_8 = arith.constant 1.280000e+02 : f32
    %12 = vector.broadcast %cst_8 : f32 to vector<128x1xf32>
    %13 = arith.divf %11, %12 : vector<128x1xf32>
    %14 = vector.broadcast %13 : vector<128x1xf32> to vector<128x128xf32>
    %15 = arith.subf %9, %14 : vector<128x128xf32>
    %16 = arith.mulf %15, %15 : vector<128x128xf32>
    %cst_9 = arith.constant dense<0.000000e+00> : vector<128xf32>
    %17 = vector.multi_reduction <add>, %16, %cst_9 [1] : vector<128x128xf32> to vector<128xf32>
    %18 = vector.shape_cast %17 : vector<128xf32> to vector<128x1xf32>
    %cst_10 = arith.constant 1.280000e+02 : f32
    %19 = vector.broadcast %cst_10 : f32 to vector<128x1xf32>
    %20 = arith.divf %18, %19 : vector<128x1xf32>
    %21 = vector.broadcast %13 : vector<128x1xf32> to vector<128x128xf32>
    %22 = arith.subf %9, %21 : vector<128x128xf32>
    %cst_11 = arith.constant 9.99999974E-6 : f32
    %23 = vector.broadcast %cst_11 : f32 to vector<128x1xf32>
    %24 = arith.addf %20, %23 : vector<128x1xf32>
    %25 = math.rsqrt %24 : vector<128x1xf32>
    %26 = vector.broadcast %25 : vector<128x1xf32> to vector<128x128xf32>
    %27 = arith.mulf %22, %26 : vector<128x128xf32>
    %c0_12 = arith.constant 0 : index
    %c0_13 = arith.constant 0 : index
    %28 = vector.load %arg4[%c0_12, %c0_13] : memref<1x128xf32, #tpu.memory_space<vmem>>, vector<1x128xf32>
    %29 = vector.broadcast %28 : vector<1x128xf32> to vector<128x128xf32>
    %30 = arith.mulf %27, %29 : vector<128x128xf32>
    %c0_14 = arith.constant 0 : index
    %c0_15 = arith.constant 0 : index
    %31 = vector.load %arg5[%c0_14, %c0_15] : memref<1x128xf32, #tpu.memory_space<vmem>>, vector<1x128xf32>
    %32 = vector.broadcast %31 : vector<1x128xf32> to vector<128x128xf32>
    %33 = arith.addf %30, %32 : vector<128x128xf32>
    %c0_16 = arith.constant 0 : index
    %c0_17 = arith.constant 0 : index
    %34 = vector.load %arg7[%c0_16, %c0_17] : memref<128x128xf32, #tpu.memory_space<vmem>>, vector<128x128xf32>
    tpu.vector_store %arg7[%c0_16, %c0_17], %33 {strides = array<i32>} : memref<128x128xf32, #tpu.memory_space<vmem>>, vector<128x128xf32>,
    %35 = arith.truncf %33 : vector<128x128xf32> to vector<128x128xbf16>
    %c0_18 = arith.constant 0 : index
    %c0_19 = arith.constant 0 : index
    %36 = vector.load %arg6[%c0_18, %c0_19] : memref<128x512xbf16, #tpu.memory_space<vmem>>, vector<128x512xbf16>
    %cst_20 = arith.constant dense<0.000000e+00> : vector<128x512xf32>
    %37 = tpu.matmul %35, %36, %cst_20 {dimension_numbers = #tpu.dot_dimension_numbers<[1], [0], [0], [1], [0, 0, 1, 1], [], []>} : vector<128x128xbf16>, vector<128x512xbf16>, vector<128x512xf32> -> vector<128x512xf32>
    %38 = vector.extract_strided_slice %37 {offsets = [0, 0], sizes = [128, 384], strides = [1, 1]} : vector<128x512xf32> to vector<128x384xf32>
    %39 = arith.truncf %38 : vector<128x384xf32> to vector<128x384xbf16>
    %c0_21 = arith.constant 0 : index
    %c0_22 = arith.constant 0 : index
    %40 = vector.load %arg8[%c0_21, %c0_22] : memref<128x384xbf16, #tpu.memory_space<vmem>>, vector<128x384xbf16>
    tpu.vector_store %arg8[%c0_21, %c0_22], %39 {strides = array<i32>} : memref<128x384xbf16, #tpu.memory_space<vmem>>, vector<128x384xbf16>,
    %41 = vector.extract_strided_slice %37 {offsets = [0, 384], sizes = [128, 128], strides = [1, 1]} : vector<128x512xf32> to vector<128x128xf32>
    %c0_23 = arith.constant 0 : index
    %c0_24 = arith.constant 0 : index
    %42 = vector.load %arg9[%c0_23, %c0_24] : memref<128x128xf32, #tpu.memory_space<vmem>>, vector<128x128xf32>
    tpu.vector_store %arg9[%c0_23, %c0_24], %41 {strides = array<i32>} : memref<128x128xf32, #tpu.memory_space<vmem>>, vector<128x128xf32>,
    return
  }
  func.func @transform_0(%arg0: i32) -> (i32, i32) {
    %c0_i32 = arith.constant 0 : i32
    %c0_i32_0 = arith.constant 0 : i32
    return %arg0, %c0_i32 : i32, i32
  }
  func.func @transform_1(%arg0: i32) -> (i32, i32) {
    %c0_i32 = arith.constant 0 : i32
    %c0_i32_0 = arith.constant 0 : i32
    %c0_i32_1 = arith.constant 0 : i32
    return %c0_i32, %c0_i32_0 : i32, i32
  }
  func.func @transform_2(%arg0: i32) -> (i32, i32) {
    %c0_i32 = arith.constant 0 : i32
    %c0_i32_0 = arith.constant 0 : i32
    %c0_i32_1 = arith.constant 0 : i32
    return %c0_i32, %c0_i32_0 : i32, i32
  }
  func.func @transform_3(%arg0: i32) -> (i32, i32) {
    %c0_i32 = arith.constant 0 : i32
    %c0_i32_0 = arith.constant 0 : i32
    %c0_i32_1 = arith.constant 0 : i32
    return %c0_i32, %c0_i32_0 : i32, i32
  }
  func.func @transform_4(%arg0: i32) -> (i32, i32) {
    %c0_i32 = arith.constant 0 : i32
    %c0_i32_0 = arith.constant 0 : i32
    %c0_i32_1 = arith.constant 0 : i32
    return %c0_i32, %c0_i32_0 : i32, i32
  }
  func.func @transform_5(%arg0: i32) -> (i32, i32) {
    %c0_i32 = arith.constant 0 : i32
    %c0_i32_0 = arith.constant 0 : i32
    %c0_i32_1 = arith.constant 0 : i32
    return %c0_i32, %c0_i32_0 : i32, i32
  }
  func.func @transform_6(%arg0: i32) -> (i32, i32) {
    %c0_i32 = arith.constant 0 : i32
    %c0_i32_0 = arith.constant 0 : i32
    return %arg0, %c0_i32 : i32, i32
  }
  func.func @transform_7(%arg0: i32) -> (i32, i32) {
    %c0_i32 = arith.constant 0 : i32
    %c0_i32_0 = arith.constant 0 : i32
    return %arg0, %c0_i32 : i32, i32
  }
  func.func @transform_8(%arg0: i32) -> (i32, i32) {
    %c0_i32 = arith.constant 0 : i32
    %c0_i32_0 = arith.constant 0 : i32
    return %arg0, %c0_i32 : i32, i32
  }
}

module attributes {stable_mosaic.version = 11 : i64} {
  func.func @rgat1_proj_kernel(%arg0: i32, %arg1: i32, %arg2: memref<3x128x128xi8, #tpu.memory_space<vmem>>, %arg3: memref<128x128xf32, #tpu.memory_space<vmem>>, %arg4: memref<8x128xf32, #tpu.memory_space<vmem>>, %arg5: memref<128x384xbf16, #tpu.memory_space<vmem>>, %arg6: memref<1x128xf32, #tpu.memory_space<vmem>>, %arg7: memref<128x512xbf16, #tpu.memory_space<vmem>>, %arg8: memref<128x384xbf16, #tpu.memory_space<vmem>>, %arg9: memref<128x128xf32, #tpu.memory_space<vmem>>, %arg10: memref<128x1xf32, #tpu.memory_space<vmem>>, %arg11: memref<128x1xf32, #tpu.memory_space<vmem>>, %arg12: memref<128x128xf32, #tpu.memory_space<vmem>>) attributes {dimension_semantics = [#tpu.dimension_semantics<parallel>, #tpu.dimension_semantics<arbitrary>], iteration_bounds = array<i64: 1, 1>, scalar_prefetch = 0 : i64, scratch_operands = 3 : i64, tpu.core_type = #tpu.core_type<tc>, window_params = [{transform_indices = @transform_0, window_bounds = array<i64: 3, 128, 128>}, {transform_indices = @transform_1, window_bounds = array<i64: 128, 128>}, {transform_indices = @transform_2, window_bounds = array<i64: 8, 128>}, {transform_indices = @transform_3, window_bounds = array<i64: 128, 384>}, {pipeline_mode = #tpu.pipeline_mode<synchronous>, transform_indices = @transform_4, window_bounds = array<i64: 1, 128>}, {pipeline_mode = #tpu.pipeline_mode<synchronous>, transform_indices = @transform_5, window_bounds = array<i64: 128, 512>}, {transform_indices = @transform_6, window_bounds = array<i64: 128, 384>}, {transform_indices = @transform_7, window_bounds = array<i64: 128, 128>}]} {
    %c0_i32 = arith.constant 0 : i32
    %0 = arith.cmpi eq, %arg1, %c0_i32 : i32
    %1 = arith.extui %0 : i1 to i32
    %c0_i32_0 = arith.constant 0 : i32
    %2 = arith.cmpi ne, %1, %c0_i32_0 : i32
    scf.if %2 {
      %cst_69 = arith.constant -1.000000e+04 : f32
      %122 = vector.broadcast %cst_69 : f32 to vector<128x1xf32>
      %c0_70 = arith.constant 0 : index
      %c0_71 = arith.constant 0 : index
      %123 = vector.load %arg10[%c0_70, %c0_71] : memref<128x1xf32, #tpu.memory_space<vmem>>, vector<128x1xf32>
      tpu.vector_store %arg10[%c0_70, %c0_71], %122 {strides = array<i32>} : memref<128x1xf32, #tpu.memory_space<vmem>>, vector<128x1xf32>,
      %cst_72 = arith.constant 0.000000e+00 : f32
      %124 = vector.broadcast %cst_72 : f32 to vector<128x1xf32>
      %c0_73 = arith.constant 0 : index
      %c0_74 = arith.constant 0 : index
      %125 = vector.load %arg11[%c0_73, %c0_74] : memref<128x1xf32, #tpu.memory_space<vmem>>, vector<128x1xf32>
      tpu.vector_store %arg11[%c0_73, %c0_74], %124 {strides = array<i32>} : memref<128x1xf32, #tpu.memory_space<vmem>>, vector<128x1xf32>,
      %cst_75 = arith.constant 0.000000e+00 : f32
      %126 = vector.broadcast %cst_75 : f32 to vector<128x128xf32>
      %c0_76 = arith.constant 0 : index
      %c0_77 = arith.constant 0 : index
      %127 = vector.load %arg12[%c0_76, %c0_77] : memref<128x128xf32, #tpu.memory_space<vmem>>, vector<128x128xf32>
      tpu.vector_store %arg12[%c0_76, %c0_77], %126 {strides = array<i32>} : memref<128x128xf32, #tpu.memory_space<vmem>>, vector<128x128xf32>,
    } else {
    }
    %c0 = arith.constant 0 : index
    %c0_1 = arith.constant 0 : index
    %3 = vector.load %arg3[%c0, %c0_1] : memref<128x128xf32, #tpu.memory_space<vmem>>, vector<128x128xf32>
    %c0_2 = arith.constant 0 : index
    %c0_3 = arith.constant 0 : index
    %4 = vector.load %arg4[%c0_2, %c0_3] : memref<8x128xf32, #tpu.memory_space<vmem>>, vector<8x128xf32>
    %5 = vector.extract_strided_slice %3 {offsets = [0, 0], sizes = [128, 1], strides = [1, 1]} : vector<128x128xf32> to vector<128x1xf32>
    %6 = vector.extract_strided_slice %4 {offsets = [0, 0], sizes = [1, 128], strides = [1, 1]} : vector<8x128xf32> to vector<1x128xf32>
    %7 = vector.broadcast %5 : vector<128x1xf32> to vector<128x128xf32>
    %8 = vector.broadcast %6 : vector<1x128xf32> to vector<128x128xf32>
    %9 = arith.addf %7, %8 : vector<128x128xf32>
    %cst = arith.constant 2.000000e-01 : f32
    %10 = vector.broadcast %cst : f32 to vector<128x128xf32>
    %11 = arith.mulf %10, %9 : vector<128x128xf32>
    %12 = arith.maximumf %9, %11 : vector<128x128xf32>
    %c0_4 = arith.constant 0 : index
    %c0_5 = arith.constant 0 : index
    %c0_6 = arith.constant 0 : index
    %13 = vector.load %arg2[%c0_4, %c0_5, %c0_6] : memref<3x128x128xi8, #tpu.memory_space<vmem>>, vector<1x128x128xi8>
    %14 = vector.shape_cast %13 : vector<1x128x128xi8> to vector<128x128xi8>
    %c0_i8 = arith.constant 0 : i8
    %15 = vector.broadcast %c0_i8 : i8 to vector<128x128xi8>
    %16 = arith.cmpi ne, %14, %15 : vector<128x128xi8>
    %cst_7 = arith.constant -1.000000e+30 : f32
    %17 = vector.broadcast %cst_7 : f32 to vector<128x128xf32>
    %18 = arith.select %16, %12, %17 : vector<128x128xi1>, vector<128x128xf32>
    %c0_8 = arith.constant 0 : index
    %c0_9 = arith.constant 0 : index
    %19 = vector.load %arg10[%c0_8, %c0_9] : memref<128x1xf32, #tpu.memory_space<vmem>>, vector<128x1xf32>
    %cst_10 = arith.constant dense<0xFF800000> : vector<128xf32>
    %20 = vector.multi_reduction <maximumf>, %18, %cst_10 [1] : vector<128x128xf32> to vector<128xf32>
    %21 = vector.shape_cast %20 : vector<128xf32> to vector<128x1xf32>
    %22 = arith.maximumf %19, %21 : vector<128x1xf32>
    %23 = vector.broadcast %22 : vector<128x1xf32> to vector<128x128xf32>
    %24 = arith.subf %18, %23 : vector<128x128xf32>
    %25 = math.exp %24 : vector<128x128xf32>
    %26 = arith.subf %19, %22 : vector<128x1xf32>
    %27 = math.exp %26 : vector<128x1xf32>
    %c0_11 = arith.constant 0 : index
    %c0_12 = arith.constant 0 : index
    %28 = vector.load %arg11[%c0_11, %c0_12] : memref<128x1xf32, #tpu.memory_space<vmem>>, vector<128x1xf32>
    %29 = arith.mulf %27, %28 : vector<128x1xf32>
    %cst_13 = arith.constant dense<0.000000e+00> : vector<128xf32>
    %30 = vector.multi_reduction <add>, %25, %cst_13 [1] : vector<128x128xf32> to vector<128xf32>
    %31 = vector.shape_cast %30 : vector<128xf32> to vector<128x1xf32>
    %32 = arith.addf %29, %31 : vector<128x1xf32>
    %c0_14 = arith.constant 0 : index
    %c0_15 = arith.constant 0 : index
    %33 = vector.load %arg11[%c0_14, %c0_15] : memref<128x1xf32, #tpu.memory_space<vmem>>, vector<128x1xf32>
    tpu.vector_store %arg11[%c0_14, %c0_15], %32 {strides = array<i32>} : memref<128x1xf32, #tpu.memory_space<vmem>>, vector<128x1xf32>,
    %c0_16 = arith.constant 0 : index
    %c0_17 = arith.constant 0 : index
    %34 = vector.load %arg12[%c0_16, %c0_17] : memref<128x128xf32, #tpu.memory_space<vmem>>, vector<128x128xf32>
    %35 = vector.broadcast %27 : vector<128x1xf32> to vector<128x128xf32>
    %36 = arith.mulf %35, %34 : vector<128x128xf32>
    %37 = arith.truncf %25 : vector<128x128xf32> to vector<128x128xbf16>
    %c0_18 = arith.constant 0 : index
    %c0_19 = arith.constant 0 : index
    %38 = vector.load %arg5[%c0_18, %c0_19] : memref<128x384xbf16, #tpu.memory_space<vmem>>, vector<128x128xbf16>
    %cst_20 = arith.constant dense<0.000000e+00> : vector<128x128xf32>
    %39 = tpu.matmul %37, %38, %cst_20 {dimension_numbers = #tpu.dot_dimension_numbers<[1], [0], [0], [1], [0, 0, 1, 1], [], []>} : vector<128x128xbf16>, vector<128x128xbf16>, vector<128x128xf32> -> vector<128x128xf32>
    %40 = arith.addf %36, %39 : vector<128x128xf32>
    %c0_21 = arith.constant 0 : index
    %c0_22 = arith.constant 0 : index
    %41 = vector.load %arg12[%c0_21, %c0_22] : memref<128x128xf32, #tpu.memory_space<vmem>>, vector<128x128xf32>
    tpu.vector_store %arg12[%c0_21, %c0_22], %40 {strides = array<i32>} : memref<128x128xf32, #tpu.memory_space<vmem>>, vector<128x128xf32>,
    %c0_23 = arith.constant 0 : index
    %c0_24 = arith.constant 0 : index
    %42 = vector.load %arg10[%c0_23, %c0_24] : memref<128x1xf32, #tpu.memory_space<vmem>>, vector<128x1xf32>
    tpu.vector_store %arg10[%c0_23, %c0_24], %22 {strides = array<i32>} : memref<128x1xf32, #tpu.memory_space<vmem>>, vector<128x1xf32>,
    %43 = vector.extract_strided_slice %3 {offsets = [0, 1], sizes = [128, 1], strides = [1, 1]} : vector<128x128xf32> to vector<128x1xf32>
    %44 = vector.extract_strided_slice %4 {offsets = [1, 0], sizes = [1, 128], strides = [1, 1]} : vector<8x128xf32> to vector<1x128xf32>
    %45 = vector.broadcast %43 : vector<128x1xf32> to vector<128x128xf32>
    %46 = vector.broadcast %44 : vector<1x128xf32> to vector<128x128xf32>
    %47 = arith.addf %45, %46 : vector<128x128xf32>
    %cst_25 = arith.constant 2.000000e-01 : f32
    %48 = vector.broadcast %cst_25 : f32 to vector<128x128xf32>
    %49 = arith.mulf %48, %47 : vector<128x128xf32>
    %50 = arith.maximumf %47, %49 : vector<128x128xf32>
    %c1 = arith.constant 1 : index
    %c0_26 = arith.constant 0 : index
    %c0_27 = arith.constant 0 : index
    %51 = vector.load %arg2[%c1, %c0_26, %c0_27] : memref<3x128x128xi8, #tpu.memory_space<vmem>>, vector<1x128x128xi8>
    %52 = vector.shape_cast %51 : vector<1x128x128xi8> to vector<128x128xi8>
    %c0_i8_28 = arith.constant 0 : i8
    %53 = vector.broadcast %c0_i8_28 : i8 to vector<128x128xi8>
    %54 = arith.cmpi ne, %52, %53 : vector<128x128xi8>
    %cst_29 = arith.constant -1.000000e+30 : f32
    %55 = vector.broadcast %cst_29 : f32 to vector<128x128xf32>
    %56 = arith.select %54, %50, %55 : vector<128x128xi1>, vector<128x128xf32>
    %c0_30 = arith.constant 0 : index
    %c0_31 = arith.constant 0 : index
    %57 = vector.load %arg10[%c0_30, %c0_31] : memref<128x1xf32, #tpu.memory_space<vmem>>, vector<128x1xf32>
    %cst_32 = arith.constant dense<0xFF800000> : vector<128xf32>
    %58 = vector.multi_reduction <maximumf>, %56, %cst_32 [1] : vector<128x128xf32> to vector<128xf32>
    %59 = vector.shape_cast %58 : vector<128xf32> to vector<128x1xf32>
    %60 = arith.maximumf %57, %59 : vector<128x1xf32>
    %61 = vector.broadcast %60 : vector<128x1xf32> to vector<128x128xf32>
    %62 = arith.subf %56, %61 : vector<128x128xf32>
    %63 = math.exp %62 : vector<128x128xf32>
    %64 = arith.subf %57, %60 : vector<128x1xf32>
    %65 = math.exp %64 : vector<128x1xf32>
    %c0_33 = arith.constant 0 : index
    %c0_34 = arith.constant 0 : index
    %66 = vector.load %arg11[%c0_33, %c0_34] : memref<128x1xf32, #tpu.memory_space<vmem>>, vector<128x1xf32>
    %67 = arith.mulf %65, %66 : vector<128x1xf32>
    %cst_35 = arith.constant dense<0.000000e+00> : vector<128xf32>
    %68 = vector.multi_reduction <add>, %63, %cst_35 [1] : vector<128x128xf32> to vector<128xf32>
    %69 = vector.shape_cast %68 : vector<128xf32> to vector<128x1xf32>
    %70 = arith.addf %67, %69 : vector<128x1xf32>
    %c0_36 = arith.constant 0 : index
    %c0_37 = arith.constant 0 : index
    %71 = vector.load %arg11[%c0_36, %c0_37] : memref<128x1xf32, #tpu.memory_space<vmem>>, vector<128x1xf32>
    tpu.vector_store %arg11[%c0_36, %c0_37], %70 {strides = array<i32>} : memref<128x1xf32, #tpu.memory_space<vmem>>, vector<128x1xf32>,
    %c0_38 = arith.constant 0 : index
    %c0_39 = arith.constant 0 : index
    %72 = vector.load %arg12[%c0_38, %c0_39] : memref<128x128xf32, #tpu.memory_space<vmem>>, vector<128x128xf32>
    %73 = vector.broadcast %65 : vector<128x1xf32> to vector<128x128xf32>
    %74 = arith.mulf %73, %72 : vector<128x128xf32>
    %75 = arith.truncf %63 : vector<128x128xf32> to vector<128x128xbf16>
    %c0_40 = arith.constant 0 : index
    %c128 = arith.constant 128 : index
    %76 = vector.load %arg5[%c0_40, %c128] : memref<128x384xbf16, #tpu.memory_space<vmem>>, vector<128x128xbf16>
    %cst_41 = arith.constant dense<0.000000e+00> : vector<128x128xf32>
    %77 = tpu.matmul %75, %76, %cst_41 {dimension_numbers = #tpu.dot_dimension_numbers<[1], [0], [0], [1], [0, 0, 1, 1], [], []>} : vector<128x128xbf16>, vector<128x128xbf16>, vector<128x128xf32> -> vector<128x128xf32>
    %78 = arith.addf %74, %77 : vector<128x128xf32>
    %c0_42 = arith.constant 0 : index
    %c0_43 = arith.constant 0 : index
    %79 = vector.load %arg12[%c0_42, %c0_43] : memref<128x128xf32, #tpu.memory_space<vmem>>, vector<128x128xf32>
    tpu.vector_store %arg12[%c0_42, %c0_43], %78 {strides = array<i32>} : memref<128x128xf32, #tpu.memory_space<vmem>>, vector<128x128xf32>,
    %c0_44 = arith.constant 0 : index
    %c0_45 = arith.constant 0 : index
    %80 = vector.load %arg10[%c0_44, %c0_45] : memref<128x1xf32, #tpu.memory_space<vmem>>, vector<128x1xf32>
    tpu.vector_store %arg10[%c0_44, %c0_45], %60 {strides = array<i32>} : memref<128x1xf32, #tpu.memory_space<vmem>>, vector<128x1xf32>,
    %81 = vector.extract_strided_slice %3 {offsets = [0, 2], sizes = [128, 1], strides = [1, 1]} : vector<128x128xf32> to vector<128x1xf32>
    %82 = vector.extract_strided_slice %4 {offsets = [2, 0], sizes = [1, 128], strides = [1, 1]} : vector<8x128xf32> to vector<1x128xf32>
    %83 = vector.broadcast %81 : vector<128x1xf32> to vector<128x128xf32>
    %84 = vector.broadcast %82 : vector<1x128xf32> to vector<128x128xf32>
    %85 = arith.addf %83, %84 : vector<128x128xf32>
    %cst_46 = arith.constant 2.000000e-01 : f32
    %86 = vector.broadcast %cst_46 : f32 to vector<128x128xf32>
    %87 = arith.mulf %86, %85 : vector<128x128xf32>
    %88 = arith.maximumf %85, %87 : vector<128x128xf32>
    %c2 = arith.constant 2 : index
    %c0_47 = arith.constant 0 : index
    %c0_48 = arith.constant 0 : index
    %89 = vector.load %arg2[%c2, %c0_47, %c0_48] : memref<3x128x128xi8, #tpu.memory_space<vmem>>, vector<1x128x128xi8>
    %90 = vector.shape_cast %89 : vector<1x128x128xi8> to vector<128x128xi8>
    %c0_i8_49 = arith.constant 0 : i8
    %91 = vector.broadcast %c0_i8_49 : i8 to vector<128x128xi8>
    %92 = arith.cmpi ne, %90, %91 : vector<128x128xi8>
    %cst_50 = arith.constant -1.000000e+30 : f32
    %93 = vector.broadcast %cst_50 : f32 to vector<128x128xf32>
    %94 = arith.select %92, %88, %93 : vector<128x128xi1>, vector<128x128xf32>
    %c0_51 = arith.constant 0 : index
    %c0_52 = arith.constant 0 : index
    %95 = vector.load %arg10[%c0_51, %c0_52] : memref<128x1xf32, #tpu.memory_space<vmem>>, vector<128x1xf32>
    %cst_53 = arith.constant dense<0xFF800000> : vector<128xf32>
    %96 = vector.multi_reduction <maximumf>, %94, %cst_53 [1] : vector<128x128xf32> to vector<128xf32>
    %97 = vector.shape_cast %96 : vector<128xf32> to vector<128x1xf32>
    %98 = arith.maximumf %95, %97 : vector<128x1xf32>
    %99 = vector.broadcast %98 : vector<128x1xf32> to vector<128x128xf32>
    %100 = arith.subf %94, %99 : vector<128x128xf32>
    %101 = math.exp %100 : vector<128x128xf32>
    %102 = arith.subf %95, %98 : vector<128x1xf32>
    %103 = math.exp %102 : vector<128x1xf32>
    %c0_54 = arith.constant 0 : index
    %c0_55 = arith.constant 0 : index
    %104 = vector.load %arg11[%c0_54, %c0_55] : memref<128x1xf32, #tpu.memory_space<vmem>>, vector<128x1xf32>
    %105 = arith.mulf %103, %104 : vector<128x1xf32>
    %cst_56 = arith.constant dense<0.000000e+00> : vector<128xf32>
    %106 = vector.multi_reduction <add>, %101, %cst_56 [1] : vector<128x128xf32> to vector<128xf32>
    %107 = vector.shape_cast %106 : vector<128xf32> to vector<128x1xf32>
    %108 = arith.addf %105, %107 : vector<128x1xf32>
    %c0_57 = arith.constant 0 : index
    %c0_58 = arith.constant 0 : index
    %109 = vector.load %arg11[%c0_57, %c0_58] : memref<128x1xf32, #tpu.memory_space<vmem>>, vector<128x1xf32>
    tpu.vector_store %arg11[%c0_57, %c0_58], %108 {strides = array<i32>} : memref<128x1xf32, #tpu.memory_space<vmem>>, vector<128x1xf32>,
    %c0_59 = arith.constant 0 : index
    %c0_60 = arith.constant 0 : index
    %110 = vector.load %arg12[%c0_59, %c0_60] : memref<128x128xf32, #tpu.memory_space<vmem>>, vector<128x128xf32>
    %111 = vector.broadcast %103 : vector<128x1xf32> to vector<128x128xf32>
    %112 = arith.mulf %111, %110 : vector<128x128xf32>
    %113 = arith.truncf %101 : vector<128x128xf32> to vector<128x128xbf16>
    %c0_61 = arith.constant 0 : index
    %c256 = arith.constant 256 : index
    %114 = vector.load %arg5[%c0_61, %c256] : memref<128x384xbf16, #tpu.memory_space<vmem>>, vector<128x128xbf16>
    %cst_62 = arith.constant dense<0.000000e+00> : vector<128x128xf32>
    %115 = tpu.matmul %113, %114, %cst_62 {dimension_numbers = #tpu.dot_dimension_numbers<[1], [0], [0], [1], [0, 0, 1, 1], [], []>} : vector<128x128xbf16>, vector<128x128xbf16>, vector<128x128xf32> -> vector<128x128xf32>
    %116 = arith.addf %112, %115 : vector<128x128xf32>
    %c0_63 = arith.constant 0 : index
    %c0_64 = arith.constant 0 : index
    %117 = vector.load %arg12[%c0_63, %c0_64] : memref<128x128xf32, #tpu.memory_space<vmem>>, vector<128x128xf32>
    tpu.vector_store %arg12[%c0_63, %c0_64], %116 {strides = array<i32>} : memref<128x128xf32, #tpu.memory_space<vmem>>, vector<128x128xf32>,
    %c0_65 = arith.constant 0 : index
    %c0_66 = arith.constant 0 : index
    %118 = vector.load %arg10[%c0_65, %c0_66] : memref<128x1xf32, #tpu.memory_space<vmem>>, vector<128x1xf32>
    tpu.vector_store %arg10[%c0_65, %c0_66], %98 {strides = array<i32>} : memref<128x1xf32, #tpu.memory_space<vmem>>, vector<128x1xf32>,
    %c0_i32_67 = arith.constant 0 : i32
    %119 = arith.cmpi eq, %arg1, %c0_i32_67 : i32
    %120 = arith.extui %119 : i1 to i32
    %c0_i32_68 = arith.constant 0 : i32
    %121 = arith.cmpi ne, %120, %c0_i32_68 : i32
    scf.if %121 {
      %c0_69 = arith.constant 0 : index
      %c0_70 = arith.constant 0 : index
      %122 = vector.load %arg11[%c0_69, %c0_70] : memref<128x1xf32, #tpu.memory_space<vmem>>, vector<128x1xf32>
      %cst_71 = arith.constant 0.000000e+00 : f32
      %123 = vector.broadcast %cst_71 : f32 to vector<128x1xf32>
      %124 = arith.cmpf ogt, %122, %123 : vector<128x1xf32>
      %125 = tpu.reciprocal %122 {approx = true} : vector<128x1xf32> -> vector<128x1xf32>
      %cst_72 = arith.constant 0.000000e+00 : f32
      %126 = vector.broadcast %cst_72 : f32 to vector<128x1xf32>
      %127 = arith.select %124, %125, %126 : vector<128x1xi1>, vector<128x1xf32>
      %c0_73 = arith.constant 0 : index
      %c0_74 = arith.constant 0 : index
      %128 = vector.load %arg12[%c0_73, %c0_74] : memref<128x128xf32, #tpu.memory_space<vmem>>, vector<128x128xf32>
      %129 = vector.broadcast %127 : vector<128x1xf32> to vector<128x128xf32>
      %130 = arith.mulf %128, %129 : vector<128x128xf32>
      %c0_75 = arith.constant 0 : index
      %c0_76 = arith.constant 0 : index
      %131 = vector.load %arg6[%c0_75, %c0_76] : memref<1x128xf32, #tpu.memory_space<vmem>>, vector<1x128xf32>
      %132 = vector.broadcast %131 : vector<1x128xf32> to vector<128x128xf32>
      %133 = arith.addf %130, %132 : vector<128x128xf32>
      %cst_77 = arith.constant 0.000000e+00 : f32
      %134 = vector.broadcast %cst_77 : f32 to vector<128x128xf32>
      %135 = arith.maximumf %133, %134 : vector<128x128xf32>
      %136 = arith.truncf %135 : vector<128x128xf32> to vector<128x128xbf16>
      %c0_78 = arith.constant 0 : index
      %c0_79 = arith.constant 0 : index
      %137 = vector.load %arg7[%c0_78, %c0_79] : memref<128x512xbf16, #tpu.memory_space<vmem>>, vector<128x512xbf16>
      %cst_80 = arith.constant dense<0.000000e+00> : vector<128x512xf32>
      %138 = tpu.matmul %136, %137, %cst_80 {dimension_numbers = #tpu.dot_dimension_numbers<[1], [0], [0], [1], [0, 0, 1, 1], [], []>} : vector<128x128xbf16>, vector<128x512xbf16>, vector<128x512xf32> -> vector<128x512xf32>
      %139 = vector.extract_strided_slice %138 {offsets = [0, 0], sizes = [128, 384], strides = [1, 1]} : vector<128x512xf32> to vector<128x384xf32>
      %140 = arith.truncf %139 : vector<128x384xf32> to vector<128x384xbf16>
      %c0_81 = arith.constant 0 : index
      %c0_82 = arith.constant 0 : index
      %141 = vector.load %arg8[%c0_81, %c0_82] : memref<128x384xbf16, #tpu.memory_space<vmem>>, vector<128x384xbf16>
      tpu.vector_store %arg8[%c0_81, %c0_82], %140 {strides = array<i32>} : memref<128x384xbf16, #tpu.memory_space<vmem>>, vector<128x384xbf16>,
      %142 = vector.extract_strided_slice %138 {offsets = [0, 384], sizes = [128, 128], strides = [1, 1]} : vector<128x512xf32> to vector<128x128xf32>
      %c0_83 = arith.constant 0 : index
      %c0_84 = arith.constant 0 : index
      %143 = vector.load %arg9[%c0_83, %c0_84] : memref<128x128xf32, #tpu.memory_space<vmem>>, vector<128x128xf32>
      tpu.vector_store %arg9[%c0_83, %c0_84], %142 {strides = array<i32>} : memref<128x128xf32, #tpu.memory_space<vmem>>, vector<128x128xf32>,
    } else {
    }
    return
  }
  func.func @transform_0(%arg0: i32, %arg1: i32) -> (i32, i32, i32) {
    %c0_i32 = arith.constant 0 : i32
    %c0_i32_0 = arith.constant 0 : i32
    return %c0_i32, %arg0, %arg1 : i32, i32, i32
  }
  func.func @transform_1(%arg0: i32, %arg1: i32) -> (i32, i32) {
    %c0_i32 = arith.constant 0 : i32
    %c0_i32_0 = arith.constant 0 : i32
    return %arg0, %c0_i32 : i32, i32
  }
  func.func @transform_2(%arg0: i32, %arg1: i32) -> (i32, i32) {
    %c0_i32 = arith.constant 0 : i32
    %c0_i32_0 = arith.constant 0 : i32
    return %c0_i32, %arg1 : i32, i32
  }
  func.func @transform_3(%arg0: i32, %arg1: i32) -> (i32, i32) {
    %c0_i32 = arith.constant 0 : i32
    %c0_i32_0 = arith.constant 0 : i32
    return %arg1, %c0_i32 : i32, i32
  }
  func.func @transform_4(%arg0: i32, %arg1: i32) -> (i32, i32) {
    %c0_i32 = arith.constant 0 : i32
    %c0_i32_0 = arith.constant 0 : i32
    %c0_i32_1 = arith.constant 0 : i32
    return %c0_i32, %c0_i32_0 : i32, i32
  }
  func.func @transform_5(%arg0: i32, %arg1: i32) -> (i32, i32) {
    %c0_i32 = arith.constant 0 : i32
    %c0_i32_0 = arith.constant 0 : i32
    %c0_i32_1 = arith.constant 0 : i32
    return %c0_i32, %c0_i32_0 : i32, i32
  }
  func.func @transform_6(%arg0: i32, %arg1: i32) -> (i32, i32) {
    %c0_i32 = arith.constant 0 : i32
    %c0_i32_0 = arith.constant 0 : i32
    return %arg0, %c0_i32 : i32, i32
  }
  func.func @transform_7(%arg0: i32, %arg1: i32) -> (i32, i32) {
    %c0_i32 = arith.constant 0 : i32
    %c0_i32_0 = arith.constant 0 : i32
    return %arg0, %c0_i32 : i32, i32
  }
}

module attributes {stable_mosaic.version = 11 : i64} {
  func.func @rgat2_cls_kernel(%arg0: i32, %arg1: i32, %arg2: memref<3x128x128xi8, #tpu.memory_space<vmem>>, %arg3: memref<128x128xf32, #tpu.memory_space<vmem>>, %arg4: memref<8x128xf32, #tpu.memory_space<vmem>>, %arg5: memref<128x384xbf16, #tpu.memory_space<vmem>>, %arg6: memref<1x128xf32, #tpu.memory_space<vmem>>, %arg7: memref<128x128xf32, #tpu.memory_space<vmem>>, %arg8: memref<128x128xf32, #tpu.memory_space<vmem>>, %arg9: memref<128x128xf32, #tpu.memory_space<vmem>>, %arg10: memref<1x128xf32, #tpu.memory_space<vmem>>, %arg11: memref<128x128xf32, #tpu.memory_space<vmem>>, %arg12: memref<128x1xf32, #tpu.memory_space<vmem>>, %arg13: memref<128x1xf32, #tpu.memory_space<vmem>>, %arg14: memref<128x128xf32, #tpu.memory_space<vmem>>) attributes {dimension_semantics = [#tpu.dimension_semantics<parallel>, #tpu.dimension_semantics<arbitrary>], iteration_bounds = array<i64: 1, 1>, scalar_prefetch = 0 : i64, scratch_operands = 3 : i64, tpu.core_type = #tpu.core_type<tc>, window_params = [{transform_indices = @transform_0, window_bounds = array<i64: 3, 128, 128>}, {transform_indices = @transform_1, window_bounds = array<i64: 128, 128>}, {transform_indices = @transform_2, window_bounds = array<i64: 8, 128>}, {transform_indices = @transform_3, window_bounds = array<i64: 128, 384>}, {pipeline_mode = #tpu.pipeline_mode<synchronous>, transform_indices = @transform_4, window_bounds = array<i64: 1, 128>}, {transform_indices = @transform_5, window_bounds = array<i64: 128, 128>}, {pipeline_mode = #tpu.pipeline_mode<synchronous>, transform_indices = @transform_6, window_bounds = array<i64: 128, 128>}, {pipeline_mode = #tpu.pipeline_mode<synchronous>, transform_indices = @transform_7, window_bounds = array<i64: 128, 128>}, {pipeline_mode = #tpu.pipeline_mode<synchronous>, transform_indices = @transform_8, window_bounds = array<i64: 1, 128>}, {transform_indices = @transform_9, window_bounds = array<i64: 128, 128>}]} {
    %c0_i32 = arith.constant 0 : i32
    %0 = arith.cmpi eq, %arg1, %c0_i32 : i32
    %1 = arith.extui %0 : i1 to i32
    %c0_i32_0 = arith.constant 0 : i32
    %2 = arith.cmpi ne, %1, %c0_i32_0 : i32
    scf.if %2 {
      %cst_69 = arith.constant -1.000000e+04 : f32
      %122 = vector.broadcast %cst_69 : f32 to vector<128x1xf32>
      %c0_70 = arith.constant 0 : index
      %c0_71 = arith.constant 0 : index
      %123 = vector.load %arg12[%c0_70, %c0_71] : memref<128x1xf32, #tpu.memory_space<vmem>>, vector<128x1xf32>
      tpu.vector_store %arg12[%c0_70, %c0_71], %122 {strides = array<i32>} : memref<128x1xf32, #tpu.memory_space<vmem>>, vector<128x1xf32>,
      %cst_72 = arith.constant 0.000000e+00 : f32
      %124 = vector.broadcast %cst_72 : f32 to vector<128x1xf32>
      %c0_73 = arith.constant 0 : index
      %c0_74 = arith.constant 0 : index
      %125 = vector.load %arg13[%c0_73, %c0_74] : memref<128x1xf32, #tpu.memory_space<vmem>>, vector<128x1xf32>
      tpu.vector_store %arg13[%c0_73, %c0_74], %124 {strides = array<i32>} : memref<128x1xf32, #tpu.memory_space<vmem>>, vector<128x1xf32>,
      %cst_75 = arith.constant 0.000000e+00 : f32
      %126 = vector.broadcast %cst_75 : f32 to vector<128x128xf32>
      %c0_76 = arith.constant 0 : index
      %c0_77 = arith.constant 0 : index
      %127 = vector.load %arg14[%c0_76, %c0_77] : memref<128x128xf32, #tpu.memory_space<vmem>>, vector<128x128xf32>
      tpu.vector_store %arg14[%c0_76, %c0_77], %126 {strides = array<i32>} : memref<128x128xf32, #tpu.memory_space<vmem>>, vector<128x128xf32>,
    } else {
    }
    %c0 = arith.constant 0 : index
    %c0_1 = arith.constant 0 : index
    %3 = vector.load %arg3[%c0, %c0_1] : memref<128x128xf32, #tpu.memory_space<vmem>>, vector<128x128xf32>
    %c0_2 = arith.constant 0 : index
    %c0_3 = arith.constant 0 : index
    %4 = vector.load %arg4[%c0_2, %c0_3] : memref<8x128xf32, #tpu.memory_space<vmem>>, vector<8x128xf32>
    %5 = vector.extract_strided_slice %3 {offsets = [0, 0], sizes = [128, 1], strides = [1, 1]} : vector<128x128xf32> to vector<128x1xf32>
    %6 = vector.extract_strided_slice %4 {offsets = [0, 0], sizes = [1, 128], strides = [1, 1]} : vector<8x128xf32> to vector<1x128xf32>
    %7 = vector.broadcast %5 : vector<128x1xf32> to vector<128x128xf32>
    %8 = vector.broadcast %6 : vector<1x128xf32> to vector<128x128xf32>
    %9 = arith.addf %7, %8 : vector<128x128xf32>
    %cst = arith.constant 2.000000e-01 : f32
    %10 = vector.broadcast %cst : f32 to vector<128x128xf32>
    %11 = arith.mulf %10, %9 : vector<128x128xf32>
    %12 = arith.maximumf %9, %11 : vector<128x128xf32>
    %c0_4 = arith.constant 0 : index
    %c0_5 = arith.constant 0 : index
    %c0_6 = arith.constant 0 : index
    %13 = vector.load %arg2[%c0_4, %c0_5, %c0_6] : memref<3x128x128xi8, #tpu.memory_space<vmem>>, vector<1x128x128xi8>
    %14 = vector.shape_cast %13 : vector<1x128x128xi8> to vector<128x128xi8>
    %c0_i8 = arith.constant 0 : i8
    %15 = vector.broadcast %c0_i8 : i8 to vector<128x128xi8>
    %16 = arith.cmpi ne, %14, %15 : vector<128x128xi8>
    %cst_7 = arith.constant -1.000000e+30 : f32
    %17 = vector.broadcast %cst_7 : f32 to vector<128x128xf32>
    %18 = arith.select %16, %12, %17 : vector<128x128xi1>, vector<128x128xf32>
    %c0_8 = arith.constant 0 : index
    %c0_9 = arith.constant 0 : index
    %19 = vector.load %arg12[%c0_8, %c0_9] : memref<128x1xf32, #tpu.memory_space<vmem>>, vector<128x1xf32>
    %cst_10 = arith.constant dense<0xFF800000> : vector<128xf32>
    %20 = vector.multi_reduction <maximumf>, %18, %cst_10 [1] : vector<128x128xf32> to vector<128xf32>
    %21 = vector.shape_cast %20 : vector<128xf32> to vector<128x1xf32>
    %22 = arith.maximumf %19, %21 : vector<128x1xf32>
    %23 = vector.broadcast %22 : vector<128x1xf32> to vector<128x128xf32>
    %24 = arith.subf %18, %23 : vector<128x128xf32>
    %25 = math.exp %24 : vector<128x128xf32>
    %26 = arith.subf %19, %22 : vector<128x1xf32>
    %27 = math.exp %26 : vector<128x1xf32>
    %c0_11 = arith.constant 0 : index
    %c0_12 = arith.constant 0 : index
    %28 = vector.load %arg13[%c0_11, %c0_12] : memref<128x1xf32, #tpu.memory_space<vmem>>, vector<128x1xf32>
    %29 = arith.mulf %27, %28 : vector<128x1xf32>
    %cst_13 = arith.constant dense<0.000000e+00> : vector<128xf32>
    %30 = vector.multi_reduction <add>, %25, %cst_13 [1] : vector<128x128xf32> to vector<128xf32>
    %31 = vector.shape_cast %30 : vector<128xf32> to vector<128x1xf32>
    %32 = arith.addf %29, %31 : vector<128x1xf32>
    %c0_14 = arith.constant 0 : index
    %c0_15 = arith.constant 0 : index
    %33 = vector.load %arg13[%c0_14, %c0_15] : memref<128x1xf32, #tpu.memory_space<vmem>>, vector<128x1xf32>
    tpu.vector_store %arg13[%c0_14, %c0_15], %32 {strides = array<i32>} : memref<128x1xf32, #tpu.memory_space<vmem>>, vector<128x1xf32>,
    %c0_16 = arith.constant 0 : index
    %c0_17 = arith.constant 0 : index
    %34 = vector.load %arg14[%c0_16, %c0_17] : memref<128x128xf32, #tpu.memory_space<vmem>>, vector<128x128xf32>
    %35 = vector.broadcast %27 : vector<128x1xf32> to vector<128x128xf32>
    %36 = arith.mulf %35, %34 : vector<128x128xf32>
    %37 = arith.truncf %25 : vector<128x128xf32> to vector<128x128xbf16>
    %c0_18 = arith.constant 0 : index
    %c0_19 = arith.constant 0 : index
    %38 = vector.load %arg5[%c0_18, %c0_19] : memref<128x384xbf16, #tpu.memory_space<vmem>>, vector<128x128xbf16>
    %cst_20 = arith.constant dense<0.000000e+00> : vector<128x128xf32>
    %39 = tpu.matmul %37, %38, %cst_20 {dimension_numbers = #tpu.dot_dimension_numbers<[1], [0], [0], [1], [0, 0, 1, 1], [], []>} : vector<128x128xbf16>, vector<128x128xbf16>, vector<128x128xf32> -> vector<128x128xf32>
    %40 = arith.addf %36, %39 : vector<128x128xf32>
    %c0_21 = arith.constant 0 : index
    %c0_22 = arith.constant 0 : index
    %41 = vector.load %arg14[%c0_21, %c0_22] : memref<128x128xf32, #tpu.memory_space<vmem>>, vector<128x128xf32>
    tpu.vector_store %arg14[%c0_21, %c0_22], %40 {strides = array<i32>} : memref<128x128xf32, #tpu.memory_space<vmem>>, vector<128x128xf32>,
    %c0_23 = arith.constant 0 : index
    %c0_24 = arith.constant 0 : index
    %42 = vector.load %arg12[%c0_23, %c0_24] : memref<128x1xf32, #tpu.memory_space<vmem>>, vector<128x1xf32>
    tpu.vector_store %arg12[%c0_23, %c0_24], %22 {strides = array<i32>} : memref<128x1xf32, #tpu.memory_space<vmem>>, vector<128x1xf32>,
    %43 = vector.extract_strided_slice %3 {offsets = [0, 1], sizes = [128, 1], strides = [1, 1]} : vector<128x128xf32> to vector<128x1xf32>
    %44 = vector.extract_strided_slice %4 {offsets = [1, 0], sizes = [1, 128], strides = [1, 1]} : vector<8x128xf32> to vector<1x128xf32>
    %45 = vector.broadcast %43 : vector<128x1xf32> to vector<128x128xf32>
    %46 = vector.broadcast %44 : vector<1x128xf32> to vector<128x128xf32>
    %47 = arith.addf %45, %46 : vector<128x128xf32>
    %cst_25 = arith.constant 2.000000e-01 : f32
    %48 = vector.broadcast %cst_25 : f32 to vector<128x128xf32>
    %49 = arith.mulf %48, %47 : vector<128x128xf32>
    %50 = arith.maximumf %47, %49 : vector<128x128xf32>
    %c1 = arith.constant 1 : index
    %c0_26 = arith.constant 0 : index
    %c0_27 = arith.constant 0 : index
    %51 = vector.load %arg2[%c1, %c0_26, %c0_27] : memref<3x128x128xi8, #tpu.memory_space<vmem>>, vector<1x128x128xi8>
    %52 = vector.shape_cast %51 : vector<1x128x128xi8> to vector<128x128xi8>
    %c0_i8_28 = arith.constant 0 : i8
    %53 = vector.broadcast %c0_i8_28 : i8 to vector<128x128xi8>
    %54 = arith.cmpi ne, %52, %53 : vector<128x128xi8>
    %cst_29 = arith.constant -1.000000e+30 : f32
    %55 = vector.broadcast %cst_29 : f32 to vector<128x128xf32>
    %56 = arith.select %54, %50, %55 : vector<128x128xi1>, vector<128x128xf32>
    %c0_30 = arith.constant 0 : index
    %c0_31 = arith.constant 0 : index
    %57 = vector.load %arg12[%c0_30, %c0_31] : memref<128x1xf32, #tpu.memory_space<vmem>>, vector<128x1xf32>
    %cst_32 = arith.constant dense<0xFF800000> : vector<128xf32>
    %58 = vector.multi_reduction <maximumf>, %56, %cst_32 [1] : vector<128x128xf32> to vector<128xf32>
    %59 = vector.shape_cast %58 : vector<128xf32> to vector<128x1xf32>
    %60 = arith.maximumf %57, %59 : vector<128x1xf32>
    %61 = vector.broadcast %60 : vector<128x1xf32> to vector<128x128xf32>
    %62 = arith.subf %56, %61 : vector<128x128xf32>
    %63 = math.exp %62 : vector<128x128xf32>
    %64 = arith.subf %57, %60 : vector<128x1xf32>
    %65 = math.exp %64 : vector<128x1xf32>
    %c0_33 = arith.constant 0 : index
    %c0_34 = arith.constant 0 : index
    %66 = vector.load %arg13[%c0_33, %c0_34] : memref<128x1xf32, #tpu.memory_space<vmem>>, vector<128x1xf32>
    %67 = arith.mulf %65, %66 : vector<128x1xf32>
    %cst_35 = arith.constant dense<0.000000e+00> : vector<128xf32>
    %68 = vector.multi_reduction <add>, %63, %cst_35 [1] : vector<128x128xf32> to vector<128xf32>
    %69 = vector.shape_cast %68 : vector<128xf32> to vector<128x1xf32>
    %70 = arith.addf %67, %69 : vector<128x1xf32>
    %c0_36 = arith.constant 0 : index
    %c0_37 = arith.constant 0 : index
    %71 = vector.load %arg13[%c0_36, %c0_37] : memref<128x1xf32, #tpu.memory_space<vmem>>, vector<128x1xf32>
    tpu.vector_store %arg13[%c0_36, %c0_37], %70 {strides = array<i32>} : memref<128x1xf32, #tpu.memory_space<vmem>>, vector<128x1xf32>,
    %c0_38 = arith.constant 0 : index
    %c0_39 = arith.constant 0 : index
    %72 = vector.load %arg14[%c0_38, %c0_39] : memref<128x128xf32, #tpu.memory_space<vmem>>, vector<128x128xf32>
    %73 = vector.broadcast %65 : vector<128x1xf32> to vector<128x128xf32>
    %74 = arith.mulf %73, %72 : vector<128x128xf32>
    %75 = arith.truncf %63 : vector<128x128xf32> to vector<128x128xbf16>
    %c0_40 = arith.constant 0 : index
    %c128 = arith.constant 128 : index
    %76 = vector.load %arg5[%c0_40, %c128] : memref<128x384xbf16, #tpu.memory_space<vmem>>, vector<128x128xbf16>
    %cst_41 = arith.constant dense<0.000000e+00> : vector<128x128xf32>
    %77 = tpu.matmul %75, %76, %cst_41 {dimension_numbers = #tpu.dot_dimension_numbers<[1], [0], [0], [1], [0, 0, 1, 1], [], []>} : vector<128x128xbf16>, vector<128x128xbf16>, vector<128x128xf32> -> vector<128x128xf32>
    %78 = arith.addf %74, %77 : vector<128x128xf32>
    %c0_42 = arith.constant 0 : index
    %c0_43 = arith.constant 0 : index
    %79 = vector.load %arg14[%c0_42, %c0_43] : memref<128x128xf32, #tpu.memory_space<vmem>>, vector<128x128xf32>
    tpu.vector_store %arg14[%c0_42, %c0_43], %78 {strides = array<i32>} : memref<128x128xf32, #tpu.memory_space<vmem>>, vector<128x128xf32>,
    %c0_44 = arith.constant 0 : index
    %c0_45 = arith.constant 0 : index
    %80 = vector.load %arg12[%c0_44, %c0_45] : memref<128x1xf32, #tpu.memory_space<vmem>>, vector<128x1xf32>
    tpu.vector_store %arg12[%c0_44, %c0_45], %60 {strides = array<i32>} : memref<128x1xf32, #tpu.memory_space<vmem>>, vector<128x1xf32>,
    %81 = vector.extract_strided_slice %3 {offsets = [0, 2], sizes = [128, 1], strides = [1, 1]} : vector<128x128xf32> to vector<128x1xf32>
    %82 = vector.extract_strided_slice %4 {offsets = [2, 0], sizes = [1, 128], strides = [1, 1]} : vector<8x128xf32> to vector<1x128xf32>
    %83 = vector.broadcast %81 : vector<128x1xf32> to vector<128x128xf32>
    %84 = vector.broadcast %82 : vector<1x128xf32> to vector<128x128xf32>
    %85 = arith.addf %83, %84 : vector<128x128xf32>
    %cst_46 = arith.constant 2.000000e-01 : f32
    %86 = vector.broadcast %cst_46 : f32 to vector<128x128xf32>
    %87 = arith.mulf %86, %85 : vector<128x128xf32>
    %88 = arith.maximumf %85, %87 : vector<128x128xf32>
    %c2 = arith.constant 2 : index
    %c0_47 = arith.constant 0 : index
    %c0_48 = arith.constant 0 : index
    %89 = vector.load %arg2[%c2, %c0_47, %c0_48] : memref<3x128x128xi8, #tpu.memory_space<vmem>>, vector<1x128x128xi8>
    %90 = vector.shape_cast %89 : vector<1x128x128xi8> to vector<128x128xi8>
    %c0_i8_49 = arith.constant 0 : i8
    %91 = vector.broadcast %c0_i8_49 : i8 to vector<128x128xi8>
    %92 = arith.cmpi ne, %90, %91 : vector<128x128xi8>
    %cst_50 = arith.constant -1.000000e+30 : f32
    %93 = vector.broadcast %cst_50 : f32 to vector<128x128xf32>
    %94 = arith.select %92, %88, %93 : vector<128x128xi1>, vector<128x128xf32>
    %c0_51 = arith.constant 0 : index
    %c0_52 = arith.constant 0 : index
    %95 = vector.load %arg12[%c0_51, %c0_52] : memref<128x1xf32, #tpu.memory_space<vmem>>, vector<128x1xf32>
    %cst_53 = arith.constant dense<0xFF800000> : vector<128xf32>
    %96 = vector.multi_reduction <maximumf>, %94, %cst_53 [1] : vector<128x128xf32> to vector<128xf32>
    %97 = vector.shape_cast %96 : vector<128xf32> to vector<128x1xf32>
    %98 = arith.maximumf %95, %97 : vector<128x1xf32>
    %99 = vector.broadcast %98 : vector<128x1xf32> to vector<128x128xf32>
    %100 = arith.subf %94, %99 : vector<128x128xf32>
    %101 = math.exp %100 : vector<128x128xf32>
    %102 = arith.subf %95, %98 : vector<128x1xf32>
    %103 = math.exp %102 : vector<128x1xf32>
    %c0_54 = arith.constant 0 : index
    %c0_55 = arith.constant 0 : index
    %104 = vector.load %arg13[%c0_54, %c0_55] : memref<128x1xf32, #tpu.memory_space<vmem>>, vector<128x1xf32>
    %105 = arith.mulf %103, %104 : vector<128x1xf32>
    %cst_56 = arith.constant dense<0.000000e+00> : vector<128xf32>
    %106 = vector.multi_reduction <add>, %101, %cst_56 [1] : vector<128x128xf32> to vector<128xf32>
    %107 = vector.shape_cast %106 : vector<128xf32> to vector<128x1xf32>
    %108 = arith.addf %105, %107 : vector<128x1xf32>
    %c0_57 = arith.constant 0 : index
    %c0_58 = arith.constant 0 : index
    %109 = vector.load %arg13[%c0_57, %c0_58] : memref<128x1xf32, #tpu.memory_space<vmem>>, vector<128x1xf32>
    tpu.vector_store %arg13[%c0_57, %c0_58], %108 {strides = array<i32>} : memref<128x1xf32, #tpu.memory_space<vmem>>, vector<128x1xf32>,
    %c0_59 = arith.constant 0 : index
    %c0_60 = arith.constant 0 : index
    %110 = vector.load %arg14[%c0_59, %c0_60] : memref<128x128xf32, #tpu.memory_space<vmem>>, vector<128x128xf32>
    %111 = vector.broadcast %103 : vector<128x1xf32> to vector<128x128xf32>
    %112 = arith.mulf %111, %110 : vector<128x128xf32>
    %113 = arith.truncf %101 : vector<128x128xf32> to vector<128x128xbf16>
    %c0_61 = arith.constant 0 : index
    %c256 = arith.constant 256 : index
    %114 = vector.load %arg5[%c0_61, %c256] : memref<128x384xbf16, #tpu.memory_space<vmem>>, vector<128x128xbf16>
    %cst_62 = arith.constant dense<0.000000e+00> : vector<128x128xf32>
    %115 = tpu.matmul %113, %114, %cst_62 {dimension_numbers = #tpu.dot_dimension_numbers<[1], [0], [0], [1], [0, 0, 1, 1], [], []>} : vector<128x128xbf16>, vector<128x128xbf16>, vector<128x128xf32> -> vector<128x128xf32>
    %116 = arith.addf %112, %115 : vector<128x128xf32>
    %c0_63 = arith.constant 0 : index
    %c0_64 = arith.constant 0 : index
    %117 = vector.load %arg14[%c0_63, %c0_64] : memref<128x128xf32, #tpu.memory_space<vmem>>, vector<128x128xf32>
    tpu.vector_store %arg14[%c0_63, %c0_64], %116 {strides = array<i32>} : memref<128x128xf32, #tpu.memory_space<vmem>>, vector<128x128xf32>,
    %c0_65 = arith.constant 0 : index
    %c0_66 = arith.constant 0 : index
    %118 = vector.load %arg12[%c0_65, %c0_66] : memref<128x1xf32, #tpu.memory_space<vmem>>, vector<128x1xf32>
    tpu.vector_store %arg12[%c0_65, %c0_66], %98 {strides = array<i32>} : memref<128x1xf32, #tpu.memory_space<vmem>>, vector<128x1xf32>,
    %c0_i32_67 = arith.constant 0 : i32
    %119 = arith.cmpi eq, %arg1, %c0_i32_67 : i32
    %120 = arith.extui %119 : i1 to i32
    %c0_i32_68 = arith.constant 0 : i32
    %121 = arith.cmpi ne, %120, %c0_i32_68 : i32
    scf.if %121 {
      %c0_69 = arith.constant 0 : index
      %c0_70 = arith.constant 0 : index
      %122 = vector.load %arg13[%c0_69, %c0_70] : memref<128x1xf32, #tpu.memory_space<vmem>>, vector<128x1xf32>
      %cst_71 = arith.constant 0.000000e+00 : f32
      %123 = vector.broadcast %cst_71 : f32 to vector<128x1xf32>
      %124 = arith.cmpf ogt, %122, %123 : vector<128x1xf32>
      %125 = tpu.reciprocal %122 {approx = true} : vector<128x1xf32> -> vector<128x1xf32>
      %cst_72 = arith.constant 0.000000e+00 : f32
      %126 = vector.broadcast %cst_72 : f32 to vector<128x1xf32>
      %127 = arith.select %124, %125, %126 : vector<128x1xi1>, vector<128x1xf32>
      %c0_73 = arith.constant 0 : index
      %c0_74 = arith.constant 0 : index
      %128 = vector.load %arg14[%c0_73, %c0_74] : memref<128x128xf32, #tpu.memory_space<vmem>>, vector<128x128xf32>
      %129 = vector.broadcast %127 : vector<128x1xf32> to vector<128x128xf32>
      %130 = arith.mulf %128, %129 : vector<128x128xf32>
      %c0_75 = arith.constant 0 : index
      %c0_76 = arith.constant 0 : index
      %131 = vector.load %arg6[%c0_75, %c0_76] : memref<1x128xf32, #tpu.memory_space<vmem>>, vector<1x128xf32>
      %132 = vector.broadcast %131 : vector<1x128xf32> to vector<128x128xf32>
      %133 = arith.addf %130, %132 : vector<128x128xf32>
      %cst_77 = arith.constant 0.000000e+00 : f32
      %134 = vector.broadcast %cst_77 : f32 to vector<128x128xf32>
      %135 = arith.maximumf %133, %134 : vector<128x128xf32>
      %c0_78 = arith.constant 0 : index
      %c0_79 = arith.constant 0 : index
      %136 = vector.load %arg7[%c0_78, %c0_79] : memref<128x128xf32, #tpu.memory_space<vmem>>, vector<128x128xf32>
      %c0_80 = arith.constant 0 : index
      %c0_81 = arith.constant 0 : index
      %137 = vector.load %arg8[%c0_80, %c0_81] : memref<128x128xf32, #tpu.memory_space<vmem>>, vector<128x128xf32>
      %cst_82 = arith.constant dense<0.000000e+00> : vector<128x128xf32>
      %138 = tpu.matmul %136, %137, %cst_82 {dimension_numbers = #tpu.dot_dimension_numbers<[1], [0], [0], [1], [0, 0, 1, 1], [], []>} : vector<128x128xf32>, vector<128x128xf32>, vector<128x128xf32> -> vector<128x128xf32>
      %c0_83 = arith.constant 0 : index
      %c0_84 = arith.constant 0 : index
      %139 = vector.load %arg9[%c0_83, %c0_84] : memref<128x128xf32, #tpu.memory_space<vmem>>, vector<128x128xf32>
      %cst_85 = arith.constant dense<0.000000e+00> : vector<128x128xf32>
      %140 = tpu.matmul %135, %139, %cst_85 {dimension_numbers = #tpu.dot_dimension_numbers<[1], [0], [0], [1], [0, 0, 1, 1], [], []>} : vector<128x128xf32>, vector<128x128xf32>, vector<128x128xf32> -> vector<128x128xf32>
      %141 = arith.addf %138, %140 : vector<128x128xf32>
      %c0_86 = arith.constant 0 : index
      %c0_87 = arith.constant 0 : index
      %142 = vector.load %arg10[%c0_86, %c0_87] : memref<1x128xf32, #tpu.memory_space<vmem>>, vector<1x128xf32>
      %143 = vector.broadcast %142 : vector<1x128xf32> to vector<128x128xf32>
      %144 = arith.addf %141, %143 : vector<128x128xf32>
      %c0_88 = arith.constant 0 : index
      %c0_89 = arith.constant 0 : index
      %145 = vector.load %arg11[%c0_88, %c0_89] : memref<128x128xf32, #tpu.memory_space<vmem>>, vector<128x128xf32>
      tpu.vector_store %arg11[%c0_88, %c0_89], %144 {strides = array<i32>} : memref<128x128xf32, #tpu.memory_space<vmem>>, vector<128x128xf32>,
    } else {
    }
    return
  }
  func.func @transform_0(%arg0: i32, %arg1: i32) -> (i32, i32, i32) {
    %c0_i32 = arith.constant 0 : i32
    %c0_i32_0 = arith.constant 0 : i32
    return %c0_i32, %arg0, %arg1 : i32, i32, i32
  }
  func.func @transform_1(%arg0: i32, %arg1: i32) -> (i32, i32) {
    %c0_i32 = arith.constant 0 : i32
    %c0_i32_0 = arith.constant 0 : i32
    return %arg0, %c0_i32 : i32, i32
  }
  func.func @transform_2(%arg0: i32, %arg1: i32) -> (i32, i32) {
    %c0_i32 = arith.constant 0 : i32
    %c0_i32_0 = arith.constant 0 : i32
    return %c0_i32, %arg1 : i32, i32
  }
  func.func @transform_3(%arg0: i32, %arg1: i32) -> (i32, i32) {
    %c0_i32 = arith.constant 0 : i32
    %c0_i32_0 = arith.constant 0 : i32
    return %arg1, %c0_i32 : i32, i32
  }
  func.func @transform_4(%arg0: i32, %arg1: i32) -> (i32, i32) {
    %c0_i32 = arith.constant 0 : i32
    %c0_i32_0 = arith.constant 0 : i32
    %c0_i32_1 = arith.constant 0 : i32
    return %c0_i32, %c0_i32_0 : i32, i32
  }
  func.func @transform_5(%arg0: i32, %arg1: i32) -> (i32, i32) {
    %c0_i32 = arith.constant 0 : i32
    %c0_i32_0 = arith.constant 0 : i32
    return %arg0, %c0_i32 : i32, i32
  }
  func.func @transform_6(%arg0: i32, %arg1: i32) -> (i32, i32) {
    %c0_i32 = arith.constant 0 : i32
    %c0_i32_0 = arith.constant 0 : i32
    %c0_i32_1 = arith.constant 0 : i32
    return %c0_i32, %c0_i32_0 : i32, i32
  }
  func.func @transform_7(%arg0: i32, %arg1: i32) -> (i32, i32) {
    %c0_i32 = arith.constant 0 : i32
    %c0_i32_0 = arith.constant 0 : i32
    %c0_i32_1 = arith.constant 0 : i32
    return %c0_i32, %c0_i32_0 : i32, i32
  }
  func.func @transform_8(%arg0: i32, %arg1: i32) -> (i32, i32) {
    %c0_i32 = arith.constant 0 : i32
    %c0_i32_0 = arith.constant 0 : i32
    %c0_i32_1 = arith.constant 0 : i32
    return %c0_i32, %c0_i32_0 : i32, i32
  }
  func.func @transform_9(%arg0: i32, %arg1: i32) -> (i32, i32) {
    %c0_i32 = arith.constant 0 : i32
    %c0_i32_0 = arith.constant 0 : i32
    return %arg0, %c0_i32 : i32, i32
  }
}

</mosaic_0001>

<llo_original>
// kernel: lm_concat_rgat_forward.3
$region0: #{lm_concat_rgat_forward.3}
  #allocation0 [shape = 'u32[]', space=smem, size = 0x4, offset = 0x4, fixed_abs, tag = 'smem constant byte address 0x4 - core index']
  #allocation1 [shape = 'u32[144,128]{1,0:T(1,128)}', space=vmem, size = 0x12000, scoped, tag = 'internal scratch']
  %s0 = inlined_call_operand.vmem [shape: bf16[128,1024], index: 0, kind: input, shape index: {}]
  %s1 = inlined_call_operand.vmem [shape: bf16[1024,128], index: 1, kind: input, shape index: {}]
  %s2 = inlined_call_operand.vmem [shape: f32[1,128], index: 2, kind: input, shape index: {}]
  %s3 = inlined_call_operand.vmem [shape: f32[1,128], index: 3, kind: input, shape index: {}]
  %s4 = inlined_call_operand.vmem [shape: f32[1,128], index: 4, kind: input, shape index: {}]
  %s5 = inlined_call_operand.vmem [shape: bf16[128,512], index: 5, kind: input, shape index: {}]
  %s6 = inlined_call_operand.vmem [shape: f32[128,128], index: 6, kind: output, shape index: {0}]
  %s7 = inlined_call_operand.vmem [shape: bf16[128,384], index: 7, kind: output, shape index: {1}]
  %s8 = inlined_call_operand.vmem [shape: f32[128,128], index: 8, kind: output, shape index: {2}]
  %9 = xla_tuple %s6, %s7, %s8
  %s10 = sld [smem:[#allocation0]]
  $region50: #{lm_concat_rgat_forward.3} parent=0
    _
  %s12 = ssub.s32 1, %s10
  %s13 = scalar_select 0, %s12, %s10
  // Predicated region
  $region2: #{lm_concat_rgat_forward.3} parent=0 // pred_check
    _
  $region3: #{lm_concat_rgat_forward.3} parent=0 // pred_check_branch
    %15 = sbr.rel (0) target = $region5
  $region4: #{lm_concat_rgat_forward.3} parent=0 // pred_region
    _
  $region5: #{lm_concat_rgat_forward.3} parent=0 // pred_fallthru
    _
  // Predicated region
  $region6: #{lm_concat_rgat_forward.3} parent=0 // pred_check
    _
  $region7: #{lm_concat_rgat_forward.3} parent=0 // pred_check_branch
    %17 = sbr.rel (0) target = $region9
  $region8: #{lm_concat_rgat_forward.3} parent=0 // pred_region
    _
  $region9: #{lm_concat_rgat_forward.3} parent=0 // pred_fallthru
    _
  // Predicated region
  $region10: #{lm_concat_rgat_forward.3} parent=0 // pred_check
    _
  $region11: #{lm_concat_rgat_forward.3} parent=0 // pred_check_branch
    %19 = sbr.rel (0) target = $region13
  $region12: #{lm_concat_rgat_forward.3} parent=0 // pred_region
    _
  $region13: #{lm_concat_rgat_forward.3} parent=0 // pred_fallthru
    _
  // Predicated region
  $region14: #{lm_concat_rgat_forward.3} parent=0 // pred_check
    _
  $region15: #{lm_concat_rgat_forward.3} parent=0 // pred_check_branch
    %21 = sbr.rel (0) target = $region17
  $region16: #{lm_concat_rgat_forward.3} parent=0 // pred_region
    _
  $region17: #{lm_concat_rgat_forward.3} parent=0 // pred_fallthru
    _
  // Predicated region
  $region18: #{lm_concat_rgat_forward.3} parent=0 // pred_check
    _
  $region19: #{lm_concat_rgat_forward.3} parent=0 // pred_check_branch
    %23 = sbr.rel (0) target = $region21
  $region20: #{lm_concat_rgat_forward.3} parent=0 // pred_region
    _
  $region21: #{lm_concat_rgat_forward.3} parent=0 // pred_fallthru
    _
  // Predicated region
  $region22: #{lm_concat_rgat_forward.3} parent=0 // pred_check
    _
  $region23: #{lm_concat_rgat_forward.3} parent=0 // pred_check_branch
    %25 = sbr.rel (0) target = $region25
  $region24: #{lm_concat_rgat_forward.3} parent=0 // pred_region
    _
  $region25: #{lm_concat_rgat_forward.3} parent=0 // pred_fallthru
    _
  %v27 = vld [vmem:[%s0] sm:$0xff]
  %v28 = vld [vmem:[%s0 + $0x8] sm:$0xff]
  %v29 = vld [vmem:[%s0 + $0x10] sm:$0xff]
  %v30 = vld [vmem:[%s0 + $0x18] sm:$0xff]
  %v31 = vld [vmem:[%s0 + $0x20] sm:$0xff]
  %v32 = vld [vmem:[%s0 + $0x28] sm:$0xff]
  %v33 = vld [vmem:[%s0 + $0x30] sm:$0xff]
  %v34 = vld [vmem:[%s0 + $0x38] sm:$0xff]
  %v35 = vld [vmem:[%s0 + $0x40] sm:$0xff]
  %v36 = vld [vmem:[%s0 + $0x48] sm:$0xff]
  %v37 = vld [vmem:[%s0 + $0x50] sm:$0xff]
  %v38 = vld [vmem:[%s0 + $0x58] sm:$0xff]
  %v39 = vld [vmem:[%s0 + $0x60] sm:$0xff]
  %v40 = vld [vmem:[%s0 + $0x68] sm:$0xff]
  %v41 = vld [vmem:[%s0 + $0x70] sm:$0xff]
  %v42 = vld [vmem:[%s0 + $0x78] sm:$0xff]
  %v43 = vld [vmem:[%s0 + $0x80] sm:$0xff]
  %v44 = vld [vmem:[%s0 + $0x88] sm:$0xff]
  %v45 = vld [vmem:[%s0 + $0x90] sm:$0xff]
  %v46 = vld [vmem:[%s0 + $0x98] sm:$0xff]
  %v47 = vld [vmem:[%s0 + $0xa0] sm:$0xff]
  %v48 = vld [vmem:[%s0 + $0xa8] sm:$0xff]
  %v49 = vld [vmem:[%s0 + $0xb0] sm:$0xff]
  %v50 = vld [vmem:[%s0 + $0xb8] sm:$0xff]
  %v51 = vld [vmem:[%s0 + $0xc0] sm:$0xff]
  %v52 = vld [vmem:[%s0 + $0xc8] sm:$0xff]
  %v53 = vld [vmem:[%s0 + $0xd0] sm:$0xff]
  %v54 = vld [vmem:[%s0 + $0xd8] sm:$0xff]
  %v55 = vld [vmem:[%s0 + $0xe0] sm:$0xff]
  %v56 = vld [vmem:[%s0 + $0xe8] sm:$0xff]
  %v57 = vld [vmem:[%s0 + $0xf0] sm:$0xff]
  %v58 = vld [vmem:[%s0 + $0xf8] sm:$0xff]
  %v59 = vld [vmem:[%s0 + $0x100] sm:$0xff]
  %v60 = vld [vmem:[%s0 + $0x108] sm:$0xff]
  %v61 = vld [vmem:[%s0 + $0x110] sm:$0xff]
  %v62 = vld [vmem:[%s0 + $0x118] sm:$0xff]
  %v63 = vld [vmem:[%s0 + $0x120] sm:$0xff]
  %v64 = vld [vmem:[%s0 + $0x128] sm:$0xff]
  %v65 = vld [vmem:[%s0 + $0x130] sm:$0xff]
  %v66 = vld [vmem:[%s0 + $0x138] sm:$0xff]
  %v67 = vld [vmem:[%s0 + $0x140] sm:$0xff]
  %v68 = vld [vmem:[%s0 + $0x148] sm:$0xff]
  %v69 = vld [vmem:[%s0 + $0x150] sm:$0xff]
  %v70 = vld [vmem:[%s0 + $0x158] sm:$0xff]
  %v71 = vld [vmem:[%s0 + $0x160] sm:$0xff]
  %v72 = vld [vmem:[%s0 + $0x168] sm:$0xff]
  %v73 = vld [vmem:[%s0 + $0x170] sm:$0xff]
  %v74 = vld [vmem:[%s0 + $0x178] sm:$0xff]
  %v75 = vld [vmem:[%s0 + $0x180] sm:$0xff]
  %v76 = vld [vmem:[%s0 + $0x188] sm:$0xff]
  %v77 = vld [vmem:[%s0 + $0x190] sm:$0xff]
  %v78 = vld [vmem:[%s0 + $0x198] sm:$0xff]
  %v79 = vld [vmem:[%s0 + $0x1a0] sm:$0xff]
  %v80 = vld [vmem:[%s0 + $0x1a8] sm:$0xff]
  %v81 = vld [vmem:[%s0 + $0x1b0] sm:$0xff]
  %v82 = vld [vmem:[%s0 + $0x1b8] sm:$0xff]
  %v83 = vld [vmem:[%s0 + $0x1c0] sm:$0xff]
  %v84 = vld [vmem:[%s0 + $0x1c8] sm:$0xff]
  %v85 = vld [vmem:[%s0 + $0x1d0] sm:$0xff]
  %v86 = vld [vmem:[%s0 + $0x1d8] sm:$0xff]
  %v87 = vld [vmem:[%s0 + $0x1e0] sm:$0xff]
  %v88 = vld [vmem:[%s0 + $0x1e8] sm:$0xff]
  %v89 = vld [vmem:[%s0 + $0x1f0] sm:$0xff]
  %v90 = vld [vmem:[%s0 + $0x1f8] sm:$0xff]
  %v91 = vmax.bf16 %v27, 0
  %v92 = vmax.bf16 %v28, 0
  %v93 = vmax.bf16 %v29, 0
  %v94 = vmax.bf16 %v30, 0
  %v95 = vmax.bf16 %v31, 0
  %v96 = vmax.bf16 %v32, 0
  %v97 = vmax.bf16 %v33, 0
  %v98 = vmax.bf16 %v34, 0
  %v99 = vmax.bf16 %v35, 0
  %v100 = vmax.bf16 %v36, 0
  %v101 = vmax.bf16 %v37, 0
  %v102 = vmax.bf16 %v38, 0
  %v103 = vmax.bf16 %v39, 0
  %v104 = vmax.bf16 %v40, 0
  %v105 = vmax.bf16 %v41, 0
  %v106 = vmax.bf16 %v42, 0
  %v107 = vmax.bf16 %v43, 0
  %v108 = vmax.bf16 %v44, 0
  %v109 = vmax.bf16 %v45, 0
  %v110 = vmax.bf16 %v46, 0
  %v111 = vmax.bf16 %v47, 0
  %v112 = vmax.bf16 %v48, 0
  %v113 = vmax.bf16 %v49, 0
  %v114 = vmax.bf16 %v50, 0
  %v115 = vmax.bf16 %v51, 0
  %v116 = vmax.bf16 %v52, 0
  %v117 = vmax.bf16 %v53, 0
  %v118 = vmax.bf16 %v54, 0
  %v119 = vmax.bf16 %v55, 0
  %v120 = vmax.bf16 %v56, 0
  %v121 = vmax.bf16 %v57, 0
  %v122 = vmax.bf16 %v58, 0
  %v123 = vmax.bf16 %v59, 0
  %v124 = vmax.bf16 %v60, 0
  %v125 = vmax.bf16 %v61, 0
  %v126 = vmax.bf16 %v62, 0
  %v127 = vmax.bf16 %v63, 0
  %v128 = vmax.bf16 %v64, 0
  %v129 = vmax.bf16 %v65, 0
  %v130 = vmax.bf16 %v66, 0
  %v131 = vmax.bf16 %v67, 0
  %v132 = vmax.bf16 %v68, 0
  %v133 = vmax.bf16 %v69, 0
  %v134 = vmax.bf16 %v70, 0
  %v135 = vmax.bf16 %v71, 0
  %v136 = vmax.bf16 %v72, 0
  %v137 = vmax.bf16 %v73, 0
  %v138 = vmax.bf16 %v74, 0
  %v139 = vmax.bf16 %v75, 0
  %v140 = vmax.bf16 %v76, 0
  %v141 = vmax.bf16 %v77, 0
  %v142 = vmax.bf16 %v78, 0
  %v143 = vmax.bf16 %v79, 0
  %v144 = vmax.bf16 %v80, 0
  %v145 = vmax.bf16 %v81, 0
  %v146 = vmax.bf16 %v82, 0
  %v147 = vmax.bf16 %v83, 0
  %v148 = vmax.bf16 %v84, 0
  %v149 = vmax.bf16 %v85, 0
  %v150 = vmax.bf16 %v86, 0
  %v151 = vmax.bf16 %v87, 0
  %v152 = vmax.bf16 %v88, 0
  %v153 = vmax.bf16 %v89, 0
  %v154 = vmax.bf16 %v90, 0
  %v155 = vld [vmem:[%s1] sm:$0xf]
  %v156 = vld [vmem:[%s1 + $0x4] sm:$0xf]
  %v157 = vld [vmem:[%s1 + $0x8] sm:$0xf]
  %v158 = vld [vmem:[%s1 + $0xc] sm:$0xf]
  %v159 = vld [vmem:[%s1 + $0x10] sm:$0xf]
  %v160 = vld [vmem:[%s1 + $0x14] sm:$0xf]
  %v161 = vld [vmem:[%s1 + $0x18] sm:$0xf]
  %v162 = vld [vmem:[%s1 + $0x1c] sm:$0xf]
  %v163 = vld [vmem:[%s1 + $0x20] sm:$0xf]
  %v164 = vld [vmem:[%s1 + $0x24] sm:$0xf]
  %v165 = vld [vmem:[%s1 + $0x28] sm:$0xf]
  %v166 = vld [vmem:[%s1 + $0x2c] sm:$0xf]
  %v167 = vld [vmem:[%s1 + $0x30] sm:$0xf]
  %v168 = vld [vmem:[%s1 + $0x34] sm:$0xf]
  %v169 = vld [vmem:[%s1 + $0x38] sm:$0xf]
  %v170 = vld [vmem:[%s1 + $0x3c] sm:$0xf]
  %v171 = vld [vmem:[%s1 + $0x40] sm:$0xf]
  %v172 = vld [vmem:[%s1 + $0x44] sm:$0xf]
  %v173 = vld [vmem:[%s1 + $0x48] sm:$0xf]
  %v174 = vld [vmem:[%s1 + $0x4c] sm:$0xf]
  %v175 = vld [vmem:[%s1 + $0x50] sm:$0xf]
  %v176 = vld [vmem:[%s1 + $0x54] sm:$0xf]
  %v177 = vld [vmem:[%s1 + $0x58] sm:$0xf]
  %v178 = vld [vmem:[%s1 + $0x5c] sm:$0xf]
  %v179 = vld [vmem:[%s1 + $0x60] sm:$0xf]
  %v180 = vld [vmem:[%s1 + $0x64] sm:$0xf]
  %v181 = vld [vmem:[%s1 + $0x68] sm:$0xf]
  %v182 = vld [vmem:[%s1 + $0x6c] sm:$0xf]
  %v183 = vld [vmem:[%s1 + $0x70] sm:$0xf]
  %v184 = vld [vmem:[%s1 + $0x74] sm:$0xf]
  %v185 = vld [vmem:[%s1 + $0x78] sm:$0xf]
  %v186 = vld [vmem:[%s1 + $0x7c] sm:$0xf]
  %v187 = vld [vmem:[%s1 + $0x80] sm:$0xf]
  %v188 = vld [vmem:[%s1 + $0x84] sm:$0xf]
  %v189 = vld [vmem:[%s1 + $0x88] sm:$0xf]
  %v190 = vld [vmem:[%s1 + $0x8c] sm:$0xf]
  %v191 = vld [vmem:[%s1 + $0x90] sm:$0xf]
  %v192 = vld [vmem:[%s1 + $0x94] sm:$0xf]
  %v193 = vld [vmem:[%s1 + $0x98] sm:$0xf]
  %v194 = vld [vmem:[%s1 + $0x9c] sm:$0xf]
  %v195 = vld [vmem:[%s1 + $0xa0] sm:$0xf]
  %v196 = vld [vmem:[%s1 + $0xa4] sm:$0xf]
  %v197 = vld [vmem:[%s1 + $0xa8] sm:$0xf]
  %v198 = vld [vmem:[%s1 + $0xac] sm:$0xf]
  %v199 = vld [vmem:[%s1 + $0xb0] sm:$0xf]
  %v200 = vld [vmem:[%s1 + $0xb4] sm:$0xf]
  %v201 = vld [vmem:[%s1 + $0xb8] sm:$0xf]
  %v202 = vld [vmem:[%s1 + $0xbc] sm:$0xf]
  %v203 = vld [vmem:[%s1 + $0xc0] sm:$0xf]
  %v204 = vld [vmem:[%s1 + $0xc4] sm:$0xf]
  %v205 = vld [vmem:[%s1 + $0xc8] sm:$0xf]
  %v206 = vld [vmem:[%s1 + $0xcc] sm:$0xf]
  %v207 = vld [vmem:[%s1 + $0xd0] sm:$0xf]
  %v208 = vld [vmem:[%s1 + $0xd4] sm:$0xf]
  %v209 = vld [vmem:[%s1 + $0xd8] sm:$0xf]
  %v210 = vld [vmem:[%s1 + $0xdc] sm:$0xf]
  %v211 = vld [vmem:[%s1 + $0xe0] sm:$0xf]
  %v212 = vld [vmem:[%s1 + $0xe4] sm:$0xf]
  %v213 = vld [vmem:[%s1 + $0xe8] sm:$0xf]
  %v214 = vld [vmem:[%s1 + $0xec] sm:$0xf]
  %v215 = vld [vmem:[%s1 + $0xf0] sm:$0xf]
  %v216 = vld [vmem:[%s1 + $0xf4] sm:$0xf]
  %v217 = vld [vmem:[%s1 + $0xf8] sm:$0xf]
  %v218 = vld [vmem:[%s1 + $0xfc] sm:$0xf]
  %v219 = vld [vmem:[%s1 + $0x100] sm:$0xf]
  %v220 = vld [vmem:[%s1 + $0x104] sm:$0xf]
  %v221 = vld [vmem:[%s1 + $0x108] sm:$0xf]
  %v222 = vld [vmem:[%s1 + $0x10c] sm:$0xf]
  %v223 = vld [vmem:[%s1 + $0x110] sm:$0xf]
  %v224 = vld [vmem:[%s1 + $0x114] sm:$0xf]
  %v225 = vld [vmem:[%s1 + $0x118] sm:$0xf]
  %v226 = vld [vmem:[%s1 + $0x11c] sm:$0xf]
  %v227 = vld [vmem:[%s1 + $0x120] sm:$0xf]
  %v228 = vld [vmem:[%s1 + $0x124] sm:$0xf]
  %v229 = vld [vmem:[%s1 + $0x128] sm:$0xf]
  %v230 = vld [vmem:[%s1 + $0x12c] sm:$0xf]
  %v231 = vld [vmem:[%s1 + $0x130] sm:$0xf]
  %v232 = vld [vmem:[%s1 + $0x134] sm:$0xf]
  %v233 = vld [vmem:[%s1 + $0x138] sm:$0xf]
  %v234 = vld [vmem:[%s1 + $0x13c] sm:$0xf]
  %v235 = vld [vmem:[%s1 + $0x140] sm:$0xf]
  %v236 = vld [vmem:[%s1 + $0x144] sm:$0xf]
  %v237 = vld [vmem:[%s1 + $0x148] sm:$0xf]
  %v238 = vld [vmem:[%s1 + $0x14c] sm:$0xf]
  %v239 = vld [vmem:[%s1 + $0x150] sm:$0xf]
  %v240 = vld [vmem:[%s1 + $0x154] sm:$0xf]
  %v241 = vld [vmem:[%s1 + $0x158] sm:$0xf]
  %v242 = vld [vmem:[%s1 + $0x15c] sm:$0xf]
  %v243 = vld [vmem:[%s1 + $0x160] sm:$0xf]
  %v244 = vld [vmem:[%s1 + $0x164] sm:$0xf]
  %v245 = vld [vmem:[%s1 + $0x168] sm:$0xf]
  %v246 = vld [vmem:[%s1 + $0x16c] sm:$0xf]
  %v247 = vld [vmem:[%s1 + $0x170] sm:$0xf]
  %v248 = vld [vmem:[%s1 + $0x174] sm:$0xf]
  %v249 = vld [vmem:[%s1 + $0x178] sm:$0xf]
  %v250 = vld [vmem:[%s1 + $0x17c] sm:$0xf]
  %v251 = vld [vmem:[%s1 + $0x180] sm:$0xf]
  %v252 = vld [vmem:[%s1 + $0x184] sm:$0xf]
  %v253 = vld [vmem:[%s1 + $0x188] sm:$0xf]
  %v254 = vld [vmem:[%s1 + $0x18c] sm:$0xf]
  %v255 = vld [vmem:[%s1 + $0x190] sm:$0xf]
  %v256 = vld [vmem:[%s1 + $0x194] sm:$0xf]
  %v257 = vld [vmem:[%s1 + $0x198] sm:$0xf]
  %v258 = vld [vmem:[%s1 + $0x19c] sm:$0xf]
  %v259 = vld [vmem:[%s1 + $0x1a0] sm:$0xf]
  %v260 = vld [vmem:[%s1 + $0x1a4] sm:$0xf]
  %v261 = vld [vmem:[%s1 + $0x1a8] sm:$0xf]
  %v262 = vld [vmem:[%s1 + $0x1ac] sm:$0xf]
  %v263 = vld [vmem:[%s1 + $0x1b0] sm:$0xf]
  %v264 = vld [vmem:[%s1 + $0x1b4] sm:$0xf]
  %v265 = vld [vmem:[%s1 + $0x1b8] sm:$0xf]
  %v266 = vld [vmem:[%s1 + $0x1bc] sm:$0xf]
  %v267 = vld [vmem:[%s1 + $0x1c0] sm:$0xf]
  %v268 = vld [vmem:[%s1 + $0x1c4] sm:$0xf]
  %v269 = vld [vmem:[%s1 + $0x1c8] sm:$0xf]
  %v270 = vld [vmem:[%s1 + $0x1cc] sm:$0xf]
  %v271 = vld [vmem:[%s1 + $0x1d0] sm:$0xf]
  %v272 = vld [vmem:[%s1 + $0x1d4] sm:$0xf]
  %v273 = vld [vmem:[%s1 + $0x1d8] sm:$0xf]
  %v274 = vld [vmem:[%s1 + $0x1dc] sm:$0xf]
  %v275 = vld [vmem:[%s1 + $0x1e0] sm:$0xf]
  %v276 = vld [vmem:[%s1 + $0x1e4] sm:$0xf]
  %v277 = vld [vmem:[%s1 + $0x1e8] sm:$0xf]
  %v278 = vld [vmem:[%s1 + $0x1ec] sm:$0xf]
  %v279 = vld [vmem:[%s1 + $0x1f0] sm:$0xf]
  %v280 = vld [vmem:[%s1 + $0x1f4] sm:$0xf]
  %v281 = vld [vmem:[%s1 + $0x1f8] sm:$0xf]
  %v282 = vld [vmem:[%s1 + $0x1fc] sm:$0xf]
  %v283 = vld [vmem:[%s2] sm:$0x1]
  %v285 = vlaneseq
  %v286 = vshrl.u32 %v285, 7
  %v287 = vsub.s32 0, %v286
  %v288 = vrot.slane %v283, %v287
  %v354 = vunpack.c.l.b16 %v91
  %v355 = vunpack.c.h.b16 %v91
  %v356 = vunpack.c.l.b16 %v92
  %v357 = vunpack.c.h.b16 %v92
  %v358 = vunpack.c.l.b16 %v93
  %v359 = vunpack.c.h.b16 %v93
  %v360 = vunpack.c.l.b16 %v94
  %v361 = vunpack.c.h.b16 %v94
  %v362 = vunpack.c.l.b16 %v95
  %v363 = vunpack.c.h.b16 %v95
  %v364 = vunpack.c.l.b16 %v96
  %v365 = vunpack.c.h.b16 %v96
  %v366 = vunpack.c.l.b16 %v97
  %v367 = vunpack.c.h.b16 %v97
  %v368 = vunpack.c.l.b16 %v98
  %v369 = vunpack.c.h.b16 %v98
  %v370 = vunpack.c.l.b16 %v99
  %v371 = vunpack.c.h.b16 %v99
  %v372 = vunpack.c.l.b16 %v100
  %v373 = vunpack.c.h.b16 %v100
  %v374 = vunpack.c.l.b16 %v101
  %v375 = vunpack.c.h.b16 %v101
  %v376 = vunpack.c.l.b16 %v102
  %v377 = vunpack.c.h.b16 %v102
  %v378 = vunpack.c.l.b16 %v103
  %v379 = vunpack.c.h.b16 %v103
  %v380 = vunpack.c.l.b16 %v104
  %v381 = vunpack.c.h.b16 %v104
  %v382 = vunpack.c.l.b16 %v105
  %v383 = vunpack.c.h.b16 %v105
  %v384 = vunpack.c.l.b16 %v106
  %v385 = vunpack.c.h.b16 %v106
  %v386 = vunpack.c.l.b16 %v107
  %v387 = vunpack.c.h.b16 %v107
  %v388 = vunpack.c.l.b16 %v108
  %v389 = vunpack.c.h.b16 %v108
  %v390 = vunpack.c.l.b16 %v109
  %v391 = vunpack.c.h.b16 %v109
  %v392 = vunpack.c.l.b16 %v110
  %v393 = vunpack.c.h.b16 %v110
  %v394 = vunpack.c.l.b16 %v111
  %v395 = vunpack.c.h.b16 %v111
  %v396 = vunpack.c.l.b16 %v112
  %v397 = vunpack.c.h.b16 %v112
  %v398 = vunpack.c.l.b16 %v113
  %v399 = vunpack.c.h.b16 %v113
  %v400 = vunpack.c.l.b16 %v114
  %v401 = vunpack.c.h.b16 %v114
  %v402 = vunpack.c.l.b16 %v115
  %v403 = vunpack.c.h.b16 %v115
  %v404 = vunpack.c.l.b16 %v116
  %v405 = vunpack.c.h.b16 %v116
  %v406 = vunpack.c.l.b16 %v117
  %v407 = vunpack.c.h.b16 %v117
  %v408 = vunpack.c.l.b16 %v118
  %v409 = vunpack.c.h.b16 %v118
  %v410 = vunpack.c.l.b16 %v119
  %v411 = vunpack.c.h.b16 %v119
  %v412 = vunpack.c.l.b16 %v120
  %v413 = vunpack.c.h.b16 %v120
  %v414 = vunpack.c.l.b16 %v121
  %v415 = vunpack.c.h.b16 %v121
  %v416 = vunpack.c.l.b16 %v122
  %v417 = vunpack.c.h.b16 %v122
  %v418 = vunpack.c.l.b16 %v123
  %v419 = vunpack.c.h.b16 %v123
  %v420 = vunpack.c.l.b16 %v124
  %v421 = vunpack.c.h.b16 %v124
  %v422 = vunpack.c.l.b16 %v125
  %v423 = vunpack.c.h.b16 %v125
  %v424 = vunpack.c.l.b16 %v126
  %v425 = vunpack.c.h.b16 %v126
  %v426 = vunpack.c.l.b16 %v127
  %v427 = vunpack.c.h.b16 %v127
  %v428 = vunpack.c.l.b16 %v128
  %v429 = vunpack.c.h.b16 %v128
  %v430 = vunpack.c.l.b16 %v129
  %v431 = vunpack.c.h.b16 %v129
  %v432 = vunpack.c.l.b16 %v130
  %v433 = vunpack.c.h.b16 %v130
  %v434 = vunpack.c.l.b16 %v131
  %v435 = vunpack.c.h.b16 %v131
  %v436 = vunpack.c.l.b16 %v132
  %v437 = vunpack.c.h.b16 %v132
  %v438 = vunpack.c.l.b16 %v133
  %v439 = vunpack.c.h.b16 %v133
  %v440 = vunpack.c.l.b16 %v134
  %v441 = vunpack.c.h.b16 %v134
  %v442 = vunpack.c.l.b16 %v135
  %v443 = vunpack.c.h.b16 %v135
  %v444 = vunpack.c.l.b16 %v136
  %v445 = vunpack.c.h.b16 %v136
  %v446 = vunpack.c.l.b16 %v137
  %v447 = vunpack.c.h.b16 %v137
  %v448 = vunpack.c.l.b16 %v138
  %v449 = vunpack.c.h.b16 %v138
  %v450 = vunpack.c.l.b16 %v139
  %v451 = vunpack.c.h.b16 %v139
  %v452 = vunpack.c.l.b16 %v140
  %v453 = vunpack.c.h.b16 %v140
  %v454 = vunpack.c.l.b16 %v141
  %v455 = vunpack.c.h.b16 %v141
  %v456 = vunpack.c.l.b16 %v142
  %v457 = vunpack.c.h.b16 %v142
  %v458 = vunpack.c.l.b16 %v143
  %v459 = vunpack.c.h.b16 %v143
  %v460 = vunpack.c.l.b16 %v144
  %v461 = vunpack.c.h.b16 %v144
  %v462 = vunpack.c.l.b16 %v145
  %v463 = vunpack.c.h.b16 %v145
  %v464 = vunpack.c.l.b16 %v146
  %v465 = vunpack.c.h.b16 %v146
  %v466 = vunpack.c.l.b16 %v147
  %v467 = vunpack.c.h.b16 %v147
  %v468 = vunpack.c.l.b16 %v148
  %v469 = vunpack.c.h.b16 %v148
  %v470 = vunpack.c.l.b16 %v149
  %v471 = vunpack.c.h.b16 %v149
  %v472 = vunpack.c.l.b16 %v150
  %v473 = vunpack.c.h.b16 %v150
  %v474 = vunpack.c.l.b16 %v151
  %v475 = vunpack.c.h.b16 %v151
  %v476 = vunpack.c.l.b16 %v152
  %v477 = vunpack.c.h.b16 %v152
  %v478 = vunpack.c.l.b16 %v153
  %v479 = vunpack.c.h.b16 %v153
  %v480 = vunpack.c.l.b16 %v154
  %v481 = vunpack.c.h.b16 %v154
  %v482 = vpack.c.b16 %v362, %v354
  %v483 = vpack.c.b16 %v363, %v355
  %v484 = vpack.c.b16 %v364, %v356
  %v485 = vpack.c.b16 %v365, %v357
  %v486 = vpack.c.b16 %v366, %v358
  %v487 = vpack.c.b16 %v367, %v359
  %v488 = vpack.c.b16 %v368, %v360
  %v489 = vpack.c.b16 %v369, %v361
  %v490 = vpack.c.b16 %v378, %v370
  %v491 = vpack.c.b16 %v379, %v371
  %v492 = vpack.c.b16 %v380, %v372
  %v493 = vpack.c.b16 %v381, %v373
  %v494 = vpack.c.b16 %v382, %v374
  %v495 = vpack.c.b16 %v383, %v375
  %v496 = vpack.c.b16 %v384, %v376
  %v497 = vpack.c.b16 %v385, %v377
  %v498 = vpack.c.b16 %v394, %v386
  %v499 = vpack.c.b16 %v395, %v387
  %v500 = vpack.c.b16 %v396, %v388
  %v501 = vpack.c.b16 %v397, %v389
  %v502 = vpack.c.b16 %v398, %v390
  %v503 = vpack.c.b16 %v399, %v391
  %v504 = vpack.c.b16 %v400, %v392
  %v505 = vpack.c.b16 %v401, %v393
  %v506 = vpack.c.b16 %v410, %v402
  %v507 = vpack.c.b16 %v411, %v403
  %v508 = vpack.c.b16 %v412, %v404
  %v509 = vpack.c.b16 %v413, %v405
  %v510 = vpack.c.b16 %v414, %v406
  %v511 = vpack.c.b16 %v415, %v407
  %v512 = vpack.c.b16 %v416, %v408
  %v513 = vpack.c.b16 %v417, %v409
  %v514 = vpack.c.b16 %v426, %v418
  %v515 = vpack.c.b16 %v427, %v419
  %v516 = vpack.c.b16 %v428, %v420
  %v517 = vpack.c.b16 %v429, %v421
  %v518 = vpack.c.b16 %v430, %v422
  %v519 = vpack.c.b16 %v431, %v423
  %v520 = vpack.c.b16 %v432, %v424
  %v521 = vpack.c.b16 %v433, %v425
  %v522 = vpack.c.b16 %v442, %v434
  %v523 = vpack.c.b16 %v443, %v435
  %v524 = vpack.c.b16 %v444, %v436
  %v525 = vpack.c.b16 %v445, %v437
  %v526 = vpack.c.b16 %v446, %v438
  %v527 = vpack.c.b16 %v447, %v439
  %v528 = vpack.c.b16 %v448, %v440
  %v529 = vpack.c.b16 %v449, %v441
  %v530 = vpack.c.b16 %v458, %v450
  %v531 = vpack.c.b16 %v459, %v451
  %v532 = vpack.c.b16 %v460, %v452
  %v533 = vpack.c.b16 %v461, %v453
  %v534 = vpack.c.b16 %v462, %v454
  %v535 = vpack.c.b16 %v463, %v455
  %v536 = vpack.c.b16 %v464, %v456
  %v537 = vpack.c.b16 %v465, %v457
  %v538 = vpack.c.b16 %v474, %v466
  %v539 = vpack.c.b16 %v475, %v467
  %v540 = vpack.c.b16 %v476, %v468
  %v541 = vpack.c.b16 %v477, %v469
  %v542 = vpack.c.b16 %v478, %v470
  %v543 = vpack.c.b16 %v479, %v471
  %v544 = vpack.c.b16 %v480, %v472
  %v545 = vpack.c.b16 %v481, %v473
  %v738 = vunpack.c.l.b16 %v155
  %v739 = vunpack.c.l.b16 %v156
  %v740 = vunpack.c.l.b16 %v157
  %v741 = vunpack.c.l.b16 %v158
  %v742 = vunpack.c.l.b16 %v159
  %v743 = vunpack.c.l.b16 %v160
  %v744 = vunpack.c.l.b16 %v161
  %v745 = vunpack.c.l.b16 %v162
  %v746 = vunpack.c.l.b16 %v163
  %v747 = vunpack.c.l.b16 %v164
  %v748 = vunpack.c.l.b16 %v165
  %v749 = vunpack.c.l.b16 %v166
  %v750 = vunpack.c.l.b16 %v167
  %v751 = vunpack.c.l.b16 %v168
  %v752 = vunpack.c.l.b16 %v169
  %v753 = vunpack.c.l.b16 %v170
  %v754 = vunpack.c.l.b16 %v171
  %v755 = vunpack.c.l.b16 %v172
  %v756 = vunpack.c.l.b16 %v173
  %v757 = vunpack.c.l.b16 %v174
  %v758 = vunpack.c.l.b16 %v175
  %v759 = vunpack.c.l.b16 %v176
  %v760 = vunpack.c.l.b16 %v177
  %v761 = vunpack.c.l.b16 %v178
  %v762 = vunpack.c.l.b16 %v179
  %v763 = vunpack.c.l.b16 %v180
  %v764 = vunpack.c.l.b16 %v181
  %v765 = vunpack.c.l.b16 %v182
  %v766 = vunpack.c.l.b16 %v183
  %v767 = vunpack.c.l.b16 %v184
  %v768 = vunpack.c.l.b16 %v185
  %v769 = vunpack.c.l.b16 %v186
  %v770 = vunpack.c.l.b16 %v187
  %v771 = vunpack.c.l.b16 %v188
  %v772 = vunpack.c.l.b16 %v189
  %v773 = vunpack.c.l.b16 %v190
  %v774 = vunpack.c.l.b16 %v191
  %v775 = vunpack.c.l.b16 %v192
  %v776 = vunpack.c.l.b16 %v193
  %v777 = vunpack.c.l.b16 %v194
  %v778 = vunpack.c.l.b16 %v195
  %v779 = vunpack.c.l.b16 %v196
  %v780 = vunpack.c.l.b16 %v197
  %v781 = vunpack.c.l.b16 %v198
  %v782 = vunpack.c.l.b16 %v199
  %v783 = vunpack.c.l.b16 %v200
  %v784 = vunpack.c.l.b16 %v201
  %v785 = vunpack.c.l.b16 %v202
  %v786 = vunpack.c.l.b16 %v203
  %v787 = vunpack.c.l.b16 %v204
  %v788 = vunpack.c.l.b16 %v205
  %v789 = vunpack.c.l.b16 %v206
  %v790 = vunpack.c.l.b16 %v207
  %v791 = vunpack.c.l.b16 %v208
  %v792 = vunpack.c.l.b16 %v209
  %v793 = vunpack.c.l.b16 %v210
  %v794 = vunpack.c.l.b16 %v211
  %v795 = vunpack.c.l.b16 %v212
  %v796 = vunpack.c.l.b16 %v213
  %v797 = vunpack.c.l.b16 %v214
  %v798 = vunpack.c.l.b16 %v215
  %v799 = vunpack.c.l.b16 %v216
  %v800 = vunpack.c.l.b16 %v217
  %v801 = vunpack.c.l.b16 %v218
  %v802 = vunpack.c.l.b16 %v219
  %v803 = vunpack.c.l.b16 %v220
  %v804 = vunpack.c.l.b16 %v221
  %v805 = vunpack.c.l.b16 %v222
  %v806 = vunpack.c.l.b16 %v223
  %v807 = vunpack.c.l.b16 %v224
  %v808 = vunpack.c.l.b16 %v225
  %v809 = vunpack.c.l.b16 %v226
  %v810 = vunpack.c.l.b16 %v227
  %v811 = vunpack.c.l.b16 %v228
  %v812 = vunpack.c.l.b16 %v229
  %v813 = vunpack.c.l.b16 %v230
  %v814 = vunpack.c.l.b16 %v231
  %v815 = vunpack.c.l.b16 %v232
  %v816 = vunpack.c.l.b16 %v233
  %v817 = vunpack.c.l.b16 %v234
  %v818 = vunpack.c.l.b16 %v235
  %v819 = vunpack.c.l.b16 %v236
  %v820 = vunpack.c.l.b16 %v237
  %v821 = vunpack.c.l.b16 %v238
  %v822 = vunpack.c.l.b16 %v239
  %v823 = vunpack.c.l.b16 %v240
  %v824 = vunpack.c.l.b16 %v241
  %v825 = vunpack.c.l.b16 %v242
  %v826 = vunpack.c.l.b16 %v243
  %v827 = vunpack.c.l.b16 %v244
  %v828 = vunpack.c.l.b16 %v245
  %v829 = vunpack.c.l.b16 %v246
  %v830 = vunpack.c.l.b16 %v247
  %v831 = vunpack.c.l.b16 %v248
  %v832 = vunpack.c.l.b16 %v249
  %v833 = vunpack.c.l.b16 %v250
  %v834 = vunpack.c.l.b16 %v251
  %v835 = vunpack.c.l.b16 %v252
  %v836 = vunpack.c.l.b16 %v253
  %v837 = vunpack.c.l.b16 %v254
  %v838 = vunpack.c.l.b16 %v255
  %v839 = vunpack.c.l.b16 %v256
  %v840 = vunpack.c.l.b16 %v257
  %v841 = vunpack.c.l.b16 %v258
  %v842 = vunpack.c.l.b16 %v259
  %v843 = vunpack.c.l.b16 %v260
  %v844 = vunpack.c.l.b16 %v261
  %v845 = vunpack.c.l.b16 %v262
  %v846 = vunpack.c.l.b16 %v263
  %v847 = vunpack.c.l.b16 %v264
  %v848 = vunpack.c.l.b16 %v265
  %v849 = vunpack.c.l.b16 %v266
  %v850 = vunpack.c.l.b16 %v267
  %v851 = vunpack.c.l.b16 %v268
  %v852 = vunpack.c.l.b16 %v269
  %v853 = vunpack.c.l.b16 %v270
  %v854 = vunpack.c.l.b16 %v271
  %v855 = vunpack.c.l.b16 %v272
  %v856 = vunpack.c.l.b16 %v273
  %v857 = vunpack.c.l.b16 %v274
  %v858 = vunpack.c.l.b16 %v275
  %v859 = vunpack.c.l.b16 %v276
  %v860 = vunpack.c.l.b16 %v277
  %v861 = vunpack.c.l.b16 %v278
  %v862 = vunpack.c.l.b16 %v279
  %v863 = vunpack.c.l.b16 %v280
  %v864 = vunpack.c.l.b16 %v281
  %v865 = vunpack.c.l.b16 %v282
  %v866 = vpack.c.b16 %v739, %v738
  %v867 = vpack.c.b16 %v741, %v740
  %v868 = vpack.c.b16 %v743, %v742
  %v869 = vpack.c.b16 %v745, %v744
  %v870 = vpack.c.b16 %v747, %v746
  %v871 = vpack.c.b16 %v749, %v748
  %v872 = vpack.c.b16 %v751, %v750
  %v873 = vpack.c.b16 %v753, %v752
  %v874 = vpack.c.b16 %v755, %v754
  %v875 = vpack.c.b16 %v757, %v756
  %v876 = vpack.c.b16 %v759, %v758
  %v877 = vpack.c.b16 %v761, %v760
  %v878 = vpack.c.b16 %v763, %v762
  %v879 = vpack.c.b16 %v765, %v764
  %v880 = vpack.c.b16 %v767, %v766
  %v881 = vpack.c.b16 %v769, %v768
  %v882 = vpack.c.b16 %v771, %v770
  %v883 = vpack.c.b16 %v773, %v772
  %v884 = vpack.c.b16 %v775, %v774
  %v885 = vpack.c.b16 %v777, %v776
  %v886 = vpack.c.b16 %v779, %v778
  %v887 = vpack.c.b16 %v781, %v780
  %v888 = vpack.c.b16 %v783, %v782
  %v889 = vpack.c.b16 %v785, %v784
  %v890 = vpack.c.b16 %v787, %v786
  %v891 = vpack.c.b16 %v789, %v788
  %v892 = vpack.c.b16 %v791, %v790
  %v893 = vpack.c.b16 %v793, %v792
  %v894 = vpack.c.b16 %v795, %v794
  %v895 = vpack.c.b16 %v797, %v796
  %v896 = vpack.c.b16 %v799, %v798
  %v897 = vpack.c.b16 %v801, %v800
  %v898 = vpack.c.b16 %v803, %v802
  %v899 = vpack.c.b16 %v805, %v804
  %v900 = vpack.c.b16 %v807, %v806
  %v901 = vpack.c.b16 %v809, %v808
  %v902 = vpack.c.b16 %v811, %v810
  %v903 = vpack.c.b16 %v813, %v812
  %v904 = vpack.c.b16 %v815, %v814
  %v905 = vpack.c.b16 %v817, %v816
  %v906 = vpack.c.b16 %v819, %v818
  %v907 = vpack.c.b16 %v821, %v820
  %v908 = vpack.c.b16 %v823, %v822
  %v909 = vpack.c.b16 %v825, %v824
  %v910 = vpack.c.b16 %v827, %v826
  %v911 = vpack.c.b16 %v829, %v828
  %v912 = vpack.c.b16 %v831, %v830
  %v913 = vpack.c.b16 %v833, %v832
  %v914 = vpack.c.b16 %v835, %v834
  %v915 = vpack.c.b16 %v837, %v836
  %v916 = vpack.c.b16 %v839, %v838
  %v917 = vpack.c.b16 %v841, %v840
  %v918 = vpack.c.b16 %v843, %v842
  %v919 = vpack.c.b16 %v845, %v844
  %v920 = vpack.c.b16 %v847, %v846
  %v921 = vpack.c.b16 %v849, %v848
  %v922 = vpack.c.b16 %v851, %v850
  %v923 = vpack.c.b16 %v853, %v852
  %v924 = vpack.c.b16 %v855, %v854
  %v925 = vpack.c.b16 %v857, %v856
  %v926 = vpack.c.b16 %v859, %v858
  %v927 = vpack.c.b16 %v861, %v860
  %v928 = vpack.c.b16 %v863, %v862
  %v929 = vpack.c.b16 %v865, %v864
  %994 = vmatprep.subr.bf16.mxu0 0
  %995 = vmatpush1.bf16.msra.mxu0 %v873
  %996 = vmatprep.subr.bf16.mxu0 0
  %997 = vmatpush1.bf16.msra.mxu0 %v872
  %998 = vmatprep.subr.bf16.mxu0 0
  %999 = vmatpush1.bf16.msra.mxu0 %v871
  %1000 = vmatprep.subr.bf16.mxu0 0
  %1001 = vmatpush1.bf16.msra.mxu0 %v870
  %1002 = vmatprep.subr.bf16.mxu0 0
  %1003 = vmatpush1.bf16.msra.mxu0 %v869
  %1004 = vmatprep.subr.bf16.mxu0 0
  %1005 = vmatpush1.bf16.msra.mxu0 %v868
  %1006 = vmatprep.subr.bf16.mxu0 0
  %1007 = vmatpush1.bf16.msra.mxu0 %v867
  %1008 = vmatprep.subr.bf16.mxu0 0
  %1009 = vmatpush1.bf16.msra.mxu0 %v866
  %1010 = vmatprep.subr.bf16.mxu0 0
  %1011 = vmatpush2.bf16.msra.mxu0 %v881
  %1012 = vmatprep.subr.bf16.mxu0 0
  %1013 = vmatpush2.bf16.msra.mxu0 %v880
  %1014 = vmatprep.subr.bf16.mxu0 0
  %1015 = vmatpush2.bf16.msra.mxu0 %v879
  %1016 = vmatprep.subr.bf16.mxu0 0
  %1017 = vmatpush2.bf16.msra.mxu0 %v878
  %1018 = vmatprep.subr.bf16.mxu0 0
  %1019 = vmatpush2.bf16.msra.mxu0 %v877
  %1020 = vmatprep.subr.bf16.mxu0 0
  %1021 = vmatpush2.bf16.msra.mxu0 %v876
  %1022 = vmatprep.subr.bf16.mxu0 0
  %1023 = vmatpush2.bf16.msra.mxu0 %v875
  %1024 = vmatprep.subr.bf16.mxu0 0
  %1025 = vmatpush2.bf16.msra.mxu0 %v874
  %1026 = vmatprep.mubr.bf16.mxu0 %v483
  %1027 = vmatmul.mubr.bf16.gmra.mxu0 %v482
  %v1028 = vpop.f32.mrf.mxu0
  %v1029 = vadd.f32 %v288, %v1028
  %v1030 = vpop.f32.mrf.mxu0
  %v1031 = vpop.f32.mrf.mxu0
  %v1032 = vadd.f32 %v288, %v1031
  %v1033 = vpop.f32.mrf.mxu0
  %1034 = vmatprep.mubr.bf16.mxu0 %v491
  %1035 = vmatmul.mubr.bf16.gmra.mxu0 %v490
  %v1036 = vpop.f32.mrf.mxu0
  %v1037 = vadd.f32 %v288, %v1036
  %v1038 = vpop.f32.mrf.mxu0
  %v1039 = vpop.f32.mrf.mxu0
  %v1040 = vadd.f32 %v288, %v1039
  %v1041 = vpop.f32.mrf.mxu0
  %1042 = vmatprep.mubr.bf16.mxu0 %v499
  %1043 = vmatmul.mubr.bf16.gmra.mxu0 %v498
  %v1044 = vpop.f32.mrf.mxu0
  %v1045 = vadd.f32 %v288, %v1044
  %v1046 = vpop.f32.mrf.mxu0
  %v1047 = vpop.f32.mrf.mxu0
  %v1048 = vadd.f32 %v288, %v1047
  %v1049 = vpop.f32.mrf.mxu0
  %1050 = vmatprep.mubr.bf16.mxu0 %v507
  %1051 = vmatmul.mubr.bf16.gmra.mxu0 %v506
  %v1052 = vpop.f32.mrf.mxu0
  %v1053 = vadd.f32 %v288, %v1052
  %v1054 = vpop.f32.mrf.mxu0
  %v1055 = vpop.f32.mrf.mxu0
  %v1056 = vadd.f32 %v288, %v1055
  %v1057 = vpop.f32.mrf.mxu0
  %1058 = vmatprep.mubr.bf16.mxu0 %v515
  %1059 = vmatmul.mubr.bf16.gmra.mxu0 %v514
  %v1060 = vpop.f32.mrf.mxu0
  %v1061 = vadd.f32 %v288, %v1060
  %v1062 = vpop.f32.mrf.mxu0
  %v1063 = vpop.f32.mrf.mxu0
  %v1064 = vadd.f32 %v288, %v1063
  %v1065 = vpop.f32.mrf.mxu0
  %1066 = vmatprep.mubr.bf16.mxu0 %v523
  %1067 = vmatmul.mubr.bf16.gmra.mxu0 %v522
  %v1068 = vpop.f32.mrf.mxu0
  %v1069 = vadd.f32 %v288, %v1068
  %v1070 = vpop.f32.mrf.mxu0
  %v1071 = vpop.f32.mrf.mxu0
  %v1072 = vadd.f32 %v288, %v1071
  %v1073 = vpop.f32.mrf.mxu0
  %1074 = vmatprep.mubr.bf16.mxu0 %v531
  %1075 = vmatmul.mubr.bf16.gmra.mxu0 %v530
  %v1076 = vpop.f32.mrf.mxu0
  %v1077 = vadd.f32 %v288, %v1076
  %v1078 = vpop.f32.mrf.mxu0
  %v1079 = vpop.f32.mrf.mxu0
  %v1080 = vadd.f32 %v288, %v1079
  %v1081 = vpop.f32.mrf.mxu0
  %1082 = vmatprep.mubr.bf16.mxu0 %v539
  %1083 = vmatmul.mubr.bf16.gmra.mxu0 %v538
  %v1084 = vpop.f32.mrf.mxu0
  %v1085 = vadd.f32 %v288, %v1084
  %v1086 = vpop.f32.mrf.mxu0
  %v1087 = vpop.f32.mrf.mxu0
  %v1088 = vadd.f32 %v288, %v1087
  %v1089 = vpop.f32.mrf.mxu0
  %1090 = vdwg.mxu0
  %1091 = vmatprep.subr.bf16.mxu0 0
  %1092 = vmatpush1.bf16.msra.mxu0 %v889
  %1093 = vmatprep.subr.bf16.mxu0 0
  %1094 = vmatpush1.bf16.msra.mxu0 %v888
  %1095 = vmatprep.subr.bf16.mxu0 0
  %1096 = vmatpush1.bf16.msra.mxu0 %v887
  %1097 = vmatprep.subr.bf16.mxu0 0
  %1098 = vmatpush1.bf16.msra.mxu0 %v886
  %1099 = vmatprep.subr.bf16.mxu0 0
  %1100 = vmatpush1.bf16.msra.mxu0 %v885
  %1101 = vmatprep.subr.bf16.mxu0 0
  %1102 = vmatpush1.bf16.msra.mxu0 %v884
  %1103 = vmatprep.subr.bf16.mxu0 0
  %1104 = vmatpush1.bf16.msra.mxu0 %v883
  %1105 = vmatprep.subr.bf16.mxu0 0
  %1106 = vmatpush1.bf16.msra.mxu0 %v882
  %1107 = vmatprep.subr.bf16.mxu0 0
  %1108 = vmatpush2.bf16.msra.mxu0 %v897
  %1109 = vmatprep.subr.bf16.mxu0 0
  %1110 = vmatpush2.bf16.msra.mxu0 %v896
  %1111 = vmatprep.subr.bf16.mxu0 0
  %1112 = vmatpush2.bf16.msra.mxu0 %v895
  %1113 = vmatprep.subr.bf16.mxu0 0
  %1114 = vmatpush2.bf16.msra.mxu0 %v894
  %1115 = vmatprep.subr.bf16.mxu0 0
  %1116 = vmatpush2.bf16.msra.mxu0 %v893
  %1117 = vmatprep.subr.bf16.mxu0 0
  %1118 = vmatpush2.bf16.msra.mxu0 %v892
  %1119 = vmatprep.subr.bf16.mxu0 0
  %1120 = vmatpush2.bf16.msra.mxu0 %v891
  %1121 = vmatprep.subr.bf16.mxu0 0
  %1122 = vmatpush2.bf16.msra.mxu0 %v890
  %1123 = vmatprep.mubr.bf16.mxu0 %v485
  %1124 = vmatmul.mubr.bf16.gmra.mxu0 %v484
  %v1125 = vpop.f32.mrf.mxu0
  %v1126 = vadd.f32 %v1029, %v1125
  %v1127 = vpop.f32.mrf.mxu0
  %v1128 = vpop.f32.mrf.mxu0
  %v1129 = vadd.f32 %v1032, %v1128
  %v1130 = vpop.f32.mrf.mxu0
  %1131 = vmatprep.mubr.bf16.mxu0 %v493
  %1132 = vmatmul.mubr.bf16.gmra.mxu0 %v492
  %v1133 = vpop.f32.mrf.mxu0
  %v1134 = vadd.f32 %v1037, %v1133
  %v1135 = vpop.f32.mrf.mxu0
  %v1136 = vpop.f32.mrf.mxu0
  %v1137 = vadd.f32 %v1040, %v1136
  %v1138 = vpop.f32.mrf.mxu0
  %1139 = vmatprep.mubr.bf16.mxu0 %v501
  %1140 = vmatmul.mubr.bf16.gmra.mxu0 %v500
  %v1141 = vpop.f32.mrf.mxu0
  %v1142 = vadd.f32 %v1045, %v1141
  %v1143 = vpop.f32.mrf.mxu0
  %v1144 = vpop.f32.mrf.mxu0
  %v1145 = vadd.f32 %v1048, %v1144
  %v1146 = vpop.f32.mrf.mxu0
  %1147 = vmatprep.mubr.bf16.mxu0 %v509
  %1148 = vmatmul.mubr.bf16.gmra.mxu0 %v508
  %v1149 = vpop.f32.mrf.mxu0
  %v1150 = vadd.f32 %v1053, %v1149
  %v1151 = vpop.f32.mrf.mxu0
  %v1152 = vpop.f32.mrf.mxu0
  %v1153 = vadd.f32 %v1056, %v1152
  %v1154 = vpop.f32.mrf.mxu0
  %1155 = vmatprep.mubr.bf16.mxu0 %v517
  %1156 = vmatmul.mubr.bf16.gmra.mxu0 %v516
  %v1157 = vpop.f32.mrf.mxu0
  %v1158 = vadd.f32 %v1061, %v1157
  %v1159 = vpop.f32.mrf.mxu0
  %v1160 = vpop.f32.mrf.mxu0
  %v1161 = vadd.f32 %v1064, %v1160
  %v1162 = vpop.f32.mrf.mxu0
  %1163 = vmatprep.mubr.bf16.mxu0 %v525
  %1164 = vmatmul.mubr.bf16.gmra.mxu0 %v524
  %v1165 = vpop.f32.mrf.mxu0
  %v1166 = vadd.f32 %v1069, %v1165
  %v1167 = vpop.f32.mrf.mxu0
  %v1168 = vpop.f32.mrf.mxu0
  %v1169 = vadd.f32 %v1072, %v1168
  %v1170 = vpop.f32.mrf.mxu0
  %1171 = vmatprep.mubr.bf16.mxu0 %v533
  %1172 = vmatmul.mubr.bf16.gmra.mxu0 %v532
  %v1173 = vpop.f32.mrf.mxu0
  %v1174 = vadd.f32 %v1077, %v1173
  %v1175 = vpop.f32.mrf.mxu0
  %v1176 = vpop.f32.mrf.mxu0
  %v1177 = vadd.f32 %v1080, %v1176
  %v1178 = vpop.f32.mrf.mxu0
  %1179 = vmatprep.mubr.bf16.mxu0 %v541
  %1180 = vmatmul.mubr.bf16.gmra.mxu0 %v540
  %v1181 = vpop.f32.mrf.mxu0
  %v1182 = vadd.f32 %v1085, %v1181
  %v1183 = vpop.f32.mrf.mxu0
  %v1184 = vpop.f32.mrf.mxu0
  %v1185 = vadd.f32 %v1088, %v1184
  %v1186 = vpop.f32.mrf.mxu0
  %1187 = vdwg.mxu0
  %1188 = vmatprep.subr.bf16.mxu0 0
  %1189 = vmatpush1.bf16.msra.mxu0 %v905
  %1190 = vmatprep.subr.bf16.mxu0 0
  %1191 = vmatpush1.bf16.msra.mxu0 %v904
  %1192 = vmatprep.subr.bf16.mxu0 0
  %1193 = vmatpush1.bf16.msra.mxu0 %v903
  %1194 = vmatprep.subr.bf16.mxu0 0
  %1195 = vmatpush1.bf16.msra.mxu0 %v902
  %1196 = vmatprep.subr.bf16.mxu0 0
  %1197 = vmatpush1.bf16.msra.mxu0 %v901
  %1198 = vmatprep.subr.bf16.mxu0 0
  %1199 = vmatpush1.bf16.msra.mxu0 %v900
  %1200 = vmatprep.subr.bf16.mxu0 0
  %1201 = vmatpush1.bf16.msra.mxu0 %v899
  %1202 = vmatprep.subr.bf16.mxu0 0
  %1203 = vmatpush1.bf16.msra.mxu0 %v898
  %1204 = vmatprep.subr.bf16.mxu0 0
  %1205 = vmatpush2.bf16.msra.mxu0 %v913
  %1206 = vmatprep.subr.bf16.mxu0 0
  %1207 = vmatpush2.bf16.msra.mxu0 %v912
  %1208 = vmatprep.subr.bf16.mxu0 0
  %1209 = vmatpush2.bf16.msra.mxu0 %v911
  %1210 = vmatprep.subr.bf16.mxu0 0
  %1211 = vmatpush2.bf16.msra.mxu0 %v910
  %1212 = vmatprep.subr.bf16.mxu0 0
  %1213 = vmatpush2.bf16.msra.mxu0 %v909
  %1214 = vmatprep.subr.bf16.mxu0 0
  %1215 = vmatpush2.bf16.msra.mxu0 %v908
  %1216 = vmatprep.subr.bf16.mxu0 0
  %1217 = vmatpush2.bf16.msra.mxu0 %v907
  %1218 = vmatprep.subr.bf16.mxu0 0
  %1219 = vmatpush2.bf16.msra.mxu0 %v906
  %1220 = vmatprep.mubr.bf16.mxu0 %v487
  %1221 = vmatmul.mubr.bf16.gmra.mxu0 %v486
  %v1222 = vpop.f32.mrf.mxu0
  %v1223 = vadd.f32 %v1126, %v1222
  %v1224 = vpop.f32.mrf.mxu0
  %v1225 = vpop.f32.mrf.mxu0
  %v1226 = vadd.f32 %v1129, %v1225
  %v1227 = vpop.f32.mrf.mxu0
  %1228 = vmatprep.mubr.bf16.mxu0 %v495
  %1229 = vmatmul.mubr.bf16.gmra.mxu0 %v494
  %v1230 = vpop.f32.mrf.mxu0
  %v1231 = vadd.f32 %v1134, %v1230
  %v1232 = vpop.f32.mrf.mxu0
  %v1233 = vpop.f32.mrf.mxu0
  %v1234 = vadd.f32 %v1137, %v1233
  %v1235 = vpop.f32.mrf.mxu0
  %1236 = vmatprep.mubr.bf16.mxu0 %v503
  %1237 = vmatmul.mubr.bf16.gmra.mxu0 %v502
  %v1238 = vpop.f32.mrf.mxu0
  %v1239 = vadd.f32 %v1142, %v1238
  %v1240 = vpop.f32.mrf.mxu0
  %v1241 = vpop.f32.mrf.mxu0
  %v1242 = vadd.f32 %v1145, %v1241
  %v1243 = vpop.f32.mrf.mxu0
  %1244 = vmatprep.mubr.bf16.mxu0 %v511
  %1245 = vmatmul.mubr.bf16.gmra.mxu0 %v510
  %v1246 = vpop.f32.mrf.mxu0
  %v1247 = vadd.f32 %v1150, %v1246
  %v1248 = vpop.f32.mrf.mxu0
  %v1249 = vpop.f32.mrf.mxu0
  %v1250 = vadd.f32 %v1153, %v1249
  %v1251 = vpop.f32.mrf.mxu0
  %1252 = vmatprep.mubr.bf16.mxu0 %v519
  %1253 = vmatmul.mubr.bf16.gmra.mxu0 %v518
  %v1254 = vpop.f32.mrf.mxu0
  %v1255 = vadd.f32 %v1158, %v1254
  %v1256 = vpop.f32.mrf.mxu0
  %v1257 = vpop.f32.mrf.mxu0
  %v1258 = vadd.f32 %v1161, %v1257
  %v1259 = vpop.f32.mrf.mxu0
  %1260 = vmatprep.mubr.bf16.mxu0 %v527
  %1261 = vmatmul.mubr.bf16.gmra.mxu0 %v526
  %v1262 = vpop.f32.mrf.mxu0
  %v1263 = vadd.f32 %v1166, %v1262
  %v1264 = vpop.f32.mrf.mxu0
  %v1265 = vpop.f32.mrf.mxu0
  %v1266 = vadd.f32 %v1169, %v1265
  %v1267 = vpop.f32.mrf.mxu0
  %1268 = vmatprep.mubr.bf16.mxu0 %v535
  %1269 = vmatmul.mubr.bf16.gmra.mxu0 %v534
  %v1270 = vpop.f32.mrf.mxu0
  %v1271 = vadd.f32 %v1174, %v1270
  %v1272 = vpop.f32.mrf.mxu0
  %v1273 = vpop.f32.mrf.mxu0
  %v1274 = vadd.f32 %v1177, %v1273
  %v1275 = vpop.f32.mrf.mxu0
  %1276 = vmatprep.mubr.bf16.mxu0 %v543
  %1277 = vmatmul.mubr.bf16.gmra.mxu0 %v542
  %v1278 = vpop.f32.mrf.mxu0
  %v1279 = vadd.f32 %v1182, %v1278
  %v1280 = vpop.f32.mrf.mxu0
  %v1281 = vpop.f32.mrf.mxu0
  %v1282 = vadd.f32 %v1185, %v1281
  %v1283 = vpop.f32.mrf.mxu0
  %1284 = vdwg.mxu0
  %1285 = vmatprep.subr.bf16.mxu0 0
  %1286 = vmatpush1.bf16.msra.mxu0 %v921
  %1287 = vmatprep.subr.bf16.mxu0 0
  %1288 = vmatpush1.bf16.msra.mxu0 %v920
  %1289 = vmatprep.subr.bf16.mxu0 0
  %1290 = vmatpush1.bf16.msra.mxu0 %v919
  %1291 = vmatprep.subr.bf16.mxu0 0
  %1292 = vmatpush1.bf16.msra.mxu0 %v918
  %1293 = vmatprep.subr.bf16.mxu0 0
  %1294 = vmatpush1.bf16.msra.mxu0 %v917
  %1295 = vmatprep.subr.bf16.mxu0 0
  %1296 = vmatpush1.bf16.msra.mxu0 %v916
  %1297 = vmatprep.subr.bf16.mxu0 0
  %1298 = vmatpush1.bf16.msra.mxu0 %v915
  %1299 = vmatprep.subr.bf16.mxu0 0
  %1300 = vmatpush1.bf16.msra.mxu0 %v914
  %1301 = vmatprep.subr.bf16.mxu0 0
  %1302 = vmatpush2.bf16.msra.mxu0 %v929
  %1303 = vmatprep.subr.bf16.mxu0 0
  %1304 = vmatpush2.bf16.msra.mxu0 %v928
  %1305 = vmatprep.subr.bf16.mxu0 0
  %1306 = vmatpush2.bf16.msra.mxu0 %v927
  %1307 = vmatprep.subr.bf16.mxu0 0
  %1308 = vmatpush2.bf16.msra.mxu0 %v926
  %1309 = vmatprep.subr.bf16.mxu0 0
  %1310 = vmatpush2.bf16.msra.mxu0 %v925
  %1311 = vmatprep.subr.bf16.mxu0 0
  %1312 = vmatpush2.bf16.msra.mxu0 %v924
  %1313 = vmatprep.subr.bf16.mxu0 0
  %1314 = vmatpush2.bf16.msra.mxu0 %v923
  %1315 = vmatprep.subr.bf16.mxu0 0
  %1316 = vmatpush2.bf16.msra.mxu0 %v922
  %1317 = vmatprep.mubr.bf16.mxu0 %v489
  %1318 = vmatmul.mubr.bf16.gmra.mxu0 %v488
  %v1319 = vpop.f32.mrf.mxu0
  %v1320 = vadd.f32 %v1223, %v1319
  %v1321 = vpop.f32.mrf.mxu0
  %v1322 = vpop.f32.mrf.mxu0
  %v1323 = vadd.f32 %v1226, %v1322
  %v1324 = vpop.f32.mrf.mxu0
  %1325 = vmatprep.mubr.bf16.mxu0 %v497
  %1326 = vmatmul.mubr.bf16.gmra.mxu0 %v496
  %v1327 = vpop.f32.mrf.mxu0
  %v1328 = vadd.f32 %v1231, %v1327
  %v1329 = vpop.f32.mrf.mxu0
  %v1330 = vpop.f32.mrf.mxu0
  %v1331 = vadd.f32 %v1234, %v1330
  %v1332 = vpop.f32.mrf.mxu0
  %1333 = vmatprep.mubr.bf16.mxu0 %v505
  %1334 = vmatmul.mubr.bf16.gmra.mxu0 %v504
  %v1335 = vpop.f32.mrf.mxu0
  %v1336 = vadd.f32 %v1239, %v1335
  %v1337 = vpop.f32.mrf.mxu0
  %v1338 = vpop.f32.mrf.mxu0
  %v1339 = vadd.f32 %v1242, %v1338
  %v1340 = vpop.f32.mrf.mxu0
  %1341 = vmatprep.mubr.bf16.mxu0 %v513
  %1342 = vmatmul.mubr.bf16.gmra.mxu0 %v512
  %v1343 = vpop.f32.mrf.mxu0
  %v1344 = vadd.f32 %v1247, %v1343
  %v1345 = vpop.f32.mrf.mxu0
  %v1346 = vpop.f32.mrf.mxu0
  %v1347 = vadd.f32 %v1250, %v1346
  %v1348 = vpop.f32.mrf.mxu0
  %1349 = vmatprep.mubr.bf16.mxu0 %v521
  %1350 = vmatmul.mubr.bf16.gmra.mxu0 %v520
  %v1351 = vpop.f32.mrf.mxu0
  %v1352 = vadd.f32 %v1255, %v1351
  %v1353 = vpop.f32.mrf.mxu0
  %v1354 = vpop.f32.mrf.mxu0
  %v1355 = vadd.f32 %v1258, %v1354
  %v1356 = vpop.f32.mrf.mxu0
  %1357 = vmatprep.mubr.bf16.mxu0 %v529
  %1358 = vmatmul.mubr.bf16.gmra.mxu0 %v528
  %v1359 = vpop.f32.mrf.mxu0
  %v1360 = vadd.f32 %v1263, %v1359
  %v1361 = vpop.f32.mrf.mxu0
  %v1362 = vpop.f32.mrf.mxu0
  %v1363 = vadd.f32 %v1266, %v1362
  %v1364 = vpop.f32.mrf.mxu0
  %1365 = vmatprep.mubr.bf16.mxu0 %v537
  %1366 = vmatmul.mubr.bf16.gmra.mxu0 %v536
  %v1367 = vpop.f32.mrf.mxu0
  %v1368 = vadd.f32 %v1271, %v1367
  %v1369 = vpop.f32.mrf.mxu0
  %v1370 = vpop.f32.mrf.mxu0
  %v1371 = vadd.f32 %v1274, %v1370
  %v1372 = vpop.f32.mrf.mxu0
  %1373 = vmatprep.mubr.bf16.mxu0 %v545
  %1374 = vmatmul.mubr.bf16.gmra.mxu0 %v544
  %v1375 = vpop.f32.mrf.mxu0
  %v1376 = vadd.f32 %v1279, %v1375
  %v1377 = vpop.f32.mrf.mxu0
  %v1378 = vpop.f32.mrf.mxu0
  %v1379 = vadd.f32 %v1282, %v1378
  %v1380 = vpop.f32.mrf.mxu0
  %1381 = vdwg.mxu0
  %v1382 = vmax.f32 %v1320, 0.0
  %v1383 = vmax.f32 %v1323, 0.0
  %v1384 = vmax.f32 %v1328, 0.0
  %v1385 = vmax.f32 %v1331, 0.0
  %v1386 = vmax.f32 %v1336, 0.0
  %v1387 = vmax.f32 %v1339, 0.0
  %v1388 = vmax.f32 %v1344, 0.0
  %v1389 = vmax.f32 %v1347, 0.0
  %v1390 = vmax.f32 %v1352, 0.0
  %v1391 = vmax.f32 %v1355, 0.0
  %v1392 = vmax.f32 %v1360, 0.0
  %v1393 = vmax.f32 %v1363, 0.0
  %v1394 = vmax.f32 %v1368, 0.0
  %v1395 = vmax.f32 %v1371, 0.0
  %v1396 = vmax.f32 %v1376, 0.0
  %v1397 = vmax.f32 %v1379, 0.0
  %1398 = vadd.xlane.f32.xlu0 %v1382
  %v1399 = vpop.xlane.xlu0 %1398
  %1400 = vadd.xlane.f32.xlu0 %v1383
  %v1401 = vpop.xlane.xlu0 %1400
  %1402 = vadd.xlane.f32.xlu0 %v1384
  %v1403 = vpop.xlane.xlu0 %1402
  %1404 = vadd.xlane.f32.xlu0 %v1385
  %v1405 = vpop.xlane.xlu0 %1404
  %1406 = vadd.xlane.f32.xlu0 %v1386
  %v1407 = vpop.xlane.xlu0 %1406
  %1408 = vadd.xlane.f32.xlu0 %v1387
  %v1409 = vpop.xlane.xlu0 %1408
  %1410 = vadd.xlane.f32.xlu0 %v1388
  %v1411 = vpop.xlane.xlu0 %1410
  %1412 = vadd.xlane.f32.xlu0 %v1389
  %v1413 = vpop.xlane.xlu0 %1412
  %1414 = vadd.xlane.f32.xlu0 %v1390
  %v1415 = vpop.xlane.xlu0 %1414
  %1416 = vadd.xlane.f32.xlu0 %v1391
  %v1417 = vpop.xlane.xlu0 %1416
  %1418 = vadd.xlane.f32.xlu0 %v1392
  %v1419 = vpop.xlane.xlu0 %1418
  %1420 = vadd.xlane.f32.xlu0 %v1393
  %v1421 = vpop.xlane.xlu0 %1420
  %1422 = vadd.xlane.f32.xlu0 %v1394
  %v1423 = vpop.xlane.xlu0 %1422
  %1424 = vadd.xlane.f32.xlu0 %v1395
  %v1425 = vpop.xlane.xlu0 %1424
  %1426 = vadd.xlane.f32.xlu0 %v1396
  %v1427 = vpop.xlane.xlu0 %1426
  %1428 = vadd.xlane.f32.xlu0 %v1397
  %v1429 = vpop.xlane.xlu0 %1428
  %v1430 = vrcp.pop 128.0
  %v1431 = vmul.f32 %v1399, %v1430
  %v1432 = vmul.f32 %v1401, %v1430
  %v1433 = vmul.f32 %v1403, %v1430
  %v1434 = vmul.f32 %v1405, %v1430
  %v1435 = vmul.f32 %v1407, %v1430
  %v1436 = vmul.f32 %v1409, %v1430
  %v1437 = vmul.f32 %v1411, %v1430
  %v1438 = vmul.f32 %v1413, %v1430
  %v1439 = vmul.f32 %v1415, %v1430
  %v1440 = vmul.f32 %v1417, %v1430
  %v1441 = vmul.f32 %v1419, %v1430
  %v1442 = vmul.f32 %v1421, %v1430
  %v1443 = vmul.f32 %v1423, %v1430
  %v1444 = vmul.f32 %v1425, %v1430
  %v1445 = vmul.f32 %v1427, %v1430
  %v1446 = vmul.f32 %v1429, %v1430
  %v1447 = vsub.f32 %v1382, %v1431
  %v1448 = vsub.f32 %v1383, %v1432
  %v1449 = vsub.f32 %v1384, %v1433
  %v1450 = vsub.f32 %v1385, %v1434
  %v1451 = vsub.f32 %v1386, %v1435
  %v1452 = vsub.f32 %v1387, %v1436
  %v1453 = vsub.f32 %v1388, %v1437
  %v1454 = vsub.f32 %v1389, %v1438
  %v1455 = vsub.f32 %v1390, %v1439
  %v1456 = vsub.f32 %v1391, %v1440
  %v1457 = vsub.f32 %v1392, %v1441
  %v1458 = vsub.f32 %v1393, %v1442
  %v1459 = vsub.f32 %v1394, %v1443
  %v1460 = vsub.f32 %v1395, %v1444
  %v1461 = vsub.f32 %v1396, %v1445
  %v1462 = vsub.f32 %v1397, %v1446
  %v1463 = vmul.f32 %v1447, %v1447
  %v1464 = vmul.f32 %v1448, %v1448
  %v1465 = vmul.f32 %v1449, %v1449
  %v1466 = vmul.f32 %v1450, %v1450
  %v1467 = vmul.f32 %v1451, %v1451
  %v1468 = vmul.f32 %v1452, %v1452
  %v1469 = vmul.f32 %v1453, %v1453
  %v1470 = vmul.f32 %v1454, %v1454
  %v1471 = vmul.f32 %v1455, %v1455
  %v1472 = vmul.f32 %v1456, %v1456
  %v1473 = vmul.f32 %v1457, %v1457
  %v1474 = vmul.f32 %v1458, %v1458
  %v1475 = vmul.f32 %v1459, %v1459
  %v1476 = vmul.f32 %v1460, %v1460
  %v1477 = vmul.f32 %v1461, %v1461
  %v1478 = vmul.f32 %v1462, %v1462
  %1479 = vadd.xlane.f32.xlu0 %v1463
  %v1480 = vpop.xlane.xlu0 %1479
  %1481 = vadd.xlane.f32.xlu0 %v1464
  %v1482 = vpop.xlane.xlu0 %1481
  %1483 = vadd.xlane.f32.xlu0 %v1465
  %v1484 = vpop.xlane.xlu0 %1483
  %1485 = vadd.xlane.f32.xlu0 %v1466
  %v1486 = vpop.xlane.xlu0 %1485
  %1487 = vadd.xlane.f32.xlu0 %v1467
  %v1488 = vpop.xlane.xlu0 %1487
  %1489 = vadd.xlane.f32.xlu0 %v1468
  %v1490 = vpop.xlane.xlu0 %1489
  %1491 = vadd.xlane.f32.xlu0 %v1469
  %v1492 = vpop.xlane.xlu0 %1491
  %1493 = vadd.xlane.f32.xlu0 %v1470
  %v1494 = vpop.xlane.xlu0 %1493
  %1495 = vadd.xlane.f32.xlu0 %v1471
  %v1496 = vpop.xlane.xlu0 %1495
  %1497 = vadd.xlane.f32.xlu0 %v1472
  %v1498 = vpop.xlane.xlu0 %1497
  %1499 = vadd.xlane.f32.xlu0 %v1473
  %v1500 = vpop.xlane.xlu0 %1499
  %1501 = vadd.xlane.f32.xlu0 %v1474
  %v1502 = vpop.xlane.xlu0 %1501
  %1503 = vadd.xlane.f32.xlu0 %v1475
  %v1504 = vpop.xlane.xlu0 %1503
  %1505 = vadd.xlane.f32.xlu0 %v1476
  %v1506 = vpop.xlane.xlu0 %1505
  %1507 = vadd.xlane.f32.xlu0 %v1477
  %v1508 = vpop.xlane.xlu0 %1507
  %1509 = vadd.xlane.f32.xlu0 %v1478
  %v1510 = vpop.xlane.xlu0 %1509
  %v1511 = vmul.f32 %v1480, %v1430
  %v1512 = vmul.f32 %v1482, %v1430
  %v1513 = vmul.f32 %v1484, %v1430
  %v1514 = vmul.f32 %v1486, %v1430
  %v1515 = vmul.f32 %v1488, %v1430
  %v1516 = vmul.f32 %v1490, %v1430
  %v1517 = vmul.f32 %v1492, %v1430
  %v1518 = vmul.f32 %v1494, %v1430
  %v1519 = vmul.f32 %v1496, %v1430
  %v1520 = vmul.f32 %v1498, %v1430
  %v1521 = vmul.f32 %v1500, %v1430
  %v1522 = vmul.f32 %v1502, %v1430
  %v1523 = vmul.f32 %v1504, %v1430
  %v1524 = vmul.f32 %v1506, %v1430
  %v1525 = vmul.f32 %v1508, %v1430
  %v1526 = vmul.f32 %v1510, %v1430
  %v1527 = vadd.f32 %v1511, 1e-05
  %v1528 = vadd.f32 %v1512, 1e-05
  %v1529 = vadd.f32 %v1513, 1e-05
  %v1530 = vadd.f32 %v1514, 1e-05
  %v1531 = vadd.f32 %v1515, 1e-05
  %v1532 = vadd.f32 %v1516, 1e-05
  %v1533 = vadd.f32 %v1517, 1e-05
  %v1534 = vadd.f32 %v1518, 1e-05
  %v1535 = vadd.f32 %v1519, 1e-05
  %v1536 = vadd.f32 %v1520, 1e-05
  %v1537 = vadd.f32 %v1521, 1e-05
  %v1538 = vadd.f32 %v1522, 1e-05
  %v1539 = vadd.f32 %v1523, 1e-05
  %v1540 = vadd.f32 %v1524, 1e-05
  %v1541 = vadd.f32 %v1525, 1e-05
  %v1542 = vadd.f32 %v1526, 1e-05
  %v1543 = vrsqrt.pop %v1527
  %v1544 = vrsqrt.pop %v1528
  %v1545 = vrsqrt.pop %v1529
  %v1546 = vrsqrt.pop %v1530
  %v1547 = vrsqrt.pop %v1531
  %v1548 = vrsqrt.pop %v1532
  %v1549 = vrsqrt.pop %v1533
  %v1550 = vrsqrt.pop %v1534
  %v1551 = vrsqrt.pop %v1535
  %v1552 = vrsqrt.pop %v1536
  %v1553 = vrsqrt.pop %v1537
  %v1554 = vrsqrt.pop %v1538
  %v1555 = vrsqrt.pop %v1539
  %v1556 = vrsqrt.pop %v1540
  %v1557 = vrsqrt.pop %v1541
  %v1558 = vrsqrt.pop %v1542
  %v1559 = vmul.f32 %v1447, %v1543
  %v1560 = vmul.f32 %v1448, %v1544
  %v1561 = vmul.f32 %v1449, %v1545
  %v1562 = vmul.f32 %v1450, %v1546
  %v1563 = vmul.f32 %v1451, %v1547
  %v1564 = vmul.f32 %v1452, %v1548
  %v1565 = vmul.f32 %v1453, %v1549
  %v1566 = vmul.f32 %v1454, %v1550
  %v1567 = vmul.f32 %v1455, %v1551
  %v1568 = vmul.f32 %v1456, %v1552
  %v1569 = vmul.f32 %v1457, %v1553
  %v1570 = vmul.f32 %v1458, %v1554
  %v1571 = vmul.f32 %v1459, %v1555
  %v1572 = vmul.f32 %v1460, %v1556
  %v1573 = vmul.f32 %v1461, %v1557
  %v1574 = vmul.f32 %v1462, %v1558
  %v1575 = vld [vmem:[%s3] sm:$0x1]
  %v1577 = vlaneseq
  %v1578 = vshrl.u32 %v1577, 7
  %v1579 = vsub.s32 0, %v1578
  %v1580 = vrot.slane %v1575, %v1579
  %v1582 = vmul.f32 %v1559, %v1580
  %v1583 = vmul.f32 %v1560, %v1580
  %v1584 = vmul.f32 %v1561, %v1580
  %v1585 = vmul.f32 %v1562, %v1580
  %v1586 = vmul.f32 %v1563, %v1580
  %v1587 = vmul.f32 %v1564, %v1580
  %v1588 = vmul.f32 %v1565, %v1580
  %v1589 = vmul.f32 %v1566, %v1580
  %v1590 = vmul.f32 %v1567, %v1580
  %v1591 = vmul.f32 %v1568, %v1580
  %v1592 = vmul.f32 %v1569, %v1580
  %v1593 = vmul.f32 %v1570, %v1580
  %v1594 = vmul.f32 %v1571, %v1580
  %v1595 = vmul.f32 %v1572, %v1580
  %v1596 = vmul.f32 %v1573, %v1580
  %v1597 = vmul.f32 %v1574, %v1580
  %v1598 = vld [vmem:[%s4] sm:$0x1]
  %v1600 = vlaneseq
  %v1601 = vshrl.u32 %v1600, 7
  %v1602 = vsub.s32 0, %v1601
  %v1603 = vrot.slane %v1598, %v1602
  %v1605 = vadd.f32 %v1582, %v1603
  %v1606 = vadd.f32 %v1583, %v1603
  %v1607 = vadd.f32 %v1584, %v1603
  %v1608 = vadd.f32 %v1585, %v1603
  %v1609 = vadd.f32 %v1586, %v1603
  %v1610 = vadd.f32 %v1587, %v1603
  %v1611 = vadd.f32 %v1588, %v1603
  %v1612 = vadd.f32 %v1589, %v1603
  %v1613 = vadd.f32 %v1590, %v1603
  %v1614 = vadd.f32 %v1591, %v1603
  %v1615 = vadd.f32 %v1592, %v1603
  %v1616 = vadd.f32 %v1593, %v1603
  %v1617 = vadd.f32 %v1594, %v1603
  %v1618 = vadd.f32 %v1595, %v1603
  %v1619 = vadd.f32 %v1596, %v1603
  %v1620 = vadd.f32 %v1597, %v1603
  %1621 = vst [vmem:[%s6] sm:$0xff] %v1605
  %1622 = vst [vmem:[%s6 + $0x8] sm:$0xff] %v1606
  %1623 = vst [vmem:[%s6 + $0x10] sm:$0xff] %v1607
  %1624 = vst [vmem:[%s6 + $0x18] sm:$0xff] %v1608
  %1625 = vst [vmem:[%s6 + $0x20] sm:$0xff] %v1609
  %1626 = vst [vmem:[%s6 + $0x28] sm:$0xff] %v1610
  %1627 = vst [vmem:[%s6 + $0x30] sm:$0xff] %v1611
  %1628 = vst [vmem:[%s6 + $0x38] sm:$0xff] %v1612
  %1629 = vst [vmem:[%s6 + $0x40] sm:$0xff] %v1613
  %1630 = vst [vmem:[%s6 + $0x48] sm:$0xff] %v1614
  %1631 = vst [vmem:[%s6 + $0x50] sm:$0xff] %v1615
  %1632 = vst [vmem:[%s6 + $0x58] sm:$0xff] %v1616
  %1633 = vst [vmem:[%s6 + $0x60] sm:$0xff] %v1617
  %1634 = vst [vmem:[%s6 + $0x68] sm:$0xff] %v1618
  %1635 = vst [vmem:[%s6 + $0x70] sm:$0xff] %v1619
  %1636 = vst [vmem:[%s6 + $0x78] sm:$0xff] %v1620
  %v1637 = vpack.c.bf16 %v1606, %v1605
  %v1638 = vpack.c.bf16 %v1608, %v1607
  %v1639 = vpack.c.bf16 %v1610, %v1609
  %v1640 = vpack.c.bf16 %v1612, %v1611
  %v1641 = vpack.c.bf16 %v1614, %v1613
  %v1642 = vpack.c.bf16 %v1616, %v1615
  %v1643 = vpack.c.bf16 %v1618, %v1617
  %v1644 = vpack.c.bf16 %v1620, %v1619
  %v1645 = vld [vmem:[%s5] sm:$0xff]
  %v1646 = vld [vmem:[%s5 + $0x8] sm:$0xff]
  %v1647 = vld [vmem:[%s5 + $0x10] sm:$0xff]
  %v1648 = vld [vmem:[%s5 + $0x18] sm:$0xff]
  %v1649 = vld [vmem:[%s5 + $0x20] sm:$0xff]
  %v1650 = vld [vmem:[%s5 + $0x28] sm:$0xff]
  %v1651 = vld [vmem:[%s5 + $0x30] sm:$0xff]
  %v1652 = vld [vmem:[%s5 + $0x38] sm:$0xff]
  %v1653 = vld [vmem:[%s5 + $0x40] sm:$0xff]
  %v1654 = vld [vmem:[%s5 + $0x48] sm:$0xff]
  %v1655 = vld [vmem:[%s5 + $0x50] sm:$0xff]
  %v1656 = vld [vmem:[%s5 + $0x58] sm:$0xff]
  %v1657 = vld [vmem:[%s5 + $0x60] sm:$0xff]
  %v1658 = vld [vmem:[%s5 + $0x68] sm:$0xff]
  %v1659 = vld [vmem:[%s5 + $0x70] sm:$0xff]
  %v1660 = vld [vmem:[%s5 + $0x78] sm:$0xff]
  %v1661 = vld [vmem:[%s5 + $0x80] sm:$0xff]
  %v1662 = vld [vmem:[%s5 + $0x88] sm:$0xff]
  %v1663 = vld [vmem:[%s5 + $0x90] sm:$0xff]
  %v1664 = vld [vmem:[%s5 + $0x98] sm:$0xff]
  %v1665 = vld [vmem:[%s5 + $0xa0] sm:$0xff]
  %v1666 = vld [vmem:[%s5 + $0xa8] sm:$0xff]
  %v1667 = vld [vmem:[%s5 + $0xb0] sm:$0xff]
  %v1668 = vld [vmem:[%s5 + $0xb8] sm:$0xff]
  %v1669 = vld [vmem:[%s5 + $0xc0] sm:$0xff]
  %v1670 = vld [vmem:[%s5 + $0xc8] sm:$0xff]
  %v1671 = vld [vmem:[%s5 + $0xd0] sm:$0xff]
  %v1672 = vld [vmem:[%s5 + $0xd8] sm:$0xff]
  %v1673 = vld [vmem:[%s5 + $0xe0] sm:$0xff]
  %v1674 = vld [vmem:[%s5 + $0xe8] sm:$0xff]
  %v1675 = vld [vmem:[%s5 + $0xf0] sm:$0xff]
  %v1676 = vld [vmem:[%s5 + $0xf8] sm:$0xff]
  %v1709 = vunpack.c.l.b16 %v1645
  %v1710 = vunpack.c.h.b16 %v1645
  %v1711 = vunpack.c.l.b16 %v1646
  %v1712 = vunpack.c.h.b16 %v1646
  %v1713 = vunpack.c.l.b16 %v1647
  %v1714 = vunpack.c.h.b16 %v1647
  %v1715 = vunpack.c.l.b16 %v1648
  %v1716 = vunpack.c.h.b16 %v1648
  %v1717 = vunpack.c.l.b16 %v1649
  %v1718 = vunpack.c.h.b16 %v1649
  %v1719 = vunpack.c.l.b16 %v1650
  %v1720 = vunpack.c.h.b16 %v1650
  %v1721 = vunpack.c.l.b16 %v1651
  %v1722 = vunpack.c.h.b16 %v1651
  %v1723 = vunpack.c.l.b16 %v1652
  %v1724 = vunpack.c.h.b16 %v1652
  %v1725 = vunpack.c.l.b16 %v1653
  %v1726 = vunpack.c.h.b16 %v1653
  %v1727 = vunpack.c.l.b16 %v1654
  %v1728 = vunpack.c.h.b16 %v1654
  %v1729 = vunpack.c.l.b16 %v1655
  %v1730 = vunpack.c.h.b16 %v1655
  %v1731 = vunpack.c.l.b16 %v1656
  %v1732 = vunpack.c.h.b16 %v1656
  %v1733 = vunpack.c.l.b16 %v1657
  %v1734 = vunpack.c.h.b16 %v1657
  %v1735 = vunpack.c.l.b16 %v1658
  %v1736 = vunpack.c.h.b16 %v1658
  %v1737 = vunpack.c.l.b16 %v1659
  %v1738 = vunpack.c.h.b16 %v1659
  %v1739 = vunpack.c.l.b16 %v1660
  %v1740 = vunpack.c.h.b16 %v1660
  %v1741 = vunpack.c.l.b16 %v1661
  %v1742 = vunpack.c.h.b16 %v1661
  %v1743 = vunpack.c.l.b16 %v1662
  %v1744 = vunpack.c.h.b16 %v1662
  %v1745 = vunpack.c.l.b16 %v1663
  %v1746 = vunpack.c.h.b16 %v1663
  %v1747 = vunpack.c.l.b16 %v1664
  %v1748 = vunpack.c.h.b16 %v1664
  %v1749 = vunpack.c.l.b16 %v1665
  %v1750 = vunpack.c.h.b16 %v1665
  %v1751 = vunpack.c.l.b16 %v1666
  %v1752 = vunpack.c.h.b16 %v1666
  %v1753 = vunpack.c.l.b16 %v1667
  %v1754 = vunpack.c.h.b16 %v1667
  %v1755 = vunpack.c.l.b16 %v1668
  %v1756 = vunpack.c.h.b16 %v1668
  %v1757 = vunpack.c.l.b16 %v1669
  %v1758 = vunpack.c.h.b16 %v1669
  %v1759 = vunpack.c.l.b16 %v1670
  %v1760 = vunpack.c.h.b16 %v1670
  %v1761 = vunpack.c.l.b16 %v1671
  %v1762 = vunpack.c.h.b16 %v1671
  %v1763 = vunpack.c.l.b16 %v1672
  %v1764 = vunpack.c.h.b16 %v1672
  %v1765 = vunpack.c.l.b16 %v1673
  %v1766 = vunpack.c.h.b16 %v1673
  %v1767 = vunpack.c.l.b16 %v1674
  %v1768 = vunpack.c.h.b16 %v1674
  %v1769 = vunpack.c.l.b16 %v1675
  %v1770 = vunpack.c.h.b16 %v1675
  %v1771 = vunpack.c.l.b16 %v1676
  %v1772 = vunpack.c.h.b16 %v1676
  %v1773 = vpack.c.b16 %v1713, %v1709
  %v1774 = vpack.c.b16 %v1714, %v1710
  %v1775 = vpack.c.b16 %v1715, %v1711
  %v1776 = vpack.c.b16 %v1716, %v1712
  %v1777 = vpack.c.b16 %v1721, %v1717
  %v1778 = vpack.c.b16 %v1722, %v1718
  %v1779 = vpack.c.b16 %v1723, %v1719
  %v1780 = vpack.c.b16 %v1724, %v1720
  %v1781 = vpack.c.b16 %v1729, %v1725
  %v1782 = vpack.c.b16 %v1730, %v1726
  %v1783 = vpack.c.b16 %v1731, %v1727
  %v1784 = vpack.c.b16 %v1732, %v1728
  %v1785 = vpack.c.b16 %v1737, %v1733
  %v1786 = vpack.c.b16 %v1738, %v1734
  %v1787 = vpack.c.b16 %v1739, %v1735
  %v1788 = vpack.c.b16 %v1740, %v1736
  %v1789 = vpack.c.b16 %v1745, %v1741
  %v1790 = vpack.c.b16 %v1746, %v1742
  %v1791 = vpack.c.b16 %v1747, %v1743
  %v1792 = vpack.c.b16 %v1748, %v1744
  %v1793 = vpack.c.b16 %v1753, %v1749
  %v1794 = vpack.c.b16 %v1754, %v1750
  %v1795 = vpack.c.b16 %v1755, %v1751
  %v1796 = vpack.c.b16 %v1756, %v1752
  %v1797 = vpack.c.b16 %v1761, %v1757
  %v1798 = vpack.c.b16 %v1762, %v1758
  %v1799 = vpack.c.b16 %v1763, %v1759
  %v1800 = vpack.c.b16 %v1764, %v1760
  %v1801 = vpack.c.b16 %v1769, %v1765
  %v1802 = vpack.c.b16 %v1770, %v1766
  %v1803 = vpack.c.b16 %v1771, %v1767
  %v1804 = vpack.c.b16 %v1772, %v1768
  %1837 = vmatprep.subr.bf16.mxu0 %v1802
  %1838 = vmatpush1.bf16.msra.mxu0 %v1801
  %1839 = vmatprep.subr.bf16.mxu0 %v1798
  %1840 = vmatpush1.bf16.msra.mxu0 %v1797
  %1841 = vmatprep.subr.bf16.mxu0 %v1794
  %1842 = vmatpush1.bf16.msra.mxu0 %v1793
  %1843 = vmatprep.subr.bf16.mxu0 %v1790
  %1844 = vmatpush1.bf16.msra.mxu0 %v1789
  %1845 = vmatprep.subr.bf16.mxu0 %v1786
  %1846 = vmatpush1.bf16.msra.mxu0 %v1785
  %1847 = vmatprep.subr.bf16.mxu0 %v1782
  %1848 = vmatpush1.bf16.msra.mxu0 %v1781
  %1849 = vmatprep.subr.bf16.mxu0 %v1778
  %1850 = vmatpush1.bf16.msra.mxu0 %v1777
  %1851 = vmatprep.subr.bf16.mxu0 %v1774
  %1852 = vmatpush1.bf16.msra.mxu0 %v1773
  %1853 = vmatprep.subr.bf16.mxu0 0
  %1854 = vmatpush2.bf16.msra.mxu0 0
  %1855 = vmatprep.subr.bf16.mxu0 0
  %1856 = vmatpush2.bf16.msra.mxu0 0
  %1857 = vmatprep.subr.bf16.mxu0 0
  %1858 = vmatpush2.bf16.msra.mxu0 0
  %1859 = vmatprep.subr.bf16.mxu0 0
  %1860 = vmatpush2.bf16.msra.mxu0 0
  %1861 = vmatprep.subr.bf16.mxu0 0
  %1862 = vmatpush2.bf16.msra.mxu0 0
  %1863 = vmatprep.subr.bf16.mxu0 0
  %1864 = vmatpush2.bf16.msra.mxu0 0
  %1865 = vmatprep.subr.bf16.mxu0 0
  %1866 = vmatpush2.bf16.msra.mxu0 0
  %1867 = vmatprep.subr.bf16.mxu0 0
  %1868 = vmatpush2.bf16.msra.mxu0 0
  %1869 = vmatprep.mubr.bf16.mxu0 0
  %1870 = vmatmul.mubr.bf16.gmra.mxu0 %v1637
  %v1871 = vpop.f32.mrf.mxu0
  %v1872 = vadd.f32 0.0, %v1871
  %v1873 = vpop.f32.mrf.mxu0
  %v1874 = vadd.f32 0.0, %v1873
  %v1875 = vpop.f32.mrf.mxu0
  %v1876 = vadd.f32 0.0, %v1875
  %v1877 = vpop.f32.mrf.mxu0
  %v1878 = vadd.f32 0.0, %v1877
  %1879 = vmatprep.mubr.bf16.mxu0 0
  %1880 = vmatmul.mubr.bf16.gmra.mxu0 %v1638
  %v1881 = vpop.f32.mrf.mxu0
  %v1882 = vadd.f32 0.0, %v1881
  %v1883 = vpop.f32.mrf.mxu0
  %v1884 = vadd.f32 0.0, %v1883
  %v1885 = vpop.f32.mrf.mxu0
  %v1886 = vadd.f32 0.0, %v1885
  %v1887 = vpop.f32.mrf.mxu0
  %v1888 = vadd.f32 0.0, %v1887
  %1889 = vmatprep.mubr.bf16.mxu0 0
  %1890 = vmatmul.mubr.bf16.gmra.mxu0 %v1639
  %v1891 = vpop.f32.mrf.mxu0
  %v1892 = vadd.f32 0.0, %v1891
  %v1893 = vpop.f32.mrf.mxu0
  %v1894 = vadd.f32 0.0, %v1893
  %v1895 = vpop.f32.mrf.mxu0
  %v1896 = vadd.f32 0.0, %v1895
  %v1897 = vpop.f32.mrf.mxu0
  %v1898 = vadd.f32 0.0, %v1897
  %1899 = vmatprep.mubr.bf16.mxu0 0
  %1900 = vmatmul.mubr.bf16.gmra.mxu0 %v1640
  %v1901 = vpop.f32.mrf.mxu0
  %v1902 = vadd.f32 0.0, %v1901
  %v1903 = vpop.f32.mrf.mxu0
  %v1904 = vadd.f32 0.0, %v1903
  %v1905 = vpop.f32.mrf.mxu0
  %v1906 = vadd.f32 0.0, %v1905
  %v1907 = vpop.f32.mrf.mxu0
  %v1908 = vadd.f32 0.0, %v1907
  %1909 = vmatprep.mubr.bf16.mxu0 0
  %1910 = vmatmul.mubr.bf16.gmra.mxu0 %v1641
  %v1911 = vpop.f32.mrf.mxu0
  %v1912 = vadd.f32 0.0, %v1911
  %v1913 = vpop.f32.mrf.mxu0
  %v1914 = vadd.f32 0.0, %v1913
  %v1915 = vpop.f32.mrf.mxu0
  %v1916 = vadd.f32 0.0, %v1915
  %v1917 = vpop.f32.mrf.mxu0
  %v1918 = vadd.f32 0.0, %v1917
  %1919 = vmatprep.mubr.bf16.mxu0 0
  %1920 = vmatmul.mubr.bf16.gmra.mxu0 %v1642
  %v1921 = vpop.f32.mrf.mxu0
  %v1922 = vadd.f32 0.0, %v1921
  %v1923 = vpop.f32.mrf.mxu0
  %v1924 = vadd.f32 0.0, %v1923
  %v1925 = vpop.f32.mrf.mxu0
  %v1926 = vadd.f32 0.0, %v1925
  %v1927 = vpop.f32.mrf.mxu0
  %v1928 = vadd.f32 0.0, %v1927
  %1929 = vmatprep.mubr.bf16.mxu0 0
  %1930 = vmatmul.mubr.bf16.gmra.mxu0 %v1643
  %v1931 = vpop.f32.mrf.mxu0
  %v1932 = vadd.f32 0.0, %v1931
  %v1933 = vpop.f32.mrf.mxu0
  %v1934 = vadd.f32 0.0, %v1933
  %v1935 = vpop.f32.mrf.mxu0
  %v1936 = vadd.f32 0.0, %v1935
  %v1937 = vpop.f32.mrf.mxu0
  %v1938 = vadd.f32 0.0, %v1937
  %1939 = vmatprep.mubr.bf16.mxu0 0
  %1940 = vmatmul.mubr.bf16.gmra.mxu0 %v1644
  %v1941 = vpop.f32.mrf.mxu0
  %v1942 = vadd.f32 0.0, %v1941
  %v1943 = vpop.f32.mrf.mxu0
  %v1944 = vadd.f32 0.0, %v1943
  %v1945 = vpop.f32.mrf.mxu0
  %v1946 = vadd.f32 0.0, %v1945
  %v1947 = vpop.f32.mrf.mxu0
  %v1948 = vadd.f32 0.0, %v1947
  %1949 = vdwg.mxu0
  %1950 = vmatprep.subr.bf16.mxu0 %v1804
  %1951 = vmatpush1.bf16.msra.mxu0 %v1803
  %1952 = vmatprep.subr.bf16.mxu0 %v1800
  %1953 = vmatpush1.bf16.msra.mxu0 %v1799
  %1954 = vmatprep.subr.bf16.mxu0 %v1796
  %1955 = vmatpush1.bf16.msra.mxu0 %v1795
  %1956 = vmatprep.subr.bf16.mxu0 %v1792
  %1957 = vmatpush1.bf16.msra.mxu0 %v1791
  %1958 = vmatprep.subr.bf16.mxu0 %v1788
  %1959 = vmatpush1.bf16.msra.mxu0 %v1787
  %1960 = vmatprep.subr.bf16.mxu0 %v1784
  %1961 = vmatpush1.bf16.msra.mxu0 %v1783
  %1962 = vmatprep.subr.bf16.mxu0 %v1780
  %1963 = vmatpush1.bf16.msra.mxu0 %v1779
  %1964 = vmatprep.subr.bf16.mxu0 %v1776
  %1965 = vmatpush1.bf16.msra.mxu0 %v1775
  %1966 = vmatprep.subr.bf16.mxu0 0
  %1967 = vmatpush2.bf16.msra.mxu0 0
  %1968 = vmatprep.subr.bf16.mxu0 0
  %1969 = vmatpush2.bf16.msra.mxu0 0
  %1970 = vmatprep.subr.bf16.mxu0 0
  %1971 = vmatpush2.bf16.msra.mxu0 0
  %1972 = vmatprep.subr.bf16.mxu0 0
  %1973 = vmatpush2.bf16.msra.mxu0 0
  %1974 = vmatprep.subr.bf16.mxu0 0
  %1975 = vmatpush2.bf16.msra.mxu0 0
  %1976 = vmatprep.subr.bf16.mxu0 0
  %1977 = vmatpush2.bf16.msra.mxu0 0
  %1978 = vmatprep.subr.bf16.mxu0 0
  %1979 = vmatpush2.bf16.msra.mxu0 0
  %1980 = vmatprep.subr.bf16.mxu0 0
  %1981 = vmatpush2.bf16.msra.mxu0 0
  %1982 = vmatprep.mubr.bf16.mxu0 0
  %1983 = vmatmul.mubr.bf16.gmra.mxu0 %v1637
  %v1984 = vpop.f32.mrf.mxu0
  %v1985 = vadd.f32 0.0, %v1984
  %v1986 = vpop.f32.mrf.mxu0
  %v1987 = vadd.f32 0.0, %v1986
  %v1988 = vpop.f32.mrf.mxu0
  %v1989 = vadd.f32 0.0, %v1988
  %v1990 = vpop.f32.mrf.mxu0
  %v1991 = vadd.f32 0.0, %v1990
  %1992 = vmatprep.mubr.bf16.mxu0 0
  %1993 = vmatmul.mubr.bf16.gmra.mxu0 %v1638
  %v1994 = vpop.f32.mrf.mxu0
  %v1995 = vadd.f32 0.0, %v1994
  %v1996 = vpop.f32.mrf.mxu0
  %v1997 = vadd.f32 0.0, %v1996
  %v1998 = vpop.f32.mrf.mxu0
  %v1999 = vadd.f32 0.0, %v1998
  %v2000 = vpop.f32.mrf.mxu0
  %v2001 = vadd.f32 0.0, %v2000
  %2002 = vmatprep.mubr.bf16.mxu0 0
  %2003 = vmatmul.mubr.bf16.gmra.mxu0 %v1639
  %v2004 = vpop.f32.mrf.mxu0
  %v2005 = vadd.f32 0.0, %v2004
  %v2006 = vpop.f32.mrf.mxu0
  %v2007 = vadd.f32 0.0, %v2006
  %v2008 = vpop.f32.mrf.mxu0
  %v2009 = vadd.f32 0.0, %v2008
  %v2010 = vpop.f32.mrf.mxu0
  %v2011 = vadd.f32 0.0, %v2010
  %2012 = vmatprep.mubr.bf16.mxu0 0
  %2013 = vmatmul.mubr.bf16.gmra.mxu0 %v1640
  %v2014 = vpop.f32.mrf.mxu0
  %v2015 = vadd.f32 0.0, %v2014
  %v2016 = vpop.f32.mrf.mxu0
  %v2017 = vadd.f32 0.0, %v2016
  %v2018 = vpop.f32.mrf.mxu0
  %v2019 = vadd.f32 0.0, %v2018
  %v2020 = vpop.f32.mrf.mxu0
  %v2021 = vadd.f32 0.0, %v2020
  %2022 = vmatprep.mubr.bf16.mxu0 0
  %2023 = vmatmul.mubr.bf16.gmra.mxu0 %v1641
  %v2024 = vpop.f32.mrf.mxu0
  %v2025 = vadd.f32 0.0, %v2024
  %v2026 = vpop.f32.mrf.mxu0
  %v2027 = vadd.f32 0.0, %v2026
  %v2028 = vpop.f32.mrf.mxu0
  %v2029 = vadd.f32 0.0, %v2028
  %v2030 = vpop.f32.mrf.mxu0
  %v2031 = vadd.f32 0.0, %v2030
  %2032 = vmatprep.mubr.bf16.mxu0 0
  %2033 = vmatmul.mubr.bf16.gmra.mxu0 %v1642
  %v2034 = vpop.f32.mrf.mxu0
  %v2035 = vadd.f32 0.0, %v2034
  %v2036 = vpop.f32.mrf.mxu0
  %v2037 = vadd.f32 0.0, %v2036
  %v2038 = vpop.f32.mrf.mxu0
  %v2039 = vadd.f32 0.0, %v2038
  %v2040 = vpop.f32.mrf.mxu0
  %v2041 = vadd.f32 0.0, %v2040
  %2042 = vmatprep.mubr.bf16.mxu0 0
  %2043 = vmatmul.mubr.bf16.gmra.mxu0 %v1643
  %v2044 = vpop.f32.mrf.mxu0
  %v2045 = vadd.f32 0.0, %v2044
  %v2046 = vpop.f32.mrf.mxu0
  %v2047 = vadd.f32 0.0, %v2046
  %v2048 = vpop.f32.mrf.mxu0
  %v2049 = vadd.f32 0.0, %v2048
  %v2050 = vpop.f32.mrf.mxu0
  %v2051 = vadd.f32 0.0, %v2050
  %2052 = vmatprep.mubr.bf16.mxu0 0
  %2053 = vmatmul.mubr.bf16.gmra.mxu0 %v1644
  %v2054 = vpop.f32.mrf.mxu0
  %v2055 = vadd.f32 0.0, %v2054
  %v2056 = vpop.f32.mrf.mxu0
  %v2057 = vadd.f32 0.0, %v2056
  %v2058 = vpop.f32.mrf.mxu0
  %v2059 = vadd.f32 0.0, %v2058
  %v2060 = vpop.f32.mrf.mxu0
  %v2061 = vadd.f32 0.0, %v2060
  %2062 = vdwg.mxu0
  %v2063 = vpack.c.bf16 %v1876, %v1872
  %v2064 = vpack.c.bf16 %v1878, %v1874
  %v2065 = vpack.c.bf16 %v1989, %v1985
  %v2066 = vpack.c.bf16 %v1886, %v1882
  %v2067 = vpack.c.bf16 %v1888, %v1884
  %v2068 = vpack.c.bf16 %v1999, %v1995
  %v2069 = vpack.c.bf16 %v1896, %v1892
  %v2070 = vpack.c.bf16 %v1898, %v1894
  %v2071 = vpack.c.bf16 %v2009, %v2005
  %v2072 = vpack.c.bf16 %v1906, %v1902
  %v2073 = vpack.c.bf16 %v1908, %v1904
  %v2074 = vpack.c.bf16 %v2019, %v2015
  %v2075 = vpack.c.bf16 %v1916, %v1912
  %v2076 = vpack.c.bf16 %v1918, %v1914
  %v2077 = vpack.c.bf16 %v2029, %v2025
  %v2078 = vpack.c.bf16 %v1926, %v1922
  %v2079 = vpack.c.bf16 %v1928, %v1924
  %v2080 = vpack.c.bf16 %v2039, %v2035
  %v2081 = vpack.c.bf16 %v1936, %v1932
  %v2082 = vpack.c.bf16 %v1938, %v1934
  %v2083 = vpack.c.bf16 %v2049, %v2045
  %v2084 = vpack.c.bf16 %v1946, %v1942
  %v2085 = vpack.c.bf16 %v1948, %v1944
  %v2086 = vpack.c.bf16 %v2059, %v2055
  %v2111 = vunpack.c.l.b16 %v2063
  %v2112 = vunpack.c.l.b16 %v2064
  %v2113 = vunpack.c.l.b16 %v2065
  %v2114 = vunpack.c.h.b16 %v2063
  %v2115 = vunpack.c.h.b16 %v2064
  %v2116 = vunpack.c.h.b16 %v2065
  %v2117 = vunpack.c.l.b16 %v2066
  %v2118 = vunpack.c.l.b16 %v2067
  %v2119 = vunpack.c.l.b16 %v2068
  %v2120 = vunpack.c.h.b16 %v2066
  %v2121 = vunpack.c.h.b16 %v2067
  %v2122 = vunpack.c.h.b16 %v2068
  %v2123 = vunpack.c.l.b16 %v2069
  %v2124 = vunpack.c.l.b16 %v2070
  %v2125 = vunpack.c.l.b16 %v2071
  %v2126 = vunpack.c.h.b16 %v2069
  %v2127 = vunpack.c.h.b16 %v2070
  %v2128 = vunpack.c.h.b16 %v2071
  %v2129 = vunpack.c.l.b16 %v2072
  %v2130 = vunpack.c.l.b16 %v2073
  %v2131 = vunpack.c.l.b16 %v2074
  %v2132 = vunpack.c.h.b16 %v2072
  %v2133 = vunpack.c.h.b16 %v2073
  %v2134 = vunpack.c.h.b16 %v2074
  %v2135 = vunpack.c.l.b16 %v2075
  %v2136 = vunpack.c.l.b16 %v2076
  %v2137 = vunpack.c.l.b16 %v2077
  %v2138 = vunpack.c.h.b16 %v2075
  %v2139 = vunpack.c.h.b16 %v2076
  %v2140 = vunpack.c.h.b16 %v2077
  %v2141 = vunpack.c.l.b16 %v2078
  %v2142 = vunpack.c.l.b16 %v2079
  %v2143 = vunpack.c.l.b16 %v2080
  %v2144 = vunpack.c.h.b16 %v2078
  %v2145 = vunpack.c.h.b16 %v2079
  %v2146 = vunpack.c.h.b16 %v2080
  %v2147 = vunpack.c.l.b16 %v2081
  %v2148 = vunpack.c.l.b16 %v2082
  %v2149 = vunpack.c.l.b16 %v2083
  %v2150 = vunpack.c.h.b16 %v2081
  %v2151 = vunpack.c.h.b16 %v2082
  %v2152 = vunpack.c.h.b16 %v2083
  %v2153 = vunpack.c.l.b16 %v2084
  %v2154 = vunpack.c.l.b16 %v2085
  %v2155 = vunpack.c.l.b16 %v2086
  %v2156 = vunpack.c.h.b16 %v2084
  %v2157 = vunpack.c.h.b16 %v2085
  %v2158 = vunpack.c.h.b16 %v2086
  %v2159 = vpack.c.b16 %v2112, %v2111
  %v2160 = vpack.c.b16 %v2113, %v2113
  %v2161 = vpack.c.b16 %v2115, %v2114
  %v2162 = vpack.c.b16 %v2116, %v2116
  %v2163 = vpack.c.b16 %v2118, %v2117
  %v2164 = vpack.c.b16 %v2119, %v2119
  %v2165 = vpack.c.b16 %v2121, %v2120
  %v2166 = vpack.c.b16 %v2122, %v2122
  %v2167 = vpack.c.b16 %v2124, %v2123
  %v2168 = vpack.c.b16 %v2125, %v2125
  %v2169 = vpack.c.b16 %v2127, %v2126
  %v2170 = vpack.c.b16 %v2128, %v2128
  %v2171 = vpack.c.b16 %v2130, %v2129
  %v2172 = vpack.c.b16 %v2131, %v2131
  %v2173 = vpack.c.b16 %v2133, %v2132
  %v2174 = vpack.c.b16 %v2134, %v2134
  %v2175 = vpack.c.b16 %v2136, %v2135
  %v2176 = vpack.c.b16 %v2137, %v2137
  %v2177 = vpack.c.b16 %v2139, %v2138
  %v2178 = vpack.c.b16 %v2140, %v2140
  %v2179 = vpack.c.b16 %v2142, %v2141
  %v2180 = vpack.c.b16 %v2143, %v2143
  %v2181 = vpack.c.b16 %v2145, %v2144
  %v2182 = vpack.c.b16 %v2146, %v2146
  %v2183 = vpack.c.b16 %v2148, %v2147
  %v2184 = vpack.c.b16 %v2149, %v2149
  %v2185 = vpack.c.b16 %v2151, %v2150
  %v2186 = vpack.c.b16 %v2152, %v2152
  %v2187 = vpack.c.b16 %v2154, %v2153
  %v2188 = vpack.c.b16 %v2155, %v2155
  %v2189 = vpack.c.b16 %v2157, %v2156
  %v2190 = vpack.c.b16 %v2158, %v2158
  %2223 = vst [vmem:[%s7] sm:$0xff] %v2159
  %2224 = vst [vmem:[%s7 + $0x8] sm:$0xf] %v2160
  %2225 = vst [vmem:[%s7 + $0xc] sm:$0xff] %v2161
  %2226 = vst [vmem:[%s7 + $0x14] sm:$0xf] %v2162
  %2227 = vst [vmem:[%s7 + $0x18] sm:$0xff] %v2163
  %2228 = vst [vmem:[%s7 + $0x20] sm:$0xf] %v2164
  %2229 = vst [vmem:[%s7 + $0x24] sm:$0xff] %v2165
  %2230 = vst [vmem:[%s7 + $0x2c] sm:$0xf] %v2166
  %2231 = vst [vmem:[%s7 + $0x30] sm:$0xff] %v2167
  %2232 = vst [vmem:[%s7 + $0x38] sm:$0xf] %v2168
  %2233 = vst [vmem:[%s7 + $0x3c] sm:$0xff] %v2169
  %2234 = vst [vmem:[%s7 + $0x44] sm:$0xf] %v2170
  %2235 = vst [vmem:[%s7 + $0x48] sm:$0xff] %v2171
  %2236 = vst [vmem:[%s7 + $0x50] sm:$0xf] %v2172
  %2237 = vst [vmem:[%s7 + $0x54] sm:$0xff] %v2173
  %2238 = vst [vmem:[%s7 + $0x5c] sm:$0xf] %v2174
  %2239 = vst [vmem:[%s7 + $0x60] sm:$0xff] %v2175
  %2240 = vst [vmem:[%s7 + $0x68] sm:$0xf] %v2176
  %2241 = vst [vmem:[%s7 + $0x6c] sm:$0xff] %v2177
  %2242 = vst [vmem:[%s7 + $0x74] sm:$0xf] %v2178
  %2243 = vst [vmem:[%s7 + $0x78] sm:$0xff] %v2179
  %2244 = vst [vmem:[%s7 + $0x80] sm:$0xf] %v2180
  %2245 = vst [vmem:[%s7 + $0x84] sm:$0xff] %v2181
  %2246 = vst [vmem:[%s7 + $0x8c] sm:$0xf] %v2182
  %2247 = vst [vmem:[%s7 + $0x90] sm:$0xff] %v2183
  %2248 = vst [vmem:[%s7 + $0x98] sm:$0xf] %v2184
  %2249 = vst [vmem:[%s7 + $0x9c] sm:$0xff] %v2185
  %2250 = vst [vmem:[%s7 + $0xa4] sm:$0xf] %v2186
  %2251 = vst [vmem:[%s7 + $0xa8] sm:$0xff] %v2187
  %2252 = vst [vmem:[%s7 + $0xb0] sm:$0xf] %v2188
  %2253 = vst [vmem:[%s7 + $0xb4] sm:$0xff] %v2189
  %2254 = vst [vmem:[%s7 + $0xbc] sm:$0xf] %v2190
  %2255 = vst [vmem:[%s8] sm:$0xff] %v1987
  %2256 = vst [vmem:[%s8 + $0x8] sm:$0xff] %v1991
  %2257 = vst [vmem:[%s8 + $0x10] sm:$0xff] %v1997
  %2258 = vst [vmem:[%s8 + $0x18] sm:$0xff] %v2001
  %2259 = vst [vmem:[%s8 + $0x20] sm:$0xff] %v2007
  %2260 = vst [vmem:[%s8 + $0x28] sm:$0xff] %v2011
  %2261 = vst [vmem:[%s8 + $0x30] sm:$0xff] %v2017
  %2262 = vst [vmem:[%s8 + $0x38] sm:$0xff] %v2021
  %2263 = vst [vmem:[%s8 + $0x40] sm:$0xff] %v2027
  %2264 = vst [vmem:[%s8 + $0x48] sm:$0xff] %v2031
  %2265 = vst [vmem:[%s8 + $0x50] sm:$0xff] %v2037
  %2266 = vst [vmem:[%s8 + $0x58] sm:$0xff] %v2041
  %2267 = vst [vmem:[%s8 + $0x60] sm:$0xff] %v2047
  %2268 = vst [vmem:[%s8 + $0x68] sm:$0xff] %v2051
  %2269 = vst [vmem:[%s8 + $0x70] sm:$0xff] %v2057
  %2270 = vst [vmem:[%s8 + $0x78] sm:$0xff] %v2061
  // Predicated region
  $region26: #{lm_concat_rgat_forward.3} parent=0 // pred_check
    _
  $region27: #{lm_concat_rgat_forward.3} parent=0 // pred_check_branch
    %2272 = sbr.rel (0) target = $region29
  $region28: #{lm_concat_rgat_forward.3} parent=0 // pred_region
    _
  $region29: #{lm_concat_rgat_forward.3} parent=0 // pred_fallthru
    _
  // Predicated region
  $region30: #{lm_concat_rgat_forward.3} parent=0 // pred_check
    _
  $region31: #{lm_concat_rgat_forward.3} parent=0 // pred_check_branch
    %2274 = sbr.rel (0) target = $region33
  $region32: #{lm_concat_rgat_forward.3} parent=0 // pred_region
    _
  $region33: #{lm_concat_rgat_forward.3} parent=0 // pred_fallthru
    _
  // Predicated region
  $region34: #{lm_concat_rgat_forward.3} parent=0 // pred_check
    _
  $region35: #{lm_concat_rgat_forward.3} parent=0 // pred_check_branch
    %2276 = sbr.rel (0) target = $region37
  $region36: #{lm_concat_rgat_forward.3} parent=0 // pred_region
    _
  $region37: #{lm_concat_rgat_forward.3} parent=0 // pred_fallthru
    _
  // Predicated region
  $region38: #{lm_concat_rgat_forward.3} parent=0 // pred_check
    _
  $region39: #{lm_concat_rgat_forward.3} parent=0 // pred_check_branch
    %2278 = sbr.rel (0) target = $region41
  $region40: #{lm_concat_rgat_forward.3} parent=0 // pred_region
    _
  $region41: #{lm_concat_rgat_forward.3} parent=0 // pred_fallthru
    _
  // Predicated region
  $region42: #{lm_concat_rgat_forward.3} parent=0 // pred_check
    _
  $region43: #{lm_concat_rgat_forward.3} parent=0 // pred_check_branch
    %2280 = sbr.rel (0) target = $region45
  $region44: #{lm_concat_rgat_forward.3} parent=0 // pred_region
    _
  $region45: #{lm_concat_rgat_forward.3} parent=0 // pred_fallthru
    _
  // Predicated region
  $region46: #{lm_concat_rgat_forward.3} parent=0 // pred_check
    _
  $region47: #{lm_concat_rgat_forward.3} parent=0 // pred_check_branch
    %2282 = sbr.rel (0) target = $region49
  $region48: #{lm_concat_rgat_forward.3} parent=0 // pred_region
    _
  $region49: #{lm_concat_rgat_forward.3} parent=0 // pred_fallthru
    _

// kernel: lm_concat_rgat_forward.5
$region0: #{lm_concat_rgat_forward.5}
  #allocation0 [shape = 'u32[]', space=smem, size = 0x4, offset = 0x4, fixed_abs, tag = 'smem constant byte address 0x4 - core index']
  #allocation1 [shape = 'u32[144,128]{1,0:T(1,128)}', space=vmem, size = 0x12000, scoped, tag = 'internal scratch']
  #allocation2 [shape = 'f32[128,1]{1,0:T(8,128)}', space=vmem, size = 0x10000, scoped, tag = 'scratch operand']
  #allocation3 [shape = 'f32[128,1]{1,0:T(8,128)}', space=vmem, size = 0x10000, scoped, tag = 'scratch operand']
  #allocation4 [shape = 'f32[128,128]{1,0:T(8,128)}', space=vmem, size = 0x10000, scoped, tag = 'scratch operand']
  %s0 = inlined_call_operand.vmem [shape: s8[3,128,128], index: 0, kind: input, shape index: {}]
  %s1 = inlined_call_operand.vmem [shape: f32[128,128], index: 1, kind: input, shape index: {}]
  %s2 = inlined_call_operand.vmem [shape: f32[8,128], index: 2, kind: input, shape index: {}]
  %s3 = inlined_call_operand.vmem [shape: bf16[128,384], index: 3, kind: input, shape index: {}]
  %s4 = inlined_call_operand.vmem [shape: f32[1,128], index: 4, kind: input, shape index: {}]
  %s5 = inlined_call_operand.vmem [shape: f32[128,128], index: 5, kind: input, shape index: {}]
  %s6 = inlined_call_operand.vmem [shape: f32[128,128], index: 6, kind: input, shape index: {}]
  %s7 = inlined_call_operand.vmem [shape: f32[128,128], index: 7, kind: input, shape index: {}]
  %s8 = inlined_call_operand.vmem [shape: f32[1,128], index: 8, kind: input, shape index: {}]
  %s9 = inlined_call_operand.vmem [shape: f32[128,128], index: 9, kind: output, shape index: {}]
  %s10 = sld [smem:[#allocation0]]
  $region54: #{lm_concat_rgat_forward.5} parent=0
    _
  %s12 = ssub.s32 1, %s10
  %s13 = scalar_select 0, %s12, %s10
  // Predicated region
  $region2: #{lm_concat_rgat_forward.5} parent=0 // pred_check
    _
  $region3: #{lm_concat_rgat_forward.5} parent=0 // pred_check_branch
    %15 = sbr.rel (0) target = $region5
  $region4: #{lm_concat_rgat_forward.5} parent=0 // pred_region
    _
  $region5: #{lm_concat_rgat_forward.5} parent=0 // pred_fallthru
    _
  // Predicated region
  $region6: #{lm_concat_rgat_forward.5} parent=0 // pred_check
    _
  $region7: #{lm_concat_rgat_forward.5} parent=0 // pred_check_branch
    %17 = sbr.rel (0) target = $region9
  $region8: #{lm_concat_rgat_forward.5} parent=0 // pred_region
    _
  $region9: #{lm_concat_rgat_forward.5} parent=0 // pred_fallthru
    _
  // Predicated region
  $region10: #{lm_concat_rgat_forward.5} parent=0 // pred_check
    _
  $region11: #{lm_concat_rgat_forward.5} parent=0 // pred_check_branch
    %19 = sbr.rel (0) target = $region13
  $region12: #{lm_concat_rgat_forward.5} parent=0 // pred_region
    _
  $region13: #{lm_concat_rgat_forward.5} parent=0 // pred_fallthru
    _
  // Predicated region
  $region14: #{lm_concat_rgat_forward.5} parent=0 // pred_check
    _
  $region15: #{lm_concat_rgat_forward.5} parent=0 // pred_check_branch
    %21 = sbr.rel (0) target = $region17
  $region16: #{lm_concat_rgat_forward.5} parent=0 // pred_region
    _
  $region17: #{lm_concat_rgat_forward.5} parent=0 // pred_fallthru
    _
  // Predicated region
  $region18: #{lm_concat_rgat_forward.5} parent=0 // pred_check
    _
  $region19: #{lm_concat_rgat_forward.5} parent=0 // pred_check_branch
    %23 = sbr.rel (0) target = $region21
  $region20: #{lm_concat_rgat_forward.5} parent=0 // pred_region
    _
  $region21: #{lm_concat_rgat_forward.5} parent=0 // pred_fallthru
    _
  // Predicated region
  $region22: #{lm_concat_rgat_forward.5} parent=0 // pred_check
    _
  $region23: #{lm_concat_rgat_forward.5} parent=0 // pred_check_branch
    %25 = sbr.rel (0) target = $region25
  $region24: #{lm_concat_rgat_forward.5} parent=0 // pred_region
    _
  $region25: #{lm_concat_rgat_forward.5} parent=0 // pred_fallthru
    _
  // Predicated region
  $region26: #{lm_concat_rgat_forward.5} parent=0 // pred_check
    _
  $region27: #{lm_concat_rgat_forward.5} parent=0 // pred_check_branch
    %27 = sbr.rel (0) target = $region29
  $region28: #{lm_concat_rgat_forward.5} parent=0 // pred_region
    _
  $region29: #{lm_concat_rgat_forward.5} parent=0 // pred_fallthru
    _
  // Predicated region
  $region30: #{lm_concat_rgat_forward.5} parent=0 // pred_check
    _
  $region31: #{lm_concat_rgat_forward.5} parent=0 // pred_check_branch
    %29 = sbr.rel (0) target = $region33
  $region32: #{lm_concat_rgat_forward.5} parent=0 // pred_region
    _
  $region33: #{lm_concat_rgat_forward.5} parent=0 // pred_fallthru
    _
  // Predicated region
  $region34: #{lm_concat_rgat_forward.5} parent=0 // pred_check
    _
  $region35: #{lm_concat_rgat_forward.5} parent=0 // pred_check_branch
    %31 = sbr.rel (0) target = $region37
  $region36: #{lm_concat_rgat_forward.5} parent=0 // pred_region
    _
  $region37: #{lm_concat_rgat_forward.5} parent=0 // pred_fallthru
    _
  %p35 = scmp.eq.s32.totalorder 0, 0
  // Predicated region
  $region38: #{lm_concat_rgat_forward.5} parent=0 // pred_check
    %p36 = pneg %p35
  $region39: #{lm_concat_rgat_forward.5} parent=0 // pred_check_branch
    %38 = sbr.rel (%p36) target = $region41
  $region40: #{lm_concat_rgat_forward.5} parent=0 // pred_region
    %vm39 = vcmask 7168
    %40 = vst.msk [vmem:[#allocation2] sm:$0xff] %vm39, -10000.0
    %41 = vst.msk [vmem:[#allocation2 + $0x8] sm:$0xff] %vm39, -10000.0
    %42 = vst.msk [vmem:[#allocation2 + $0x10] sm:$0xff] %vm39, -10000.0
    %43 = vst.msk [vmem:[#allocation2 + $0x18] sm:$0xff] %vm39, -10000.0
    %44 = vst.msk [vmem:[#allocation2 + $0x20] sm:$0xff] %vm39, -10000.0
    %45 = vst.msk [vmem:[#allocation2 + $0x28] sm:$0xff] %vm39, -10000.0
    %46 = vst.msk [vmem:[#allocation2 + $0x30] sm:$0xff] %vm39, -10000.0
    %47 = vst.msk [vmem:[#allocation2 + $0x38] sm:$0xff] %vm39, -10000.0
    %48 = vst.msk [vmem:[#allocation2 + $0x40] sm:$0xff] %vm39, -10000.0
    %49 = vst.msk [vmem:[#allocation2 + $0x48] sm:$0xff] %vm39, -10000.0
    %50 = vst.msk [vmem:[#allocation2 + $0x50] sm:$0xff] %vm39, -10000.0
    %51 = vst.msk [vmem:[#allocation2 + $0x58] sm:$0xff] %vm39, -10000.0
    %52 = vst.msk [vmem:[#allocation2 + $0x60] sm:$0xff] %vm39, -10000.0
    %53 = vst.msk [vmem:[#allocation2 + $0x68] sm:$0xff] %vm39, -10000.0
    %54 = vst.msk [vmem:[#allocation2 + $0x70] sm:$0xff] %vm39, -10000.0
    %55 = vst.msk [vmem:[#allocation2 + $0x78] sm:$0xff] %vm39, -10000.0
    %56 = vst.msk [vmem:[#allocation3] sm:$0xff] %vm39, 0.0
    %57 = vst.msk [vmem:[#allocation3 + $0x8] sm:$0xff] %vm39, 0.0
    %58 = vst.msk [vmem:[#allocation3 + $0x10] sm:$0xff] %vm39, 0.0
    %59 = vst.msk [vmem:[#allocation3 + $0x18] sm:$0xff] %vm39, 0.0
    %60 = vst.msk [vmem:[#allocation3 + $0x20] sm:$0xff] %vm39, 0.0
    %61 = vst.msk [vmem:[#allocation3 + $0x28] sm:$0xff] %vm39, 0.0
    %62 = vst.msk [vmem:[#allocation3 + $0x30] sm:$0xff] %vm39, 0.0
    %63 = vst.msk [vmem:[#allocation3 + $0x38] sm:$0xff] %vm39, 0.0
    %64 = vst.msk [vmem:[#allocation3 + $0x40] sm:$0xff] %vm39, 0.0
    %65 = vst.msk [vmem:[#allocation3 + $0x48] sm:$0xff] %vm39, 0.0
    %66 = vst.msk [vmem:[#allocation3 + $0x50] sm:$0xff] %vm39, 0.0
    %67 = vst.msk [vmem:[#allocation3 + $0x58] sm:$0xff] %vm39, 0.0
    %68 = vst.msk [vmem:[#allocation3 + $0x60] sm:$0xff] %vm39, 0.0
    %69 = vst.msk [vmem:[#allocation3 + $0x68] sm:$0xff] %vm39, 0.0
    %70 = vst.msk [vmem:[#allocation3 + $0x70] sm:$0xff] %vm39, 0.0
    %71 = vst.msk [vmem:[#allocation3 + $0x78] sm:$0xff] %vm39, 0.0
    %72 = vst [vmem:[#allocation4] sm:$0xff] 0.0
    %73 = vst [vmem:[#allocation4 + $0x8] sm:$0xff] 0.0
    %74 = vst [vmem:[#allocation4 + $0x10] sm:$0xff] 0.0
    %75 = vst [vmem:[#allocation4 + $0x18] sm:$0xff] 0.0
    %76 = vst [vmem:[#allocation4 + $0x20] sm:$0xff] 0.0
    %77 = vst [vmem:[#allocation4 + $0x28] sm:$0xff] 0.0
    %78 = vst [vmem:[#allocation4 + $0x30] sm:$0xff] 0.0
    %79 = vst [vmem:[#allocation4 + $0x38] sm:$0xff] 0.0
    %80 = vst [vmem:[#allocation4 + $0x40] sm:$0xff] 0.0
    %81 = vst [vmem:[#allocation4 + $0x48] sm:$0xff] 0.0
    %82 = vst [vmem:[#allocation4 + $0x50] sm:$0xff] 0.0
    %83 = vst [vmem:[#allocation4 + $0x58] sm:$0xff] 0.0
    %84 = vst [vmem:[#allocation4 + $0x60] sm:$0xff] 0.0
    %85 = vst [vmem:[#allocation4 + $0x68] sm:$0xff] 0.0
    %86 = vst [vmem:[#allocation4 + $0x70] sm:$0xff] 0.0
    %87 = vst [vmem:[#allocation4 + $0x78] sm:$0xff] 0.0
  $region41: #{lm_concat_rgat_forward.5} parent=0 // pred_fallthru
    _
  %v88 = vld [vmem:[%s1] sm:$0xff]
  %v89 = vld [vmem:[%s1 + $0x8] sm:$0xff]
  %v90 = vld [vmem:[%s1 + $0x10] sm:$0xff]
  %v91 = vld [vmem:[%s1 + $0x18] sm:$0xff]
  %v92 = vld [vmem:[%s1 + $0x20] sm:$0xff]
  %v93 = vld [vmem:[%s1 + $0x28] sm:$0xff]
  %v94 = vld [vmem:[%s1 + $0x30] sm:$0xff]
  %v95 = vld [vmem:[%s1 + $0x38] sm:$0xff]
  %v96 = vld [vmem:[%s1 + $0x40] sm:$0xff]
  %v97 = vld [vmem:[%s1 + $0x48] sm:$0xff]
  %v98 = vld [vmem:[%s1 + $0x50] sm:$0xff]
  %v99 = vld [vmem:[%s1 + $0x58] sm:$0xff]
  %v100 = vld [vmem:[%s1 + $0x60] sm:$0xff]
  %v101 = vld [vmem:[%s1 + $0x68] sm:$0xff]
  %v102 = vld [vmem:[%s1 + $0x70] sm:$0xff]
  %v103 = vld [vmem:[%s1 + $0x78] sm:$0xff]
  %v104 = vld [vmem:[%s2] sm:$0xff]
  %106 = vset.pattern.permute.xlu0 0
  %107 = vperm.xlu0 %106, %v88
  %v108 = vpop.permute.xlu0 %107
  %111 = vset.pattern.permute.xlu0 0
  %112 = vperm.xlu0 %111, %v89
  %v113 = vpop.permute.xlu0 %112
  %116 = vset.pattern.permute.xlu0 0
  %117 = vperm.xlu0 %116, %v90
  %v118 = vpop.permute.xlu0 %117
  %121 = vset.pattern.permute.xlu0 0
  %122 = vperm.xlu0 %121, %v91
  %v123 = vpop.permute.xlu0 %122
  %126 = vset.pattern.permute.xlu0 0
  %127 = vperm.xlu0 %126, %v92
  %v128 = vpop.permute.xlu0 %127
  %131 = vset.pattern.permute.xlu0 0
  %132 = vperm.xlu0 %131, %v93
  %v133 = vpop.permute.xlu0 %132
  %136 = vset.pattern.permute.xlu0 0
  %137 = vperm.xlu0 %136, %v94
  %v138 = vpop.permute.xlu0 %137
  %141 = vset.pattern.permute.xlu0 0
  %142 = vperm.xlu0 %141, %v95
  %v143 = vpop.permute.xlu0 %142
  %146 = vset.pattern.permute.xlu0 0
  %147 = vperm.xlu0 %146, %v96
  %v148 = vpop.permute.xlu0 %147
  %151 = vset.pattern.permute.xlu0 0
  %152 = vperm.xlu0 %151, %v97
  %v153 = vpop.permute.xlu0 %152
  %156 = vset.pattern.permute.xlu0 0
  %157 = vperm.xlu0 %156, %v98
  %v158 = vpop.permute.xlu0 %157
  %161 = vset.pattern.permute.xlu0 0
  %162 = vperm.xlu0 %161, %v99
  %v163 = vpop.permute.xlu0 %162
  %166 = vset.pattern.permute.xlu0 0
  %167 = vperm.xlu0 %166, %v100
  %v168 = vpop.permute.xlu0 %167
  %171 = vset.pattern.permute.xlu0 0
  %172 = vperm.xlu0 %171, %v101
  %v173 = vpop.permute.xlu0 %172
  %176 = vset.pattern.permute.xlu0 0
  %177 = vperm.xlu0 %176, %v102
  %v178 = vpop.permute.xlu0 %177
  %181 = vset.pattern.permute.xlu0 0
  %182 = vperm.xlu0 %181, %v103
  %v183 = vpop.permute.xlu0 %182
  %v185 = vlaneseq
  %v186 = vshrl.u32 %v185, 7
  %v187 = vsub.s32 0, %v186
  %v188 = vrot.slane %v104, %v187
  %v189 = vadd.f32 %v108, %v188
  %v190 = vadd.f32 %v113, %v188
  %v191 = vadd.f32 %v118, %v188
  %v192 = vadd.f32 %v123, %v188
  %v193 = vadd.f32 %v128, %v188
  %v194 = vadd.f32 %v133, %v188
  %v195 = vadd.f32 %v138, %v188
  %v196 = vadd.f32 %v143, %v188
  %v197 = vadd.f32 %v148, %v188
  %v198 = vadd.f32 %v153, %v188
  %v199 = vadd.f32 %v158, %v188
  %v200 = vadd.f32 %v163, %v188
  %v201 = vadd.f32 %v168, %v188
  %v202 = vadd.f32 %v173, %v188
  %v203 = vadd.f32 %v178, %v188
  %v204 = vadd.f32 %v183, %v188
  %v205 = vmul.f32 %v189, 0.2
  %v206 = vmul.f32 %v190, 0.2
  %v207 = vmul.f32 %v191, 0.2
  %v208 = vmul.f32 %v192, 0.2
  %v209 = vmul.f32 %v193, 0.2
  %v210 = vmul.f32 %v194, 0.2
  %v211 = vmul.f32 %v195, 0.2
  %v212 = vmul.f32 %v196, 0.2
  %v213 = vmul.f32 %v197, 0.2
  %v214 = vmul.f32 %v198, 0.2
  %v215 = vmul.f32 %v199, 0.2
  %v216 = vmul.f32 %v200, 0.2
  %v217 = vmul.f32 %v201, 0.2
  %v218 = vmul.f32 %v202, 0.2
  %v219 = vmul.f32 %v203, 0.2
  %v220 = vmul.f32 %v204, 0.2
  %v221 = vmax.f32 %v189, %v205
  %v222 = vmax.f32 %v190, %v206
  %v223 = vmax.f32 %v191, %v207
  %v224 = vmax.f32 %v192, %v208
  %v225 = vmax.f32 %v193, %v209
  %v226 = vmax.f32 %v194, %v210
  %v227 = vmax.f32 %v195, %v211
  %v228 = vmax.f32 %v196, %v212
  %v229 = vmax.f32 %v197, %v213
  %v230 = vmax.f32 %v198, %v214
  %v231 = vmax.f32 %v199, %v215
  %v232 = vmax.f32 %v200, %v216
  %v233 = vmax.f32 %v201, %v217
  %v234 = vmax.f32 %v202, %v218
  %v235 = vmax.f32 %v203, %v219
  %v236 = vmax.f32 %v204, %v220
  %v237 = vld [vmem:[%s0] sm:$0xff]
  %v238 = vld [vmem:[%s0 + $0x8] sm:$0xff]
  %v239 = vld [vmem:[%s0 + $0x10] sm:$0xff]
  %v240 = vld [vmem:[%s0 + $0x18] sm:$0xff]
  %vm241 = vnez %v237
  %vm242 = vnez %v238
  %vm243 = vnez %v239
  %vm244 = vnez %v240
  %v245 = vsel %vm241, 16843009, 0
  %v246 = vsel %vm242, 16843009, 0
  %v247 = vsel %vm243, 16843009, 0
  %v248 = vsel %vm244, 16843009, 0
  %v249 = vunpack.c.0.s8 %v245
  %v250 = vunpack.c.1.s8 %v245
  %v251 = vunpack.c.2.s8 %v245
  %v252 = vunpack.c.3.s8 %v245
  %v253 = vunpack.c.0.s8 %v246
  %v254 = vunpack.c.1.s8 %v246
  %v255 = vunpack.c.2.s8 %v246
  %v256 = vunpack.c.3.s8 %v246
  %v257 = vunpack.c.0.s8 %v247
  %v258 = vunpack.c.1.s8 %v247
  %v259 = vunpack.c.2.s8 %v247
  %v260 = vunpack.c.3.s8 %v247
  %v261 = vunpack.c.0.s8 %v248
  %v262 = vunpack.c.1.s8 %v248
  %v263 = vunpack.c.2.s8 %v248
  %v264 = vunpack.c.3.s8 %v248
  %v265 = vpack.c.b16 %v249, %v249
  %v266 = vpack.c.b8 %v265, %v265
  %v267 = vpack.c.b16 %v250, %v250
  %v268 = vpack.c.b8 %v267, %v267
  %v269 = vpack.c.b16 %v251, %v251
  %v270 = vpack.c.b8 %v269, %v269
  %v271 = vpack.c.b16 %v252, %v252
  %v272 = vpack.c.b8 %v271, %v271
  %v273 = vpack.c.b16 %v253, %v253
  %v274 = vpack.c.b8 %v273, %v273
  %v275 = vpack.c.b16 %v254, %v254
  %v276 = vpack.c.b8 %v275, %v275
  %v277 = vpack.c.b16 %v255, %v255
  %v278 = vpack.c.b8 %v277, %v277
  %v279 = vpack.c.b16 %v256, %v256
  %v280 = vpack.c.b8 %v279, %v279
  %v281 = vpack.c.b16 %v257, %v257
  %v282 = vpack.c.b8 %v281, %v281
  %v283 = vpack.c.b16 %v258, %v258
  %v284 = vpack.c.b8 %v283, %v283
  %v285 = vpack.c.b16 %v259, %v259
  %v286 = vpack.c.b8 %v285, %v285
  %v287 = vpack.c.b16 %v260, %v260
  %v288 = vpack.c.b8 %v287, %v287
  %v289 = vpack.c.b16 %v261, %v261
  %v290 = vpack.c.b8 %v289, %v289
  %v291 = vpack.c.b16 %v262, %v262
  %v292 = vpack.c.b8 %v291, %v291
  %v293 = vpack.c.b16 %v263, %v263
  %v294 = vpack.c.b8 %v293, %v293
  %v295 = vpack.c.b16 %v264, %v264
  %v296 = vpack.c.b8 %v295, %v295
  %vm297 = vnez %v266
  %vm298 = vnez %v268
  %vm299 = vnez %v270
  %vm300 = vnez %v272
  %vm301 = vnez %v274
  %vm302 = vnez %v276
  %vm303 = vnez %v278
  %vm304 = vnez %v280
  %vm305 = vnez %v282
  %vm306 = vnez %v284
  %vm307 = vnez %v286
  %vm308 = vnez %v288
  %vm309 = vnez %v290
  %vm310 = vnez %v292
  %vm311 = vnez %v294
  %vm312 = vnez %v296
  %v313 = vsel %vm297, 16843009, 0
  %v314 = vsel %vm298, 16843009, 0
  %v315 = vsel %vm299, 16843009, 0
  %v316 = vsel %vm300, 16843009, 0
  %v317 = vsel %vm301, 16843009, 0
  %v318 = vsel %vm302, 16843009, 0
  %v319 = vsel %vm303, 16843009, 0
  %v320 = vsel %vm304, 16843009, 0
  %v321 = vsel %vm305, 16843009, 0
  %v322 = vsel %vm306, 16843009, 0
  %v323 = vsel %vm307, 16843009, 0
  %v324 = vsel %vm308, 16843009, 0
  %v325 = vsel %vm309, 16843009, 0
  %v326 = vsel %vm310, 16843009, 0
  %v327 = vsel %vm311, 16843009, 0
  %v328 = vsel %vm312, 16843009, 0
  %v329 = vunpack.c.0.s8 %v313
  %v330 = vunpack.c.0.s8 %v314
  %v331 = vunpack.c.0.s8 %v315
  %v332 = vunpack.c.0.s8 %v316
  %v333 = vunpack.c.0.s8 %v317
  %v334 = vunpack.c.0.s8 %v318
  %v335 = vunpack.c.0.s8 %v319
  %v336 = vunpack.c.0.s8 %v320
  %v337 = vunpack.c.0.s8 %v321
  %v338 = vunpack.c.0.s8 %v322
  %v339 = vunpack.c.0.s8 %v323
  %v340 = vunpack.c.0.s8 %v324
  %v341 = vunpack.c.0.s8 %v325
  %v342 = vunpack.c.0.s8 %v326
  %v343 = vunpack.c.0.s8 %v327
  %v344 = vunpack.c.0.s8 %v328
  %vm345 = vcmp.ne.s32.totalorder %v329, 0
  %vm346 = vcmp.ne.s32.totalorder %v330, 0
  %vm347 = vcmp.ne.s32.totalorder %v331, 0
  %vm348 = vcmp.ne.s32.totalorder %v332, 0
  %vm349 = vcmp.ne.s32.totalorder %v333, 0
  %vm350 = vcmp.ne.s32.totalorder %v334, 0
  %vm351 = vcmp.ne.s32.totalorder %v335, 0
  %vm352 = vcmp.ne.s32.totalorder %v336, 0
  %vm353 = vcmp.ne.s32.totalorder %v337, 0
  %vm354 = vcmp.ne.s32.totalorder %v338, 0
  %vm355 = vcmp.ne.s32.totalorder %v339, 0
  %vm356 = vcmp.ne.s32.totalorder %v340, 0
  %vm357 = vcmp.ne.s32.totalorder %v341, 0
  %vm358 = vcmp.ne.s32.totalorder %v342, 0
  %vm359 = vcmp.ne.s32.totalorder %v343, 0
  %vm360 = vcmp.ne.s32.totalorder %v344, 0
  %v361 = vsel %vm345, %v221, -1e+30
  %v362 = vsel %vm346, %v222, -1e+30
  %v363 = vsel %vm347, %v223, -1e+30
  %v364 = vsel %vm348, %v224, -1e+30
  %v365 = vsel %vm349, %v225, -1e+30
  %v366 = vsel %vm350, %v226, -1e+30
  %v367 = vsel %vm351, %v227, -1e+30
  %v368 = vsel %vm352, %v228, -1e+30
  %v369 = vsel %vm353, %v229, -1e+30
  %v370 = vsel %vm354, %v230, -1e+30
  %v371 = vsel %vm355, %v231, -1e+30
  %v372 = vsel %vm356, %v232, -1e+30
  %v373 = vsel %vm357, %v233, -1e+30
  %v374 = vsel %vm358, %v234, -1e+30
  %v375 = vsel %vm359, %v235, -1e+30
  %v376 = vsel %vm360, %v236, -1e+30
  %v377 = vld [vmem:[#allocation2] sm:$0xff]
  %v378 = vld [vmem:[#allocation2 + $0x8] sm:$0xff]
  %v379 = vld [vmem:[#allocation2 + $0x10] sm:$0xff]
  %v380 = vld [vmem:[#allocation2 + $0x18] sm:$0xff]
  %v381 = vld [vmem:[#allocation2 + $0x20] sm:$0xff]
  %v382 = vld [vmem:[#allocation2 + $0x28] sm:$0xff]
  %v383 = vld [vmem:[#allocation2 + $0x30] sm:$0xff]
  %v384 = vld [vmem:[#allocation2 + $0x38] sm:$0xff]
  %v385 = vld [vmem:[#allocation2 + $0x40] sm:$0xff]
  %v386 = vld [vmem:[#allocation2 + $0x48] sm:$0xff]
  %v387 = vld [vmem:[#allocation2 + $0x50] sm:$0xff]
  %v388 = vld [vmem:[#allocation2 + $0x58] sm:$0xff]
  %v389 = vld [vmem:[#allocation2 + $0x60] sm:$0xff]
  %v390 = vld [vmem:[#allocation2 + $0x68] sm:$0xff]
  %v391 = vld [vmem:[#allocation2 + $0x70] sm:$0xff]
  %v392 = vld [vmem:[#allocation2 + $0x78] sm:$0xff]
  %393 = vmax.xlane.f32.xlu0 %v361
  %v394 = vpop.xlane.xlu0 %393
  %395 = vmax.xlane.f32.xlu0 %v362
  %v396 = vpop.xlane.xlu0 %395
  %397 = vmax.xlane.f32.xlu0 %v363
  %v398 = vpop.xlane.xlu0 %397
  %399 = vmax.xlane.f32.xlu0 %v364
  %v400 = vpop.xlane.xlu0 %399
  %401 = vmax.xlane.f32.xlu0 %v365
  %v402 = vpop.xlane.xlu0 %401
  %403 = vmax.xlane.f32.xlu0 %v366
  %v404 = vpop.xlane.xlu0 %403
  %405 = vmax.xlane.f32.xlu0 %v367
  %v406 = vpop.xlane.xlu0 %405
  %407 = vmax.xlane.f32.xlu0 %v368
  %v408 = vpop.xlane.xlu0 %407
  %409 = vmax.xlane.f32.xlu0 %v369
  %v410 = vpop.xlane.xlu0 %409
  %411 = vmax.xlane.f32.xlu0 %v370
  %v412 = vpop.xlane.xlu0 %411
  %413 = vmax.xlane.f32.xlu0 %v371
  %v414 = vpop.xlane.xlu0 %413
  %415 = vmax.xlane.f32.xlu0 %v372
  %v416 = vpop.xlane.xlu0 %415
  %417 = vmax.xlane.f32.xlu0 %v373
  %v418 = vpop.xlane.xlu0 %417
  %419 = vmax.xlane.f32.xlu0 %v374
  %v420 = vpop.xlane.xlu0 %419
  %421 = vmax.xlane.f32.xlu0 %v375
  %v422 = vpop.xlane.xlu0 %421
  %423 = vmax.xlane.f32.xlu0 %v376
  %v424 = vpop.xlane.xlu0 %423
  %v425 = vmax.f32 %v377, %v394
  %v426 = vmax.f32 %v378, %v396
  %v427 = vmax.f32 %v379, %v398
  %v428 = vmax.f32 %v380, %v400
  %v429 = vmax.f32 %v381, %v402
  %v430 = vmax.f32 %v382, %v404
  %v431 = vmax.f32 %v383, %v406
  %v432 = vmax.f32 %v384, %v408
  %v433 = vmax.f32 %v385, %v410
  %v434 = vmax.f32 %v386, %v412
  %v435 = vmax.f32 %v387, %v414
  %v436 = vmax.f32 %v388, %v416
  %v437 = vmax.f32 %v389, %v418
  %v438 = vmax.f32 %v390, %v420
  %v439 = vmax.f32 %v391, %v422
  %v440 = vmax.f32 %v392, %v424
  %442 = vset.pattern.permute.xlu0 0
  %443 = vperm.xlu0 %442, %v425
  %v444 = vpop.permute.xlu0 %443
  %447 = vset.pattern.permute.xlu0 0
  %448 = vperm.xlu0 %447, %v426
  %v449 = vpop.permute.xlu0 %448
  %452 = vset.pattern.permute.xlu0 0
  %453 = vperm.xlu0 %452, %v427
  %v454 = vpop.permute.xlu0 %453
  %457 = vset.pattern.permute.xlu0 0
  %458 = vperm.xlu0 %457, %v428
  %v459 = vpop.permute.xlu0 %458
  %462 = vset.pattern.permute.xlu0 0
  %463 = vperm.xlu0 %462, %v429
  %v464 = vpop.permute.xlu0 %463
  %467 = vset.pattern.permute.xlu0 0
  %468 = vperm.xlu0 %467, %v430
  %v469 = vpop.permute.xlu0 %468
  %472 = vset.pattern.permute.xlu0 0
  %473 = vperm.xlu0 %472, %v431
  %v474 = vpop.permute.xlu0 %473
  %477 = vset.pattern.permute.xlu0 0
  %478 = vperm.xlu0 %477, %v432
  %v479 = vpop.permute.xlu0 %478
  %482 = vset.pattern.permute.xlu0 0
  %483 = vperm.xlu0 %482, %v433
  %v484 = vpop.permute.xlu0 %483
  %487 = vset.pattern.permute.xlu0 0
  %488 = vperm.xlu0 %487, %v434
  %v489 = vpop.permute.xlu0 %488
  %492 = vset.pattern.permute.xlu0 0
  %493 = vperm.xlu0 %492, %v435
  %v494 = vpop.permute.xlu0 %493
  %497 = vset.pattern.permute.xlu0 0
  %498 = vperm.xlu0 %497, %v436
  %v499 = vpop.permute.xlu0 %498
  %502 = vset.pattern.permute.xlu0 0
  %503 = vperm.xlu0 %502, %v437
  %v504 = vpop.permute.xlu0 %503
  %507 = vset.pattern.permute.xlu0 0
  %508 = vperm.xlu0 %507, %v438
  %v509 = vpop.permute.xlu0 %508
  %512 = vset.pattern.permute.xlu0 0
  %513 = vperm.xlu0 %512, %v439
  %v514 = vpop.permute.xlu0 %513
  %517 = vset.pattern.permute.xlu0 0
  %518 = vperm.xlu0 %517, %v440
  %v519 = vpop.permute.xlu0 %518
  %v521 = vsub.f32 %v361, %v444
  %v522 = vsub.f32 %v362, %v449
  %v523 = vsub.f32 %v363, %v454
  %v524 = vsub.f32 %v364, %v459
  %v525 = vsub.f32 %v365, %v464
  %v526 = vsub.f32 %v366, %v469
  %v527 = vsub.f32 %v367, %v474
  %v528 = vsub.f32 %v368, %v479
  %v529 = vsub.f32 %v369, %v484
  %v530 = vsub.f32 %v370, %v489
  %v531 = vsub.f32 %v371, %v494
  %v532 = vsub.f32 %v372, %v499
  %v533 = vsub.f32 %v373, %v504
  %v534 = vsub.f32 %v374, %v509
  %v535 = vsub.f32 %v375, %v514
  %v536 = vsub.f32 %v376, %v519
  %v537 = vmul.f32 %v521, 1.442695
  %v538 = vpow.pop %v537
  %v539 = vmul.f32 %v522, 1.442695
  %v540 = vpow.pop %v539
  %v541 = vmul.f32 %v523, 1.442695
  %v542 = vpow.pop %v541
  %v543 = vmul.f32 %v524, 1.442695
  %v544 = vpow.pop %v543
  %v545 = vmul.f32 %v525, 1.442695
  %v546 = vpow.pop %v545
  %v547 = vmul.f32 %v526, 1.442695
  %v548 = vpow.pop %v547
  %v549 = vmul.f32 %v527, 1.442695
  %v550 = vpow.pop %v549
  %v551 = vmul.f32 %v528, 1.442695
  %v552 = vpow.pop %v551
  %v553 = vmul.f32 %v529, 1.442695
  %v554 = vpow.pop %v553
  %v555 = vmul.f32 %v530, 1.442695
  %v556 = vpow.pop %v555
  %v557 = vmul.f32 %v531, 1.442695
  %v558 = vpow.pop %v557
  %v559 = vmul.f32 %v532, 1.442695
  %v560 = vpow.pop %v559
  %v561 = vmul.f32 %v533, 1.442695
  %v562 = vpow.pop %v561
  %v563 = vmul.f32 %v534, 1.442695
  %v564 = vpow.pop %v563
  %v565 = vmul.f32 %v535, 1.442695
  %v566 = vpow.pop %v565
  %v567 = vmul.f32 %v536, 1.442695
  %v568 = vpow.pop %v567
  %v569 = vsub.f32 %v377, %v425
  %v570 = vsub.f32 %v378, %v426
  %v571 = vsub.f32 %v379, %v427
  %v572 = vsub.f32 %v380, %v428
  %v573 = vsub.f32 %v381, %v429
  %v574 = vsub.f32 %v382, %v430
  %v575 = vsub.f32 %v383, %v431
  %v576 = vsub.f32 %v384, %v432
  %v577 = vsub.f32 %v385, %v433
  %v578 = vsub.f32 %v386, %v434
  %v579 = vsub.f32 %v387, %v435
  %v580 = vsub.f32 %v388, %v436
  %v581 = vsub.f32 %v389, %v437
  %v582 = vsub.f32 %v390, %v438
  %v583 = vsub.f32 %v391, %v439
  %v584 = vsub.f32 %v392, %v440
  %v585 = vmul.f32 %v569, 1.442695
  %v586 = vpow.pop %v585
  %v587 = vmul.f32 %v570, 1.442695
  %v588 = vpow.pop %v587
  %v589 = vmul.f32 %v571, 1.442695
  %v590 = vpow.pop %v589
  %v591 = vmul.f32 %v572, 1.442695
  %v592 = vpow.pop %v591
  %v593 = vmul.f32 %v573, 1.442695
  %v594 = vpow.pop %v593
  %v595 = vmul.f32 %v574, 1.442695
  %v596 = vpow.pop %v595
  %v597 = vmul.f32 %v575, 1.442695
  %v598 = vpow.pop %v597
  %v599 = vmul.f32 %v576, 1.442695
  %v600 = vpow.pop %v599
  %v601 = vmul.f32 %v577, 1.442695
  %v602 = vpow.pop %v601
  %v603 = vmul.f32 %v578, 1.442695
  %v604 = vpow.pop %v603
  %v605 = vmul.f32 %v579, 1.442695
  %v606 = vpow.pop %v605
  %v607 = vmul.f32 %v580, 1.442695
  %v608 = vpow.pop %v607
  %v609 = vmul.f32 %v581, 1.442695
  %v610 = vpow.pop %v609
  %v611 = vmul.f32 %v582, 1.442695
  %v612 = vpow.pop %v611
  %v613 = vmul.f32 %v583, 1.442695
  %v614 = vpow.pop %v613
  %v615 = vmul.f32 %v584, 1.442695
  %v616 = vpow.pop %v615
  %v617 = vld [vmem:[#allocation3] sm:$0xff]
  %v618 = vld [vmem:[#allocation3 + $0x8] sm:$0xff]
  %v619 = vld [vmem:[#allocation3 + $0x10] sm:$0xff]
  %v620 = vld [vmem:[#allocation3 + $0x18] sm:$0xff]
  %v621 = vld [vmem:[#allocation3 + $0x20] sm:$0xff]
  %v622 = vld [vmem:[#allocation3 + $0x28] sm:$0xff]
  %v623 = vld [vmem:[#allocation3 + $0x30] sm:$0xff]
  %v624 = vld [vmem:[#allocation3 + $0x38] sm:$0xff]
  %v625 = vld [vmem:[#allocation3 + $0x40] sm:$0xff]
  %v626 = vld [vmem:[#allocation3 + $0x48] sm:$0xff]
  %v627 = vld [vmem:[#allocation3 + $0x50] sm:$0xff]
  %v628 = vld [vmem:[#allocation3 + $0x58] sm:$0xff]
  %v629 = vld [vmem:[#allocation3 + $0x60] sm:$0xff]
  %v630 = vld [vmem:[#allocation3 + $0x68] sm:$0xff]
  %v631 = vld [vmem:[#allocation3 + $0x70] sm:$0xff]
  %v632 = vld [vmem:[#allocation3 + $0x78] sm:$0xff]
  %v633 = vmul.f32 %v586, %v617
  %v634 = vmul.f32 %v588, %v618
  %v635 = vmul.f32 %v590, %v619
  %v636 = vmul.f32 %v592, %v620
  %v637 = vmul.f32 %v594, %v621
  %v638 = vmul.f32 %v596, %v622
  %v639 = vmul.f32 %v598, %v623
  %v640 = vmul.f32 %v600, %v624
  %v641 = vmul.f32 %v602, %v625
  %v642 = vmul.f32 %v604, %v626
  %v643 = vmul.f32 %v606, %v627
  %v644 = vmul.f32 %v608, %v628
  %v645 = vmul.f32 %v610, %v629
  %v646 = vmul.f32 %v612, %v630
  %v647 = vmul.f32 %v614, %v631
  %v648 = vmul.f32 %v616, %v632
  %649 = vadd.xlane.f32.xlu0 %v538
  %v650 = vpop.xlane.xlu0 %649
  %651 = vadd.xlane.f32.xlu0 %v540
  %v652 = vpop.xlane.xlu0 %651
  %653 = vadd.xlane.f32.xlu0 %v542
  %v654 = vpop.xlane.xlu0 %653
  %655 = vadd.xlane.f32.xlu0 %v544
  %v656 = vpop.xlane.xlu0 %655
  %657 = vadd.xlane.f32.xlu0 %v546
  %v658 = vpop.xlane.xlu0 %657
  %659 = vadd.xlane.f32.xlu0 %v548
  %v660 = vpop.xlane.xlu0 %659
  %661 = vadd.xlane.f32.xlu0 %v550
  %v662 = vpop.xlane.xlu0 %661
  %663 = vadd.xlane.f32.xlu0 %v552
  %v664 = vpop.xlane.xlu0 %663
  %665 = vadd.xlane.f32.xlu0 %v554
  %v666 = vpop.xlane.xlu0 %665
  %667 = vadd.xlane.f32.xlu0 %v556
  %v668 = vpop.xlane.xlu0 %667
  %669 = vadd.xlane.f32.xlu0 %v558
  %v670 = vpop.xlane.xlu0 %669
  %671 = vadd.xlane.f32.xlu0 %v560
  %v672 = vpop.xlane.xlu0 %671
  %673 = vadd.xlane.f32.xlu0 %v562
  %v674 = vpop.xlane.xlu0 %673
  %675 = vadd.xlane.f32.xlu0 %v564
  %v676 = vpop.xlane.xlu0 %675
  %677 = vadd.xlane.f32.xlu0 %v566
  %v678 = vpop.xlane.xlu0 %677
  %679 = vadd.xlane.f32.xlu0 %v568
  %v680 = vpop.xlane.xlu0 %679
  %v681 = vadd.f32 %v633, %v650
  %v682 = vadd.f32 %v634, %v652
  %v683 = vadd.f32 %v635, %v654
  %v684 = vadd.f32 %v636, %v656
  %v685 = vadd.f32 %v637, %v658
  %v686 = vadd.f32 %v638, %v660
  %v687 = vadd.f32 %v639, %v662
  %v688 = vadd.f32 %v640, %v664
  %v689 = vadd.f32 %v641, %v666
  %v690 = vadd.f32 %v642, %v668
  %v691 = vadd.f32 %v643, %v670
  %v692 = vadd.f32 %v644, %v672
  %v693 = vadd.f32 %v645, %v674
  %v694 = vadd.f32 %v646, %v676
  %v695 = vadd.f32 %v647, %v678
  %v696 = vadd.f32 %v648, %v680
  %vm697 = vcmask 7168
  %698 = vst.msk [vmem:[#allocation3] sm:$0xff] %vm697, %v681
  %699 = vst.msk [vmem:[#allocation3 + $0x8] sm:$0xff] %vm697, %v682
  %700 = vst.msk [vmem:[#allocation3 + $0x10] sm:$0xff] %vm697, %v683
  %701 = vst.msk [vmem:[#allocation3 + $0x18] sm:$0xff] %vm697, %v684
  %702 = vst.msk [vmem:[#allocation3 + $0x20] sm:$0xff] %vm697, %v685
  %703 = vst.msk [vmem:[#allocation3 + $0x28] sm:$0xff] %vm697, %v686
  %704 = vst.msk [vmem:[#allocation3 + $0x30] sm:$0xff] %vm697, %v687
  %705 = vst.msk [vmem:[#allocation3 + $0x38] sm:$0xff] %vm697, %v688
  %706 = vst.msk [vmem:[#allocation3 + $0x40] sm:$0xff] %vm697, %v689
  %707 = vst.msk [vmem:[#allocation3 + $0x48] sm:$0xff] %vm697, %v690
  %708 = vst.msk [vmem:[#allocation3 + $0x50] sm:$0xff] %vm697, %v691
  %709 = vst.msk [vmem:[#allocation3 + $0x58] sm:$0xff] %vm697, %v692
  %710 = vst.msk [vmem:[#allocation3 + $0x60] sm:$0xff] %vm697, %v693
  %711 = vst.msk [vmem:[#allocation3 + $0x68] sm:$0xff] %vm697, %v694
  %712 = vst.msk [vmem:[#allocation3 + $0x70] sm:$0xff] %vm697, %v695
  %713 = vst.msk [vmem:[#allocation3 + $0x78] sm:$0xff] %vm697, %v696
  %v714 = vld [vmem:[#allocation4] sm:$0xff]
  %v715 = vld [vmem:[#allocation4 + $0x8] sm:$0xff]
  %v716 = vld [vmem:[#allocation4 + $0x10] sm:$0xff]
  %v717 = vld [vmem:[#allocation4 + $0x18] sm:$0xff]
  %v718 = vld [vmem:[#allocation4 + $0x20] sm:$0xff]
  %v719 = vld [vmem:[#allocation4 + $0x28] sm:$0xff]
  %v720 = vld [vmem:[#allocation4 + $0x30] sm:$0xff]
  %v721 = vld [vmem:[#allocation4 + $0x38] sm:$0xff]
  %v722 = vld [vmem:[#allocation4 + $0x40] sm:$0xff]
  %v723 = vld [vmem:[#allocation4 + $0x48] sm:$0xff]
  %v724 = vld [vmem:[#allocation4 + $0x50] sm:$0xff]
  %v725 = vld [vmem:[#allocation4 + $0x58] sm:$0xff]
  %v726 = vld [vmem:[#allocation4 + $0x60] sm:$0xff]
  %v727 = vld [vmem:[#allocation4 + $0x68] sm:$0xff]
  %v728 = vld [vmem:[#allocation4 + $0x70] sm:$0xff]
  %v729 = vld [vmem:[#allocation4 + $0x78] sm:$0xff]
  %731 = vset.pattern.permute.xlu0 0
  %732 = vperm.xlu0 %731, %v586
  %v733 = vpop.permute.xlu0 %732
  %736 = vset.pattern.permute.xlu0 0
  %737 = vperm.xlu0 %736, %v588
  %v738 = vpop.permute.xlu0 %737
  %741 = vset.pattern.permute.xlu0 0
  %742 = vperm.xlu0 %741, %v590
  %v743 = vpop.permute.xlu0 %742
  %746 = vset.pattern.permute.xlu0 0
  %747 = vperm.xlu0 %746, %v592
  %v748 = vpop.permute.xlu0 %747
  %751 = vset.pattern.permute.xlu0 0
  %752 = vperm.xlu0 %751, %v594
  %v753 = vpop.permute.xlu0 %752
  %756 = vset.pattern.permute.xlu0 0
  %757 = vperm.xlu0 %756, %v596
  %v758 = vpop.permute.xlu0 %757
  %761 = vset.pattern.permute.xlu0 0
  %762 = vperm.xlu0 %761, %v598
  %v763 = vpop.permute.xlu0 %762
  %766 = vset.pattern.permute.xlu0 0
  %767 = vperm.xlu0 %766, %v600
  %v768 = vpop.permute.xlu0 %767
  %771 = vset.pattern.permute.xlu0 0
  %772 = vperm.xlu0 %771, %v602
  %v773 = vpop.permute.xlu0 %772
  %776 = vset.pattern.permute.xlu0 0
  %777 = vperm.xlu0 %776, %v604
  %v778 = vpop.permute.xlu0 %777
  %781 = vset.pattern.permute.xlu0 0
  %782 = vperm.xlu0 %781, %v606
  %v783 = vpop.permute.xlu0 %782
  %786 = vset.pattern.permute.xlu0 0
  %787 = vperm.xlu0 %786, %v608
  %v788 = vpop.permute.xlu0 %787
  %791 = vset.pattern.permute.xlu0 0
  %792 = vperm.xlu0 %791, %v610
  %v793 = vpop.permute.xlu0 %792
  %796 = vset.pattern.permute.xlu0 0
  %797 = vperm.xlu0 %796, %v612
  %v798 = vpop.permute.xlu0 %797
  %801 = vset.pattern.permute.xlu0 0
  %802 = vperm.xlu0 %801, %v614
  %v803 = vpop.permute.xlu0 %802
  %806 = vset.pattern.permute.xlu0 0
  %807 = vperm.xlu0 %806, %v616
  %v808 = vpop.permute.xlu0 %807
  %v810 = vmul.f32 %v733, %v714
  %v811 = vmul.f32 %v738, %v715
  %v812 = vmul.f32 %v743, %v716
  %v813 = vmul.f32 %v748, %v717
  %v814 = vmul.f32 %v753, %v718
  %v815 = vmul.f32 %v758, %v719
  %v816 = vmul.f32 %v763, %v720
  %v817 = vmul.f32 %v768, %v721
  %v818 = vmul.f32 %v773, %v722
  %v819 = vmul.f32 %v778, %v723
  %v820 = vmul.f32 %v783, %v724
  %v821 = vmul.f32 %v788, %v725
  %v822 = vmul.f32 %v793, %v726
  %v823 = vmul.f32 %v798, %v727
  %v824 = vmul.f32 %v803, %v728
  %v825 = vmul.f32 %v808, %v729
  %v826 = vpack.c.bf16 %v540, %v538
  %v827 = vpack.c.bf16 %v544, %v542
  %v828 = vpack.c.bf16 %v548, %v546
  %v829 = vpack.c.bf16 %v552, %v550
  %v830 = vpack.c.bf16 %v556, %v554
  %v831 = vpack.c.bf16 %v560, %v558
  %v832 = vpack.c.bf16 %v564, %v562
  %v833 = vpack.c.bf16 %v568, %v566
  %v834 = vld [vmem:[%s3] sm:$0xf]
  %v835 = vld [vmem:[%s3 + $0xc] sm:$0xf]
  %v836 = vld [vmem:[%s3 + $0x18] sm:$0xf]
  %v837 = vld [vmem:[%s3 + $0x24] sm:$0xf]
  %v838 = vld [vmem:[%s3 + $0x30] sm:$0xf]
  %v839 = vld [vmem:[%s3 + $0x3c] sm:$0xf]
  %v840 = vld [vmem:[%s3 + $0x48] sm:$0xf]
  %v841 = vld [vmem:[%s3 + $0x54] sm:$0xf]
  %v842 = vld [vmem:[%s3 + $0x60] sm:$0xf]
  %v843 = vld [vmem:[%s3 + $0x6c] sm:$0xf]
  %v844 = vld [vmem:[%s3 + $0x78] sm:$0xf]
  %v845 = vld [vmem:[%s3 + $0x84] sm:$0xf]
  %v846 = vld [vmem:[%s3 + $0x90] sm:$0xf]
  %v847 = vld [vmem:[%s3 + $0x9c] sm:$0xf]
  %v848 = vld [vmem:[%s3 + $0xa8] sm:$0xf]
  %v849 = vld [vmem:[%s3 + $0xb4] sm:$0xf]
  %v866 = vunpack.c.l.b16 %v834
  %v867 = vunpack.c.l.b16 %v835
  %v868 = vunpack.c.l.b16 %v836
  %v869 = vunpack.c.l.b16 %v837
  %v870 = vunpack.c.l.b16 %v838
  %v871 = vunpack.c.l.b16 %v839
  %v872 = vunpack.c.l.b16 %v840
  %v873 = vunpack.c.l.b16 %v841
  %v874 = vunpack.c.l.b16 %v842
  %v875 = vunpack.c.l.b16 %v843
  %v876 = vunpack.c.l.b16 %v844
  %v877 = vunpack.c.l.b16 %v845
  %v878 = vunpack.c.l.b16 %v846
  %v879 = vunpack.c.l.b16 %v847
  %v880 = vunpack.c.l.b16 %v848
  %v881 = vunpack.c.l.b16 %v849
  %v882 = vpack.c.b16 %v867, %v866
  %v883 = vpack.c.b16 %v869, %v868
  %v884 = vpack.c.b16 %v871, %v870
  %v885 = vpack.c.b16 %v873, %v872
  %v886 = vpack.c.b16 %v875, %v874
  %v887 = vpack.c.b16 %v877, %v876
  %v888 = vpack.c.b16 %v879, %v878
  %v889 = vpack.c.b16 %v881, %v880
  %898 = vmatprep.subr.bf16.mxu0 0
  %899 = vmatpush1.bf16.msra.mxu0 %v889
  %900 = vmatprep.subr.bf16.mxu0 0
  %901 = vmatpush1.bf16.msra.mxu0 %v888
  %902 = vmatprep.subr.bf16.mxu0 0
  %903 = vmatpush1.bf16.msra.mxu0 %v887
  %904 = vmatprep.subr.bf16.mxu0 0
  %905 = vmatpush1.bf16.msra.mxu0 %v886
  %906 = vmatprep.subr.bf16.mxu0 0
  %907 = vmatpush1.bf16.msra.mxu0 %v885
  %908 = vmatprep.subr.bf16.mxu0 0
  %909 = vmatpush1.bf16.msra.mxu0 %v884
  %910 = vmatprep.subr.bf16.mxu0 0
  %911 = vmatpush1.bf16.msra.mxu0 %v883
  %912 = vmatprep.subr.bf16.mxu0 0
  %913 = vmatpush1.bf16.msra.mxu0 %v882
  %914 = vmatprep.subr.bf16.mxu0 0
  %915 = vmatpush2.bf16.msra.mxu0 0
  %916 = vmatprep.subr.bf16.mxu0 0
  %917 = vmatpush2.bf16.msra.mxu0 0
  %918 = vmatprep.subr.bf16.mxu0 0
  %919 = vmatpush2.bf16.msra.mxu0 0
  %920 = vmatprep.subr.bf16.mxu0 0
  %921 = vmatpush2.bf16.msra.mxu0 0
  %922 = vmatprep.subr.bf16.mxu0 0
  %923 = vmatpush2.bf16.msra.mxu0 0
  %924 = vmatprep.subr.bf16.mxu0 0
  %925 = vmatpush2.bf16.msra.mxu0 0
  %926 = vmatprep.subr.bf16.mxu0 0
  %927 = vmatpush2.bf16.msra.mxu0 0
  %928 = vmatprep.subr.bf16.mxu0 0
  %929 = vmatpush2.bf16.msra.mxu0 0
  %930 = vmatprep.mubr.bf16.mxu0 0
  %931 = vmatmul.mubr.bf16.gmra.mxu0 %v826
  %v932 = vpop.f32.mrf.mxu0
  %v933 = vadd.f32 0.0, %v932
  %v934 = vpop.f32.mrf.mxu0
  %v935 = vpop.f32.mrf.mxu0
  %v936 = vadd.f32 0.0, %v935
  %v937 = vpop.f32.mrf.mxu0
  %938 = vmatprep.mubr.bf16.mxu0 0
  %939 = vmatmul.mubr.bf16.gmra.mxu0 %v827
  %v940 = vpop.f32.mrf.mxu0
  %v941 = vadd.f32 0.0, %v940
  %v942 = vpop.f32.mrf.mxu0
  %v943 = vpop.f32.mrf.mxu0
  %v944 = vadd.f32 0.0, %v943
  %v945 = vpop.f32.mrf.mxu0
  %946 = vmatprep.mubr.bf16.mxu0 0
  %947 = vmatmul.mubr.bf16.gmra.mxu0 %v828
  %v948 = vpop.f32.mrf.mxu0
  %v949 = vadd.f32 0.0, %v948
  %v950 = vpop.f32.mrf.mxu0
  %v951 = vpop.f32.mrf.mxu0
  %v952 = vadd.f32 0.0, %v951
  %v953 = vpop.f32.mrf.mxu0
  %954 = vmatprep.mubr.bf16.mxu0 0
  %955 = vmatmul.mubr.bf16.gmra.mxu0 %v829
  %v956 = vpop.f32.mrf.mxu0
  %v957 = vadd.f32 0.0, %v956
  %v958 = vpop.f32.mrf.mxu0
  %v959 = vpop.f32.mrf.mxu0
  %v960 = vadd.f32 0.0, %v959
  %v961 = vpop.f32.mrf.mxu0
  %962 = vmatprep.mubr.bf16.mxu0 0
  %963 = vmatmul.mubr.bf16.gmra.mxu0 %v830
  %v964 = vpop.f32.mrf.mxu0
  %v965 = vadd.f32 0.0, %v964
  %v966 = vpop.f32.mrf.mxu0
  %v967 = vpop.f32.mrf.mxu0
  %v968 = vadd.f32 0.0, %v967
  %v969 = vpop.f32.mrf.mxu0
  %970 = vmatprep.mubr.bf16.mxu0 0
  %971 = vmatmul.mubr.bf16.gmra.mxu0 %v831
  %v972 = vpop.f32.mrf.mxu0
  %v973 = vadd.f32 0.0, %v972
  %v974 = vpop.f32.mrf.mxu0
  %v975 = vpop.f32.mrf.mxu0
  %v976 = vadd.f32 0.0, %v975
  %v977 = vpop.f32.mrf.mxu0
  %978 = vmatprep.mubr.bf16.mxu0 0
  %979 = vmatmul.mubr.bf16.gmra.mxu0 %v832
  %v980 = vpop.f32.mrf.mxu0
  %v981 = vadd.f32 0.0, %v980
  %v982 = vpop.f32.mrf.mxu0
  %v983 = vpop.f32.mrf.mxu0
  %v984 = vadd.f32 0.0, %v983
  %v985 = vpop.f32.mrf.mxu0
  %986 = vmatprep.mubr.bf16.mxu0 0
  %987 = vmatmul.mubr.bf16.gmra.mxu0 %v833
  %v988 = vpop.f32.mrf.mxu0
  %v989 = vadd.f32 0.0, %v988
  %v990 = vpop.f32.mrf.mxu0
  %v991 = vpop.f32.mrf.mxu0
  %v992 = vadd.f32 0.0, %v991
  %v993 = vpop.f32.mrf.mxu0
  %994 = vdwg.mxu0
  %v995 = vadd.f32 %v810, %v933
  %v996 = vadd.f32 %v811, %v936
  %v997 = vadd.f32 %v812, %v941
  %v998 = vadd.f32 %v813, %v944
  %v999 = vadd.f32 %v814, %v949
  %v1000 = vadd.f32 %v815, %v952
  %v1001 = vadd.f32 %v816, %v957
  %v1002 = vadd.f32 %v817, %v960
  %v1003 = vadd.f32 %v818, %v965
  %v1004 = vadd.f32 %v819, %v968
  %v1005 = vadd.f32 %v820, %v973
  %v1006 = vadd.f32 %v821, %v976
  %v1007 = vadd.f32 %v822, %v981
  %v1008 = vadd.f32 %v823, %v984
  %v1009 = vadd.f32 %v824, %v989
  %v1010 = vadd.f32 %v825, %v992
  %1011 = vst [vmem:[#allocation4] sm:$0xff] %v995
  %1012 = vst [vmem:[#allocation4 + $0x8] sm:$0xff] %v996
  %1013 = vst [vmem:[#allocation4 + $0x10] sm:$0xff] %v997
  %1014 = vst [vmem:[#allocation4 + $0x18] sm:$0xff] %v998
  %1015 = vst [vmem:[#allocation4 + $0x20] sm:$0xff] %v999
  %1016 = vst [vmem:[#allocation4 + $0x28] sm:$0xff] %v1000
  %1017 = vst [vmem:[#allocation4 + $0x30] sm:$0xff] %v1001
  %1018 = vst [vmem:[#allocation4 + $0x38] sm:$0xff] %v1002
  %1019 = vst [vmem:[#allocation4 + $0x40] sm:$0xff] %v1003
  %1020 = vst [vmem:[#allocation4 + $0x48] sm:$0xff] %v1004
  %1021 = vst [vmem:[#allocation4 + $0x50] sm:$0xff] %v1005
  %1022 = vst [vmem:[#allocation4 + $0x58] sm:$0xff] %v1006
  %1023 = vst [vmem:[#allocation4 + $0x60] sm:$0xff] %v1007
  %1024 = vst [vmem:[#allocation4 + $0x68] sm:$0xff] %v1008
  %1025 = vst [vmem:[#allocation4 + $0x70] sm:$0xff] %v1009
  %1026 = vst [vmem:[#allocation4 + $0x78] sm:$0xff] %v1010
  %1027 = vst.msk [vmem:[#allocation2] sm:$0xff] %vm697, %v425
  %1028 = vst.msk [vmem:[#allocation2 + $0x8] sm:$0xff] %vm697, %v426
  %1029 = vst.msk [vmem:[#allocation2 + $0x10] sm:$0xff] %vm697, %v427
  %1030 = vst.msk [vmem:[#allocation2 + $0x18] sm:$0xff] %vm697, %v428
  %1031 = vst.msk [vmem:[#allocation2 + $0x20] sm:$0xff] %vm697, %v429
  %1032 = vst.msk [vmem:[#allocation2 + $0x28] sm:$0xff] %vm697, %v430
  %1033 = vst.msk [vmem:[#allocation2 + $0x30] sm:$0xff] %vm697, %v431
  %1034 = vst.msk [vmem:[#allocation2 + $0x38] sm:$0xff] %vm697, %v432
  %1035 = vst.msk [vmem:[#allocation2 + $0x40] sm:$0xff] %vm697, %v433
  %1036 = vst.msk [vmem:[#allocation2 + $0x48] sm:$0xff] %vm697, %v434
  %1037 = vst.msk [vmem:[#allocation2 + $0x50] sm:$0xff] %vm697, %v435
  %1038 = vst.msk [vmem:[#allocation2 + $0x58] sm:$0xff] %vm697, %v436
  %1039 = vst.msk [vmem:[#allocation2 + $0x60] sm:$0xff] %vm697, %v437
  %1040 = vst.msk [vmem:[#allocation2 + $0x68] sm:$0xff] %vm697, %v438
  %1041 = vst.msk [vmem:[#allocation2 + $0x70] sm:$0xff] %vm697, %v439
  %1042 = vst.msk [vmem:[#allocation2 + $0x78] sm:$0xff] %vm697, %v440
  %1043 = vset.pattern.permute.xlu0 1
  %1044 = vperm.xlu0 %1043, %v88
  %v1045 = vpop.permute.xlu0 %1044
  %1047 = vset.pattern.permute.xlu0 1
  %1048 = vperm.xlu0 %1047, %v89
  %v1049 = vpop.permute.xlu0 %1048
  %1051 = vset.pattern.permute.xlu0 1
  %1052 = vperm.xlu0 %1051, %v90
  %v1053 = vpop.permute.xlu0 %1052
  %1055 = vset.pattern.permute.xlu0 1
  %1056 = vperm.xlu0 %1055, %v91
  %v1057 = vpop.permute.xlu0 %1056
  %1059 = vset.pattern.permute.xlu0 1
  %1060 = vperm.xlu0 %1059, %v92
  %v1061 = vpop.permute.xlu0 %1060
  %1063 = vset.pattern.permute.xlu0 1
  %1064 = vperm.xlu0 %1063, %v93
  %v1065 = vpop.permute.xlu0 %1064
  %1067 = vset.pattern.permute.xlu0 1
  %1068 = vperm.xlu0 %1067, %v94
  %v1069 = vpop.permute.xlu0 %1068
  %1071 = vset.pattern.permute.xlu0 1
  %1072 = vperm.xlu0 %1071, %v95
  %v1073 = vpop.permute.xlu0 %1072
  %1075 = vset.pattern.permute.xlu0 1
  %1076 = vperm.xlu0 %1075, %v96
  %v1077 = vpop.permute.xlu0 %1076
  %1079 = vset.pattern.permute.xlu0 1
  %1080 = vperm.xlu0 %1079, %v97
  %v1081 = vpop.permute.xlu0 %1080
  %1083 = vset.pattern.permute.xlu0 1
  %1084 = vperm.xlu0 %1083, %v98
  %v1085 = vpop.permute.xlu0 %1084
  %1087 = vset.pattern.permute.xlu0 1
  %1088 = vperm.xlu0 %1087, %v99
  %v1089 = vpop.permute.xlu0 %1088
  %1091 = vset.pattern.permute.xlu0 1
  %1092 = vperm.xlu0 %1091, %v100
  %v1093 = vpop.permute.xlu0 %1092
  %1095 = vset.pattern.permute.xlu0 1
  %1096 = vperm.xlu0 %1095, %v101
  %v1097 = vpop.permute.xlu0 %1096
  %1099 = vset.pattern.permute.xlu0 1
  %1100 = vperm.xlu0 %1099, %v102
  %v1101 = vpop.permute.xlu0 %1100
  %1103 = vset.pattern.permute.xlu0 1
  %1104 = vperm.xlu0 %1103, %v103
  %v1105 = vpop.permute.xlu0 %1104
  %v1107 = vlaneseq
  %v1108 = vshrl.u32 %v1107, 7
  %v1109 = vsub.s32 1, %v1108
  %v1110 = vrot.slane %v104, %v1109
  %v1111 = vadd.f32 %v1045, %v1110
  %v1112 = vadd.f32 %v1049, %v1110
  %v1113 = vadd.f32 %v1053, %v1110
  %v1114 = vadd.f32 %v1057, %v1110
  %v1115 = vadd.f32 %v1061, %v1110
  %v1116 = vadd.f32 %v1065, %v1110
  %v1117 = vadd.f32 %v1069, %v1110
  %v1118 = vadd.f32 %v1073, %v1110
  %v1119 = vadd.f32 %v1077, %v1110
  %v1120 = vadd.f32 %v1081, %v1110
  %v1121 = vadd.f32 %v1085, %v1110
  %v1122 = vadd.f32 %v1089, %v1110
  %v1123 = vadd.f32 %v1093, %v1110
  %v1124 = vadd.f32 %v1097, %v1110
  %v1125 = vadd.f32 %v1101, %v1110
  %v1126 = vadd.f32 %v1105, %v1110
  %v1127 = vmul.f32 %v1111, 0.2
  %v1128 = vmul.f32 %v1112, 0.2
  %v1129 = vmul.f32 %v1113, 0.2
  %v1130 = vmul.f32 %v1114, 0.2
  %v1131 = vmul.f32 %v1115, 0.2
  %v1132 = vmul.f32 %v1116, 0.2
  %v1133 = vmul.f32 %v1117, 0.2
  %v1134 = vmul.f32 %v1118, 0.2
  %v1135 = vmul.f32 %v1119, 0.2
  %v1136 = vmul.f32 %v1120, 0.2
  %v1137 = vmul.f32 %v1121, 0.2
  %v1138 = vmul.f32 %v1122, 0.2
  %v1139 = vmul.f32 %v1123, 0.2
  %v1140 = vmul.f32 %v1124, 0.2
  %v1141 = vmul.f32 %v1125, 0.2
  %v1142 = vmul.f32 %v1126, 0.2
  %v1143 = vmax.f32 %v1111, %v1127
  %v1144 = vmax.f32 %v1112, %v1128
  %v1145 = vmax.f32 %v1113, %v1129
  %v1146 = vmax.f32 %v1114, %v1130
  %v1147 = vmax.f32 %v1115, %v1131
  %v1148 = vmax.f32 %v1116, %v1132
  %v1149 = vmax.f32 %v1117, %v1133
  %v1150 = vmax.f32 %v1118, %v1134
  %v1151 = vmax.f32 %v1119, %v1135
  %v1152 = vmax.f32 %v1120, %v1136
  %v1153 = vmax.f32 %v1121, %v1137
  %v1154 = vmax.f32 %v1122, %v1138
  %v1155 = vmax.f32 %v1123, %v1139
  %v1156 = vmax.f32 %v1124, %v1140
  %v1157 = vmax.f32 %v1125, %v1141
  %v1158 = vmax.f32 %v1126, %v1142
  %s1159 = scalar_lea.vmem %s0, 32
  %v1160 = vld [vmem:[%s1159] sm:$0xff]
  %v1161 = vld [vmem:[%s1159 + $0x8] sm:$0xff]
  %v1162 = vld [vmem:[%s1159 + $0x10] sm:$0xff]
  %v1163 = vld [vmem:[%s1159 + $0x18] sm:$0xff]
  %vm1164 = vnez %v1160
  %vm1165 = vnez %v1161
  %vm1166 = vnez %v1162
  %vm1167 = vnez %v1163
  %v1168 = vsel %vm1164, 16843009, 0
  %v1169 = vsel %vm1165, 16843009, 0
  %v1170 = vsel %vm1166, 16843009, 0
  %v1171 = vsel %vm1167, 16843009, 0
  %v1172 = vunpack.c.0.s8 %v1168
  %v1173 = vunpack.c.1.s8 %v1168
  %v1174 = vunpack.c.2.s8 %v1168
  %v1175 = vunpack.c.3.s8 %v1168
  %v1176 = vunpack.c.0.s8 %v1169
  %v1177 = vunpack.c.1.s8 %v1169
  %v1178 = vunpack.c.2.s8 %v1169
  %v1179 = vunpack.c.3.s8 %v1169
  %v1180 = vunpack.c.0.s8 %v1170
  %v1181 = vunpack.c.1.s8 %v1170
  %v1182 = vunpack.c.2.s8 %v1170
  %v1183 = vunpack.c.3.s8 %v1170
  %v1184 = vunpack.c.0.s8 %v1171
  %v1185 = vunpack.c.1.s8 %v1171
  %v1186 = vunpack.c.2.s8 %v1171
  %v1187 = vunpack.c.3.s8 %v1171
  %v1188 = vpack.c.b16 %v1172, %v1172
  %v1189 = vpack.c.b8 %v1188, %v1188
  %v1190 = vpack.c.b16 %v1173, %v1173
  %v1191 = vpack.c.b8 %v1190, %v1190
  %v1192 = vpack.c.b16 %v1174, %v1174
  %v1193 = vpack.c.b8 %v1192, %v1192
  %v1194 = vpack.c.b16 %v1175, %v1175
  %v1195 = vpack.c.b8 %v1194, %v1194
  %v1196 = vpack.c.b16 %v1176, %v1176
  %v1197 = vpack.c.b8 %v1196, %v1196
  %v1198 = vpack.c.b16 %v1177, %v1177
  %v1199 = vpack.c.b8 %v1198, %v1198
  %v1200 = vpack.c.b16 %v1178, %v1178
  %v1201 = vpack.c.b8 %v1200, %v1200
  %v1202 = vpack.c.b16 %v1179, %v1179
  %v1203 = vpack.c.b8 %v1202, %v1202
  %v1204 = vpack.c.b16 %v1180, %v1180
  %v1205 = vpack.c.b8 %v1204, %v1204
  %v1206 = vpack.c.b16 %v1181, %v1181
  %v1207 = vpack.c.b8 %v1206, %v1206
  %v1208 = vpack.c.b16 %v1182, %v1182
  %v1209 = vpack.c.b8 %v1208, %v1208
  %v1210 = vpack.c.b16 %v1183, %v1183
  %v1211 = vpack.c.b8 %v1210, %v1210
  %v1212 = vpack.c.b16 %v1184, %v1184
  %v1213 = vpack.c.b8 %v1212, %v1212
  %v1214 = vpack.c.b16 %v1185, %v1185
  %v1215 = vpack.c.b8 %v1214, %v1214
  %v1216 = vpack.c.b16 %v1186, %v1186
  %v1217 = vpack.c.b8 %v1216, %v1216
  %v1218 = vpack.c.b16 %v1187, %v1187
  %v1219 = vpack.c.b8 %v1218, %v1218
  %vm1220 = vnez %v1189
  %vm1221 = vnez %v1191
  %vm1222 = vnez %v1193
  %vm1223 = vnez %v1195
  %vm1224 = vnez %v1197
  %vm1225 = vnez %v1199
  %vm1226 = vnez %v1201
  %vm1227 = vnez %v1203
  %vm1228 = vnez %v1205
  %vm1229 = vnez %v1207
  %vm1230 = vnez %v1209
  %vm1231 = vnez %v1211
  %vm1232 = vnez %v1213
  %vm1233 = vnez %v1215
  %vm1234 = vnez %v1217
  %vm1235 = vnez %v1219
  %v1236 = vsel %vm1220, 16843009, 0
  %v1237 = vsel %vm1221, 16843009, 0
  %v1238 = vsel %vm1222, 16843009, 0
  %v1239 = vsel %vm1223, 16843009, 0
  %v1240 = vsel %vm1224, 16843009, 0
  %v1241 = vsel %vm1225, 16843009, 0
  %v1242 = vsel %vm1226, 16843009, 0
  %v1243 = vsel %vm1227, 16843009, 0
  %v1244 = vsel %vm1228, 16843009, 0
  %v1245 = vsel %vm1229, 16843009, 0
  %v1246 = vsel %vm1230, 16843009, 0
  %v1247 = vsel %vm1231, 16843009, 0
  %v1248 = vsel %vm1232, 16843009, 0
  %v1249 = vsel %vm1233, 16843009, 0
  %v1250 = vsel %vm1234, 16843009, 0
  %v1251 = vsel %vm1235, 16843009, 0
  %v1252 = vunpack.c.0.s8 %v1236
  %v1253 = vunpack.c.0.s8 %v1237
  %v1254 = vunpack.c.0.s8 %v1238
  %v1255 = vunpack.c.0.s8 %v1239
  %v1256 = vunpack.c.0.s8 %v1240
  %v1257 = vunpack.c.0.s8 %v1241
  %v1258 = vunpack.c.0.s8 %v1242
  %v1259 = vunpack.c.0.s8 %v1243
  %v1260 = vunpack.c.0.s8 %v1244
  %v1261 = vunpack.c.0.s8 %v1245
  %v1262 = vunpack.c.0.s8 %v1246
  %v1263 = vunpack.c.0.s8 %v1247
  %v1264 = vunpack.c.0.s8 %v1248
  %v1265 = vunpack.c.0.s8 %v1249
  %v1266 = vunpack.c.0.s8 %v1250
  %v1267 = vunpack.c.0.s8 %v1251
  %vm1268 = vcmp.ne.s32.totalorder %v1252, 0
  %vm1269 = vcmp.ne.s32.totalorder %v1253, 0
  %vm1270 = vcmp.ne.s32.totalorder %v1254, 0
  %vm1271 = vcmp.ne.s32.totalorder %v1255, 0
  %vm1272 = vcmp.ne.s32.totalorder %v1256, 0
  %vm1273 = vcmp.ne.s32.totalorder %v1257, 0
  %vm1274 = vcmp.ne.s32.totalorder %v1258, 0
  %vm1275 = vcmp.ne.s32.totalorder %v1259, 0
  %vm1276 = vcmp.ne.s32.totalorder %v1260, 0
  %vm1277 = vcmp.ne.s32.totalorder %v1261, 0
  %vm1278 = vcmp.ne.s32.totalorder %v1262, 0
  %vm1279 = vcmp.ne.s32.totalorder %v1263, 0
  %vm1280 = vcmp.ne.s32.totalorder %v1264, 0
  %vm1281 = vcmp.ne.s32.totalorder %v1265, 0
  %vm1282 = vcmp.ne.s32.totalorder %v1266, 0
  %vm1283 = vcmp.ne.s32.totalorder %v1267, 0
  %v1284 = vsel %vm1268, %v1143, -1e+30
  %v1285 = vsel %vm1269, %v1144, -1e+30
  %v1286 = vsel %vm1270, %v1145, -1e+30
  %v1287 = vsel %vm1271, %v1146, -1e+30
  %v1288 = vsel %vm1272, %v1147, -1e+30
  %v1289 = vsel %vm1273, %v1148, -1e+30
  %v1290 = vsel %vm1274, %v1149, -1e+30
  %v1291 = vsel %vm1275, %v1150, -1e+30
  %v1292 = vsel %vm1276, %v1151, -1e+30
  %v1293 = vsel %vm1277, %v1152, -1e+30
  %v1294 = vsel %vm1278, %v1153, -1e+30
  %v1295 = vsel %vm1279, %v1154, -1e+30
  %v1296 = vsel %vm1280, %v1155, -1e+30
  %v1297 = vsel %vm1281, %v1156, -1e+30
  %v1298 = vsel %vm1282, %v1157, -1e+30
  %v1299 = vsel %vm1283, %v1158, -1e+30
  %v1300 = vld [vmem:[#allocation2] sm:$0xff]
  %v1301 = vld [vmem:[#allocation2 + $0x8] sm:$0xff]
  %v1302 = vld [vmem:[#allocation2 + $0x10] sm:$0xff]
  %v1303 = vld [vmem:[#allocation2 + $0x18] sm:$0xff]
  %v1304 = vld [vmem:[#allocation2 + $0x20] sm:$0xff]
  %v1305 = vld [vmem:[#allocation2 + $0x28] sm:$0xff]
  %v1306 = vld [vmem:[#allocation2 + $0x30] sm:$0xff]
  %v1307 = vld [vmem:[#allocation2 + $0x38] sm:$0xff]
  %v1308 = vld [vmem:[#allocation2 + $0x40] sm:$0xff]
  %v1309 = vld [vmem:[#allocation2 + $0x48] sm:$0xff]
  %v1310 = vld [vmem:[#allocation2 + $0x50] sm:$0xff]
  %v1311 = vld [vmem:[#allocation2 + $0x58] sm:$0xff]
  %v1312 = vld [vmem:[#allocation2 + $0x60] sm:$0xff]
  %v1313 = vld [vmem:[#allocation2 + $0x68] sm:$0xff]
  %v1314 = vld [vmem:[#allocation2 + $0x70] sm:$0xff]
  %v1315 = vld [vmem:[#allocation2 + $0x78] sm:$0xff]
  %1316 = vmax.xlane.f32.xlu0 %v1284
  %v1317 = vpop.xlane.xlu0 %1316
  %1318 = vmax.xlane.f32.xlu0 %v1285
  %v1319 = vpop.xlane.xlu0 %1318
  %1320 = vmax.xlane.f32.xlu0 %v1286
  %v1321 = vpop.xlane.xlu0 %1320
  %1322 = vmax.xlane.f32.xlu0 %v1287
  %v1323 = vpop.xlane.xlu0 %1322
  %1324 = vmax.xlane.f32.xlu0 %v1288
  %v1325 = vpop.xlane.xlu0 %1324
  %1326 = vmax.xlane.f32.xlu0 %v1289
  %v1327 = vpop.xlane.xlu0 %1326
  %1328 = vmax.xlane.f32.xlu0 %v1290
  %v1329 = vpop.xlane.xlu0 %1328
  %1330 = vmax.xlane.f32.xlu0 %v1291
  %v1331 = vpop.xlane.xlu0 %1330
  %1332 = vmax.xlane.f32.xlu0 %v1292
  %v1333 = vpop.xlane.xlu0 %1332
  %1334 = vmax.xlane.f32.xlu0 %v1293
  %v1335 = vpop.xlane.xlu0 %1334
  %1336 = vmax.xlane.f32.xlu0 %v1294
  %v1337 = vpop.xlane.xlu0 %1336
  %1338 = vmax.xlane.f32.xlu0 %v1295
  %v1339 = vpop.xlane.xlu0 %1338
  %1340 = vmax.xlane.f32.xlu0 %v1296
  %v1341 = vpop.xlane.xlu0 %1340
  %1342 = vmax.xlane.f32.xlu0 %v1297
  %v1343 = vpop.xlane.xlu0 %1342
  %1344 = vmax.xlane.f32.xlu0 %v1298
  %v1345 = vpop.xlane.xlu0 %1344
  %1346 = vmax.xlane.f32.xlu0 %v1299
  %v1347 = vpop.xlane.xlu0 %1346
  %v1348 = vmax.f32 %v1300, %v1317
  %v1349 = vmax.f32 %v1301, %v1319
  %v1350 = vmax.f32 %v1302, %v1321
  %v1351 = vmax.f32 %v1303, %v1323
  %v1352 = vmax.f32 %v1304, %v1325
  %v1353 = vmax.f32 %v1305, %v1327
  %v1354 = vmax.f32 %v1306, %v1329
  %v1355 = vmax.f32 %v1307, %v1331
  %v1356 = vmax.f32 %v1308, %v1333
  %v1357 = vmax.f32 %v1309, %v1335
  %v1358 = vmax.f32 %v1310, %v1337
  %v1359 = vmax.f32 %v1311, %v1339
  %v1360 = vmax.f32 %v1312, %v1341
  %v1361 = vmax.f32 %v1313, %v1343
  %v1362 = vmax.f32 %v1314, %v1345
  %v1363 = vmax.f32 %v1315, %v1347
  %1365 = vset.pattern.permute.xlu0 0
  %1366 = vperm.xlu0 %1365, %v1348
  %v1367 = vpop.permute.xlu0 %1366
  %1370 = vset.pattern.permute.xlu0 0
  %1371 = vperm.xlu0 %1370, %v1349
  %v1372 = vpop.permute.xlu0 %1371
  %1375 = vset.pattern.permute.xlu0 0
  %1376 = vperm.xlu0 %1375, %v1350
  %v1377 = vpop.permute.xlu0 %1376
  %1380 = vset.pattern.permute.xlu0 0
  %1381 = vperm.xlu0 %1380, %v1351
  %v1382 = vpop.permute.xlu0 %1381
  %1385 = vset.pattern.permute.xlu0 0
  %1386 = vperm.xlu0 %1385, %v1352
  %v1387 = vpop.permute.xlu0 %1386
  %1390 = vset.pattern.permute.xlu0 0
  %1391 = vperm.xlu0 %1390, %v1353
  %v1392 = vpop.permute.xlu0 %1391
  %1395 = vset.pattern.permute.xlu0 0
  %1396 = vperm.xlu0 %1395, %v1354
  %v1397 = vpop.permute.xlu0 %1396
  %1400 = vset.pattern.permute.xlu0 0
  %1401 = vperm.xlu0 %1400, %v1355
  %v1402 = vpop.permute.xlu0 %1401
  %1405 = vset.pattern.permute.xlu0 0
  %1406 = vperm.xlu0 %1405, %v1356
  %v1407 = vpop.permute.xlu0 %1406
  %1410 = vset.pattern.permute.xlu0 0
  %1411 = vperm.xlu0 %1410, %v1357
  %v1412 = vpop.permute.xlu0 %1411
  %1415 = vset.pattern.permute.xlu0 0
  %1416 = vperm.xlu0 %1415, %v1358
  %v1417 = vpop.permute.xlu0 %1416
  %1420 = vset.pattern.permute.xlu0 0
  %1421 = vperm.xlu0 %1420, %v1359
  %v1422 = vpop.permute.xlu0 %1421
  %1425 = vset.pattern.permute.xlu0 0
  %1426 = vperm.xlu0 %1425, %v1360
  %v1427 = vpop.permute.xlu0 %1426
  %1430 = vset.pattern.permute.xlu0 0
  %1431 = vperm.xlu0 %1430, %v1361
  %v1432 = vpop.permute.xlu0 %1431
  %1435 = vset.pattern.permute.xlu0 0
  %1436 = vperm.xlu0 %1435, %v1362
  %v1437 = vpop.permute.xlu0 %1436
  %1440 = vset.pattern.permute.xlu0 0
  %1441 = vperm.xlu0 %1440, %v1363
  %v1442 = vpop.permute.xlu0 %1441
  %v1444 = vsub.f32 %v1284, %v1367
  %v1445 = vsub.f32 %v1285, %v1372
  %v1446 = vsub.f32 %v1286, %v1377
  %v1447 = vsub.f32 %v1287, %v1382
  %v1448 = vsub.f32 %v1288, %v1387
  %v1449 = vsub.f32 %v1289, %v1392
  %v1450 = vsub.f32 %v1290, %v1397
  %v1451 = vsub.f32 %v1291, %v1402
  %v1452 = vsub.f32 %v1292, %v1407
  %v1453 = vsub.f32 %v1293, %v1412
  %v1454 = vsub.f32 %v1294, %v1417
  %v1455 = vsub.f32 %v1295, %v1422
  %v1456 = vsub.f32 %v1296, %v1427
  %v1457 = vsub.f32 %v1297, %v1432
  %v1458 = vsub.f32 %v1298, %v1437
  %v1459 = vsub.f32 %v1299, %v1442
  %v1460 = vmul.f32 %v1444, 1.442695
  %v1461 = vpow.pop %v1460
  %v1462 = vmul.f32 %v1445, 1.442695
  %v1463 = vpow.pop %v1462
  %v1464 = vmul.f32 %v1446, 1.442695
  %v1465 = vpow.pop %v1464
  %v1466 = vmul.f32 %v1447, 1.442695
  %v1467 = vpow.pop %v1466
  %v1468 = vmul.f32 %v1448, 1.442695
  %v1469 = vpow.pop %v1468
  %v1470 = vmul.f32 %v1449, 1.442695
  %v1471 = vpow.pop %v1470
  %v1472 = vmul.f32 %v1450, 1.442695
  %v1473 = vpow.pop %v1472
  %v1474 = vmul.f32 %v1451, 1.442695
  %v1475 = vpow.pop %v1474
  %v1476 = vmul.f32 %v1452, 1.442695
  %v1477 = vpow.pop %v1476
  %v1478 = vmul.f32 %v1453, 1.442695
  %v1479 = vpow.pop %v1478
  %v1480 = vmul.f32 %v1454, 1.442695
  %v1481 = vpow.pop %v1480
  %v1482 = vmul.f32 %v1455, 1.442695
  %v1483 = vpow.pop %v1482
  %v1484 = vmul.f32 %v1456, 1.442695
  %v1485 = vpow.pop %v1484
  %v1486 = vmul.f32 %v1457, 1.442695
  %v1487 = vpow.pop %v1486
  %v1488 = vmul.f32 %v1458, 1.442695
  %v1489 = vpow.pop %v1488
  %v1490 = vmul.f32 %v1459, 1.442695
  %v1491 = vpow.pop %v1490
  %v1492 = vsub.f32 %v1300, %v1348
  %v1493 = vsub.f32 %v1301, %v1349
  %v1494 = vsub.f32 %v1302, %v1350
  %v1495 = vsub.f32 %v1303, %v1351
  %v1496 = vsub.f32 %v1304, %v1352
  %v1497 = vsub.f32 %v1305, %v1353
  %v1498 = vsub.f32 %v1306, %v1354
  %v1499 = vsub.f32 %v1307, %v1355
  %v1500 = vsub.f32 %v1308, %v1356
  %v1501 = vsub.f32 %v1309, %v1357
  %v1502 = vsub.f32 %v1310, %v1358
  %v1503 = vsub.f32 %v1311, %v1359
  %v1504 = vsub.f32 %v1312, %v1360
  %v1505 = vsub.f32 %v1313, %v1361
  %v1506 = vsub.f32 %v1314, %v1362
  %v1507 = vsub.f32 %v1315, %v1363
  %v1508 = vmul.f32 %v1492, 1.442695
  %v1509 = vpow.pop %v1508
  %v1510 = vmul.f32 %v1493, 1.442695
  %v1511 = vpow.pop %v1510
  %v1512 = vmul.f32 %v1494, 1.442695
  %v1513 = vpow.pop %v1512
  %v1514 = vmul.f32 %v1495, 1.442695
  %v1515 = vpow.pop %v1514
  %v1516 = vmul.f32 %v1496, 1.442695
  %v1517 = vpow.pop %v1516
  %v1518 = vmul.f32 %v1497, 1.442695
  %v1519 = vpow.pop %v1518
  %v1520 = vmul.f32 %v1498, 1.442695
  %v1521 = vpow.pop %v1520
  %v1522 = vmul.f32 %v1499, 1.442695
  %v1523 = vpow.pop %v1522
  %v1524 = vmul.f32 %v1500, 1.442695
  %v1525 = vpow.pop %v1524
  %v1526 = vmul.f32 %v1501, 1.442695
  %v1527 = vpow.pop %v1526
  %v1528 = vmul.f32 %v1502, 1.442695
  %v1529 = vpow.pop %v1528
  %v1530 = vmul.f32 %v1503, 1.442695
  %v1531 = vpow.pop %v1530
  %v1532 = vmul.f32 %v1504, 1.442695
  %v1533 = vpow.pop %v1532
  %v1534 = vmul.f32 %v1505, 1.442695
  %v1535 = vpow.pop %v1534
  %v1536 = vmul.f32 %v1506, 1.442695
  %v1537 = vpow.pop %v1536
  %v1538 = vmul.f32 %v1507, 1.442695
  %v1539 = vpow.pop %v1538
  %v1540 = vld [vmem:[#allocation3] sm:$0xff]
  %v1541 = vld [vmem:[#allocation3 + $0x8] sm:$0xff]
  %v1542 = vld [vmem:[#allocation3 + $0x10] sm:$0xff]
  %v1543 = vld [vmem:[#allocation3 + $0x18] sm:$0xff]
  %v1544 = vld [vmem:[#allocation3 + $0x20] sm:$0xff]
  %v1545 = vld [vmem:[#allocation3 + $0x28] sm:$0xff]
  %v1546 = vld [vmem:[#allocation3 + $0x30] sm:$0xff]
  %v1547 = vld [vmem:[#allocation3 + $0x38] sm:$0xff]
  %v1548 = vld [vmem:[#allocation3 + $0x40] sm:$0xff]
  %v1549 = vld [vmem:[#allocation3 + $0x48] sm:$0xff]
  %v1550 = vld [vmem:[#allocation3 + $0x50] sm:$0xff]
  %v1551 = vld [vmem:[#allocation3 + $0x58] sm:$0xff]
  %v1552 = vld [vmem:[#allocation3 + $0x60] sm:$0xff]
  %v1553 = vld [vmem:[#allocation3 + $0x68] sm:$0xff]
  %v1554 = vld [vmem:[#allocation3 + $0x70] sm:$0xff]
  %v1555 = vld [vmem:[#allocation3 + $0x78] sm:$0xff]
  %v1556 = vmul.f32 %v1509, %v1540
  %v1557 = vmul.f32 %v1511, %v1541
  %v1558 = vmul.f32 %v1513, %v1542
  %v1559 = vmul.f32 %v1515, %v1543
  %v1560 = vmul.f32 %v1517, %v1544
  %v1561 = vmul.f32 %v1519, %v1545
  %v1562 = vmul.f32 %v1521, %v1546
  %v1563 = vmul.f32 %v1523, %v1547
  %v1564 = vmul.f32 %v1525, %v1548
  %v1565 = vmul.f32 %v1527, %v1549
  %v1566 = vmul.f32 %v1529, %v1550
  %v1567 = vmul.f32 %v1531, %v1551
  %v1568 = vmul.f32 %v1533, %v1552
  %v1569 = vmul.f32 %v1535, %v1553
  %v1570 = vmul.f32 %v1537, %v1554
  %v1571 = vmul.f32 %v1539, %v1555
  %1572 = vadd.xlane.f32.xlu0 %v1461
  %v1573 = vpop.xlane.xlu0 %1572
  %1574 = vadd.xlane.f32.xlu0 %v1463
  %v1575 = vpop.xlane.xlu0 %1574
  %1576 = vadd.xlane.f32.xlu0 %v1465
  %v1577 = vpop.xlane.xlu0 %1576
  %1578 = vadd.xlane.f32.xlu0 %v1467
  %v1579 = vpop.xlane.xlu0 %1578
  %1580 = vadd.xlane.f32.xlu0 %v1469
  %v1581 = vpop.xlane.xlu0 %1580
  %1582 = vadd.xlane.f32.xlu0 %v1471
  %v1583 = vpop.xlane.xlu0 %1582
  %1584 = vadd.xlane.f32.xlu0 %v1473
  %v1585 = vpop.xlane.xlu0 %1584
  %1586 = vadd.xlane.f32.xlu0 %v1475
  %v1587 = vpop.xlane.xlu0 %1586
  %1588 = vadd.xlane.f32.xlu0 %v1477
  %v1589 = vpop.xlane.xlu0 %1588
  %1590 = vadd.xlane.f32.xlu0 %v1479
  %v1591 = vpop.xlane.xlu0 %1590
  %1592 = vadd.xlane.f32.xlu0 %v1481
  %v1593 = vpop.xlane.xlu0 %1592
  %1594 = vadd.xlane.f32.xlu0 %v1483
  %v1595 = vpop.xlane.xlu0 %1594
  %1596 = vadd.xlane.f32.xlu0 %v1485
  %v1597 = vpop.xlane.xlu0 %1596
  %1598 = vadd.xlane.f32.xlu0 %v1487
  %v1599 = vpop.xlane.xlu0 %1598
  %1600 = vadd.xlane.f32.xlu0 %v1489
  %v1601 = vpop.xlane.xlu0 %1600
  %1602 = vadd.xlane.f32.xlu0 %v1491
  %v1603 = vpop.xlane.xlu0 %1602
  %v1604 = vadd.f32 %v1556, %v1573
  %v1605 = vadd.f32 %v1557, %v1575
  %v1606 = vadd.f32 %v1558, %v1577
  %v1607 = vadd.f32 %v1559, %v1579
  %v1608 = vadd.f32 %v1560, %v1581
  %v1609 = vadd.f32 %v1561, %v1583
  %v1610 = vadd.f32 %v1562, %v1585
  %v1611 = vadd.f32 %v1563, %v1587
  %v1612 = vadd.f32 %v1564, %v1589
  %v1613 = vadd.f32 %v1565, %v1591
  %v1614 = vadd.f32 %v1566, %v1593
  %v1615 = vadd.f32 %v1567, %v1595
  %v1616 = vadd.f32 %v1568, %v1597
  %v1617 = vadd.f32 %v1569, %v1599
  %v1618 = vadd.f32 %v1570, %v1601
  %v1619 = vadd.f32 %v1571, %v1603
  %1620 = vst.msk [vmem:[#allocation3] sm:$0xff] %vm697, %v1604
  %1621 = vst.msk [vmem:[#allocation3 + $0x8] sm:$0xff] %vm697, %v1605
  %1622 = vst.msk [vmem:[#allocation3 + $0x10] sm:$0xff] %vm697, %v1606
  %1623 = vst.msk [vmem:[#allocation3 + $0x18] sm:$0xff] %vm697, %v1607
  %1624 = vst.msk [vmem:[#allocation3 + $0x20] sm:$0xff] %vm697, %v1608
  %1625 = vst.msk [vmem:[#allocation3 + $0x28] sm:$0xff] %vm697, %v1609
  %1626 = vst.msk [vmem:[#allocation3 + $0x30] sm:$0xff] %vm697, %v1610
  %1627 = vst.msk [vmem:[#allocation3 + $0x38] sm:$0xff] %vm697, %v1611
  %1628 = vst.msk [vmem:[#allocation3 + $0x40] sm:$0xff] %vm697, %v1612
  %1629 = vst.msk [vmem:[#allocation3 + $0x48] sm:$0xff] %vm697, %v1613
  %1630 = vst.msk [vmem:[#allocation3 + $0x50] sm:$0xff] %vm697, %v1614
  %1631 = vst.msk [vmem:[#allocation3 + $0x58] sm:$0xff] %vm697, %v1615
  %1632 = vst.msk [vmem:[#allocation3 + $0x60] sm:$0xff] %vm697, %v1616
  %1633 = vst.msk [vmem:[#allocation3 + $0x68] sm:$0xff] %vm697, %v1617
  %1634 = vst.msk [vmem:[#allocation3 + $0x70] sm:$0xff] %vm697, %v1618
  %1635 = vst.msk [vmem:[#allocation3 + $0x78] sm:$0xff] %vm697, %v1619
  %v1636 = vld [vmem:[#allocation4] sm:$0xff]
  %v1637 = vld [vmem:[#allocation4 + $0x8] sm:$0xff]
  %v1638 = vld [vmem:[#allocation4 + $0x10] sm:$0xff]
  %v1639 = vld [vmem:[#allocation4 + $0x18] sm:$0xff]
  %v1640 = vld [vmem:[#allocation4 + $0x20] sm:$0xff]
  %v1641 = vld [vmem:[#allocation4 + $0x28] sm:$0xff]
  %v1642 = vld [vmem:[#allocation4 + $0x30] sm:$0xff]
  %v1643 = vld [vmem:[#allocation4 + $0x38] sm:$0xff]
  %v1644 = vld [vmem:[#allocation4 + $0x40] sm:$0xff]
  %v1645 = vld [vmem:[#allocation4 + $0x48] sm:$0xff]
  %v1646 = vld [vmem:[#allocation4 + $0x50] sm:$0xff]
  %v1647 = vld [vmem:[#allocation4 + $0x58] sm:$0xff]
  %v1648 = vld [vmem:[#allocation4 + $0x60] sm:$0xff]
  %v1649 = vld [vmem:[#allocation4 + $0x68] sm:$0xff]
  %v1650 = vld [vmem:[#allocation4 + $0x70] sm:$0xff]
  %v1651 = vld [vmem:[#allocation4 + $0x78] sm:$0xff]
  %1653 = vset.pattern.permute.xlu0 0
  %1654 = vperm.xlu0 %1653, %v1509
  %v1655 = vpop.permute.xlu0 %1654
  %1658 = vset.pattern.permute.xlu0 0
  %1659 = vperm.xlu0 %1658, %v1511
  %v1660 = vpop.permute.xlu0 %1659
  %1663 = vset.pattern.permute.xlu0 0
  %1664 = vperm.xlu0 %1663, %v1513
  %v1665 = vpop.permute.xlu0 %1664
  %1668 = vset.pattern.permute.xlu0 0
  %1669 = vperm.xlu0 %1668, %v1515
  %v1670 = vpop.permute.xlu0 %1669
  %1673 = vset.pattern.permute.xlu0 0
  %1674 = vperm.xlu0 %1673, %v1517
  %v1675 = vpop.permute.xlu0 %1674
  %1678 = vset.pattern.permute.xlu0 0
  %1679 = vperm.xlu0 %1678, %v1519
  %v1680 = vpop.permute.xlu0 %1679
  %1683 = vset.pattern.permute.xlu0 0
  %1684 = vperm.xlu0 %1683, %v1521
  %v1685 = vpop.permute.xlu0 %1684
  %1688 = vset.pattern.permute.xlu0 0
  %1689 = vperm.xlu0 %1688, %v1523
  %v1690 = vpop.permute.xlu0 %1689
  %1693 = vset.pattern.permute.xlu0 0
  %1694 = vperm.xlu0 %1693, %v1525
  %v1695 = vpop.permute.xlu0 %1694
  %1698 = vset.pattern.permute.xlu0 0
  %1699 = vperm.xlu0 %1698, %v1527
  %v1700 = vpop.permute.xlu0 %1699
  %1703 = vset.pattern.permute.xlu0 0
  %1704 = vperm.xlu0 %1703, %v1529
  %v1705 = vpop.permute.xlu0 %1704
  %1708 = vset.pattern.permute.xlu0 0
  %1709 = vperm.xlu0 %1708, %v1531
  %v1710 = vpop.permute.xlu0 %1709
  %1713 = vset.pattern.permute.xlu0 0
  %1714 = vperm.xlu0 %1713, %v1533
  %v1715 = vpop.permute.xlu0 %1714
  %1718 = vset.pattern.permute.xlu0 0
  %1719 = vperm.xlu0 %1718, %v1535
  %v1720 = vpop.permute.xlu0 %1719
  %1723 = vset.pattern.permute.xlu0 0
  %1724 = vperm.xlu0 %1723, %v1537
  %v1725 = vpop.permute.xlu0 %1724
  %1728 = vset.pattern.permute.xlu0 0
  %1729 = vperm.xlu0 %1728, %v1539
  %v1730 = vpop.permute.xlu0 %1729
  %v1732 = vmul.f32 %v1655, %v1636
  %v1733 = vmul.f32 %v1660, %v1637
  %v1734 = vmul.f32 %v1665, %v1638
  %v1735 = vmul.f32 %v1670, %v1639
  %v1736 = vmul.f32 %v1675, %v1640
  %v1737 = vmul.f32 %v1680, %v1641
  %v1738 = vmul.f32 %v1685, %v1642
  %v1739 = vmul.f32 %v1690, %v1643
  %v1740 = vmul.f32 %v1695, %v1644
  %v1741 = vmul.f32 %v1700, %v1645
  %v1742 = vmul.f32 %v1705, %v1646
  %v1743 = vmul.f32 %v1710, %v1647
  %v1744 = vmul.f32 %v1715, %v1648
  %v1745 = vmul.f32 %v1720, %v1649
  %v1746 = vmul.f32 %v1725, %v1650
  %v1747 = vmul.f32 %v1730, %v1651
  %v1748 = vpack.c.bf16 %v1463, %v1461
  %v1749 = vpack.c.bf16 %v1467, %v1465
  %v1750 = vpack.c.bf16 %v1471, %v1469
  %v1751 = vpack.c.bf16 %v1475, %v1473
  %v1752 = vpack.c.bf16 %v1479, %v1477
  %v1753 = vpack.c.bf16 %v1483, %v1481
  %v1754 = vpack.c.bf16 %v1487, %v1485
  %v1755 = vpack.c.bf16 %v1491, %v1489
  %v1756 = vld [vmem:[%s3 + $0x4] sm:$0xf]
  %v1757 = vld [vmem:[%s3 + $0x10] sm:$0xf]
  %v1758 = vld [vmem:[%s3 + $0x1c] sm:$0xf]
  %v1759 = vld [vmem:[%s3 + $0x28] sm:$0xf]
  %v1760 = vld [vmem:[%s3 + $0x34] sm:$0xf]
  %v1761 = vld [vmem:[%s3 + $0x40] sm:$0xf]
  %v1762 = vld [vmem:[%s3 + $0x4c] sm:$0xf]
  %v1763 = vld [vmem:[%s3 + $0x58] sm:$0xf]
  %v1764 = vld [vmem:[%s3 + $0x64] sm:$0xf]
  %v1765 = vld [vmem:[%s3 + $0x70] sm:$0xf]
  %v1766 = vld [vmem:[%s3 + $0x7c] sm:$0xf]
  %v1767 = vld [vmem:[%s3 + $0x88] sm:$0xf]
  %v1768 = vld [vmem:[%s3 + $0x94] sm:$0xf]
  %v1769 = vld [vmem:[%s3 + $0xa0] sm:$0xf]
  %v1770 = vld [vmem:[%s3 + $0xac] sm:$0xf]
  %v1771 = vld [vmem:[%s3 + $0xb8] sm:$0xf]
  %v1788 = vunpack.c.l.b16 %v1756
  %v1789 = vunpack.c.l.b16 %v1757
  %v1790 = vunpack.c.l.b16 %v1758
  %v1791 = vunpack.c.l.b16 %v1759
  %v1792 = vunpack.c.l.b16 %v1760
  %v1793 = vunpack.c.l.b16 %v1761
  %v1794 = vunpack.c.l.b16 %v1762
  %v1795 = vunpack.c.l.b16 %v1763
  %v1796 = vunpack.c.l.b16 %v1764
  %v1797 = vunpack.c.l.b16 %v1765
  %v1798 = vunpack.c.l.b16 %v1766
  %v1799 = vunpack.c.l.b16 %v1767
  %v1800 = vunpack.c.l.b16 %v1768
  %v1801 = vunpack.c.l.b16 %v1769
  %v1802 = vunpack.c.l.b16 %v1770
  %v1803 = vunpack.c.l.b16 %v1771
  %v1804 = vpack.c.b16 %v1789, %v1788
  %v1805 = vpack.c.b16 %v1791, %v1790
  %v1806 = vpack.c.b16 %v1793, %v1792
  %v1807 = vpack.c.b16 %v1795, %v1794
  %v1808 = vpack.c.b16 %v1797, %v1796
  %v1809 = vpack.c.b16 %v1799, %v1798
  %v1810 = vpack.c.b16 %v1801, %v1800
  %v1811 = vpack.c.b16 %v1803, %v1802
  %1820 = vmatprep.subr.bf16.mxu0 0
  %1821 = vmatpush1.bf16.msra.mxu0 %v1811
  %1822 = vmatprep.subr.bf16.mxu0 0
  %1823 = vmatpush1.bf16.msra.mxu0 %v1810
  %1824 = vmatprep.subr.bf16.mxu0 0
  %1825 = vmatpush1.bf16.msra.mxu0 %v1809
  %1826 = vmatprep.subr.bf16.mxu0 0
  %1827 = vmatpush1.bf16.msra.mxu0 %v1808
  %1828 = vmatprep.subr.bf16.mxu0 0
  %1829 = vmatpush1.bf16.msra.mxu0 %v1807
  %1830 = vmatprep.subr.bf16.mxu0 0
  %1831 = vmatpush1.bf16.msra.mxu0 %v1806
  %1832 = vmatprep.subr.bf16.mxu0 0
  %1833 = vmatpush1.bf16.msra.mxu0 %v1805
  %1834 = vmatprep.subr.bf16.mxu0 0
  %1835 = vmatpush1.bf16.msra.mxu0 %v1804
  %1836 = vmatprep.subr.bf16.mxu0 0
  %1837 = vmatpush2.bf16.msra.mxu0 0
  %1838 = vmatprep.subr.bf16.mxu0 0
  %1839 = vmatpush2.bf16.msra.mxu0 0
  %1840 = vmatprep.subr.bf16.mxu0 0
  %1841 = vmatpush2.bf16.msra.mxu0 0
  %1842 = vmatprep.subr.bf16.mxu0 0
  %1843 = vmatpush2.bf16.msra.mxu0 0
  %1844 = vmatprep.subr.bf16.mxu0 0
  %1845 = vmatpush2.bf16.msra.mxu0 0
  %1846 = vmatprep.subr.bf16.mxu0 0
  %1847 = vmatpush2.bf16.msra.mxu0 0
  %1848 = vmatprep.subr.bf16.mxu0 0
  %1849 = vmatpush2.bf16.msra.mxu0 0
  %1850 = vmatprep.subr.bf16.mxu0 0
  %1851 = vmatpush2.bf16.msra.mxu0 0
  %1852 = vmatprep.mubr.bf16.mxu0 0
  %1853 = vmatmul.mubr.bf16.gmra.mxu0 %v1748
  %v1854 = vpop.f32.mrf.mxu0
  %v1855 = vadd.f32 0.0, %v1854
  %v1856 = vpop.f32.mrf.mxu0
  %v1857 = vpop.f32.mrf.mxu0
  %v1858 = vadd.f32 0.0, %v1857
  %v1859 = vpop.f32.mrf.mxu0
  %1860 = vmatprep.mubr.bf16.mxu0 0
  %1861 = vmatmul.mubr.bf16.gmra.mxu0 %v1749
  %v1862 = vpop.f32.mrf.mxu0
  %v1863 = vadd.f32 0.0, %v1862
  %v1864 = vpop.f32.mrf.mxu0
  %v1865 = vpop.f32.mrf.mxu0
  %v1866 = vadd.f32 0.0, %v1865
  %v1867 = vpop.f32.mrf.mxu0
  %1868 = vmatprep.mubr.bf16.mxu0 0
  %1869 = vmatmul.mubr.bf16.gmra.mxu0 %v1750
  %v1870 = vpop.f32.mrf.mxu0
  %v1871 = vadd.f32 0.0, %v1870
  %v1872 = vpop.f32.mrf.mxu0
  %v1873 = vpop.f32.mrf.mxu0
  %v1874 = vadd.f32 0.0, %v1873
  %v1875 = vpop.f32.mrf.mxu0
  %1876 = vmatprep.mubr.bf16.mxu0 0
  %1877 = vmatmul.mubr.bf16.gmra.mxu0 %v1751
  %v1878 = vpop.f32.mrf.mxu0
  %v1879 = vadd.f32 0.0, %v1878
  %v1880 = vpop.f32.mrf.mxu0
  %v1881 = vpop.f32.mrf.mxu0
  %v1882 = vadd.f32 0.0, %v1881
  %v1883 = vpop.f32.mrf.mxu0
  %1884 = vmatprep.mubr.bf16.mxu0 0
  %1885 = vmatmul.mubr.bf16.gmra.mxu0 %v1752
  %v1886 = vpop.f32.mrf.mxu0
  %v1887 = vadd.f32 0.0, %v1886
  %v1888 = vpop.f32.mrf.mxu0
  %v1889 = vpop.f32.mrf.mxu0
  %v1890 = vadd.f32 0.0, %v1889
  %v1891 = vpop.f32.mrf.mxu0
  %1892 = vmatprep.mubr.bf16.mxu0 0
  %1893 = vmatmul.mubr.bf16.gmra.mxu0 %v1753
  %v1894 = vpop.f32.mrf.mxu0
  %v1895 = vadd.f32 0.0, %v1894
  %v1896 = vpop.f32.mrf.mxu0
  %v1897 = vpop.f32.mrf.mxu0
  %v1898 = vadd.f32 0.0, %v1897
  %v1899 = vpop.f32.mrf.mxu0
  %1900 = vmatprep.mubr.bf16.mxu0 0
  %1901 = vmatmul.mubr.bf16.gmra.mxu0 %v1754
  %v1902 = vpop.f32.mrf.mxu0
  %v1903 = vadd.f32 0.0, %v1902
  %v1904 = vpop.f32.mrf.mxu0
  %v1905 = vpop.f32.mrf.mxu0
  %v1906 = vadd.f32 0.0, %v1905
  %v1907 = vpop.f32.mrf.mxu0
  %1908 = vmatprep.mubr.bf16.mxu0 0
  %1909 = vmatmul.mubr.bf16.gmra.mxu0 %v1755
  %v1910 = vpop.f32.mrf.mxu0
  %v1911 = vadd.f32 0.0, %v1910
  %v1912 = vpop.f32.mrf.mxu0
  %v1913 = vpop.f32.mrf.mxu0
  %v1914 = vadd.f32 0.0, %v1913
  %v1915 = vpop.f32.mrf.mxu0
  %1916 = vdwg.mxu0
  %v1917 = vadd.f32 %v1732, %v1855
  %v1918 = vadd.f32 %v1733, %v1858
  %v1919 = vadd.f32 %v1734, %v1863
  %v1920 = vadd.f32 %v1735, %v1866
  %v1921 = vadd.f32 %v1736, %v1871
  %v1922 = vadd.f32 %v1737, %v1874
  %v1923 = vadd.f32 %v1738, %v1879
  %v1924 = vadd.f32 %v1739, %v1882
  %v1925 = vadd.f32 %v1740, %v1887
  %v1926 = vadd.f32 %v1741, %v1890
  %v1927 = vadd.f32 %v1742, %v1895
  %v1928 = vadd.f32 %v1743, %v1898
  %v1929 = vadd.f32 %v1744, %v1903
  %v1930 = vadd.f32 %v1745, %v1906
  %v1931 = vadd.f32 %v1746, %v1911
  %v1932 = vadd.f32 %v1747, %v1914
  %1933 = vst [vmem:[#allocation4] sm:$0xff] %v1917
  %1934 = vst [vmem:[#allocation4 + $0x8] sm:$0xff] %v1918
  %1935 = vst [vmem:[#allocation4 + $0x10] sm:$0xff] %v1919
  %1936 = vst [vmem:[#allocation4 + $0x18] sm:$0xff] %v1920
  %1937 = vst [vmem:[#allocation4 + $0x20] sm:$0xff] %v1921
  %1938 = vst [vmem:[#allocation4 + $0x28] sm:$0xff] %v1922
  %1939 = vst [vmem:[#allocation4 + $0x30] sm:$0xff] %v1923
  %1940 = vst [vmem:[#allocation4 + $0x38] sm:$0xff] %v1924
  %1941 = vst [vmem:[#allocation4 + $0x40] sm:$0xff] %v1925
  %1942 = vst [vmem:[#allocation4 + $0x48] sm:$0xff] %v1926
  %1943 = vst [vmem:[#allocation4 + $0x50] sm:$0xff] %v1927
  %1944 = vst [vmem:[#allocation4 + $0x58] sm:$0xff] %v1928
  %1945 = vst [vmem:[#allocation4 + $0x60] sm:$0xff] %v1929
  %1946 = vst [vmem:[#allocation4 + $0x68] sm:$0xff] %v1930
  %1947 = vst [vmem:[#allocation4 + $0x70] sm:$0xff] %v1931
  %1948 = vst [vmem:[#allocation4 + $0x78] sm:$0xff] %v1932
  %1949 = vst.msk [vmem:[#allocation2] sm:$0xff] %vm697, %v1348
  %1950 = vst.msk [vmem:[#allocation2 + $0x8] sm:$0xff] %vm697, %v1349
  %1951 = vst.msk [vmem:[#allocation2 + $0x10] sm:$0xff] %vm697, %v1350
  %1952 = vst.msk [vmem:[#allocation2 + $0x18] sm:$0xff] %vm697, %v1351
  %1953 = vst.msk [vmem:[#allocation2 + $0x20] sm:$0xff] %vm697, %v1352
  %1954 = vst.msk [vmem:[#allocation2 + $0x28] sm:$0xff] %vm697, %v1353
  %1955 = vst.msk [vmem:[#allocation2 + $0x30] sm:$0xff] %vm697, %v1354
  %1956 = vst.msk [vmem:[#allocation2 + $0x38] sm:$0xff] %vm697, %v1355
  %1957 = vst.msk [vmem:[#allocation2 + $0x40] sm:$0xff] %vm697, %v1356
  %1958 = vst.msk [vmem:[#allocation2 + $0x48] sm:$0xff] %vm697, %v1357
  %1959 = vst.msk [vmem:[#allocation2 + $0x50] sm:$0xff] %vm697, %v1358
  %1960 = vst.msk [vmem:[#allocation2 + $0x58] sm:$0xff] %vm697, %v1359
  %1961 = vst.msk [vmem:[#allocation2 + $0x60] sm:$0xff] %vm697, %v1360
  %1962 = vst.msk [vmem:[#allocation2 + $0x68] sm:$0xff] %vm697, %v1361
  %1963 = vst.msk [vmem:[#allocation2 + $0x70] sm:$0xff] %vm697, %v1362
  %1964 = vst.msk [vmem:[#allocation2 + $0x78] sm:$0xff] %vm697, %v1363
  %1965 = vset.pattern.permute.xlu0 2
  %1966 = vperm.xlu0 %1965, %v88
  %v1967 = vpop.permute.xlu0 %1966
  %1969 = vset.pattern.permute.xlu0 2
  %1970 = vperm.xlu0 %1969, %v89
  %v1971 = vpop.permute.xlu0 %1970
  %1973 = vset.pattern.permute.xlu0 2
  %1974 = vperm.xlu0 %1973, %v90
  %v1975 = vpop.permute.xlu0 %1974
  %1977 = vset.pattern.permute.xlu0 2
  %1978 = vperm.xlu0 %1977, %v91
  %v1979 = vpop.permute.xlu0 %1978
  %1981 = vset.pattern.permute.xlu0 2
  %1982 = vperm.xlu0 %1981, %v92
  %v1983 = vpop.permute.xlu0 %1982
  %1985 = vset.pattern.permute.xlu0 2
  %1986 = vperm.xlu0 %1985, %v93
  %v1987 = vpop.permute.xlu0 %1986
  %1989 = vset.pattern.permute.xlu0 2
  %1990 = vperm.xlu0 %1989, %v94
  %v1991 = vpop.permute.xlu0 %1990
  %1993 = vset.pattern.permute.xlu0 2
  %1994 = vperm.xlu0 %1993, %v95
  %v1995 = vpop.permute.xlu0 %1994
  %1997 = vset.pattern.permute.xlu0 2
  %1998 = vperm.xlu0 %1997, %v96
  %v1999 = vpop.permute.xlu0 %1998
  %2001 = vset.pattern.permute.xlu0 2
  %2002 = vperm.xlu0 %2001, %v97
  %v2003 = vpop.permute.xlu0 %2002
  %2005 = vset.pattern.permute.xlu0 2
  %2006 = vperm.xlu0 %2005, %v98
  %v2007 = vpop.permute.xlu0 %2006
  %2009 = vset.pattern.permute.xlu0 2
  %2010 = vperm.xlu0 %2009, %v99
  %v2011 = vpop.permute.xlu0 %2010
  %2013 = vset.pattern.permute.xlu0 2
  %2014 = vperm.xlu0 %2013, %v100
  %v2015 = vpop.permute.xlu0 %2014
  %2017 = vset.pattern.permute.xlu0 2
  %2018 = vperm.xlu0 %2017, %v101
  %v2019 = vpop.permute.xlu0 %2018
  %2021 = vset.pattern.permute.xlu0 2
  %2022 = vperm.xlu0 %2021, %v102
  %v2023 = vpop.permute.xlu0 %2022
  %2025 = vset.pattern.permute.xlu0 2
  %2026 = vperm.xlu0 %2025, %v103
  %v2027 = vpop.permute.xlu0 %2026
  %v2029 = vlaneseq
  %v2030 = vshrl.u32 %v2029, 7
  %v2031 = vsub.s32 2, %v2030
  %v2032 = vrot.slane %v104, %v2031
  %v2033 = vadd.f32 %v1967, %v2032
  %v2034 = vadd.f32 %v1971, %v2032
  %v2035 = vadd.f32 %v1975, %v2032
  %v2036 = vadd.f32 %v1979, %v2032
  %v2037 = vadd.f32 %v1983, %v2032
  %v2038 = vadd.f32 %v1987, %v2032
  %v2039 = vadd.f32 %v1991, %v2032
  %v2040 = vadd.f32 %v1995, %v2032
  %v2041 = vadd.f32 %v1999, %v2032
  %v2042 = vadd.f32 %v2003, %v2032
  %v2043 = vadd.f32 %v2007, %v2032
  %v2044 = vadd.f32 %v2011, %v2032
  %v2045 = vadd.f32 %v2015, %v2032
  %v2046 = vadd.f32 %v2019, %v2032
  %v2047 = vadd.f32 %v2023, %v2032
  %v2048 = vadd.f32 %v2027, %v2032
  %v2049 = vmul.f32 %v2033, 0.2
  %v2050 = vmul.f32 %v2034, 0.2
  %v2051 = vmul.f32 %v2035, 0.2
  %v2052 = vmul.f32 %v2036, 0.2
  %v2053 = vmul.f32 %v2037, 0.2
  %v2054 = vmul.f32 %v2038, 0.2
  %v2055 = vmul.f32 %v2039, 0.2
  %v2056 = vmul.f32 %v2040, 0.2
  %v2057 = vmul.f32 %v2041, 0.2
  %v2058 = vmul.f32 %v2042, 0.2
  %v2059 = vmul.f32 %v2043, 0.2
  %v2060 = vmul.f32 %v2044, 0.2
  %v2061 = vmul.f32 %v2045, 0.2
  %v2062 = vmul.f32 %v2046, 0.2
  %v2063 = vmul.f32 %v2047, 0.2
  %v2064 = vmul.f32 %v2048, 0.2
  %v2065 = vmax.f32 %v2033, %v2049
  %v2066 = vmax.f32 %v2034, %v2050
  %v2067 = vmax.f32 %v2035, %v2051
  %v2068 = vmax.f32 %v2036, %v2052
  %v2069 = vmax.f32 %v2037, %v2053
  %v2070 = vmax.f32 %v2038, %v2054
  %v2071 = vmax.f32 %v2039, %v2055
  %v2072 = vmax.f32 %v2040, %v2056
  %v2073 = vmax.f32 %v2041, %v2057
  %v2074 = vmax.f32 %v2042, %v2058
  %v2075 = vmax.f32 %v2043, %v2059
  %v2076 = vmax.f32 %v2044, %v2060
  %v2077 = vmax.f32 %v2045, %v2061
  %v2078 = vmax.f32 %v2046, %v2062
  %v2079 = vmax.f32 %v2047, %v2063
  %v2080 = vmax.f32 %v2048, %v2064
  %s2081 = scalar_lea.vmem %s0, 64
  %v2082 = vld [vmem:[%s2081] sm:$0xff]
  %v2083 = vld [vmem:[%s2081 + $0x8] sm:$0xff]
  %v2084 = vld [vmem:[%s2081 + $0x10] sm:$0xff]
  %v2085 = vld [vmem:[%s2081 + $0x18] sm:$0xff]
  %vm2086 = vnez %v2082
  %vm2087 = vnez %v2083
  %vm2088 = vnez %v2084
  %vm2089 = vnez %v2085
  %v2090 = vsel %vm2086, 16843009, 0
  %v2091 = vsel %vm2087, 16843009, 0
  %v2092 = vsel %vm2088, 16843009, 0
  %v2093 = vsel %vm2089, 16843009, 0
  %v2094 = vunpack.c.0.s8 %v2090
  %v2095 = vunpack.c.1.s8 %v2090
  %v2096 = vunpack.c.2.s8 %v2090
  %v2097 = vunpack.c.3.s8 %v2090
  %v2098 = vunpack.c.0.s8 %v2091
  %v2099 = vunpack.c.1.s8 %v2091
  %v2100 = vunpack.c.2.s8 %v2091
  %v2101 = vunpack.c.3.s8 %v2091
  %v2102 = vunpack.c.0.s8 %v2092
  %v2103 = vunpack.c.1.s8 %v2092
  %v2104 = vunpack.c.2.s8 %v2092
  %v2105 = vunpack.c.3.s8 %v2092
  %v2106 = vunpack.c.0.s8 %v2093
  %v2107 = vunpack.c.1.s8 %v2093
  %v2108 = vunpack.c.2.s8 %v2093
  %v2109 = vunpack.c.3.s8 %v2093
  %v2110 = vpack.c.b16 %v2094, %v2094
  %v2111 = vpack.c.b8 %v2110, %v2110
  %v2112 = vpack.c.b16 %v2095, %v2095
  %v2113 = vpack.c.b8 %v2112, %v2112
  %v2114 = vpack.c.b16 %v2096, %v2096
  %v2115 = vpack.c.b8 %v2114, %v2114
  %v2116 = vpack.c.b16 %v2097, %v2097
  %v2117 = vpack.c.b8 %v2116, %v2116
  %v2118 = vpack.c.b16 %v2098, %v2098
  %v2119 = vpack.c.b8 %v2118, %v2118
  %v2120 = vpack.c.b16 %v2099, %v2099
  %v2121 = vpack.c.b8 %v2120, %v2120
  %v2122 = vpack.c.b16 %v2100, %v2100
  %v2123 = vpack.c.b8 %v2122, %v2122
  %v2124 = vpack.c.b16 %v2101, %v2101
  %v2125 = vpack.c.b8 %v2124, %v2124
  %v2126 = vpack.c.b16 %v2102, %v2102
  %v2127 = vpack.c.b8 %v2126, %v2126
  %v2128 = vpack.c.b16 %v2103, %v2103
  %v2129 = vpack.c.b8 %v2128, %v2128
  %v2130 = vpack.c.b16 %v2104, %v2104
  %v2131 = vpack.c.b8 %v2130, %v2130
  %v2132 = vpack.c.b16 %v2105, %v2105
  %v2133 = vpack.c.b8 %v2132, %v2132
  %v2134 = vpack.c.b16 %v2106, %v2106
  %v2135 = vpack.c.b8 %v2134, %v2134
  %v2136 = vpack.c.b16 %v2107, %v2107
  %v2137 = vpack.c.b8 %v2136, %v2136
  %v2138 = vpack.c.b16 %v2108, %v2108
  %v2139 = vpack.c.b8 %v2138, %v2138
  %v2140 = vpack.c.b16 %v2109, %v2109
  %v2141 = vpack.c.b8 %v2140, %v2140
  %vm2142 = vnez %v2111
  %vm2143 = vnez %v2113
  %vm2144 = vnez %v2115
  %vm2145 = vnez %v2117
  %vm2146 = vnez %v2119
  %vm2147 = vnez %v2121
  %vm2148 = vnez %v2123
  %vm2149 = vnez %v2125
  %vm2150 = vnez %v2127
  %vm2151 = vnez %v2129
  %vm2152 = vnez %v2131
  %vm2153 = vnez %v2133
  %vm2154 = vnez %v2135
  %vm2155 = vnez %v2137
  %vm2156 = vnez %v2139
  %vm2157 = vnez %v2141
  %v2158 = vsel %vm2142, 16843009, 0
  %v2159 = vsel %vm2143, 16843009, 0
  %v2160 = vsel %vm2144, 16843009, 0
  %v2161 = vsel %vm2145, 16843009, 0
  %v2162 = vsel %vm2146, 16843009, 0
  %v2163 = vsel %vm2147, 16843009, 0
  %v2164 = vsel %vm2148, 16843009, 0
  %v2165 = vsel %vm2149, 16843009, 0
  %v2166 = vsel %vm2150, 16843009, 0
  %v2167 = vsel %vm2151, 16843009, 0
  %v2168 = vsel %vm2152, 16843009, 0
  %v2169 = vsel %vm2153, 16843009, 0
  %v2170 = vsel %vm2154, 16843009, 0
  %v2171 = vsel %vm2155, 16843009, 0
  %v2172 = vsel %vm2156, 16843009, 0
  %v2173 = vsel %vm2157, 16843009, 0
  %v2174 = vunpack.c.0.s8 %v2158
  %v2175 = vunpack.c.0.s8 %v2159
  %v2176 = vunpack.c.0.s8 %v2160
  %v2177 = vunpack.c.0.s8 %v2161
  %v2178 = vunpack.c.0.s8 %v2162
  %v2179 = vunpack.c.0.s8 %v2163
  %v2180 = vunpack.c.0.s8 %v2164
  %v2181 = vunpack.c.0.s8 %v2165
  %v2182 = vunpack.c.0.s8 %v2166
  %v2183 = vunpack.c.0.s8 %v2167
  %v2184 = vunpack.c.0.s8 %v2168
  %v2185 = vunpack.c.0.s8 %v2169
  %v2186 = vunpack.c.0.s8 %v2170
  %v2187 = vunpack.c.0.s8 %v2171
  %v2188 = vunpack.c.0.s8 %v2172
  %v2189 = vunpack.c.0.s8 %v2173
  %vm2190 = vcmp.ne.s32.totalorder %v2174, 0
  %vm2191 = vcmp.ne.s32.totalorder %v2175, 0
  %vm2192 = vcmp.ne.s32.totalorder %v2176, 0
  %vm2193 = vcmp.ne.s32.totalorder %v2177, 0
  %vm2194 = vcmp.ne.s32.totalorder %v2178, 0
  %vm2195 = vcmp.ne.s32.totalorder %v2179, 0
  %vm2196 = vcmp.ne.s32.totalorder %v2180, 0
  %vm2197 = vcmp.ne.s32.totalorder %v2181, 0
  %vm2198 = vcmp.ne.s32.totalorder %v2182, 0
  %vm2199 = vcmp.ne.s32.totalorder %v2183, 0
  %vm2200 = vcmp.ne.s32.totalorder %v2184, 0
  %vm2201 = vcmp.ne.s32.totalorder %v2185, 0
  %vm2202 = vcmp.ne.s32.totalorder %v2186, 0
  %vm2203 = vcmp.ne.s32.totalorder %v2187, 0
  %vm2204 = vcmp.ne.s32.totalorder %v2188, 0
  %vm2205 = vcmp.ne.s32.totalorder %v2189, 0
  %v2206 = vsel %vm2190, %v2065, -1e+30
  %v2207 = vsel %vm2191, %v2066, -1e+30
  %v2208 = vsel %vm2192, %v2067, -1e+30
  %v2209 = vsel %vm2193, %v2068, -1e+30
  %v2210 = vsel %vm2194, %v2069, -1e+30
  %v2211 = vsel %vm2195, %v2070, -1e+30
  %v2212 = vsel %vm2196, %v2071, -1e+30
  %v2213 = vsel %vm2197, %v2072, -1e+30
  %v2214 = vsel %vm2198, %v2073, -1e+30
  %v2215 = vsel %vm2199, %v2074, -1e+30
  %v2216 = vsel %vm2200, %v2075, -1e+30
  %v2217 = vsel %vm2201, %v2076, -1e+30
  %v2218 = vsel %vm2202, %v2077, -1e+30
  %v2219 = vsel %vm2203, %v2078, -1e+30
  %v2220 = vsel %vm2204, %v2079, -1e+30
  %v2221 = vsel %vm2205, %v2080, -1e+30
  %v2222 = vld [vmem:[#allocation2] sm:$0xff]
  %v2223 = vld [vmem:[#allocation2 + $0x8] sm:$0xff]
  %v2224 = vld [vmem:[#allocation2 + $0x10] sm:$0xff]
  %v2225 = vld [vmem:[#allocation2 + $0x18] sm:$0xff]
  %v2226 = vld [vmem:[#allocation2 + $0x20] sm:$0xff]
  %v2227 = vld [vmem:[#allocation2 + $0x28] sm:$0xff]
  %v2228 = vld [vmem:[#allocation2 + $0x30] sm:$0xff]
  %v2229 = vld [vmem:[#allocation2 + $0x38] sm:$0xff]
  %v2230 = vld [vmem:[#allocation2 + $0x40] sm:$0xff]
  %v2231 = vld [vmem:[#allocation2 + $0x48] sm:$0xff]
  %v2232 = vld [vmem:[#allocation2 + $0x50] sm:$0xff]
  %v2233 = vld [vmem:[#allocation2 + $0x58] sm:$0xff]
  %v2234 = vld [vmem:[#allocation2 + $0x60] sm:$0xff]
  %v2235 = vld [vmem:[#allocation2 + $0x68] sm:$0xff]
  %v2236 = vld [vmem:[#allocation2 + $0x70] sm:$0xff]
  %v2237 = vld [vmem:[#allocation2 + $0x78] sm:$0xff]
  %2238 = vmax.xlane.f32.xlu0 %v2206
  %v2239 = vpop.xlane.xlu0 %2238
  %2240 = vmax.xlane.f32.xlu0 %v2207
  %v2241 = vpop.xlane.xlu0 %2240
  %2242 = vmax.xlane.f32.xlu0 %v2208
  %v2243 = vpop.xlane.xlu0 %2242
  %2244 = vmax.xlane.f32.xlu0 %v2209
  %v2245 = vpop.xlane.xlu0 %2244
  %2246 = vmax.xlane.f32.xlu0 %v2210
  %v2247 = vpop.xlane.xlu0 %2246
  %2248 = vmax.xlane.f32.xlu0 %v2211
  %v2249 = vpop.xlane.xlu0 %2248
  %2250 = vmax.xlane.f32.xlu0 %v2212
  %v2251 = vpop.xlane.xlu0 %2250
  %2252 = vmax.xlane.f32.xlu0 %v2213
  %v2253 = vpop.xlane.xlu0 %2252
  %2254 = vmax.xlane.f32.xlu0 %v2214
  %v2255 = vpop.xlane.xlu0 %2254
  %2256 = vmax.xlane.f32.xlu0 %v2215
  %v2257 = vpop.xlane.xlu0 %2256
  %2258 = vmax.xlane.f32.xlu0 %v2216
  %v2259 = vpop.xlane.xlu0 %2258
  %2260 = vmax.xlane.f32.xlu0 %v2217
  %v2261 = vpop.xlane.xlu0 %2260
  %2262 = vmax.xlane.f32.xlu0 %v2218
  %v2263 = vpop.xlane.xlu0 %2262
  %2264 = vmax.xlane.f32.xlu0 %v2219
  %v2265 = vpop.xlane.xlu0 %2264
  %2266 = vmax.xlane.f32.xlu0 %v2220
  %v2267 = vpop.xlane.xlu0 %2266
  %2268 = vmax.xlane.f32.xlu0 %v2221
  %v2269 = vpop.xlane.xlu0 %2268
  %v2270 = vmax.f32 %v2222, %v2239
  %v2271 = vmax.f32 %v2223, %v2241
  %v2272 = vmax.f32 %v2224, %v2243
  %v2273 = vmax.f32 %v2225, %v2245
  %v2274 = vmax.f32 %v2226, %v2247
  %v2275 = vmax.f32 %v2227, %v2249
  %v2276 = vmax.f32 %v2228, %v2251
  %v2277 = vmax.f32 %v2229, %v2253
  %v2278 = vmax.f32 %v2230, %v2255
  %v2279 = vmax.f32 %v2231, %v2257
  %v2280 = vmax.f32 %v2232, %v2259
  %v2281 = vmax.f32 %v2233, %v2261
  %v2282 = vmax.f32 %v2234, %v2263
  %v2283 = vmax.f32 %v2235, %v2265
  %v2284 = vmax.f32 %v2236, %v2267
  %v2285 = vmax.f32 %v2237, %v2269
  %2287 = vset.pattern.permute.xlu0 0
  %2288 = vperm.xlu0 %2287, %v2270
  %v2289 = vpop.permute.xlu0 %2288
  %2292 = vset.pattern.permute.xlu0 0
  %2293 = vperm.xlu0 %2292, %v2271
  %v2294 = vpop.permute.xlu0 %2293
  %2297 = vset.pattern.permute.xlu0 0
  %2298 = vperm.xlu0 %2297, %v2272
  %v2299 = vpop.permute.xlu0 %2298
  %2302 = vset.pattern.permute.xlu0 0
  %2303 = vperm.xlu0 %2302, %v2273
  %v2304 = vpop.permute.xlu0 %2303
  %2307 = vset.pattern.permute.xlu0 0
  %2308 = vperm.xlu0 %2307, %v2274
  %v2309 = vpop.permute.xlu0 %2308
  %2312 = vset.pattern.permute.xlu0 0
  %2313 = vperm.xlu0 %2312, %v2275
  %v2314 = vpop.permute.xlu0 %2313
  %2317 = vset.pattern.permute.xlu0 0
  %2318 = vperm.xlu0 %2317, %v2276
  %v2319 = vpop.permute.xlu0 %2318
  %2322 = vset.pattern.permute.xlu0 0
  %2323 = vperm.xlu0 %2322, %v2277
  %v2324 = vpop.permute.xlu0 %2323
  %2327 = vset.pattern.permute.xlu0 0
  %2328 = vperm.xlu0 %2327, %v2278
  %v2329 = vpop.permute.xlu0 %2328
  %2332 = vset.pattern.permute.xlu0 0
  %2333 = vperm.xlu0 %2332, %v2279
  %v2334 = vpop.permute.xlu0 %2333
  %2337 = vset.pattern.permute.xlu0 0
  %2338 = vperm.xlu0 %2337, %v2280
  %v2339 = vpop.permute.xlu0 %2338
  %2342 = vset.pattern.permute.xlu0 0
  %2343 = vperm.xlu0 %2342, %v2281
  %v2344 = vpop.permute.xlu0 %2343
  %2347 = vset.pattern.permute.xlu0 0
  %2348 = vperm.xlu0 %2347, %v2282
  %v2349 = vpop.permute.xlu0 %2348
  %2352 = vset.pattern.permute.xlu0 0
  %2353 = vperm.xlu0 %2352, %v2283
  %v2354 = vpop.permute.xlu0 %2353
  %2357 = vset.pattern.permute.xlu0 0
  %2358 = vperm.xlu0 %2357, %v2284
  %v2359 = vpop.permute.xlu0 %2358
  %2362 = vset.pattern.permute.xlu0 0
  %2363 = vperm.xlu0 %2362, %v2285
  %v2364 = vpop.permute.xlu0 %2363
  %v2366 = vsub.f32 %v2206, %v2289
  %v2367 = vsub.f32 %v2207, %v2294
  %v2368 = vsub.f32 %v2208, %v2299
  %v2369 = vsub.f32 %v2209, %v2304
  %v2370 = vsub.f32 %v2210, %v2309
  %v2371 = vsub.f32 %v2211, %v2314
  %v2372 = vsub.f32 %v2212, %v2319
  %v2373 = vsub.f32 %v2213, %v2324
  %v2374 = vsub.f32 %v2214, %v2329
  %v2375 = vsub.f32 %v2215, %v2334
  %v2376 = vsub.f32 %v2216, %v2339
  %v2377 = vsub.f32 %v2217, %v2344
  %v2378 = vsub.f32 %v2218, %v2349
  %v2379 = vsub.f32 %v2219, %v2354
  %v2380 = vsub.f32 %v2220, %v2359
  %v2381 = vsub.f32 %v2221, %v2364
  %v2382 = vmul.f32 %v2366, 1.442695
  %v2383 = vpow.pop %v2382
  %v2384 = vmul.f32 %v2367, 1.442695
  %v2385 = vpow.pop %v2384
  %v2386 = vmul.f32 %v2368, 1.442695
  %v2387 = vpow.pop %v2386
  %v2388 = vmul.f32 %v2369, 1.442695
  %v2389 = vpow.pop %v2388
  %v2390 = vmul.f32 %v2370, 1.442695
  %v2391 = vpow.pop %v2390
  %v2392 = vmul.f32 %v2371, 1.442695
  %v2393 = vpow.pop %v2392
  %v2394 = vmul.f32 %v2372, 1.442695
  %v2395 = vpow.pop %v2394
  %v2396 = vmul.f32 %v2373, 1.442695
  %v2397 = vpow.pop %v2396
  %v2398 = vmul.f32 %v2374, 1.442695
  %v2399 = vpow.pop %v2398
  %v2400 = vmul.f32 %v2375, 1.442695
  %v2401 = vpow.pop %v2400
  %v2402 = vmul.f32 %v2376, 1.442695
  %v2403 = vpow.pop %v2402
  %v2404 = vmul.f32 %v2377, 1.442695
  %v2405 = vpow.pop %v2404
  %v2406 = vmul.f32 %v2378, 1.442695
  %v2407 = vpow.pop %v2406
  %v2408 = vmul.f32 %v2379, 1.442695
  %v2409 = vpow.pop %v2408
  %v2410 = vmul.f32 %v2380, 1.442695
  %v2411 = vpow.pop %v2410
  %v2412 = vmul.f32 %v2381, 1.442695
  %v2413 = vpow.pop %v2412
  %v2414 = vsub.f32 %v2222, %v2270
  %v2415 = vsub.f32 %v2223, %v2271
  %v2416 = vsub.f32 %v2224, %v2272
  %v2417 = vsub.f32 %v2225, %v2273
  %v2418 = vsub.f32 %v2226, %v2274
  %v2419 = vsub.f32 %v2227, %v2275
  %v2420 = vsub.f32 %v2228, %v2276
  %v2421 = vsub.f32 %v2229, %v2277
  %v2422 = vsub.f32 %v2230, %v2278
  %v2423 = vsub.f32 %v2231, %v2279
  %v2424 = vsub.f32 %v2232, %v2280
  %v2425 = vsub.f32 %v2233, %v2281
  %v2426 = vsub.f32 %v2234, %v2282
  %v2427 = vsub.f32 %v2235, %v2283
  %v2428 = vsub.f32 %v2236, %v2284
  %v2429 = vsub.f32 %v2237, %v2285
  %v2430 = vmul.f32 %v2414, 1.442695
  %v2431 = vpow.pop %v2430
  %v2432 = vmul.f32 %v2415, 1.442695
  %v2433 = vpow.pop %v2432
  %v2434 = vmul.f32 %v2416, 1.442695
  %v2435 = vpow.pop %v2434
  %v2436 = vmul.f32 %v2417, 1.442695
  %v2437 = vpow.pop %v2436
  %v2438 = vmul.f32 %v2418, 1.442695
  %v2439 = vpow.pop %v2438
  %v2440 = vmul.f32 %v2419, 1.442695
  %v2441 = vpow.pop %v2440
  %v2442 = vmul.f32 %v2420, 1.442695
  %v2443 = vpow.pop %v2442
  %v2444 = vmul.f32 %v2421, 1.442695
  %v2445 = vpow.pop %v2444
  %v2446 = vmul.f32 %v2422, 1.442695
  %v2447 = vpow.pop %v2446
  %v2448 = vmul.f32 %v2423, 1.442695
  %v2449 = vpow.pop %v2448
  %v2450 = vmul.f32 %v2424, 1.442695
  %v2451 = vpow.pop %v2450
  %v2452 = vmul.f32 %v2425, 1.442695
  %v2453 = vpow.pop %v2452
  %v2454 = vmul.f32 %v2426, 1.442695
  %v2455 = vpow.pop %v2454
  %v2456 = vmul.f32 %v2427, 1.442695
  %v2457 = vpow.pop %v2456
  %v2458 = vmul.f32 %v2428, 1.442695
  %v2459 = vpow.pop %v2458
  %v2460 = vmul.f32 %v2429, 1.442695
  %v2461 = vpow.pop %v2460
  %v2462 = vld [vmem:[#allocation3] sm:$0xff]
  %v2463 = vld [vmem:[#allocation3 + $0x8] sm:$0xff]
  %v2464 = vld [vmem:[#allocation3 + $0x10] sm:$0xff]
  %v2465 = vld [vmem:[#allocation3 + $0x18] sm:$0xff]
  %v2466 = vld [vmem:[#allocation3 + $0x20] sm:$0xff]
  %v2467 = vld [vmem:[#allocation3 + $0x28] sm:$0xff]
  %v2468 = vld [vmem:[#allocation3 + $0x30] sm:$0xff]
  %v2469 = vld [vmem:[#allocation3 + $0x38] sm:$0xff]
  %v2470 = vld [vmem:[#allocation3 + $0x40] sm:$0xff]
  %v2471 = vld [vmem:[#allocation3 + $0x48] sm:$0xff]
  %v2472 = vld [vmem:[#allocation3 + $0x50] sm:$0xff]
  %v2473 = vld [vmem:[#allocation3 + $0x58] sm:$0xff]
  %v2474 = vld [vmem:[#allocation3 + $0x60] sm:$0xff]
  %v2475 = vld [vmem:[#allocation3 + $0x68] sm:$0xff]
  %v2476 = vld [vmem:[#allocation3 + $0x70] sm:$0xff]
  %v2477 = vld [vmem:[#allocation3 + $0x78] sm:$0xff]
  %v2478 = vmul.f32 %v2431, %v2462
  %v2479 = vmul.f32 %v2433, %v2463
  %v2480 = vmul.f32 %v2435, %v2464
  %v2481 = vmul.f32 %v2437, %v2465
  %v2482 = vmul.f32 %v2439, %v2466
  %v2483 = vmul.f32 %v2441, %v2467
  %v2484 = vmul.f32 %v2443, %v2468
  %v2485 = vmul.f32 %v2445, %v2469
  %v2486 = vmul.f32 %v2447, %v2470
  %v2487 = vmul.f32 %v2449, %v2471
  %v2488 = vmul.f32 %v2451, %v2472
  %v2489 = vmul.f32 %v2453, %v2473
  %v2490 = vmul.f32 %v2455, %v2474
  %v2491 = vmul.f32 %v2457, %v2475
  %v2492 = vmul.f32 %v2459, %v2476
  %v2493 = vmul.f32 %v2461, %v2477
  %2494 = vadd.xlane.f32.xlu0 %v2383
  %v2495 = vpop.xlane.xlu0 %2494
  %2496 = vadd.xlane.f32.xlu0 %v2385
  %v2497 = vpop.xlane.xlu0 %2496
  %2498 = vadd.xlane.f32.xlu0 %v2387
  %v2499 = vpop.xlane.xlu0 %2498
  %2500 = vadd.xlane.f32.xlu0 %v2389
  %v2501 = vpop.xlane.xlu0 %2500
  %2502 = vadd.xlane.f32.xlu0 %v2391
  %v2503 = vpop.xlane.xlu0 %2502
  %2504 = vadd.xlane.f32.xlu0 %v2393
  %v2505 = vpop.xlane.xlu0 %2504
  %2506 = vadd.xlane.f32.xlu0 %v2395
  %v2507 = vpop.xlane.xlu0 %2506
  %2508 = vadd.xlane.f32.xlu0 %v2397
  %v2509 = vpop.xlane.xlu0 %2508
  %2510 = vadd.xlane.f32.xlu0 %v2399
  %v2511 = vpop.xlane.xlu0 %2510
  %2512 = vadd.xlane.f32.xlu0 %v2401
  %v2513 = vpop.xlane.xlu0 %2512
  %2514 = vadd.xlane.f32.xlu0 %v2403
  %v2515 = vpop.xlane.xlu0 %2514
  %2516 = vadd.xlane.f32.xlu0 %v2405
  %v2517 = vpop.xlane.xlu0 %2516
  %2518 = vadd.xlane.f32.xlu0 %v2407
  %v2519 = vpop.xlane.xlu0 %2518
  %2520 = vadd.xlane.f32.xlu0 %v2409
  %v2521 = vpop.xlane.xlu0 %2520
  %2522 = vadd.xlane.f32.xlu0 %v2411
  %v2523 = vpop.xlane.xlu0 %2522
  %2524 = vadd.xlane.f32.xlu0 %v2413
  %v2525 = vpop.xlane.xlu0 %2524
  %v2526 = vadd.f32 %v2478, %v2495
  %v2527 = vadd.f32 %v2479, %v2497
  %v2528 = vadd.f32 %v2480, %v2499
  %v2529 = vadd.f32 %v2481, %v2501
  %v2530 = vadd.f32 %v2482, %v2503
  %v2531 = vadd.f32 %v2483, %v2505
  %v2532 = vadd.f32 %v2484, %v2507
  %v2533 = vadd.f32 %v2485, %v2509
  %v2534 = vadd.f32 %v2486, %v2511
  %v2535 = vadd.f32 %v2487, %v2513
  %v2536 = vadd.f32 %v2488, %v2515
  %v2537 = vadd.f32 %v2489, %v2517
  %v2538 = vadd.f32 %v2490, %v2519
  %v2539 = vadd.f32 %v2491, %v2521
  %v2540 = vadd.f32 %v2492, %v2523
  %v2541 = vadd.f32 %v2493, %v2525
  %2542 = vst.msk [vmem:[#allocation3] sm:$0xff] %vm697, %v2526
  %2543 = vst.msk [vmem:[#allocation3 + $0x8] sm:$0xff] %vm697, %v2527
  %2544 = vst.msk [vmem:[#allocation3 + $0x10] sm:$0xff] %vm697, %v2528
  %2545 = vst.msk [vmem:[#allocation3 + $0x18] sm:$0xff] %vm697, %v2529
  %2546 = vst.msk [vmem:[#allocation3 + $0x20] sm:$0xff] %vm697, %v2530
  %2547 = vst.msk [vmem:[#allocation3 + $0x28] sm:$0xff] %vm697, %v2531
  %2548 = vst.msk [vmem:[#allocation3 + $0x30] sm:$0xff] %vm697, %v2532
  %2549 = vst.msk [vmem:[#allocation3 + $0x38] sm:$0xff] %vm697, %v2533
  %2550 = vst.msk [vmem:[#allocation3 + $0x40] sm:$0xff] %vm697, %v2534
  %2551 = vst.msk [vmem:[#allocation3 + $0x48] sm:$0xff] %vm697, %v2535
  %2552 = vst.msk [vmem:[#allocation3 + $0x50] sm:$0xff] %vm697, %v2536
  %2553 = vst.msk [vmem:[#allocation3 + $0x58] sm:$0xff] %vm697, %v2537
  %2554 = vst.msk [vmem:[#allocation3 + $0x60] sm:$0xff] %vm697, %v2538
  %2555 = vst.msk [vmem:[#allocation3 + $0x68] sm:$0xff] %vm697, %v2539
  %2556 = vst.msk [vmem:[#allocation3 + $0x70] sm:$0xff] %vm697, %v2540
  %2557 = vst.msk [vmem:[#allocation3 + $0x78] sm:$0xff] %vm697, %v2541
  %v2558 = vld [vmem:[#allocation4] sm:$0xff]
  %v2559 = vld [vmem:[#allocation4 + $0x8] sm:$0xff]
  %v2560 = vld [vmem:[#allocation4 + $0x10] sm:$0xff]
  %v2561 = vld [vmem:[#allocation4 + $0x18] sm:$0xff]
  %v2562 = vld [vmem:[#allocation4 + $0x20] sm:$0xff]
  %v2563 = vld [vmem:[#allocation4 + $0x28] sm:$0xff]
  %v2564 = vld [vmem:[#allocation4 + $0x30] sm:$0xff]
  %v2565 = vld [vmem:[#allocation4 + $0x38] sm:$0xff]
  %v2566 = vld [vmem:[#allocation4 + $0x40] sm:$0xff]
  %v2567 = vld [vmem:[#allocation4 + $0x48] sm:$0xff]
  %v2568 = vld [vmem:[#allocation4 + $0x50] sm:$0xff]
  %v2569 = vld [vmem:[#allocation4 + $0x58] sm:$0xff]
  %v2570 = vld [vmem:[#allocation4 + $0x60] sm:$0xff]
  %v2571 = vld [vmem:[#allocation4 + $0x68] sm:$0xff]
  %v2572 = vld [vmem:[#allocation4 + $0x70] sm:$0xff]
  %v2573 = vld [vmem:[#allocation4 + $0x78] sm:$0xff]
  %2575 = vset.pattern.permute.xlu0 0
  %2576 = vperm.xlu0 %2575, %v2431
  %v2577 = vpop.permute.xlu0 %2576
  %2580 = vset.pattern.permute.xlu0 0
  %2581 = vperm.xlu0 %2580, %v2433
  %v2582 = vpop.permute.xlu0 %2581
  %2585 = vset.pattern.permute.xlu0 0
  %2586 = vperm.xlu0 %2585, %v2435
  %v2587 = vpop.permute.xlu0 %2586
  %2590 = vset.pattern.permute.xlu0 0
  %2591 = vperm.xlu0 %2590, %v2437
  %v2592 = vpop.permute.xlu0 %2591
  %2595 = vset.pattern.permute.xlu0 0
  %2596 = vperm.xlu0 %2595, %v2439
  %v2597 = vpop.permute.xlu0 %2596
  %2600 = vset.pattern.permute.xlu0 0
  %2601 = vperm.xlu0 %2600, %v2441
  %v2602 = vpop.permute.xlu0 %2601
  %2605 = vset.pattern.permute.xlu0 0
  %2606 = vperm.xlu0 %2605, %v2443
  %v2607 = vpop.permute.xlu0 %2606
  %2610 = vset.pattern.permute.xlu0 0
  %2611 = vperm.xlu0 %2610, %v2445
  %v2612 = vpop.permute.xlu0 %2611
  %2615 = vset.pattern.permute.xlu0 0
  %2616 = vperm.xlu0 %2615, %v2447
  %v2617 = vpop.permute.xlu0 %2616
  %2620 = vset.pattern.permute.xlu0 0
  %2621 = vperm.xlu0 %2620, %v2449
  %v2622 = vpop.permute.xlu0 %2621
  %2625 = vset.pattern.permute.xlu0 0
  %2626 = vperm.xlu0 %2625, %v2451
  %v2627 = vpop.permute.xlu0 %2626
  %2630 = vset.pattern.permute.xlu0 0
  %2631 = vperm.xlu0 %2630, %v2453
  %v2632 = vpop.permute.xlu0 %2631
  %2635 = vset.pattern.permute.xlu0 0
  %2636 = vperm.xlu0 %2635, %v2455
  %v2637 = vpop.permute.xlu0 %2636
  %2640 = vset.pattern.permute.xlu0 0
  %2641 = vperm.xlu0 %2640, %v2457
  %v2642 = vpop.permute.xlu0 %2641
  %2645 = vset.pattern.permute.xlu0 0
  %2646 = vperm.xlu0 %2645, %v2459
  %v2647 = vpop.permute.xlu0 %2646
  %2650 = vset.pattern.permute.xlu0 0
  %2651 = vperm.xlu0 %2650, %v2461
  %v2652 = vpop.permute.xlu0 %2651
  %v2654 = vmul.f32 %v2577, %v2558
  %v2655 = vmul.f32 %v2582, %v2559
  %v2656 = vmul.f32 %v2587, %v2560
  %v2657 = vmul.f32 %v2592, %v2561
  %v2658 = vmul.f32 %v2597, %v2562
  %v2659 = vmul.f32 %v2602, %v2563
  %v2660 = vmul.f32 %v2607, %v2564
  %v2661 = vmul.f32 %v2612, %v2565
  %v2662 = vmul.f32 %v2617, %v2566
  %v2663 = vmul.f32 %v2622, %v2567
  %v2664 = vmul.f32 %v2627, %v2568
  %v2665 = vmul.f32 %v2632, %v2569
  %v2666 = vmul.f32 %v2637, %v2570
  %v2667 = vmul.f32 %v2642, %v2571
  %v2668 = vmul.f32 %v2647, %v2572
  %v2669 = vmul.f32 %v2652, %v2573
  %v2670 = vpack.c.bf16 %v2385, %v2383
  %v2671 = vpack.c.bf16 %v2389, %v2387
  %v2672 = vpack.c.bf16 %v2393, %v2391
  %v2673 = vpack.c.bf16 %v2397, %v2395
  %v2674 = vpack.c.bf16 %v2401, %v2399
  %v2675 = vpack.c.bf16 %v2405, %v2403
  %v2676 = vpack.c.bf16 %v2409, %v2407
  %v2677 = vpack.c.bf16 %v2413, %v2411
  %v2678 = vld [vmem:[%s3 + $0x8] sm:$0xf]
  %v2679 = vld [vmem:[%s3 + $0x14] sm:$0xf]
  %v2680 = vld [vmem:[%s3 + $0x20] sm:$0xf]
  %v2681 = vld [vmem:[%s3 + $0x2c] sm:$0xf]
  %v2682 = vld [vmem:[%s3 + $0x38] sm:$0xf]
  %v2683 = vld [vmem:[%s3 + $0x44] sm:$0xf]
  %v2684 = vld [vmem:[%s3 + $0x50] sm:$0xf]
  %v2685 = vld [vmem:[%s3 + $0x5c] sm:$0xf]
  %v2686 = vld [vmem:[%s3 + $0x68] sm:$0xf]
  %v2687 = vld [vmem:[%s3 + $0x74] sm:$0xf]
  %v2688 = vld [vmem:[%s3 + $0x80] sm:$0xf]
  %v2689 = vld [vmem:[%s3 + $0x8c] sm:$0xf]
  %v2690 = vld [vmem:[%s3 + $0x98] sm:$0xf]
  %v2691 = vld [vmem:[%s3 + $0xa4] sm:$0xf]
  %v2692 = vld [vmem:[%s3 + $0xb0] sm:$0xf]
  %v2693 = vld [vmem:[%s3 + $0xbc] sm:$0xf]
  %v2710 = vunpack.c.l.b16 %v2678
  %v2711 = vunpack.c.l.b16 %v2679
  %v2712 = vunpack.c.l.b16 %v2680
  %v2713 = vunpack.c.l.b16 %v2681
  %v2714 = vunpack.c.l.b16 %v2682
  %v2715 = vunpack.c.l.b16 %v2683
  %v2716 = vunpack.c.l.b16 %v2684
  %v2717 = vunpack.c.l.b16 %v2685
  %v2718 = vunpack.c.l.b16 %v2686
  %v2719 = vunpack.c.l.b16 %v2687
  %v2720 = vunpack.c.l.b16 %v2688
  %v2721 = vunpack.c.l.b16 %v2689
  %v2722 = vunpack.c.l.b16 %v2690
  %v2723 = vunpack.c.l.b16 %v2691
  %v2724 = vunpack.c.l.b16 %v2692
  %v2725 = vunpack.c.l.b16 %v2693
  %v2726 = vpack.c.b16 %v2711, %v2710
  %v2727 = vpack.c.b16 %v2713, %v2712
  %v2728 = vpack.c.b16 %v2715, %v2714
  %v2729 = vpack.c.b16 %v2717, %v2716
  %v2730 = vpack.c.b16 %v2719, %v2718
  %v2731 = vpack.c.b16 %v2721, %v2720
  %v2732 = vpack.c.b16 %v2723, %v2722
  %v2733 = vpack.c.b16 %v2725, %v2724
  %2742 = vmatprep.subr.bf16.mxu0 0
  %2743 = vmatpush1.bf16.msra.mxu0 %v2733
  %2744 = vmatprep.subr.bf16.mxu0 0
  %2745 = vmatpush1.bf16.msra.mxu0 %v2732
  %2746 = vmatprep.subr.bf16.mxu0 0
  %2747 = vmatpush1.bf16.msra.mxu0 %v2731
  %2748 = vmatprep.subr.bf16.mxu0 0
  %2749 = vmatpush1.bf16.msra.mxu0 %v2730
  %2750 = vmatprep.subr.bf16.mxu0 0
  %2751 = vmatpush1.bf16.msra.mxu0 %v2729
  %2752 = vmatprep.subr.bf16.mxu0 0
  %2753 = vmatpush1.bf16.msra.mxu0 %v2728
  %2754 = vmatprep.subr.bf16.mxu0 0
  %2755 = vmatpush1.bf16.msra.mxu0 %v2727
  %2756 = vmatprep.subr.bf16.mxu0 0
  %2757 = vmatpush1.bf16.msra.mxu0 %v2726
  %2758 = vmatprep.subr.bf16.mxu0 0
  %2759 = vmatpush2.bf16.msra.mxu0 0
  %2760 = vmatprep.subr.bf16.mxu0 0
  %2761 = vmatpush2.bf16.msra.mxu0 0
  %2762 = vmatprep.subr.bf16.mxu0 0
  %2763 = vmatpush2.bf16.msra.mxu0 0
  %2764 = vmatprep.subr.bf16.mxu0 0
  %2765 = vmatpush2.bf16.msra.mxu0 0
  %2766 = vmatprep.subr.bf16.mxu0 0
  %2767 = vmatpush2.bf16.msra.mxu0 0
  %2768 = vmatprep.subr.bf16.mxu0 0
  %2769 = vmatpush2.bf16.msra.mxu0 0
  %2770 = vmatprep.subr.bf16.mxu0 0
  %2771 = vmatpush2.bf16.msra.mxu0 0
  %2772 = vmatprep.subr.bf16.mxu0 0
  %2773 = vmatpush2.bf16.msra.mxu0 0
  %2774 = vmatprep.mubr.bf16.mxu0 0
  %2775 = vmatmul.mubr.bf16.gmra.mxu0 %v2670
  %v2776 = vpop.f32.mrf.mxu0
  %v2777 = vadd.f32 0.0, %v2776
  %v2778 = vpop.f32.mrf.mxu0
  %v2779 = vpop.f32.mrf.mxu0
  %v2780 = vadd.f32 0.0, %v2779
  %v2781 = vpop.f32.mrf.mxu0
  %2782 = vmatprep.mubr.bf16.mxu0 0
  %2783 = vmatmul.mubr.bf16.gmra.mxu0 %v2671
  %v2784 = vpop.f32.mrf.mxu0
  %v2785 = vadd.f32 0.0, %v2784
  %v2786 = vpop.f32.mrf.mxu0
  %v2787 = vpop.f32.mrf.mxu0
  %v2788 = vadd.f32 0.0, %v2787
  %v2789 = vpop.f32.mrf.mxu0
  %2790 = vmatprep.mubr.bf16.mxu0 0
  %2791 = vmatmul.mubr.bf16.gmra.mxu0 %v2672
  %v2792 = vpop.f32.mrf.mxu0
  %v2793 = vadd.f32 0.0, %v2792
  %v2794 = vpop.f32.mrf.mxu0
  %v2795 = vpop.f32.mrf.mxu0
  %v2796 = vadd.f32 0.0, %v2795
  %v2797 = vpop.f32.mrf.mxu0
  %2798 = vmatprep.mubr.bf16.mxu0 0
  %2799 = vmatmul.mubr.bf16.gmra.mxu0 %v2673
  %v2800 = vpop.f32.mrf.mxu0
  %v2801 = vadd.f32 0.0, %v2800
  %v2802 = vpop.f32.mrf.mxu0
  %v2803 = vpop.f32.mrf.mxu0
  %v2804 = vadd.f32 0.0, %v2803
  %v2805 = vpop.f32.mrf.mxu0
  %2806 = vmatprep.mubr.bf16.mxu0 0
  %2807 = vmatmul.mubr.bf16.gmra.mxu0 %v2674
  %v2808 = vpop.f32.mrf.mxu0
  %v2809 = vadd.f32 0.0, %v2808
  %v2810 = vpop.f32.mrf.mxu0
  %v2811 = vpop.f32.mrf.mxu0
  %v2812 = vadd.f32 0.0, %v2811
  %v2813 = vpop.f32.mrf.mxu0
  %2814 = vmatprep.mubr.bf16.mxu0 0
  %2815 = vmatmul.mubr.bf16.gmra.mxu0 %v2675
  %v2816 = vpop.f32.mrf.mxu0
  %v2817 = vadd.f32 0.0, %v2816
  %v2818 = vpop.f32.mrf.mxu0
  %v2819 = vpop.f32.mrf.mxu0
  %v2820 = vadd.f32 0.0, %v2819
  %v2821 = vpop.f32.mrf.mxu0
  %2822 = vmatprep.mubr.bf16.mxu0 0
  %2823 = vmatmul.mubr.bf16.gmra.mxu0 %v2676
  %v2824 = vpop.f32.mrf.mxu0
  %v2825 = vadd.f32 0.0, %v2824
  %v2826 = vpop.f32.mrf.mxu0
  %v2827 = vpop.f32.mrf.mxu0
  %v2828 = vadd.f32 0.0, %v2827
  %v2829 = vpop.f32.mrf.mxu0
  %2830 = vmatprep.mubr.bf16.mxu0 0
  %2831 = vmatmul.mubr.bf16.gmra.mxu0 %v2677
  %v2832 = vpop.f32.mrf.mxu0
  %v2833 = vadd.f32 0.0, %v2832
  %v2834 = vpop.f32.mrf.mxu0
  %v2835 = vpop.f32.mrf.mxu0
  %v2836 = vadd.f32 0.0, %v2835
  %v2837 = vpop.f32.mrf.mxu0
  %2838 = vdwg.mxu0
  %v2839 = vadd.f32 %v2654, %v2777
  %v2840 = vadd.f32 %v2655, %v2780
  %v2841 = vadd.f32 %v2656, %v2785
  %v2842 = vadd.f32 %v2657, %v2788
  %v2843 = vadd.f32 %v2658, %v2793
  %v2844 = vadd.f32 %v2659, %v2796
  %v2845 = vadd.f32 %v2660, %v2801
  %v2846 = vadd.f32 %v2661, %v2804
  %v2847 = vadd.f32 %v2662, %v2809
  %v2848 = vadd.f32 %v2663, %v2812
  %v2849 = vadd.f32 %v2664, %v2817
  %v2850 = vadd.f32 %v2665, %v2820
  %v2851 = vadd.f32 %v2666, %v2825
  %v2852 = vadd.f32 %v2667, %v2828
  %v2853 = vadd.f32 %v2668, %v2833
  %v2854 = vadd.f32 %v2669, %v2836
  %2855 = vst [vmem:[#allocation4] sm:$0xff] %v2839
  %2856 = vst [vmem:[#allocation4 + $0x8] sm:$0xff] %v2840
  %2857 = vst [vmem:[#allocation4 + $0x10] sm:$0xff] %v2841
  %2858 = vst [vmem:[#allocation4 + $0x18] sm:$0xff] %v2842
  %2859 = vst [vmem:[#allocation4 + $0x20] sm:$0xff] %v2843
  %2860 = vst [vmem:[#allocation4 + $0x28] sm:$0xff] %v2844
  %2861 = vst [vmem:[#allocation4 + $0x30] sm:$0xff] %v2845
  %2862 = vst [vmem:[#allocation4 + $0x38] sm:$0xff] %v2846
  %2863 = vst [vmem:[#allocation4 + $0x40] sm:$0xff] %v2847
  %2864 = vst [vmem:[#allocation4 + $0x48] sm:$0xff] %v2848
  %2865 = vst [vmem:[#allocation4 + $0x50] sm:$0xff] %v2849
  %2866 = vst [vmem:[#allocation4 + $0x58] sm:$0xff] %v2850
  %2867 = vst [vmem:[#allocation4 + $0x60] sm:$0xff] %v2851
  %2868 = vst [vmem:[#allocation4 + $0x68] sm:$0xff] %v2852
  %2869 = vst [vmem:[#allocation4 + $0x70] sm:$0xff] %v2853
  %2870 = vst [vmem:[#allocation4 + $0x78] sm:$0xff] %v2854
  %2871 = vst.msk [vmem:[#allocation2] sm:$0xff] %vm697, %v2270
  %2872 = vst.msk [vmem:[#allocation2 + $0x8] sm:$0xff] %vm697, %v2271
  %2873 = vst.msk [vmem:[#allocation2 + $0x10] sm:$0xff] %vm697, %v2272
  %2874 = vst.msk [vmem:[#allocation2 + $0x18] sm:$0xff] %vm697, %v2273
  %2875 = vst.msk [vmem:[#allocation2 + $0x20] sm:$0xff] %vm697, %v2274
  %2876 = vst.msk [vmem:[#allocation2 + $0x28] sm:$0xff] %vm697, %v2275
  %2877 = vst.msk [vmem:[#allocation2 + $0x30] sm:$0xff] %vm697, %v2276
  %2878 = vst.msk [vmem:[#allocation2 + $0x38] sm:$0xff] %vm697, %v2277
  %2879 = vst.msk [vmem:[#allocation2 + $0x40] sm:$0xff] %vm697, %v2278
  %2880 = vst.msk [vmem:[#allocation2 + $0x48] sm:$0xff] %vm697, %v2279
  %2881 = vst.msk [vmem:[#allocation2 + $0x50] sm:$0xff] %vm697, %v2280
  %2882 = vst.msk [vmem:[#allocation2 + $0x58] sm:$0xff] %vm697, %v2281
  %2883 = vst.msk [vmem:[#allocation2 + $0x60] sm:$0xff] %vm697, %v2282
  %2884 = vst.msk [vmem:[#allocation2 + $0x68] sm:$0xff] %vm697, %v2283
  %2885 = vst.msk [vmem:[#allocation2 + $0x70] sm:$0xff] %vm697, %v2284
  %2886 = vst.msk [vmem:[#allocation2 + $0x78] sm:$0xff] %vm697, %v2285
  // Predicated region
  $region42: #{lm_concat_rgat_forward.5} parent=0 // pred_check
    %p2887 = pneg %p35
  $region43: #{lm_concat_rgat_forward.5} parent=0 // pred_check_branch
    %2889 = sbr.rel (%p2887) target = $region45
  $region44: #{lm_concat_rgat_forward.5} parent=0 // pred_region
    %v2890 = vld [vmem:[#allocation3] sm:$0xff]
    %v2891 = vld [vmem:[#allocation3 + $0x8] sm:$0xff]
    %v2892 = vld [vmem:[#allocation3 + $0x10] sm:$0xff]
    %v2893 = vld [vmem:[#allocation3 + $0x18] sm:$0xff]
    %v2894 = vld [vmem:[#allocation3 + $0x20] sm:$0xff]
    %v2895 = vld [vmem:[#allocation3 + $0x28] sm:$0xff]
    %v2896 = vld [vmem:[#allocation3 + $0x30] sm:$0xff]
    %v2897 = vld [vmem:[#allocation3 + $0x38] sm:$0xff]
    %v2898 = vld [vmem:[#allocation3 + $0x40] sm:$0xff]
    %v2899 = vld [vmem:[#allocation3 + $0x48] sm:$0xff]
    %v2900 = vld [vmem:[#allocation3 + $0x50] sm:$0xff]
    %v2901 = vld [vmem:[#allocation3 + $0x58] sm:$0xff]
    %v2902 = vld [vmem:[#allocation3 + $0x60] sm:$0xff]
    %v2903 = vld [vmem:[#allocation3 + $0x68] sm:$0xff]
    %v2904 = vld [vmem:[#allocation3 + $0x70] sm:$0xff]
    %v2905 = vld [vmem:[#allocation3 + $0x78] sm:$0xff]
    %vm2906 = vcmp.gt.f32.partialorder %v2890, 0.0
    %vm2907 = vcmp.gt.f32.partialorder %v2891, 0.0
    %vm2908 = vcmp.gt.f32.partialorder %v2892, 0.0
    %vm2909 = vcmp.gt.f32.partialorder %v2893, 0.0
    %vm2910 = vcmp.gt.f32.partialorder %v2894, 0.0
    %vm2911 = vcmp.gt.f32.partialorder %v2895, 0.0
    %vm2912 = vcmp.gt.f32.partialorder %v2896, 0.0
    %vm2913 = vcmp.gt.f32.partialorder %v2897, 0.0
    %vm2914 = vcmp.gt.f32.partialorder %v2898, 0.0
    %vm2915 = vcmp.gt.f32.partialorder %v2899, 0.0
    %vm2916 = vcmp.gt.f32.partialorder %v2900, 0.0
    %vm2917 = vcmp.gt.f32.partialorder %v2901, 0.0
    %vm2918 = vcmp.gt.f32.partialorder %v2902, 0.0
    %vm2919 = vcmp.gt.f32.partialorder %v2903, 0.0
    %vm2920 = vcmp.gt.f32.partialorder %v2904, 0.0
    %vm2921 = vcmp.gt.f32.partialorder %v2905, 0.0
    %v2922 = vrcp.pop %v2890
    %v2923 = vrcp.pop %v2891
    %v2924 = vrcp.pop %v2892
    %v2925 = vrcp.pop %v2893
    %v2926 = vrcp.pop %v2894
    %v2927 = vrcp.pop %v2895
    %v2928 = vrcp.pop %v2896
    %v2929 = vrcp.pop %v2897
    %v2930 = vrcp.pop %v2898
    %v2931 = vrcp.pop %v2899
    %v2932 = vrcp.pop %v2900
    %v2933 = vrcp.pop %v2901
    %v2934 = vrcp.pop %v2902
    %v2935 = vrcp.pop %v2903
    %v2936 = vrcp.pop %v2904
    %v2937 = vrcp.pop %v2905
    %v2938 = vsel %vm2906, %v2922, 0.0
    %v2939 = vsel %vm2907, %v2923, 0.0
    %v2940 = vsel %vm2908, %v2924, 0.0
    %v2941 = vsel %vm2909, %v2925, 0.0
    %v2942 = vsel %vm2910, %v2926, 0.0
    %v2943 = vsel %vm2911, %v2927, 0.0
    %v2944 = vsel %vm2912, %v2928, 0.0
    %v2945 = vsel %vm2913, %v2929, 0.0
    %v2946 = vsel %vm2914, %v2930, 0.0
    %v2947 = vsel %vm2915, %v2931, 0.0
    %v2948 = vsel %vm2916, %v2932, 0.0
    %v2949 = vsel %vm2917, %v2933, 0.0
    %v2950 = vsel %vm2918, %v2934, 0.0
    %v2951 = vsel %vm2919, %v2935, 0.0
    %v2952 = vsel %vm2920, %v2936, 0.0
    %v2953 = vsel %vm2921, %v2937, 0.0
    %v2954 = vld [vmem:[#allocation4] sm:$0xff]
    %v2955 = vld [vmem:[#allocation4 + $0x8] sm:$0xff]
    %v2956 = vld [vmem:[#allocation4 + $0x10] sm:$0xff]
    %v2957 = vld [vmem:[#allocation4 + $0x18] sm:$0xff]
    %v2958 = vld [vmem:[#allocation4 + $0x20] sm:$0xff]
    %v2959 = vld [vmem:[#allocation4 + $0x28] sm:$0xff]
    %v2960 = vld [vmem:[#allocation4 + $0x30] sm:$0xff]
    %v2961 = vld [vmem:[#allocation4 + $0x38] sm:$0xff]
    %v2962 = vld [vmem:[#allocation4 + $0x40] sm:$0xff]
    %v2963 = vld [vmem:[#allocation4 + $0x48] sm:$0xff]
    %v2964 = vld [vmem:[#allocation4 + $0x50] sm:$0xff]
    %v2965 = vld [vmem:[#allocation4 + $0x58] sm:$0xff]
    %v2966 = vld [vmem:[#allocation4 + $0x60] sm:$0xff]
    %v2967 = vld [vmem:[#allocation4 + $0x68] sm:$0xff]
    %v2968 = vld [vmem:[#allocation4 + $0x70] sm:$0xff]
    %v2969 = vld [vmem:[#allocation4 + $0x78] sm:$0xff]
    %2971 = vset.pattern.permute.xlu0 0
    %2972 = vperm.xlu0 %2971, %v2938
    %v2973 = vpop.permute.xlu0 %2972
    %2976 = vset.pattern.permute.xlu0 0
    %2977 = vperm.xlu0 %2976, %v2939
    %v2978 = vpop.permute.xlu0 %2977
    %2981 = vset.pattern.permute.xlu0 0
    %2982 = vperm.xlu0 %2981, %v2940
    %v2983 = vpop.permute.xlu0 %2982
    %2986 = vset.pattern.permute.xlu0 0
    %2987 = vperm.xlu0 %2986, %v2941
    %v2988 = vpop.permute.xlu0 %2987
    %2991 = vset.pattern.permute.xlu0 0
    %2992 = vperm.xlu0 %2991, %v2942
    %v2993 = vpop.permute.xlu0 %2992
    %2996 = vset.pattern.permute.xlu0 0
    %2997 = vperm.xlu0 %2996, %v2943
    %v2998 = vpop.permute.xlu0 %2997
    %3001 = vset.pattern.permute.xlu0 0
    %3002 = vperm.xlu0 %3001, %v2944
    %v3003 = vpop.permute.xlu0 %3002
    %3006 = vset.pattern.permute.xlu0 0
    %3007 = vperm.xlu0 %3006, %v2945
    %v3008 = vpop.permute.xlu0 %3007
    %3011 = vset.pattern.permute.xlu0 0
    %3012 = vperm.xlu0 %3011, %v2946
    %v3013 = vpop.permute.xlu0 %3012
    %3016 = vset.pattern.permute.xlu0 0
    %3017 = vperm.xlu0 %3016, %v2947
    %v3018 = vpop.permute.xlu0 %3017
    %3021 = vset.pattern.permute.xlu0 0
    %3022 = vperm.xlu0 %3021, %v2948
    %v3023 = vpop.permute.xlu0 %3022
    %3026 = vset.pattern.permute.xlu0 0
    %3027 = vperm.xlu0 %3026, %v2949
    %v3028 = vpop.permute.xlu0 %3027
    %3031 = vset.pattern.permute.xlu0 0
    %3032 = vperm.xlu0 %3031, %v2950
    %v3033 = vpop.permute.xlu0 %3032
    %3036 = vset.pattern.permute.xlu0 0
    %3037 = vperm.xlu0 %3036, %v2951
    %v3038 = vpop.permute.xlu0 %3037
    %3041 = vset.pattern.permute.xlu0 0
    %3042 = vperm.xlu0 %3041, %v2952
    %v3043 = vpop.permute.xlu0 %3042
    %3046 = vset.pattern.permute.xlu0 0
    %3047 = vperm.xlu0 %3046, %v2953
    %v3048 = vpop.permute.xlu0 %3047
    %v3050 = vmul.f32 %v2954, %v2973
    %v3051 = vmul.f32 %v2955, %v2978
    %v3052 = vmul.f32 %v2956, %v2983
    %v3053 = vmul.f32 %v2957, %v2988
    %v3054 = vmul.f32 %v2958, %v2993
    %v3055 = vmul.f32 %v2959, %v2998
    %v3056 = vmul.f32 %v2960, %v3003
    %v3057 = vmul.f32 %v2961, %v3008
    %v3058 = vmul.f32 %v2962, %v3013
    %v3059 = vmul.f32 %v2963, %v3018
    %v3060 = vmul.f32 %v2964, %v3023
    %v3061 = vmul.f32 %v2965, %v3028
    %v3062 = vmul.f32 %v2966, %v3033
    %v3063 = vmul.f32 %v2967, %v3038
    %v3064 = vmul.f32 %v2968, %v3043
    %v3065 = vmul.f32 %v2969, %v3048
    %v3066 = vld [vmem:[%s4] sm:$0x1]
    %v3068 = vlaneseq
    %v3069 = vshrl.u32 %v3068, 7
    %v3070 = vsub.s32 0, %v3069
    %v3071 = vrot.slane %v3066, %v3070
    %v3073 = vadd.f32 %v3050, %v3071
    %v3074 = vadd.f32 %v3051, %v3071
    %v3075 = vadd.f32 %v3052, %v3071
    %v3076 = vadd.f32 %v3053, %v3071
    %v3077 = vadd.f32 %v3054, %v3071
    %v3078 = vadd.f32 %v3055, %v3071
    %v3079 = vadd.f32 %v3056, %v3071
    %v3080 = vadd.f32 %v3057, %v3071
    %v3081 = vadd.f32 %v3058, %v3071
    %v3082 = vadd.f32 %v3059, %v3071
    %v3083 = vadd.f32 %v3060, %v3071
    %v3084 = vadd.f32 %v3061, %v3071
    %v3085 = vadd.f32 %v3062, %v3071
    %v3086 = vadd.f32 %v3063, %v3071
    %v3087 = vadd.f32 %v3064, %v3071
    %v3088 = vadd.f32 %v3065, %v3071
    %v3089 = vmax.f32 %v3073, 0.0
    %v3090 = vmax.f32 %v3074, 0.0
    %v3091 = vmax.f32 %v3075, 0.0
    %v3092 = vmax.f32 %v3076, 0.0
    %v3093 = vmax.f32 %v3077, 0.0
    %v3094 = vmax.f32 %v3078, 0.0
    %v3095 = vmax.f32 %v3079, 0.0
    %v3096 = vmax.f32 %v3080, 0.0
    %v3097 = vmax.f32 %v3081, 0.0
    %v3098 = vmax.f32 %v3082, 0.0
    %v3099 = vmax.f32 %v3083, 0.0
    %v3100 = vmax.f32 %v3084, 0.0
    %v3101 = vmax.f32 %v3085, 0.0
    %v3102 = vmax.f32 %v3086, 0.0
    %v3103 = vmax.f32 %v3087, 0.0
    %v3104 = vmax.f32 %v3088, 0.0
    %v3105 = vld [vmem:[%s5] sm:$0xff]
    %v3106 = vld [vmem:[%s5 + $0x8] sm:$0xff]
    %v3107 = vld [vmem:[%s5 + $0x10] sm:$0xff]
    %v3108 = vld [vmem:[%s5 + $0x18] sm:$0xff]
    %v3109 = vld [vmem:[%s5 + $0x20] sm:$0xff]
    %v3110 = vld [vmem:[%s5 + $0x28] sm:$0xff]
    %v3111 = vld [vmem:[%s5 + $0x30] sm:$0xff]
    %v3112 = vld [vmem:[%s5 + $0x38] sm:$0xff]
    %v3113 = vld [vmem:[%s5 + $0x40] sm:$0xff]
    %v3114 = vld [vmem:[%s5 + $0x48] sm:$0xff]
    %v3115 = vld [vmem:[%s5 + $0x50] sm:$0xff]
    %v3116 = vld [vmem:[%s5 + $0x58] sm:$0xff]
    %v3117 = vld [vmem:[%s5 + $0x60] sm:$0xff]
    %v3118 = vld [vmem:[%s5 + $0x68] sm:$0xff]
    %v3119 = vld [vmem:[%s5 + $0x70] sm:$0xff]
    %v3120 = vld [vmem:[%s5 + $0x78] sm:$0xff]
    %v3121 = vld [vmem:[%s6] sm:$0xff]
    %v3122 = vld [vmem:[%s6 + $0x8] sm:$0xff]
    %v3123 = vld [vmem:[%s6 + $0x10] sm:$0xff]
    %v3124 = vld [vmem:[%s6 + $0x18] sm:$0xff]
    %v3125 = vld [vmem:[%s6 + $0x20] sm:$0xff]
    %v3126 = vld [vmem:[%s6 + $0x28] sm:$0xff]
    %v3127 = vld [vmem:[%s6 + $0x30] sm:$0xff]
    %v3128 = vld [vmem:[%s6 + $0x38] sm:$0xff]
    %v3129 = vld [vmem:[%s6 + $0x40] sm:$0xff]
    %v3130 = vld [vmem:[%s6 + $0x48] sm:$0xff]
    %v3131 = vld [vmem:[%s6 + $0x50] sm:$0xff]
    %v3132 = vld [vmem:[%s6 + $0x58] sm:$0xff]
    %v3133 = vld [vmem:[%s6 + $0x60] sm:$0xff]
    %v3134 = vld [vmem:[%s6 + $0x68] sm:$0xff]
    %v3135 = vld [vmem:[%s6 + $0x70] sm:$0xff]
    %v3136 = vld [vmem:[%s6 + $0x78] sm:$0xff]
    %v3137 = vld [vmem:[%s7] sm:$0xff]
    %v3138 = vld [vmem:[%s7 + $0x8] sm:$0xff]
    %v3139 = vld [vmem:[%s7 + $0x10] sm:$0xff]
    %v3140 = vld [vmem:[%s7 + $0x18] sm:$0xff]
    %v3141 = vld [vmem:[%s7 + $0x20] sm:$0xff]
    %v3142 = vld [vmem:[%s7 + $0x28] sm:$0xff]
    %v3143 = vld [vmem:[%s7 + $0x30] sm:$0xff]
    %v3144 = vld [vmem:[%s7 + $0x38] sm:$0xff]
    %v3145 = vld [vmem:[%s7 + $0x40] sm:$0xff]
    %v3146 = vld [vmem:[%s7 + $0x48] sm:$0xff]
    %v3147 = vld [vmem:[%s7 + $0x50] sm:$0xff]
    %v3148 = vld [vmem:[%s7 + $0x58] sm:$0xff]
    %v3149 = vld [vmem:[%s7 + $0x60] sm:$0xff]
    %v3150 = vld [vmem:[%s7 + $0x68] sm:$0xff]
    %v3151 = vld [vmem:[%s7 + $0x70] sm:$0xff]
    %v3152 = vld [vmem:[%s7 + $0x78] sm:$0xff]
    %3153 = vmatprep.subr.mxu0 0.0
    %3154 = vmatpush1.msra.mxu0 %v3152
    %3155 = vmatprep.subr.mxu0 0.0
    %3156 = vmatpush1.msra.mxu0 %v3151
    %3157 = vmatprep.subr.mxu0 0.0
    %3158 = vmatpush1.msra.mxu0 %v3150
    %3159 = vmatprep.subr.mxu0 0.0
    %3160 = vmatpush1.msra.mxu0 %v3149
    %3161 = vmatprep.subr.mxu0 0.0
    %3162 = vmatpush1.msra.mxu0 %v3148
    %3163 = vmatprep.subr.mxu0 0.0
    %3164 = vmatpush1.msra.mxu0 %v3147
    %3165 = vmatprep.subr.mxu0 0.0
    %3166 = vmatpush1.msra.mxu0 %v3146
    %3167 = vmatprep.subr.mxu0 0.0
    %3168 = vmatpush1.msra.mxu0 %v3145
    %3169 = vmatprep.subr.mxu0 0.0
    %3170 = vmatpush1.msra.mxu0 %v3144
    %3171 = vmatprep.subr.mxu0 0.0
    %3172 = vmatpush1.msra.mxu0 %v3143
    %3173 = vmatprep.subr.mxu0 0.0
    %3174 = vmatpush1.msra.mxu0 %v3142
    %3175 = vmatprep.subr.mxu0 0.0
    %3176 = vmatpush1.msra.mxu0 %v3141
    %3177 = vmatprep.subr.mxu0 0.0
    %3178 = vmatpush1.msra.mxu0 %v3140
    %3179 = vmatprep.subr.mxu0 0.0
    %3180 = vmatpush1.msra.mxu0 %v3139
    %3181 = vmatprep.subr.mxu0 0.0
    %3182 = vmatpush1.msra.mxu0 %v3138
    %3183 = vmatprep.subr.mxu0 0.0
    %3184 = vmatpush1.msra.mxu0 %v3137
    %3185 = vmatprep.subr.mxu0 0.0
    %3186 = vmatpush2.msra.mxu0 0.0
    %3187 = vmatprep.subr.mxu0 0.0
    %3188 = vmatpush2.msra.mxu0 0.0
    %3189 = vmatprep.subr.mxu0 0.0
    %3190 = vmatpush2.msra.mxu0 0.0
    %3191 = vmatprep.subr.mxu0 0.0
    %3192 = vmatpush2.msra.mxu0 0.0
    %3193 = vmatprep.subr.mxu0 0.0
    %3194 = vmatpush2.msra.mxu0 0.0
    %3195 = vmatprep.subr.mxu0 0.0
    %3196 = vmatpush2.msra.mxu0 0.0
    %3197 = vmatprep.subr.mxu0 0.0
    %3198 = vmatpush2.msra.mxu0 0.0
    %3199 = vmatprep.subr.mxu0 0.0
    %3200 = vmatpush2.msra.mxu0 0.0
    %3201 = vmatprep.subr.mxu0 0.0
    %3202 = vmatpush2.msra.mxu0 0.0
    %3203 = vmatprep.subr.mxu0 0.0
    %3204 = vmatpush2.msra.mxu0 0.0
    %3205 = vmatprep.subr.mxu0 0.0
    %3206 = vmatpush2.msra.mxu0 0.0
    %3207 = vmatprep.subr.mxu0 0.0
    %3208 = vmatpush2.msra.mxu0 0.0
    %3209 = vmatprep.subr.mxu0 0.0
    %3210 = vmatpush2.msra.mxu0 0.0
    %3211 = vmatprep.subr.mxu0 0.0
    %3212 = vmatpush2.msra.mxu0 0.0
    %3213 = vmatprep.subr.mxu0 0.0
    %3214 = vmatpush2.msra.mxu0 0.0
    %3215 = vmatprep.subr.mxu0 0.0
    %3216 = vmatpush2.msra.mxu0 0.0
    %3217 = vmatprep.mubr.f32.mxu0 0.0
    %3218 = vmatmul.mubr.f32.gmra.mxu0 %v3089
    %v3219 = vpop.f32.mrf.mxu0
    %v3220 = vadd.f32 0.0, %v3219
    %v3221 = vpop.f32.mrf.mxu0
    %3222 = vmatprep.mubr.f32.mxu0 0.0
    %3223 = vmatmul.mubr.f32.gmra.mxu0 %v3090
    %v3224 = vpop.f32.mrf.mxu0
    %v3225 = vadd.f32 0.0, %v3224
    %v3226 = vpop.f32.mrf.mxu0
    %3227 = vmatprep.mubr.f32.mxu0 0.0
    %3228 = vmatmul.mubr.f32.gmra.mxu0 %v3091
    %v3229 = vpop.f32.mrf.mxu0
    %v3230 = vadd.f32 0.0, %v3229
    %v3231 = vpop.f32.mrf.mxu0
    %3232 = vmatprep.mubr.f32.mxu0 0.0
    %3233 = vmatmul.mubr.f32.gmra.mxu0 %v3092
    %v3234 = vpop.f32.mrf.mxu0
    %v3235 = vadd.f32 0.0, %v3234
    %v3236 = vpop.f32.mrf.mxu0
    %3237 = vmatprep.mubr.f32.mxu0 0.0
    %3238 = vmatmul.mubr.f32.gmra.mxu0 %v3093
    %v3239 = vpop.f32.mrf.mxu0
    %v3240 = vadd.f32 0.0, %v3239
    %v3241 = vpop.f32.mrf.mxu0
    %3242 = vmatprep.mubr.f32.mxu0 0.0
    %3243 = vmatmul.mubr.f32.gmra.mxu0 %v3094
    %v3244 = vpop.f32.mrf.mxu0
    %v3245 = vadd.f32 0.0, %v3244
    %v3246 = vpop.f32.mrf.mxu0
    %3247 = vmatprep.mubr.f32.mxu0 0.0
    %3248 = vmatmul.mubr.f32.gmra.mxu0 %v3095
    %v3249 = vpop.f32.mrf.mxu0
    %v3250 = vadd.f32 0.0, %v3249
    %v3251 = vpop.f32.mrf.mxu0
    %3252 = vmatprep.mubr.f32.mxu0 0.0
    %3253 = vmatmul.mubr.f32.gmra.mxu0 %v3096
    %v3254 = vpop.f32.mrf.mxu0
    %v3255 = vadd.f32 0.0, %v3254
    %v3256 = vpop.f32.mrf.mxu0
    %3257 = vmatprep.mubr.f32.mxu0 0.0
    %3258 = vmatmul.mubr.f32.gmra.mxu0 %v3097
    %v3259 = vpop.f32.mrf.mxu0
    %v3260 = vadd.f32 0.0, %v3259
    %v3261 = vpop.f32.mrf.mxu0
    %3262 = vmatprep.mubr.f32.mxu0 0.0
    %3263 = vmatmul.mubr.f32.gmra.mxu0 %v3098
    %v3264 = vpop.f32.mrf.mxu0
    %v3265 = vadd.f32 0.0, %v3264
    %v3266 = vpop.f32.mrf.mxu0
    %3267 = vmatprep.mubr.f32.mxu0 0.0
    %3268 = vmatmul.mubr.f32.gmra.mxu0 %v3099
    %v3269 = vpop.f32.mrf.mxu0
    %v3270 = vadd.f32 0.0, %v3269
    %v3271 = vpop.f32.mrf.mxu0
    %3272 = vmatprep.mubr.f32.mxu0 0.0
    %3273 = vmatmul.mubr.f32.gmra.mxu0 %v3100
    %v3274 = vpop.f32.mrf.mxu0
    %v3275 = vadd.f32 0.0, %v3274
    %v3276 = vpop.f32.mrf.mxu0
    %3277 = vmatprep.mubr.f32.mxu0 0.0
    %3278 = vmatmul.mubr.f32.gmra.mxu0 %v3101
    %v3279 = vpop.f32.mrf.mxu0
    %v3280 = vadd.f32 0.0, %v3279
    %v3281 = vpop.f32.mrf.mxu0
    %3282 = vmatprep.mubr.f32.mxu0 0.0
    %3283 = vmatmul.mubr.f32.gmra.mxu0 %v3102
    %v3284 = vpop.f32.mrf.mxu0
    %v3285 = vadd.f32 0.0, %v3284
    %v3286 = vpop.f32.mrf.mxu0
    %3287 = vmatprep.mubr.f32.mxu0 0.0
    %3288 = vmatmul.mubr.f32.gmra.mxu0 %v3103
    %v3289 = vpop.f32.mrf.mxu0
    %v3290 = vadd.f32 0.0, %v3289
    %v3291 = vpop.f32.mrf.mxu0
    %3292 = vmatprep.mubr.f32.mxu0 0.0
    %3293 = vmatmul.mubr.f32.gmra.mxu0 %v3104
    %v3294 = vpop.f32.mrf.mxu0
    %v3295 = vadd.f32 0.0, %v3294
    %v3296 = vpop.f32.mrf.mxu0
    %3297 = vdwg.mxu0
    %3298 = vmatprep.subr.mxu0 0.0
    %3299 = vmatpush1.msra.mxu0 %v3136
    %3300 = vmatprep.subr.mxu0 0.0
    %3301 = vmatpush1.msra.mxu0 %v3135
    %3302 = vmatprep.subr.mxu0 0.0
    %3303 = vmatpush1.msra.mxu0 %v3134
    %3304 = vmatprep.subr.mxu0 0.0
    %3305 = vmatpush1.msra.mxu0 %v3133
    %3306 = vmatprep.subr.mxu0 0.0
    %3307 = vmatpush1.msra.mxu0 %v3132
    %3308 = vmatprep.subr.mxu0 0.0
    %3309 = vmatpush1.msra.mxu0 %v3131
    %3310 = vmatprep.subr.mxu0 0.0
    %3311 = vmatpush1.msra.mxu0 %v3130
    %3312 = vmatprep.subr.mxu0 0.0
    %3313 = vmatpush1.msra.mxu0 %v3129
    %3314 = vmatprep.subr.mxu0 0.0
    %3315 = vmatpush1.msra.mxu0 %v3128
    %3316 = vmatprep.subr.mxu0 0.0
    %3317 = vmatpush1.msra.mxu0 %v3127
    %3318 = vmatprep.subr.mxu0 0.0
    %3319 = vmatpush1.msra.mxu0 %v3126
    %3320 = vmatprep.subr.mxu0 0.0
    %3321 = vmatpush1.msra.mxu0 %v3125
    %3322 = vmatprep.subr.mxu0 0.0
    %3323 = vmatpush1.msra.mxu0 %v3124
    %3324 = vmatprep.subr.mxu0 0.0
    %3325 = vmatpush1.msra.mxu0 %v3123
    %3326 = vmatprep.subr.mxu0 0.0
    %3327 = vmatpush1.msra.mxu0 %v3122
    %3328 = vmatprep.subr.mxu0 0.0
    %3329 = vmatpush1.msra.mxu0 %v3121
    %3330 = vmatprep.subr.mxu0 0.0
    %3331 = vmatpush2.msra.mxu0 0.0
    %3332 = vmatprep.subr.mxu0 0.0
    %3333 = vmatpush2.msra.mxu0 0.0
    %3334 = vmatprep.subr.mxu0 0.0
    %3335 = vmatpush2.msra.mxu0 0.0
    %3336 = vmatprep.subr.mxu0 0.0
    %3337 = vmatpush2.msra.mxu0 0.0
    %3338 = vmatprep.subr.mxu0 0.0
    %3339 = vmatpush2.msra.mxu0 0.0
    %3340 = vmatprep.subr.mxu0 0.0
    %3341 = vmatpush2.msra.mxu0 0.0
    %3342 = vmatprep.subr.mxu0 0.0
    %3343 = vmatpush2.msra.mxu0 0.0
    %3344 = vmatprep.subr.mxu0 0.0
    %3345 = vmatpush2.msra.mxu0 0.0
    %3346 = vmatprep.subr.mxu0 0.0
    %3347 = vmatpush2.msra.mxu0 0.0
    %3348 = vmatprep.subr.mxu0 0.0
    %3349 = vmatpush2.msra.mxu0 0.0
    %3350 = vmatprep.subr.mxu0 0.0
    %3351 = vmatpush2.msra.mxu0 0.0
    %3352 = vmatprep.subr.mxu0 0.0
    %3353 = vmatpush2.msra.mxu0 0.0
    %3354 = vmatprep.subr.mxu0 0.0
    %3355 = vmatpush2.msra.mxu0 0.0
    %3356 = vmatprep.subr.mxu0 0.0
    %3357 = vmatpush2.msra.mxu0 0.0
    %3358 = vmatprep.subr.mxu0 0.0
    %3359 = vmatpush2.msra.mxu0 0.0
    %3360 = vmatprep.subr.mxu0 0.0
    %3361 = vmatpush2.msra.mxu0 0.0
    %3362 = vmatprep.mubr.f32.mxu0 0.0
    %3363 = vmatmul.mubr.f32.gmra.mxu0 %v3105
    %v3364 = vpop.f32.mrf.mxu0
    %v3365 = vadd.f32 %v3220, %v3364
    %v3366 = vpop.f32.mrf.mxu0
    %3367 = vmatprep.mubr.f32.mxu0 0.0
    %3368 = vmatmul.mubr.f32.gmra.mxu0 %v3106
    %v3369 = vpop.f32.mrf.mxu0
    %v3370 = vadd.f32 %v3225, %v3369
    %v3371 = vpop.f32.mrf.mxu0
    %3372 = vmatprep.mubr.f32.mxu0 0.0
    %3373 = vmatmul.mubr.f32.gmra.mxu0 %v3107
    %v3374 = vpop.f32.mrf.mxu0
    %v3375 = vadd.f32 %v3230, %v3374
    %v3376 = vpop.f32.mrf.mxu0
    %3377 = vmatprep.mubr.f32.mxu0 0.0
    %3378 = vmatmul.mubr.f32.gmra.mxu0 %v3108
    %v3379 = vpop.f32.mrf.mxu0
    %v3380 = vadd.f32 %v3235, %v3379
    %v3381 = vpop.f32.mrf.mxu0
    %3382 = vmatprep.mubr.f32.mxu0 0.0
    %3383 = vmatmul.mubr.f32.gmra.mxu0 %v3109
    %v3384 = vpop.f32.mrf.mxu0
    %v3385 = vadd.f32 %v3240, %v3384
    %v3386 = vpop.f32.mrf.mxu0
    %3387 = vmatprep.mubr.f32.mxu0 0.0
    %3388 = vmatmul.mubr.f32.gmra.mxu0 %v3110
    %v3389 = vpop.f32.mrf.mxu0
    %v3390 = vadd.f32 %v3245, %v3389
    %v3391 = vpop.f32.mrf.mxu0
    %3392 = vmatprep.mubr.f32.mxu0 0.0
    %3393 = vmatmul.mubr.f32.gmra.mxu0 %v3111
    %v3394 = vpop.f32.mrf.mxu0
    %v3395 = vadd.f32 %v3250, %v3394
    %v3396 = vpop.f32.mrf.mxu0
    %3397 = vmatprep.mubr.f32.mxu0 0.0
    %3398 = vmatmul.mubr.f32.gmra.mxu0 %v3112
    %v3399 = vpop.f32.mrf.mxu0
    %v3400 = vadd.f32 %v3255, %v3399
    %v3401 = vpop.f32.mrf.mxu0
    %3402 = vmatprep.mubr.f32.mxu0 0.0
    %3403 = vmatmul.mubr.f32.gmra.mxu0 %v3113
    %v3404 = vpop.f32.mrf.mxu0
    %v3405 = vadd.f32 %v3260, %v3404
    %v3406 = vpop.f32.mrf.mxu0
    %3407 = vmatprep.mubr.f32.mxu0 0.0
    %3408 = vmatmul.mubr.f32.gmra.mxu0 %v3114
    %v3409 = vpop.f32.mrf.mxu0
    %v3410 = vadd.f32 %v3265, %v3409
    %v3411 = vpop.f32.mrf.mxu0
    %3412 = vmatprep.mubr.f32.mxu0 0.0
    %3413 = vmatmul.mubr.f32.gmra.mxu0 %v3115
    %v3414 = vpop.f32.mrf.mxu0
    %v3415 = vadd.f32 %v3270, %v3414
    %v3416 = vpop.f32.mrf.mxu0
    %3417 = vmatprep.mubr.f32.mxu0 0.0
    %3418 = vmatmul.mubr.f32.gmra.mxu0 %v3116
    %v3419 = vpop.f32.mrf.mxu0
    %v3420 = vadd.f32 %v3275, %v3419
    %v3421 = vpop.f32.mrf.mxu0
    %3422 = vmatprep.mubr.f32.mxu0 0.0
    %3423 = vmatmul.mubr.f32.gmra.mxu0 %v3117
    %v3424 = vpop.f32.mrf.mxu0
    %v3425 = vadd.f32 %v3280, %v3424
    %v3426 = vpop.f32.mrf.mxu0
    %3427 = vmatprep.mubr.f32.mxu0 0.0
    %3428 = vmatmul.mubr.f32.gmra.mxu0 %v3118
    %v3429 = vpop.f32.mrf.mxu0
    %v3430 = vadd.f32 %v3285, %v3429
    %v3431 = vpop.f32.mrf.mxu0
    %3432 = vmatprep.mubr.f32.mxu0 0.0
    %3433 = vmatmul.mubr.f32.gmra.mxu0 %v3119
    %v3434 = vpop.f32.mrf.mxu0
    %v3435 = vadd.f32 %v3290, %v3434
    %v3436 = vpop.f32.mrf.mxu0
    %3437 = vmatprep.mubr.f32.mxu0 0.0
    %3438 = vmatmul.mubr.f32.gmra.mxu0 %v3120
    %v3439 = vpop.f32.mrf.mxu0
    %v3440 = vadd.f32 %v3295, %v3439
    %v3441 = vpop.f32.mrf.mxu0
    %3442 = vdwg.mxu0
    %v3443 = vld [vmem:[%s8] sm:$0x1]
    %v3445 = vlaneseq
    %v3446 = vshrl.u32 %v3445, 7
    %v3447 = vsub.s32 0, %v3446
    %v3448 = vrot.slane %v3443, %v3447
    %v3450 = vadd.f32 %v3365, %v3448
    %v3451 = vadd.f32 %v3370, %v3448
    %v3452 = vadd.f32 %v3375, %v3448
    %v3453 = vadd.f32 %v3380, %v3448
    %v3454 = vadd.f32 %v3385, %v3448
    %v3455 = vadd.f32 %v3390, %v3448
    %v3456 = vadd.f32 %v3395, %v3448
    %v3457 = vadd.f32 %v3400, %v3448
    %v3458 = vadd.f32 %v3405, %v3448
    %v3459 = vadd.f32 %v3410, %v3448
    %v3460 = vadd.f32 %v3415, %v3448
    %v3461 = vadd.f32 %v3420, %v3448
    %v3462 = vadd.f32 %v3425, %v3448
    %v3463 = vadd.f32 %v3430, %v3448
    %v3464 = vadd.f32 %v3435, %v3448
    %v3465 = vadd.f32 %v3440, %v3448
    %3466 = vst [vmem:[%s9] sm:$0xff] %v3450
    %3467 = vst [vmem:[%s9 + $0x8] sm:$0xff] %v3451
    %3468 = vst [vmem:[%s9 + $0x10] sm:$0xff] %v3452
    %3469 = vst [vmem:[%s9 + $0x18] sm:$0xff] %v3453
    %3470 = vst [vmem:[%s9 + $0x20] sm:$0xff] %v3454
    %3471 = vst [vmem:[%s9 + $0x28] sm:$0xff] %v3455
    %3472 = vst [vmem:[%s9 + $0x30] sm:$0xff] %v3456
    %3473 = vst [vmem:[%s9 + $0x38] sm:$0xff] %v3457
    %3474 = vst [vmem:[%s9 + $0x40] sm:$0xff] %v3458
    %3475 = vst [vmem:[%s9 + $0x48] sm:$0xff] %v3459
    %3476 = vst [vmem:[%s9 + $0x50] sm:$0xff] %v3460
    %3477 = vst [vmem:[%s9 + $0x58] sm:$0xff] %v3461
    %3478 = vst [vmem:[%s9 + $0x60] sm:$0xff] %v3462
    %3479 = vst [vmem:[%s9 + $0x68] sm:$0xff] %v3463
    %3480 = vst [vmem:[%s9 + $0x70] sm:$0xff] %v3464
    %3481 = vst [vmem:[%s9 + $0x78] sm:$0xff] %v3465
  $region45: #{lm_concat_rgat_forward.5} parent=0 // pred_fallthru
    _
  // Predicated region
  $region46: #{lm_concat_rgat_forward.5} parent=0 // pred_check
    _
  $region47: #{lm_concat_rgat_forward.5} parent=0 // pred_check_branch
    %3483 = sbr.rel (0) target = $region49
  $region48: #{lm_concat_rgat_forward.5} parent=0 // pred_region
    _
  $region49: #{lm_concat_rgat_forward.5} parent=0 // pred_fallthru
    _
  // Predicated region
  $region50: #{lm_concat_rgat_forward.5} parent=0 // pred_check
    _
  $region51: #{lm_concat_rgat_forward.5} parent=0 // pred_check_branch
    %3485 = sbr.rel (0) target = $region53
  $region52: #{lm_concat_rgat_forward.5} parent=0 // pred_region
    _
  $region53: #{lm_concat_rgat_forward.5} parent=0 // pred_fallthru
    _

// kernel: lm_concat_rgat_forward.4
$region0: #{lm_concat_rgat_forward.4}
  #allocation0 [shape = 'u32[]', space=smem, size = 0x4, offset = 0x4, fixed_abs, tag = 'smem constant byte address 0x4 - core index']
  #allocation1 [shape = 'u32[144,128]{1,0:T(1,128)}', space=vmem, size = 0x12000, scoped, tag = 'internal scratch']
  #allocation2 [shape = 'f32[128,1]{1,0:T(8,128)}', space=vmem, size = 0x10000, scoped, tag = 'scratch operand']
  #allocation3 [shape = 'f32[128,1]{1,0:T(8,128)}', space=vmem, size = 0x10000, scoped, tag = 'scratch operand']
  #allocation4 [shape = 'f32[128,128]{1,0:T(8,128)}', space=vmem, size = 0x10000, scoped, tag = 'scratch operand']
  %s0 = inlined_call_operand.vmem [shape: s8[3,128,128], index: 0, kind: input, shape index: {}]
  %s1 = inlined_call_operand.vmem [shape: f32[128,128], index: 1, kind: input, shape index: {}]
  %s2 = inlined_call_operand.vmem [shape: f32[8,128], index: 2, kind: input, shape index: {}]
  %s3 = inlined_call_operand.vmem [shape: bf16[128,384], index: 3, kind: input, shape index: {}]
  %s4 = inlined_call_operand.vmem [shape: f32[1,128], index: 4, kind: input, shape index: {}]
  %s5 = inlined_call_operand.vmem [shape: bf16[128,512], index: 5, kind: input, shape index: {}]
  %s6 = inlined_call_operand.vmem [shape: bf16[128,384], index: 6, kind: output, shape index: {0}]
  %s7 = inlined_call_operand.vmem [shape: f32[128,128], index: 7, kind: output, shape index: {1}]
  %8 = xla_tuple %s6, %s7
  %s9 = sld [smem:[#allocation0]]
  $region50: #{lm_concat_rgat_forward.4} parent=0
    _
  %s11 = ssub.s32 1, %s9
  %s12 = scalar_select 0, %s11, %s9
  // Predicated region
  $region2: #{lm_concat_rgat_forward.4} parent=0 // pred_check
    _
  $region3: #{lm_concat_rgat_forward.4} parent=0 // pred_check_branch
    %14 = sbr.rel (0) target = $region5
  $region4: #{lm_concat_rgat_forward.4} parent=0 // pred_region
    _
  $region5: #{lm_concat_rgat_forward.4} parent=0 // pred_fallthru
    _
  // Predicated region
  $region6: #{lm_concat_rgat_forward.4} parent=0 // pred_check
    _
  $region7: #{lm_concat_rgat_forward.4} parent=0 // pred_check_branch
    %16 = sbr.rel (0) target = $region9
  $region8: #{lm_concat_rgat_forward.4} parent=0 // pred_region
    _
  $region9: #{lm_concat_rgat_forward.4} parent=0 // pred_fallthru
    _
  // Predicated region
  $region10: #{lm_concat_rgat_forward.4} parent=0 // pred_check
    _
  $region11: #{lm_concat_rgat_forward.4} parent=0 // pred_check_branch
    %18 = sbr.rel (0) target = $region13
  $region12: #{lm_concat_rgat_forward.4} parent=0 // pred_region
    _
  $region13: #{lm_concat_rgat_forward.4} parent=0 // pred_fallthru
    _
  // Predicated region
  $region14: #{lm_concat_rgat_forward.4} parent=0 // pred_check
    _
  $region15: #{lm_concat_rgat_forward.4} parent=0 // pred_check_branch
    %20 = sbr.rel (0) target = $region17
  $region16: #{lm_concat_rgat_forward.4} parent=0 // pred_region
    _
  $region17: #{lm_concat_rgat_forward.4} parent=0 // pred_fallthru
    _
  // Predicated region
  $region18: #{lm_concat_rgat_forward.4} parent=0 // pred_check
    _
  $region19: #{lm_concat_rgat_forward.4} parent=0 // pred_check_branch
    %22 = sbr.rel (0) target = $region21
  $region20: #{lm_concat_rgat_forward.4} parent=0 // pred_region
    _
  $region21: #{lm_concat_rgat_forward.4} parent=0 // pred_fallthru
    _
  // Predicated region
  $region22: #{lm_concat_rgat_forward.4} parent=0 // pred_check
    _
  $region23: #{lm_concat_rgat_forward.4} parent=0 // pred_check_branch
    %24 = sbr.rel (0) target = $region25
  $region24: #{lm_concat_rgat_forward.4} parent=0 // pred_region
    _
  $region25: #{lm_concat_rgat_forward.4} parent=0 // pred_fallthru
    _
  %p28 = scmp.eq.s32.totalorder 0, 0
  // Predicated region
  $region26: #{lm_concat_rgat_forward.4} parent=0 // pred_check
    %p29 = pneg %p28
  $region27: #{lm_concat_rgat_forward.4} parent=0 // pred_check_branch
    %31 = sbr.rel (%p29) target = $region29
  $region28: #{lm_concat_rgat_forward.4} parent=0 // pred_region
    %vm32 = vcmask 7168
    %33 = vst.msk [vmem:[#allocation2] sm:$0xff] %vm32, -10000.0
    %34 = vst.msk [vmem:[#allocation2 + $0x8] sm:$0xff] %vm32, -10000.0
    %35 = vst.msk [vmem:[#allocation2 + $0x10] sm:$0xff] %vm32, -10000.0
    %36 = vst.msk [vmem:[#allocation2 + $0x18] sm:$0xff] %vm32, -10000.0
    %37 = vst.msk [vmem:[#allocation2 + $0x20] sm:$0xff] %vm32, -10000.0
    %38 = vst.msk [vmem:[#allocation2 + $0x28] sm:$0xff] %vm32, -10000.0
    %39 = vst.msk [vmem:[#allocation2 + $0x30] sm:$0xff] %vm32, -10000.0
    %40 = vst.msk [vmem:[#allocation2 + $0x38] sm:$0xff] %vm32, -10000.0
    %41 = vst.msk [vmem:[#allocation2 + $0x40] sm:$0xff] %vm32, -10000.0
    %42 = vst.msk [vmem:[#allocation2 + $0x48] sm:$0xff] %vm32, -10000.0
    %43 = vst.msk [vmem:[#allocation2 + $0x50] sm:$0xff] %vm32, -10000.0
    %44 = vst.msk [vmem:[#allocation2 + $0x58] sm:$0xff] %vm32, -10000.0
    %45 = vst.msk [vmem:[#allocation2 + $0x60] sm:$0xff] %vm32, -10000.0
    %46 = vst.msk [vmem:[#allocation2 + $0x68] sm:$0xff] %vm32, -10000.0
    %47 = vst.msk [vmem:[#allocation2 + $0x70] sm:$0xff] %vm32, -10000.0
    %48 = vst.msk [vmem:[#allocation2 + $0x78] sm:$0xff] %vm32, -10000.0
    %49 = vst.msk [vmem:[#allocation3] sm:$0xff] %vm32, 0.0
    %50 = vst.msk [vmem:[#allocation3 + $0x8] sm:$0xff] %vm32, 0.0
    %51 = vst.msk [vmem:[#allocation3 + $0x10] sm:$0xff] %vm32, 0.0
    %52 = vst.msk [vmem:[#allocation3 + $0x18] sm:$0xff] %vm32, 0.0
    %53 = vst.msk [vmem:[#allocation3 + $0x20] sm:$0xff] %vm32, 0.0
    %54 = vst.msk [vmem:[#allocation3 + $0x28] sm:$0xff] %vm32, 0.0
    %55 = vst.msk [vmem:[#allocation3 + $0x30] sm:$0xff] %vm32, 0.0
    %56 = vst.msk [vmem:[#allocation3 + $0x38] sm:$0xff] %vm32, 0.0
    %57 = vst.msk [vmem:[#allocation3 + $0x40] sm:$0xff] %vm32, 0.0
    %58 = vst.msk [vmem:[#allocation3 + $0x48] sm:$0xff] %vm32, 0.0
    %59 = vst.msk [vmem:[#allocation3 + $0x50] sm:$0xff] %vm32, 0.0
    %60 = vst.msk [vmem:[#allocation3 + $0x58] sm:$0xff] %vm32, 0.0
    %61 = vst.msk [vmem:[#allocation3 + $0x60] sm:$0xff] %vm32, 0.0
    %62 = vst.msk [vmem:[#allocation3 + $0x68] sm:$0xff] %vm32, 0.0
    %63 = vst.msk [vmem:[#allocation3 + $0x70] sm:$0xff] %vm32, 0.0
    %64 = vst.msk [vmem:[#allocation3 + $0x78] sm:$0xff] %vm32, 0.0
    %65 = vst [vmem:[#allocation4] sm:$0xff] 0.0
    %66 = vst [vmem:[#allocation4 + $0x8] sm:$0xff] 0.0
    %67 = vst [vmem:[#allocation4 + $0x10] sm:$0xff] 0.0
    %68 = vst [vmem:[#allocation4 + $0x18] sm:$0xff] 0.0
    %69 = vst [vmem:[#allocation4 + $0x20] sm:$0xff] 0.0
    %70 = vst [vmem:[#allocation4 + $0x28] sm:$0xff] 0.0
    %71 = vst [vmem:[#allocation4 + $0x30] sm:$0xff] 0.0
    %72 = vst [vmem:[#allocation4 + $0x38] sm:$0xff] 0.0
    %73 = vst [vmem:[#allocation4 + $0x40] sm:$0xff] 0.0
    %74 = vst [vmem:[#allocation4 + $0x48] sm:$0xff] 0.0
    %75 = vst [vmem:[#allocation4 + $0x50] sm:$0xff] 0.0
    %76 = vst [vmem:[#allocation4 + $0x58] sm:$0xff] 0.0
    %77 = vst [vmem:[#allocation4 + $0x60] sm:$0xff] 0.0
    %78 = vst [vmem:[#allocation4 + $0x68] sm:$0xff] 0.0
    %79 = vst [vmem:[#allocation4 + $0x70] sm:$0xff] 0.0
    %80 = vst [vmem:[#allocation4 + $0x78] sm:$0xff] 0.0
  $region29: #{lm_concat_rgat_forward.4} parent=0 // pred_fallthru
    _
  %v81 = vld [vmem:[%s1] sm:$0xff]
  %v82 = vld [vmem:[%s1 + $0x8] sm:$0xff]
  %v83 = vld [vmem:[%s1 + $0x10] sm:$0xff]
  %v84 = vld [vmem:[%s1 + $0x18] sm:$0xff]
  %v85 = vld [vmem:[%s1 + $0x20] sm:$0xff]
  %v86 = vld [vmem:[%s1 + $0x28] sm:$0xff]
  %v87 = vld [vmem:[%s1 + $0x30] sm:$0xff]
  %v88 = vld [vmem:[%s1 + $0x38] sm:$0xff]
  %v89 = vld [vmem:[%s1 + $0x40] sm:$0xff]
  %v90 = vld [vmem:[%s1 + $0x48] sm:$0xff]
  %v91 = vld [vmem:[%s1 + $0x50] sm:$0xff]
  %v92 = vld [vmem:[%s1 + $0x58] sm:$0xff]
  %v93 = vld [vmem:[%s1 + $0x60] sm:$0xff]
  %v94 = vld [vmem:[%s1 + $0x68] sm:$0xff]
  %v95 = vld [vmem:[%s1 + $0x70] sm:$0xff]
  %v96 = vld [vmem:[%s1 + $0x78] sm:$0xff]
  %v97 = vld [vmem:[%s2] sm:$0xff]
  %99 = vset.pattern.permute.xlu0 0
  %100 = vperm.xlu0 %99, %v81
  %v101 = vpop.permute.xlu0 %100
  %104 = vset.pattern.permute.xlu0 0
  %105 = vperm.xlu0 %104, %v82
  %v106 = vpop.permute.xlu0 %105
  %109 = vset.pattern.permute.xlu0 0
  %110 = vperm.xlu0 %109, %v83
  %v111 = vpop.permute.xlu0 %110
  %114 = vset.pattern.permute.xlu0 0
  %115 = vperm.xlu0 %114, %v84
  %v116 = vpop.permute.xlu0 %115
  %119 = vset.pattern.permute.xlu0 0
  %120 = vperm.xlu0 %119, %v85
  %v121 = vpop.permute.xlu0 %120
  %124 = vset.pattern.permute.xlu0 0
  %125 = vperm.xlu0 %124, %v86
  %v126 = vpop.permute.xlu0 %125
  %129 = vset.pattern.permute.xlu0 0
  %130 = vperm.xlu0 %129, %v87
  %v131 = vpop.permute.xlu0 %130
  %134 = vset.pattern.permute.xlu0 0
  %135 = vperm.xlu0 %134, %v88
  %v136 = vpop.permute.xlu0 %135
  %139 = vset.pattern.permute.xlu0 0
  %140 = vperm.xlu0 %139, %v89
  %v141 = vpop.permute.xlu0 %140
  %144 = vset.pattern.permute.xlu0 0
  %145 = vperm.xlu0 %144, %v90
  %v146 = vpop.permute.xlu0 %145
  %149 = vset.pattern.permute.xlu0 0
  %150 = vperm.xlu0 %149, %v91
  %v151 = vpop.permute.xlu0 %150
  %154 = vset.pattern.permute.xlu0 0
  %155 = vperm.xlu0 %154, %v92
  %v156 = vpop.permute.xlu0 %155
  %159 = vset.pattern.permute.xlu0 0
  %160 = vperm.xlu0 %159, %v93
  %v161 = vpop.permute.xlu0 %160
  %164 = vset.pattern.permute.xlu0 0
  %165 = vperm.xlu0 %164, %v94
  %v166 = vpop.permute.xlu0 %165
  %169 = vset.pattern.permute.xlu0 0
  %170 = vperm.xlu0 %169, %v95
  %v171 = vpop.permute.xlu0 %170
  %174 = vset.pattern.permute.xlu0 0
  %175 = vperm.xlu0 %174, %v96
  %v176 = vpop.permute.xlu0 %175
  %v178 = vlaneseq
  %v179 = vshrl.u32 %v178, 7
  %v180 = vsub.s32 0, %v179
  %v181 = vrot.slane %v97, %v180
  %v182 = vadd.f32 %v101, %v181
  %v183 = vadd.f32 %v106, %v181
  %v184 = vadd.f32 %v111, %v181
  %v185 = vadd.f32 %v116, %v181
  %v186 = vadd.f32 %v121, %v181
  %v187 = vadd.f32 %v126, %v181
  %v188 = vadd.f32 %v131, %v181
  %v189 = vadd.f32 %v136, %v181
  %v190 = vadd.f32 %v141, %v181
  %v191 = vadd.f32 %v146, %v181
  %v192 = vadd.f32 %v151, %v181
  %v193 = vadd.f32 %v156, %v181
  %v194 = vadd.f32 %v161, %v181
  %v195 = vadd.f32 %v166, %v181
  %v196 = vadd.f32 %v171, %v181
  %v197 = vadd.f32 %v176, %v181
  %v198 = vmul.f32 %v182, 0.2
  %v199 = vmul.f32 %v183, 0.2
  %v200 = vmul.f32 %v184, 0.2
  %v201 = vmul.f32 %v185, 0.2
  %v202 = vmul.f32 %v186, 0.2
  %v203 = vmul.f32 %v187, 0.2
  %v204 = vmul.f32 %v188, 0.2
  %v205 = vmul.f32 %v189, 0.2
  %v206 = vmul.f32 %v190, 0.2
  %v207 = vmul.f32 %v191, 0.2
  %v208 = vmul.f32 %v192, 0.2
  %v209 = vmul.f32 %v193, 0.2
  %v210 = vmul.f32 %v194, 0.2
  %v211 = vmul.f32 %v195, 0.2
  %v212 = vmul.f32 %v196, 0.2
  %v213 = vmul.f32 %v197, 0.2
  %v214 = vmax.f32 %v182, %v198
  %v215 = vmax.f32 %v183, %v199
  %v216 = vmax.f32 %v184, %v200
  %v217 = vmax.f32 %v185, %v201
  %v218 = vmax.f32 %v186, %v202
  %v219 = vmax.f32 %v187, %v203
  %v220 = vmax.f32 %v188, %v204
  %v221 = vmax.f32 %v189, %v205
  %v222 = vmax.f32 %v190, %v206
  %v223 = vmax.f32 %v191, %v207
  %v224 = vmax.f32 %v192, %v208
  %v225 = vmax.f32 %v193, %v209
  %v226 = vmax.f32 %v194, %v210
  %v227 = vmax.f32 %v195, %v211
  %v228 = vmax.f32 %v196, %v212
  %v229 = vmax.f32 %v197, %v213
  %v230 = vld [vmem:[%s0] sm:$0xff]
  %v231 = vld [vmem:[%s0 + $0x8] sm:$0xff]
  %v232 = vld [vmem:[%s0 + $0x10] sm:$0xff]
  %v233 = vld [vmem:[%s0 + $0x18] sm:$0xff]
  %vm234 = vnez %v230
  %vm235 = vnez %v231
  %vm236 = vnez %v232
  %vm237 = vnez %v233
  %v238 = vsel %vm234, 16843009, 0
  %v239 = vsel %vm235, 16843009, 0
  %v240 = vsel %vm236, 16843009, 0
  %v241 = vsel %vm237, 16843009, 0
  %v242 = vunpack.c.0.s8 %v238
  %v243 = vunpack.c.1.s8 %v238
  %v244 = vunpack.c.2.s8 %v238
  %v245 = vunpack.c.3.s8 %v238
  %v246 = vunpack.c.0.s8 %v239
  %v247 = vunpack.c.1.s8 %v239
  %v248 = vunpack.c.2.s8 %v239
  %v249 = vunpack.c.3.s8 %v239
  %v250 = vunpack.c.0.s8 %v240
  %v251 = vunpack.c.1.s8 %v240
  %v252 = vunpack.c.2.s8 %v240
  %v253 = vunpack.c.3.s8 %v240
  %v254 = vunpack.c.0.s8 %v241
  %v255 = vunpack.c.1.s8 %v241
  %v256 = vunpack.c.2.s8 %v241
  %v257 = vunpack.c.3.s8 %v241
  %v258 = vpack.c.b16 %v242, %v242
  %v259 = vpack.c.b8 %v258, %v258
  %v260 = vpack.c.b16 %v243, %v243
  %v261 = vpack.c.b8 %v260, %v260
  %v262 = vpack.c.b16 %v244, %v244
  %v263 = vpack.c.b8 %v262, %v262
  %v264 = vpack.c.b16 %v245, %v245
  %v265 = vpack.c.b8 %v264, %v264
  %v266 = vpack.c.b16 %v246, %v246
  %v267 = vpack.c.b8 %v266, %v266
  %v268 = vpack.c.b16 %v247, %v247
  %v269 = vpack.c.b8 %v268, %v268
  %v270 = vpack.c.b16 %v248, %v248
  %v271 = vpack.c.b8 %v270, %v270
  %v272 = vpack.c.b16 %v249, %v249
  %v273 = vpack.c.b8 %v272, %v272
  %v274 = vpack.c.b16 %v250, %v250
  %v275 = vpack.c.b8 %v274, %v274
  %v276 = vpack.c.b16 %v251, %v251
  %v277 = vpack.c.b8 %v276, %v276
  %v278 = vpack.c.b16 %v252, %v252
  %v279 = vpack.c.b8 %v278, %v278
  %v280 = vpack.c.b16 %v253, %v253
  %v281 = vpack.c.b8 %v280, %v280
  %v282 = vpack.c.b16 %v254, %v254
  %v283 = vpack.c.b8 %v282, %v282
  %v284 = vpack.c.b16 %v255, %v255
  %v285 = vpack.c.b8 %v284, %v284
  %v286 = vpack.c.b16 %v256, %v256
  %v287 = vpack.c.b8 %v286, %v286
  %v288 = vpack.c.b16 %v257, %v257
  %v289 = vpack.c.b8 %v288, %v288
  %vm290 = vnez %v259
  %vm291 = vnez %v261
  %vm292 = vnez %v263
  %vm293 = vnez %v265
  %vm294 = vnez %v267
  %vm295 = vnez %v269
  %vm296 = vnez %v271
  %vm297 = vnez %v273
  %vm298 = vnez %v275
  %vm299 = vnez %v277
  %vm300 = vnez %v279
  %vm301 = vnez %v281
  %vm302 = vnez %v283
  %vm303 = vnez %v285
  %vm304 = vnez %v287
  %vm305 = vnez %v289
  %v306 = vsel %vm290, 16843009, 0
  %v307 = vsel %vm291, 16843009, 0
  %v308 = vsel %vm292, 16843009, 0
  %v309 = vsel %vm293, 16843009, 0
  %v310 = vsel %vm294, 16843009, 0
  %v311 = vsel %vm295, 16843009, 0
  %v312 = vsel %vm296, 16843009, 0
  %v313 = vsel %vm297, 16843009, 0
  %v314 = vsel %vm298, 16843009, 0
  %v315 = vsel %vm299, 16843009, 0
  %v316 = vsel %vm300, 16843009, 0
  %v317 = vsel %vm301, 16843009, 0
  %v318 = vsel %vm302, 16843009, 0
  %v319 = vsel %vm303, 16843009, 0
  %v320 = vsel %vm304, 16843009, 0
  %v321 = vsel %vm305, 16843009, 0
  %v322 = vunpack.c.0.s8 %v306
  %v323 = vunpack.c.0.s8 %v307
  %v324 = vunpack.c.0.s8 %v308
  %v325 = vunpack.c.0.s8 %v309
  %v326 = vunpack.c.0.s8 %v310
  %v327 = vunpack.c.0.s8 %v311
  %v328 = vunpack.c.0.s8 %v312
  %v329 = vunpack.c.0.s8 %v313
  %v330 = vunpack.c.0.s8 %v314
  %v331 = vunpack.c.0.s8 %v315
  %v332 = vunpack.c.0.s8 %v316
  %v333 = vunpack.c.0.s8 %v317
  %v334 = vunpack.c.0.s8 %v318
  %v335 = vunpack.c.0.s8 %v319
  %v336 = vunpack.c.0.s8 %v320
  %v337 = vunpack.c.0.s8 %v321
  %vm338 = vcmp.ne.s32.totalorder %v322, 0
  %vm339 = vcmp.ne.s32.totalorder %v323, 0
  %vm340 = vcmp.ne.s32.totalorder %v324, 0
  %vm341 = vcmp.ne.s32.totalorder %v325, 0
  %vm342 = vcmp.ne.s32.totalorder %v326, 0
  %vm343 = vcmp.ne.s32.totalorder %v327, 0
  %vm344 = vcmp.ne.s32.totalorder %v328, 0
  %vm345 = vcmp.ne.s32.totalorder %v329, 0
  %vm346 = vcmp.ne.s32.totalorder %v330, 0
  %vm347 = vcmp.ne.s32.totalorder %v331, 0
  %vm348 = vcmp.ne.s32.totalorder %v332, 0
  %vm349 = vcmp.ne.s32.totalorder %v333, 0
  %vm350 = vcmp.ne.s32.totalorder %v334, 0
  %vm351 = vcmp.ne.s32.totalorder %v335, 0
  %vm352 = vcmp.ne.s32.totalorder %v336, 0
  %vm353 = vcmp.ne.s32.totalorder %v337, 0
  %v354 = vsel %vm338, %v214, -1e+30
  %v355 = vsel %vm339, %v215, -1e+30
  %v356 = vsel %vm340, %v216, -1e+30
  %v357 = vsel %vm341, %v217, -1e+30
  %v358 = vsel %vm342, %v218, -1e+30
  %v359 = vsel %vm343, %v219, -1e+30
  %v360 = vsel %vm344, %v220, -1e+30
  %v361 = vsel %vm345, %v221, -1e+30
  %v362 = vsel %vm346, %v222, -1e+30
  %v363 = vsel %vm347, %v223, -1e+30
  %v364 = vsel %vm348, %v224, -1e+30
  %v365 = vsel %vm349, %v225, -1e+30
  %v366 = vsel %vm350, %v226, -1e+30
  %v367 = vsel %vm351, %v227, -1e+30
  %v368 = vsel %vm352, %v228, -1e+30
  %v369 = vsel %vm353, %v229, -1e+30
  %v370 = vld [vmem:[#allocation2] sm:$0xff]
  %v371 = vld [vmem:[#allocation2 + $0x8] sm:$0xff]
  %v372 = vld [vmem:[#allocation2 + $0x10] sm:$0xff]
  %v373 = vld [vmem:[#allocation2 + $0x18] sm:$0xff]
  %v374 = vld [vmem:[#allocation2 + $0x20] sm:$0xff]
  %v375 = vld [vmem:[#allocation2 + $0x28] sm:$0xff]
  %v376 = vld [vmem:[#allocation2 + $0x30] sm:$0xff]
  %v377 = vld [vmem:[#allocation2 + $0x38] sm:$0xff]
  %v378 = vld [vmem:[#allocation2 + $0x40] sm:$0xff]
  %v379 = vld [vmem:[#allocation2 + $0x48] sm:$0xff]
  %v380 = vld [vmem:[#allocation2 + $0x50] sm:$0xff]
  %v381 = vld [vmem:[#allocation2 + $0x58] sm:$0xff]
  %v382 = vld [vmem:[#allocation2 + $0x60] sm:$0xff]
  %v383 = vld [vmem:[#allocation2 + $0x68] sm:$0xff]
  %v384 = vld [vmem:[#allocation2 + $0x70] sm:$0xff]
  %v385 = vld [vmem:[#allocation2 + $0x78] sm:$0xff]
  %386 = vmax.xlane.f32.xlu0 %v354
  %v387 = vpop.xlane.xlu0 %386
  %388 = vmax.xlane.f32.xlu0 %v355
  %v389 = vpop.xlane.xlu0 %388
  %390 = vmax.xlane.f32.xlu0 %v356
  %v391 = vpop.xlane.xlu0 %390
  %392 = vmax.xlane.f32.xlu0 %v357
  %v393 = vpop.xlane.xlu0 %392
  %394 = vmax.xlane.f32.xlu0 %v358
  %v395 = vpop.xlane.xlu0 %394
  %396 = vmax.xlane.f32.xlu0 %v359
  %v397 = vpop.xlane.xlu0 %396
  %398 = vmax.xlane.f32.xlu0 %v360
  %v399 = vpop.xlane.xlu0 %398
  %400 = vmax.xlane.f32.xlu0 %v361
  %v401 = vpop.xlane.xlu0 %400
  %402 = vmax.xlane.f32.xlu0 %v362
  %v403 = vpop.xlane.xlu0 %402
  %404 = vmax.xlane.f32.xlu0 %v363
  %v405 = vpop.xlane.xlu0 %404
  %406 = vmax.xlane.f32.xlu0 %v364
  %v407 = vpop.xlane.xlu0 %406
  %408 = vmax.xlane.f32.xlu0 %v365
  %v409 = vpop.xlane.xlu0 %408
  %410 = vmax.xlane.f32.xlu0 %v366
  %v411 = vpop.xlane.xlu0 %410
  %412 = vmax.xlane.f32.xlu0 %v367
  %v413 = vpop.xlane.xlu0 %412
  %414 = vmax.xlane.f32.xlu0 %v368
  %v415 = vpop.xlane.xlu0 %414
  %416 = vmax.xlane.f32.xlu0 %v369
  %v417 = vpop.xlane.xlu0 %416
  %v418 = vmax.f32 %v370, %v387
  %v419 = vmax.f32 %v371, %v389
  %v420 = vmax.f32 %v372, %v391
  %v421 = vmax.f32 %v373, %v393
  %v422 = vmax.f32 %v374, %v395
  %v423 = vmax.f32 %v375, %v397
  %v424 = vmax.f32 %v376, %v399
  %v425 = vmax.f32 %v377, %v401
  %v426 = vmax.f32 %v378, %v403
  %v427 = vmax.f32 %v379, %v405
  %v428 = vmax.f32 %v380, %v407
  %v429 = vmax.f32 %v381, %v409
  %v430 = vmax.f32 %v382, %v411
  %v431 = vmax.f32 %v383, %v413
  %v432 = vmax.f32 %v384, %v415
  %v433 = vmax.f32 %v385, %v417
  %435 = vset.pattern.permute.xlu0 0
  %436 = vperm.xlu0 %435, %v418
  %v437 = vpop.permute.xlu0 %436
  %440 = vset.pattern.permute.xlu0 0
  %441 = vperm.xlu0 %440, %v419
  %v442 = vpop.permute.xlu0 %441
  %445 = vset.pattern.permute.xlu0 0
  %446 = vperm.xlu0 %445, %v420
  %v447 = vpop.permute.xlu0 %446
  %450 = vset.pattern.permute.xlu0 0
  %451 = vperm.xlu0 %450, %v421
  %v452 = vpop.permute.xlu0 %451
  %455 = vset.pattern.permute.xlu0 0
  %456 = vperm.xlu0 %455, %v422
  %v457 = vpop.permute.xlu0 %456
  %460 = vset.pattern.permute.xlu0 0
  %461 = vperm.xlu0 %460, %v423
  %v462 = vpop.permute.xlu0 %461
  %465 = vset.pattern.permute.xlu0 0
  %466 = vperm.xlu0 %465, %v424
  %v467 = vpop.permute.xlu0 %466
  %470 = vset.pattern.permute.xlu0 0
  %471 = vperm.xlu0 %470, %v425
  %v472 = vpop.permute.xlu0 %471
  %475 = vset.pattern.permute.xlu0 0
  %476 = vperm.xlu0 %475, %v426
  %v477 = vpop.permute.xlu0 %476
  %480 = vset.pattern.permute.xlu0 0
  %481 = vperm.xlu0 %480, %v427
  %v482 = vpop.permute.xlu0 %481
  %485 = vset.pattern.permute.xlu0 0
  %486 = vperm.xlu0 %485, %v428
  %v487 = vpop.permute.xlu0 %486
  %490 = vset.pattern.permute.xlu0 0
  %491 = vperm.xlu0 %490, %v429
  %v492 = vpop.permute.xlu0 %491
  %495 = vset.pattern.permute.xlu0 0
  %496 = vperm.xlu0 %495, %v430
  %v497 = vpop.permute.xlu0 %496
  %500 = vset.pattern.permute.xlu0 0
  %501 = vperm.xlu0 %500, %v431
  %v502 = vpop.permute.xlu0 %501
  %505 = vset.pattern.permute.xlu0 0
  %506 = vperm.xlu0 %505, %v432
  %v507 = vpop.permute.xlu0 %506
  %510 = vset.pattern.permute.xlu0 0
  %511 = vperm.xlu0 %510, %v433
  %v512 = vpop.permute.xlu0 %511
  %v514 = vsub.f32 %v354, %v437
  %v515 = vsub.f32 %v355, %v442
  %v516 = vsub.f32 %v356, %v447
  %v517 = vsub.f32 %v357, %v452
  %v518 = vsub.f32 %v358, %v457
  %v519 = vsub.f32 %v359, %v462
  %v520 = vsub.f32 %v360, %v467
  %v521 = vsub.f32 %v361, %v472
  %v522 = vsub.f32 %v362, %v477
  %v523 = vsub.f32 %v363, %v482
  %v524 = vsub.f32 %v364, %v487
  %v525 = vsub.f32 %v365, %v492
  %v526 = vsub.f32 %v366, %v497
  %v527 = vsub.f32 %v367, %v502
  %v528 = vsub.f32 %v368, %v507
  %v529 = vsub.f32 %v369, %v512
  %v530 = vmul.f32 %v514, 1.442695
  %v531 = vpow.pop %v530
  %v532 = vmul.f32 %v515, 1.442695
  %v533 = vpow.pop %v532
  %v534 = vmul.f32 %v516, 1.442695
  %v535 = vpow.pop %v534
  %v536 = vmul.f32 %v517, 1.442695
  %v537 = vpow.pop %v536
  %v538 = vmul.f32 %v518, 1.442695
  %v539 = vpow.pop %v538
  %v540 = vmul.f32 %v519, 1.442695
  %v541 = vpow.pop %v540
  %v542 = vmul.f32 %v520, 1.442695
  %v543 = vpow.pop %v542
  %v544 = vmul.f32 %v521, 1.442695
  %v545 = vpow.pop %v544
  %v546 = vmul.f32 %v522, 1.442695
  %v547 = vpow.pop %v546
  %v548 = vmul.f32 %v523, 1.442695
  %v549 = vpow.pop %v548
  %v550 = vmul.f32 %v524, 1.442695
  %v551 = vpow.pop %v550
  %v552 = vmul.f32 %v525, 1.442695
  %v553 = vpow.pop %v552
  %v554 = vmul.f32 %v526, 1.442695
  %v555 = vpow.pop %v554
  %v556 = vmul.f32 %v527, 1.442695
  %v557 = vpow.pop %v556
  %v558 = vmul.f32 %v528, 1.442695
  %v559 = vpow.pop %v558
  %v560 = vmul.f32 %v529, 1.442695
  %v561 = vpow.pop %v560
  %v562 = vsub.f32 %v370, %v418
  %v563 = vsub.f32 %v371, %v419
  %v564 = vsub.f32 %v372, %v420
  %v565 = vsub.f32 %v373, %v421
  %v566 = vsub.f32 %v374, %v422
  %v567 = vsub.f32 %v375, %v423
  %v568 = vsub.f32 %v376, %v424
  %v569 = vsub.f32 %v377, %v425
  %v570 = vsub.f32 %v378, %v426
  %v571 = vsub.f32 %v379, %v427
  %v572 = vsub.f32 %v380, %v428
  %v573 = vsub.f32 %v381, %v429
  %v574 = vsub.f32 %v382, %v430
  %v575 = vsub.f32 %v383, %v431
  %v576 = vsub.f32 %v384, %v432
  %v577 = vsub.f32 %v385, %v433
  %v578 = vmul.f32 %v562, 1.442695
  %v579 = vpow.pop %v578
  %v580 = vmul.f32 %v563, 1.442695
  %v581 = vpow.pop %v580
  %v582 = vmul.f32 %v564, 1.442695
  %v583 = vpow.pop %v582
  %v584 = vmul.f32 %v565, 1.442695
  %v585 = vpow.pop %v584
  %v586 = vmul.f32 %v566, 1.442695
  %v587 = vpow.pop %v586
  %v588 = vmul.f32 %v567, 1.442695
  %v589 = vpow.pop %v588
  %v590 = vmul.f32 %v568, 1.442695
  %v591 = vpow.pop %v590
  %v592 = vmul.f32 %v569, 1.442695
  %v593 = vpow.pop %v592
  %v594 = vmul.f32 %v570, 1.442695
  %v595 = vpow.pop %v594
  %v596 = vmul.f32 %v571, 1.442695
  %v597 = vpow.pop %v596
  %v598 = vmul.f32 %v572, 1.442695
  %v599 = vpow.pop %v598
  %v600 = vmul.f32 %v573, 1.442695
  %v601 = vpow.pop %v600
  %v602 = vmul.f32 %v574, 1.442695
  %v603 = vpow.pop %v602
  %v604 = vmul.f32 %v575, 1.442695
  %v605 = vpow.pop %v604
  %v606 = vmul.f32 %v576, 1.442695
  %v607 = vpow.pop %v606
  %v608 = vmul.f32 %v577, 1.442695
  %v609 = vpow.pop %v608
  %v610 = vld [vmem:[#allocation3] sm:$0xff]
  %v611 = vld [vmem:[#allocation3 + $0x8] sm:$0xff]
  %v612 = vld [vmem:[#allocation3 + $0x10] sm:$0xff]
  %v613 = vld [vmem:[#allocation3 + $0x18] sm:$0xff]
  %v614 = vld [vmem:[#allocation3 + $0x20] sm:$0xff]
  %v615 = vld [vmem:[#allocation3 + $0x28] sm:$0xff]
  %v616 = vld [vmem:[#allocation3 + $0x30] sm:$0xff]
  %v617 = vld [vmem:[#allocation3 + $0x38] sm:$0xff]
  %v618 = vld [vmem:[#allocation3 + $0x40] sm:$0xff]
  %v619 = vld [vmem:[#allocation3 + $0x48] sm:$0xff]
  %v620 = vld [vmem:[#allocation3 + $0x50] sm:$0xff]
  %v621 = vld [vmem:[#allocation3 + $0x58] sm:$0xff]
  %v622 = vld [vmem:[#allocation3 + $0x60] sm:$0xff]
  %v623 = vld [vmem:[#allocation3 + $0x68] sm:$0xff]
  %v624 = vld [vmem:[#allocation3 + $0x70] sm:$0xff]
  %v625 = vld [vmem:[#allocation3 + $0x78] sm:$0xff]
  %v626 = vmul.f32 %v579, %v610
  %v627 = vmul.f32 %v581, %v611
  %v628 = vmul.f32 %v583, %v612
  %v629 = vmul.f32 %v585, %v613
  %v630 = vmul.f32 %v587, %v614
  %v631 = vmul.f32 %v589, %v615
  %v632 = vmul.f32 %v591, %v616
  %v633 = vmul.f32 %v593, %v617
  %v634 = vmul.f32 %v595, %v618
  %v635 = vmul.f32 %v597, %v619
  %v636 = vmul.f32 %v599, %v620
  %v637 = vmul.f32 %v601, %v621
  %v638 = vmul.f32 %v603, %v622
  %v639 = vmul.f32 %v605, %v623
  %v640 = vmul.f32 %v607, %v624
  %v641 = vmul.f32 %v609, %v625
  %642 = vadd.xlane.f32.xlu0 %v531
  %v643 = vpop.xlane.xlu0 %642
  %644 = vadd.xlane.f32.xlu0 %v533
  %v645 = vpop.xlane.xlu0 %644
  %646 = vadd.xlane.f32.xlu0 %v535
  %v647 = vpop.xlane.xlu0 %646
  %648 = vadd.xlane.f32.xlu0 %v537
  %v649 = vpop.xlane.xlu0 %648
  %650 = vadd.xlane.f32.xlu0 %v539
  %v651 = vpop.xlane.xlu0 %650
  %652 = vadd.xlane.f32.xlu0 %v541
  %v653 = vpop.xlane.xlu0 %652
  %654 = vadd.xlane.f32.xlu0 %v543
  %v655 = vpop.xlane.xlu0 %654
  %656 = vadd.xlane.f32.xlu0 %v545
  %v657 = vpop.xlane.xlu0 %656
  %658 = vadd.xlane.f32.xlu0 %v547
  %v659 = vpop.xlane.xlu0 %658
  %660 = vadd.xlane.f32.xlu0 %v549
  %v661 = vpop.xlane.xlu0 %660
  %662 = vadd.xlane.f32.xlu0 %v551
  %v663 = vpop.xlane.xlu0 %662
  %664 = vadd.xlane.f32.xlu0 %v553
  %v665 = vpop.xlane.xlu0 %664
  %666 = vadd.xlane.f32.xlu0 %v555
  %v667 = vpop.xlane.xlu0 %666
  %668 = vadd.xlane.f32.xlu0 %v557
  %v669 = vpop.xlane.xlu0 %668
  %670 = vadd.xlane.f32.xlu0 %v559
  %v671 = vpop.xlane.xlu0 %670
  %672 = vadd.xlane.f32.xlu0 %v561
  %v673 = vpop.xlane.xlu0 %672
  %v674 = vadd.f32 %v626, %v643
  %v675 = vadd.f32 %v627, %v645
  %v676 = vadd.f32 %v628, %v647
  %v677 = vadd.f32 %v629, %v649
  %v678 = vadd.f32 %v630, %v651
  %v679 = vadd.f32 %v631, %v653
  %v680 = vadd.f32 %v632, %v655
  %v681 = vadd.f32 %v633, %v657
  %v682 = vadd.f32 %v634, %v659
  %v683 = vadd.f32 %v635, %v661
  %v684 = vadd.f32 %v636, %v663
  %v685 = vadd.f32 %v637, %v665
  %v686 = vadd.f32 %v638, %v667
  %v687 = vadd.f32 %v639, %v669
  %v688 = vadd.f32 %v640, %v671
  %v689 = vadd.f32 %v641, %v673
  %vm690 = vcmask 7168
  %691 = vst.msk [vmem:[#allocation3] sm:$0xff] %vm690, %v674
  %692 = vst.msk [vmem:[#allocation3 + $0x8] sm:$0xff] %vm690, %v675
  %693 = vst.msk [vmem:[#allocation3 + $0x10] sm:$0xff] %vm690, %v676
  %694 = vst.msk [vmem:[#allocation3 + $0x18] sm:$0xff] %vm690, %v677
  %695 = vst.msk [vmem:[#allocation3 + $0x20] sm:$0xff] %vm690, %v678
  %696 = vst.msk [vmem:[#allocation3 + $0x28] sm:$0xff] %vm690, %v679
  %697 = vst.msk [vmem:[#allocation3 + $0x30] sm:$0xff] %vm690, %v680
  %698 = vst.msk [vmem:[#allocation3 + $0x38] sm:$0xff] %vm690, %v681
  %699 = vst.msk [vmem:[#allocation3 + $0x40] sm:$0xff] %vm690, %v682
  %700 = vst.msk [vmem:[#allocation3 + $0x48] sm:$0xff] %vm690, %v683
  %701 = vst.msk [vmem:[#allocation3 + $0x50] sm:$0xff] %vm690, %v684
  %702 = vst.msk [vmem:[#allocation3 + $0x58] sm:$0xff] %vm690, %v685
  %703 = vst.msk [vmem:[#allocation3 + $0x60] sm:$0xff] %vm690, %v686
  %704 = vst.msk [vmem:[#allocation3 + $0x68] sm:$0xff] %vm690, %v687
  %705 = vst.msk [vmem:[#allocation3 + $0x70] sm:$0xff] %vm690, %v688
  %706 = vst.msk [vmem:[#allocation3 + $0x78] sm:$0xff] %vm690, %v689
  %v707 = vld [vmem:[#allocation4] sm:$0xff]
  %v708 = vld [vmem:[#allocation4 + $0x8] sm:$0xff]
  %v709 = vld [vmem:[#allocation4 + $0x10] sm:$0xff]
  %v710 = vld [vmem:[#allocation4 + $0x18] sm:$0xff]
  %v711 = vld [vmem:[#allocation4 + $0x20] sm:$0xff]
  %v712 = vld [vmem:[#allocation4 + $0x28] sm:$0xff]
  %v713 = vld [vmem:[#allocation4 + $0x30] sm:$0xff]
  %v714 = vld [vmem:[#allocation4 + $0x38] sm:$0xff]
  %v715 = vld [vmem:[#allocation4 + $0x40] sm:$0xff]
  %v716 = vld [vmem:[#allocation4 + $0x48] sm:$0xff]
  %v717 = vld [vmem:[#allocation4 + $0x50] sm:$0xff]
  %v718 = vld [vmem:[#allocation4 + $0x58] sm:$0xff]
  %v719 = vld [vmem:[#allocation4 + $0x60] sm:$0xff]
  %v720 = vld [vmem:[#allocation4 + $0x68] sm:$0xff]
  %v721 = vld [vmem:[#allocation4 + $0x70] sm:$0xff]
  %v722 = vld [vmem:[#allocation4 + $0x78] sm:$0xff]
  %724 = vset.pattern.permute.xlu0 0
  %725 = vperm.xlu0 %724, %v579
  %v726 = vpop.permute.xlu0 %725
  %729 = vset.pattern.permute.xlu0 0
  %730 = vperm.xlu0 %729, %v581
  %v731 = vpop.permute.xlu0 %730
  %734 = vset.pattern.permute.xlu0 0
  %735 = vperm.xlu0 %734, %v583
  %v736 = vpop.permute.xlu0 %735
  %739 = vset.pattern.permute.xlu0 0
  %740 = vperm.xlu0 %739, %v585
  %v741 = vpop.permute.xlu0 %740
  %744 = vset.pattern.permute.xlu0 0
  %745 = vperm.xlu0 %744, %v587
  %v746 = vpop.permute.xlu0 %745
  %749 = vset.pattern.permute.xlu0 0
  %750 = vperm.xlu0 %749, %v589
  %v751 = vpop.permute.xlu0 %750
  %754 = vset.pattern.permute.xlu0 0
  %755 = vperm.xlu0 %754, %v591
  %v756 = vpop.permute.xlu0 %755
  %759 = vset.pattern.permute.xlu0 0
  %760 = vperm.xlu0 %759, %v593
  %v761 = vpop.permute.xlu0 %760
  %764 = vset.pattern.permute.xlu0 0
  %765 = vperm.xlu0 %764, %v595
  %v766 = vpop.permute.xlu0 %765
  %769 = vset.pattern.permute.xlu0 0
  %770 = vperm.xlu0 %769, %v597
  %v771 = vpop.permute.xlu0 %770
  %774 = vset.pattern.permute.xlu0 0
  %775 = vperm.xlu0 %774, %v599
  %v776 = vpop.permute.xlu0 %775
  %779 = vset.pattern.permute.xlu0 0
  %780 = vperm.xlu0 %779, %v601
  %v781 = vpop.permute.xlu0 %780
  %784 = vset.pattern.permute.xlu0 0
  %785 = vperm.xlu0 %784, %v603
  %v786 = vpop.permute.xlu0 %785
  %789 = vset.pattern.permute.xlu0 0
  %790 = vperm.xlu0 %789, %v605
  %v791 = vpop.permute.xlu0 %790
  %794 = vset.pattern.permute.xlu0 0
  %795 = vperm.xlu0 %794, %v607
  %v796 = vpop.permute.xlu0 %795
  %799 = vset.pattern.permute.xlu0 0
  %800 = vperm.xlu0 %799, %v609
  %v801 = vpop.permute.xlu0 %800
  %v803 = vmul.f32 %v726, %v707
  %v804 = vmul.f32 %v731, %v708
  %v805 = vmul.f32 %v736, %v709
  %v806 = vmul.f32 %v741, %v710
  %v807 = vmul.f32 %v746, %v711
  %v808 = vmul.f32 %v751, %v712
  %v809 = vmul.f32 %v756, %v713
  %v810 = vmul.f32 %v761, %v714
  %v811 = vmul.f32 %v766, %v715
  %v812 = vmul.f32 %v771, %v716
  %v813 = vmul.f32 %v776, %v717
  %v814 = vmul.f32 %v781, %v718
  %v815 = vmul.f32 %v786, %v719
  %v816 = vmul.f32 %v791, %v720
  %v817 = vmul.f32 %v796, %v721
  %v818 = vmul.f32 %v801, %v722
  %v819 = vpack.c.bf16 %v533, %v531
  %v820 = vpack.c.bf16 %v537, %v535
  %v821 = vpack.c.bf16 %v541, %v539
  %v822 = vpack.c.bf16 %v545, %v543
  %v823 = vpack.c.bf16 %v549, %v547
  %v824 = vpack.c.bf16 %v553, %v551
  %v825 = vpack.c.bf16 %v557, %v555
  %v826 = vpack.c.bf16 %v561, %v559
  %v827 = vld [vmem:[%s3] sm:$0xf]
  %v828 = vld [vmem:[%s3 + $0xc] sm:$0xf]
  %v829 = vld [vmem:[%s3 + $0x18] sm:$0xf]
  %v830 = vld [vmem:[%s3 + $0x24] sm:$0xf]
  %v831 = vld [vmem:[%s3 + $0x30] sm:$0xf]
  %v832 = vld [vmem:[%s3 + $0x3c] sm:$0xf]
  %v833 = vld [vmem:[%s3 + $0x48] sm:$0xf]
  %v834 = vld [vmem:[%s3 + $0x54] sm:$0xf]
  %v835 = vld [vmem:[%s3 + $0x60] sm:$0xf]
  %v836 = vld [vmem:[%s3 + $0x6c] sm:$0xf]
  %v837 = vld [vmem:[%s3 + $0x78] sm:$0xf]
  %v838 = vld [vmem:[%s3 + $0x84] sm:$0xf]
  %v839 = vld [vmem:[%s3 + $0x90] sm:$0xf]
  %v840 = vld [vmem:[%s3 + $0x9c] sm:$0xf]
  %v841 = vld [vmem:[%s3 + $0xa8] sm:$0xf]
  %v842 = vld [vmem:[%s3 + $0xb4] sm:$0xf]
  %v859 = vunpack.c.l.b16 %v827
  %v860 = vunpack.c.l.b16 %v828
  %v861 = vunpack.c.l.b16 %v829
  %v862 = vunpack.c.l.b16 %v830
  %v863 = vunpack.c.l.b16 %v831
  %v864 = vunpack.c.l.b16 %v832
  %v865 = vunpack.c.l.b16 %v833
  %v866 = vunpack.c.l.b16 %v834
  %v867 = vunpack.c.l.b16 %v835
  %v868 = vunpack.c.l.b16 %v836
  %v869 = vunpack.c.l.b16 %v837
  %v870 = vunpack.c.l.b16 %v838
  %v871 = vunpack.c.l.b16 %v839
  %v872 = vunpack.c.l.b16 %v840
  %v873 = vunpack.c.l.b16 %v841
  %v874 = vunpack.c.l.b16 %v842
  %v875 = vpack.c.b16 %v860, %v859
  %v876 = vpack.c.b16 %v862, %v861
  %v877 = vpack.c.b16 %v864, %v863
  %v878 = vpack.c.b16 %v866, %v865
  %v879 = vpack.c.b16 %v868, %v867
  %v880 = vpack.c.b16 %v870, %v869
  %v881 = vpack.c.b16 %v872, %v871
  %v882 = vpack.c.b16 %v874, %v873
  %891 = vmatprep.subr.bf16.mxu0 0
  %892 = vmatpush1.bf16.msra.mxu0 %v882
  %893 = vmatprep.subr.bf16.mxu0 0
  %894 = vmatpush1.bf16.msra.mxu0 %v881
  %895 = vmatprep.subr.bf16.mxu0 0
  %896 = vmatpush1.bf16.msra.mxu0 %v880
  %897 = vmatprep.subr.bf16.mxu0 0
  %898 = vmatpush1.bf16.msra.mxu0 %v879
  %899 = vmatprep.subr.bf16.mxu0 0
  %900 = vmatpush1.bf16.msra.mxu0 %v878
  %901 = vmatprep.subr.bf16.mxu0 0
  %902 = vmatpush1.bf16.msra.mxu0 %v877
  %903 = vmatprep.subr.bf16.mxu0 0
  %904 = vmatpush1.bf16.msra.mxu0 %v876
  %905 = vmatprep.subr.bf16.mxu0 0
  %906 = vmatpush1.bf16.msra.mxu0 %v875
  %907 = vmatprep.subr.bf16.mxu0 0
  %908 = vmatpush2.bf16.msra.mxu0 0
  %909 = vmatprep.subr.bf16.mxu0 0
  %910 = vmatpush2.bf16.msra.mxu0 0
  %911 = vmatprep.subr.bf16.mxu0 0
  %912 = vmatpush2.bf16.msra.mxu0 0
  %913 = vmatprep.subr.bf16.mxu0 0
  %914 = vmatpush2.bf16.msra.mxu0 0
  %915 = vmatprep.subr.bf16.mxu0 0
  %916 = vmatpush2.bf16.msra.mxu0 0
  %917 = vmatprep.subr.bf16.mxu0 0
  %918 = vmatpush2.bf16.msra.mxu0 0
  %919 = vmatprep.subr.bf16.mxu0 0
  %920 = vmatpush2.bf16.msra.mxu0 0
  %921 = vmatprep.subr.bf16.mxu0 0
  %922 = vmatpush2.bf16.msra.mxu0 0
  %923 = vmatprep.mubr.bf16.mxu0 0
  %924 = vmatmul.mubr.bf16.gmra.mxu0 %v819
  %v925 = vpop.f32.mrf.mxu0
  %v926 = vadd.f32 0.0, %v925
  %v927 = vpop.f32.mrf.mxu0
  %v928 = vpop.f32.mrf.mxu0
  %v929 = vadd.f32 0.0, %v928
  %v930 = vpop.f32.mrf.mxu0
  %931 = vmatprep.mubr.bf16.mxu0 0
  %932 = vmatmul.mubr.bf16.gmra.mxu0 %v820
  %v933 = vpop.f32.mrf.mxu0
  %v934 = vadd.f32 0.0, %v933
  %v935 = vpop.f32.mrf.mxu0
  %v936 = vpop.f32.mrf.mxu0
  %v937 = vadd.f32 0.0, %v936
  %v938 = vpop.f32.mrf.mxu0
  %939 = vmatprep.mubr.bf16.mxu0 0
  %940 = vmatmul.mubr.bf16.gmra.mxu0 %v821
  %v941 = vpop.f32.mrf.mxu0
  %v942 = vadd.f32 0.0, %v941
  %v943 = vpop.f32.mrf.mxu0
  %v944 = vpop.f32.mrf.mxu0
  %v945 = vadd.f32 0.0, %v944
  %v946 = vpop.f32.mrf.mxu0
  %947 = vmatprep.mubr.bf16.mxu0 0
  %948 = vmatmul.mubr.bf16.gmra.mxu0 %v822
  %v949 = vpop.f32.mrf.mxu0
  %v950 = vadd.f32 0.0, %v949
  %v951 = vpop.f32.mrf.mxu0
  %v952 = vpop.f32.mrf.mxu0
  %v953 = vadd.f32 0.0, %v952
  %v954 = vpop.f32.mrf.mxu0
  %955 = vmatprep.mubr.bf16.mxu0 0
  %956 = vmatmul.mubr.bf16.gmra.mxu0 %v823
  %v957 = vpop.f32.mrf.mxu0
  %v958 = vadd.f32 0.0, %v957
  %v959 = vpop.f32.mrf.mxu0
  %v960 = vpop.f32.mrf.mxu0
  %v961 = vadd.f32 0.0, %v960
  %v962 = vpop.f32.mrf.mxu0
  %963 = vmatprep.mubr.bf16.mxu0 0
  %964 = vmatmul.mubr.bf16.gmra.mxu0 %v824
  %v965 = vpop.f32.mrf.mxu0
  %v966 = vadd.f32 0.0, %v965
  %v967 = vpop.f32.mrf.mxu0
  %v968 = vpop.f32.mrf.mxu0
  %v969 = vadd.f32 0.0, %v968
  %v970 = vpop.f32.mrf.mxu0
  %971 = vmatprep.mubr.bf16.mxu0 0
  %972 = vmatmul.mubr.bf16.gmra.mxu0 %v825
  %v973 = vpop.f32.mrf.mxu0
  %v974 = vadd.f32 0.0, %v973
  %v975 = vpop.f32.mrf.mxu0
  %v976 = vpop.f32.mrf.mxu0
  %v977 = vadd.f32 0.0, %v976
  %v978 = vpop.f32.mrf.mxu0
  %979 = vmatprep.mubr.bf16.mxu0 0
  %980 = vmatmul.mubr.bf16.gmra.mxu0 %v826
  %v981 = vpop.f32.mrf.mxu0
  %v982 = vadd.f32 0.0, %v981
  %v983 = vpop.f32.mrf.mxu0
  %v984 = vpop.f32.mrf.mxu0
  %v985 = vadd.f32 0.0, %v984
  %v986 = vpop.f32.mrf.mxu0
  %987 = vdwg.mxu0
  %v988 = vadd.f32 %v803, %v926
  %v989 = vadd.f32 %v804, %v929
  %v990 = vadd.f32 %v805, %v934
  %v991 = vadd.f32 %v806, %v937
  %v992 = vadd.f32 %v807, %v942
  %v993 = vadd.f32 %v808, %v945
  %v994 = vadd.f32 %v809, %v950
  %v995 = vadd.f32 %v810, %v953
  %v996 = vadd.f32 %v811, %v958
  %v997 = vadd.f32 %v812, %v961
  %v998 = vadd.f32 %v813, %v966
  %v999 = vadd.f32 %v814, %v969
  %v1000 = vadd.f32 %v815, %v974
  %v1001 = vadd.f32 %v816, %v977
  %v1002 = vadd.f32 %v817, %v982
  %v1003 = vadd.f32 %v818, %v985
  %1004 = vst [vmem:[#allocation4] sm:$0xff] %v988
  %1005 = vst [vmem:[#allocation4 + $0x8] sm:$0xff] %v989
  %1006 = vst [vmem:[#allocation4 + $0x10] sm:$0xff] %v990
  %1007 = vst [vmem:[#allocation4 + $0x18] sm:$0xff] %v991
  %1008 = vst [vmem:[#allocation4 + $0x20] sm:$0xff] %v992
  %1009 = vst [vmem:[#allocation4 + $0x28] sm:$0xff] %v993
  %1010 = vst [vmem:[#allocation4 + $0x30] sm:$0xff] %v994
  %1011 = vst [vmem:[#allocation4 + $0x38] sm:$0xff] %v995
  %1012 = vst [vmem:[#allocation4 + $0x40] sm:$0xff] %v996
  %1013 = vst [vmem:[#allocation4 + $0x48] sm:$0xff] %v997
  %1014 = vst [vmem:[#allocation4 + $0x50] sm:$0xff] %v998
  %1015 = vst [vmem:[#allocation4 + $0x58] sm:$0xff] %v999
  %1016 = vst [vmem:[#allocation4 + $0x60] sm:$0xff] %v1000
  %1017 = vst [vmem:[#allocation4 + $0x68] sm:$0xff] %v1001
  %1018 = vst [vmem:[#allocation4 + $0x70] sm:$0xff] %v1002
  %1019 = vst [vmem:[#allocation4 + $0x78] sm:$0xff] %v1003
  %1020 = vst.msk [vmem:[#allocation2] sm:$0xff] %vm690, %v418
  %1021 = vst.msk [vmem:[#allocation2 + $0x8] sm:$0xff] %vm690, %v419
  %1022 = vst.msk [vmem:[#allocation2 + $0x10] sm:$0xff] %vm690, %v420
  %1023 = vst.msk [vmem:[#allocation2 + $0x18] sm:$0xff] %vm690, %v421
  %1024 = vst.msk [vmem:[#allocation2 + $0x20] sm:$0xff] %vm690, %v422
  %1025 = vst.msk [vmem:[#allocation2 + $0x28] sm:$0xff] %vm690, %v423
  %1026 = vst.msk [vmem:[#allocation2 + $0x30] sm:$0xff] %vm690, %v424
  %1027 = vst.msk [vmem:[#allocation2 + $0x38] sm:$0xff] %vm690, %v425
  %1028 = vst.msk [vmem:[#allocation2 + $0x40] sm:$0xff] %vm690, %v426
  %1029 = vst.msk [vmem:[#allocation2 + $0x48] sm:$0xff] %vm690, %v427
  %1030 = vst.msk [vmem:[#allocation2 + $0x50] sm:$0xff] %vm690, %v428
  %1031 = vst.msk [vmem:[#allocation2 + $0x58] sm:$0xff] %vm690, %v429
  %1032 = vst.msk [vmem:[#allocation2 + $0x60] sm:$0xff] %vm690, %v430
  %1033 = vst.msk [vmem:[#allocation2 + $0x68] sm:$0xff] %vm690, %v431
  %1034 = vst.msk [vmem:[#allocation2 + $0x70] sm:$0xff] %vm690, %v432
  %1035 = vst.msk [vmem:[#allocation2 + $0x78] sm:$0xff] %vm690, %v433
  %1036 = vset.pattern.permute.xlu0 1
  %1037 = vperm.xlu0 %1036, %v81
  %v1038 = vpop.permute.xlu0 %1037
  %1040 = vset.pattern.permute.xlu0 1
  %1041 = vperm.xlu0 %1040, %v82
  %v1042 = vpop.permute.xlu0 %1041
  %1044 = vset.pattern.permute.xlu0 1
  %1045 = vperm.xlu0 %1044, %v83
  %v1046 = vpop.permute.xlu0 %1045
  %1048 = vset.pattern.permute.xlu0 1
  %1049 = vperm.xlu0 %1048, %v84
  %v1050 = vpop.permute.xlu0 %1049
  %1052 = vset.pattern.permute.xlu0 1
  %1053 = vperm.xlu0 %1052, %v85
  %v1054 = vpop.permute.xlu0 %1053
  %1056 = vset.pattern.permute.xlu0 1
  %1057 = vperm.xlu0 %1056, %v86
  %v1058 = vpop.permute.xlu0 %1057
  %1060 = vset.pattern.permute.xlu0 1
  %1061 = vperm.xlu0 %1060, %v87
  %v1062 = vpop.permute.xlu0 %1061
  %1064 = vset.pattern.permute.xlu0 1
  %1065 = vperm.xlu0 %1064, %v88
  %v1066 = vpop.permute.xlu0 %1065
  %1068 = vset.pattern.permute.xlu0 1
  %1069 = vperm.xlu0 %1068, %v89
  %v1070 = vpop.permute.xlu0 %1069
  %1072 = vset.pattern.permute.xlu0 1
  %1073 = vperm.xlu0 %1072, %v90
  %v1074 = vpop.permute.xlu0 %1073
  %1076 = vset.pattern.permute.xlu0 1
  %1077 = vperm.xlu0 %1076, %v91
  %v1078 = vpop.permute.xlu0 %1077
  %1080 = vset.pattern.permute.xlu0 1
  %1081 = vperm.xlu0 %1080, %v92
  %v1082 = vpop.permute.xlu0 %1081
  %1084 = vset.pattern.permute.xlu0 1
  %1085 = vperm.xlu0 %1084, %v93
  %v1086 = vpop.permute.xlu0 %1085
  %1088 = vset.pattern.permute.xlu0 1
  %1089 = vperm.xlu0 %1088, %v94
  %v1090 = vpop.permute.xlu0 %1089
  %1092 = vset.pattern.permute.xlu0 1
  %1093 = vperm.xlu0 %1092, %v95
  %v1094 = vpop.permute.xlu0 %1093
  %1096 = vset.pattern.permute.xlu0 1
  %1097 = vperm.xlu0 %1096, %v96
  %v1098 = vpop.permute.xlu0 %1097
  %v1100 = vlaneseq
  %v1101 = vshrl.u32 %v1100, 7
  %v1102 = vsub.s32 1, %v1101
  %v1103 = vrot.slane %v97, %v1102
  %v1104 = vadd.f32 %v1038, %v1103
  %v1105 = vadd.f32 %v1042, %v1103
  %v1106 = vadd.f32 %v1046, %v1103
  %v1107 = vadd.f32 %v1050, %v1103
  %v1108 = vadd.f32 %v1054, %v1103
  %v1109 = vadd.f32 %v1058, %v1103
  %v1110 = vadd.f32 %v1062, %v1103
  %v1111 = vadd.f32 %v1066, %v1103
  %v1112 = vadd.f32 %v1070, %v1103
  %v1113 = vadd.f32 %v1074, %v1103
  %v1114 = vadd.f32 %v1078, %v1103
  %v1115 = vadd.f32 %v1082, %v1103
  %v1116 = vadd.f32 %v1086, %v1103
  %v1117 = vadd.f32 %v1090, %v1103
  %v1118 = vadd.f32 %v1094, %v1103
  %v1119 = vadd.f32 %v1098, %v1103
  %v1120 = vmul.f32 %v1104, 0.2
  %v1121 = vmul.f32 %v1105, 0.2
  %v1122 = vmul.f32 %v1106, 0.2
  %v1123 = vmul.f32 %v1107, 0.2
  %v1124 = vmul.f32 %v1108, 0.2
  %v1125 = vmul.f32 %v1109, 0.2
  %v1126 = vmul.f32 %v1110, 0.2
  %v1127 = vmul.f32 %v1111, 0.2
  %v1128 = vmul.f32 %v1112, 0.2
  %v1129 = vmul.f32 %v1113, 0.2
  %v1130 = vmul.f32 %v1114, 0.2
  %v1131 = vmul.f32 %v1115, 0.2
  %v1132 = vmul.f32 %v1116, 0.2
  %v1133 = vmul.f32 %v1117, 0.2
  %v1134 = vmul.f32 %v1118, 0.2
  %v1135 = vmul.f32 %v1119, 0.2
  %v1136 = vmax.f32 %v1104, %v1120
  %v1137 = vmax.f32 %v1105, %v1121
  %v1138 = vmax.f32 %v1106, %v1122
  %v1139 = vmax.f32 %v1107, %v1123
  %v1140 = vmax.f32 %v1108, %v1124
  %v1141 = vmax.f32 %v1109, %v1125
  %v1142 = vmax.f32 %v1110, %v1126
  %v1143 = vmax.f32 %v1111, %v1127
  %v1144 = vmax.f32 %v1112, %v1128
  %v1145 = vmax.f32 %v1113, %v1129
  %v1146 = vmax.f32 %v1114, %v1130
  %v1147 = vmax.f32 %v1115, %v1131
  %v1148 = vmax.f32 %v1116, %v1132
  %v1149 = vmax.f32 %v1117, %v1133
  %v1150 = vmax.f32 %v1118, %v1134
  %v1151 = vmax.f32 %v1119, %v1135
  %s1152 = scalar_lea.vmem %s0, 32
  %v1153 = vld [vmem:[%s1152] sm:$0xff]
  %v1154 = vld [vmem:[%s1152 + $0x8] sm:$0xff]
  %v1155 = vld [vmem:[%s1152 + $0x10] sm:$0xff]
  %v1156 = vld [vmem:[%s1152 + $0x18] sm:$0xff]
  %vm1157 = vnez %v1153
  %vm1158 = vnez %v1154
  %vm1159 = vnez %v1155
  %vm1160 = vnez %v1156
  %v1161 = vsel %vm1157, 16843009, 0
  %v1162 = vsel %vm1158, 16843009, 0
  %v1163 = vsel %vm1159, 16843009, 0
  %v1164 = vsel %vm1160, 16843009, 0
  %v1165 = vunpack.c.0.s8 %v1161
  %v1166 = vunpack.c.1.s8 %v1161
  %v1167 = vunpack.c.2.s8 %v1161
  %v1168 = vunpack.c.3.s8 %v1161
  %v1169 = vunpack.c.0.s8 %v1162
  %v1170 = vunpack.c.1.s8 %v1162
  %v1171 = vunpack.c.2.s8 %v1162
  %v1172 = vunpack.c.3.s8 %v1162
  %v1173 = vunpack.c.0.s8 %v1163
  %v1174 = vunpack.c.1.s8 %v1163
  %v1175 = vunpack.c.2.s8 %v1163
  %v1176 = vunpack.c.3.s8 %v1163
  %v1177 = vunpack.c.0.s8 %v1164
  %v1178 = vunpack.c.1.s8 %v1164
  %v1179 = vunpack.c.2.s8 %v1164
  %v1180 = vunpack.c.3.s8 %v1164
  %v1181 = vpack.c.b16 %v1165, %v1165
  %v1182 = vpack.c.b8 %v1181, %v1181
  %v1183 = vpack.c.b16 %v1166, %v1166
  %v1184 = vpack.c.b8 %v1183, %v1183
  %v1185 = vpack.c.b16 %v1167, %v1167
  %v1186 = vpack.c.b8 %v1185, %v1185
  %v1187 = vpack.c.b16 %v1168, %v1168
  %v1188 = vpack.c.b8 %v1187, %v1187
  %v1189 = vpack.c.b16 %v1169, %v1169
  %v1190 = vpack.c.b8 %v1189, %v1189
  %v1191 = vpack.c.b16 %v1170, %v1170
  %v1192 = vpack.c.b8 %v1191, %v1191
  %v1193 = vpack.c.b16 %v1171, %v1171
  %v1194 = vpack.c.b8 %v1193, %v1193
  %v1195 = vpack.c.b16 %v1172, %v1172
  %v1196 = vpack.c.b8 %v1195, %v1195
  %v1197 = vpack.c.b16 %v1173, %v1173
  %v1198 = vpack.c.b8 %v1197, %v1197
  %v1199 = vpack.c.b16 %v1174, %v1174
  %v1200 = vpack.c.b8 %v1199, %v1199
  %v1201 = vpack.c.b16 %v1175, %v1175
  %v1202 = vpack.c.b8 %v1201, %v1201
  %v1203 = vpack.c.b16 %v1176, %v1176
  %v1204 = vpack.c.b8 %v1203, %v1203
  %v1205 = vpack.c.b16 %v1177, %v1177
  %v1206 = vpack.c.b8 %v1205, %v1205
  %v1207 = vpack.c.b16 %v1178, %v1178
  %v1208 = vpack.c.b8 %v1207, %v1207
  %v1209 = vpack.c.b16 %v1179, %v1179
  %v1210 = vpack.c.b8 %v1209, %v1209
  %v1211 = vpack.c.b16 %v1180, %v1180
  %v1212 = vpack.c.b8 %v1211, %v1211
  %vm1213 = vnez %v1182
  %vm1214 = vnez %v1184
  %vm1215 = vnez %v1186
  %vm1216 = vnez %v1188
  %vm1217 = vnez %v1190
  %vm1218 = vnez %v1192
  %vm1219 = vnez %v1194
  %vm1220 = vnez %v1196
  %vm1221 = vnez %v1198
  %vm1222 = vnez %v1200
  %vm1223 = vnez %v1202
  %vm1224 = vnez %v1204
  %vm1225 = vnez %v1206
  %vm1226 = vnez %v1208
  %vm1227 = vnez %v1210
  %vm1228 = vnez %v1212
  %v1229 = vsel %vm1213, 16843009, 0
  %v1230 = vsel %vm1214, 16843009, 0
  %v1231 = vsel %vm1215, 16843009, 0
  %v1232 = vsel %vm1216, 16843009, 0
  %v1233 = vsel %vm1217, 16843009, 0
  %v1234 = vsel %vm1218, 16843009, 0
  %v1235 = vsel %vm1219, 16843009, 0
  %v1236 = vsel %vm1220, 16843009, 0
  %v1237 = vsel %vm1221, 16843009, 0
  %v1238 = vsel %vm1222, 16843009, 0
  %v1239 = vsel %vm1223, 16843009, 0
  %v1240 = vsel %vm1224, 16843009, 0
  %v1241 = vsel %vm1225, 16843009, 0
  %v1242 = vsel %vm1226, 16843009, 0
  %v1243 = vsel %vm1227, 16843009, 0
  %v1244 = vsel %vm1228, 16843009, 0
  %v1245 = vunpack.c.0.s8 %v1229
  %v1246 = vunpack.c.0.s8 %v1230
  %v1247 = vunpack.c.0.s8 %v1231
  %v1248 = vunpack.c.0.s8 %v1232
  %v1249 = vunpack.c.0.s8 %v1233
  %v1250 = vunpack.c.0.s8 %v1234
  %v1251 = vunpack.c.0.s8 %v1235
  %v1252 = vunpack.c.0.s8 %v1236
  %v1253 = vunpack.c.0.s8 %v1237
  %v1254 = vunpack.c.0.s8 %v1238
  %v1255 = vunpack.c.0.s8 %v1239
  %v1256 = vunpack.c.0.s8 %v1240
  %v1257 = vunpack.c.0.s8 %v1241
  %v1258 = vunpack.c.0.s8 %v1242
  %v1259 = vunpack.c.0.s8 %v1243
  %v1260 = vunpack.c.0.s8 %v1244
  %vm1261 = vcmp.ne.s32.totalorder %v1245, 0
  %vm1262 = vcmp.ne.s32.totalorder %v1246, 0
  %vm1263 = vcmp.ne.s32.totalorder %v1247, 0
  %vm1264 = vcmp.ne.s32.totalorder %v1248, 0
  %vm1265 = vcmp.ne.s32.totalorder %v1249, 0
  %vm1266 = vcmp.ne.s32.totalorder %v1250, 0
  %vm1267 = vcmp.ne.s32.totalorder %v1251, 0
  %vm1268 = vcmp.ne.s32.totalorder %v1252, 0
  %vm1269 = vcmp.ne.s32.totalorder %v1253, 0
  %vm1270 = vcmp.ne.s32.totalorder %v1254, 0
  %vm1271 = vcmp.ne.s32.totalorder %v1255, 0
  %vm1272 = vcmp.ne.s32.totalorder %v1256, 0
  %vm1273 = vcmp.ne.s32.totalorder %v1257, 0
  %vm1274 = vcmp.ne.s32.totalorder %v1258, 0
  %vm1275 = vcmp.ne.s32.totalorder %v1259, 0
  %vm1276 = vcmp.ne.s32.totalorder %v1260, 0
  %v1277 = vsel %vm1261, %v1136, -1e+30
  %v1278 = vsel %vm1262, %v1137, -1e+30
  %v1279 = vsel %vm1263, %v1138, -1e+30
  %v1280 = vsel %vm1264, %v1139, -1e+30
  %v1281 = vsel %vm1265, %v1140, -1e+30
  %v1282 = vsel %vm1266, %v1141, -1e+30
  %v1283 = vsel %vm1267, %v1142, -1e+30
  %v1284 = vsel %vm1268, %v1143, -1e+30
  %v1285 = vsel %vm1269, %v1144, -1e+30
  %v1286 = vsel %vm1270, %v1145, -1e+30
  %v1287 = vsel %vm1271, %v1146, -1e+30
  %v1288 = vsel %vm1272, %v1147, -1e+30
  %v1289 = vsel %vm1273, %v1148, -1e+30
  %v1290 = vsel %vm1274, %v1149, -1e+30
  %v1291 = vsel %vm1275, %v1150, -1e+30
  %v1292 = vsel %vm1276, %v1151, -1e+30
  %v1293 = vld [vmem:[#allocation2] sm:$0xff]
  %v1294 = vld [vmem:[#allocation2 + $0x8] sm:$0xff]
  %v1295 = vld [vmem:[#allocation2 + $0x10] sm:$0xff]
  %v1296 = vld [vmem:[#allocation2 + $0x18] sm:$0xff]
  %v1297 = vld [vmem:[#allocation2 + $0x20] sm:$0xff]
  %v1298 = vld [vmem:[#allocation2 + $0x28] sm:$0xff]
  %v1299 = vld [vmem:[#allocation2 + $0x30] sm:$0xff]
  %v1300 = vld [vmem:[#allocation2 + $0x38] sm:$0xff]
  %v1301 = vld [vmem:[#allocation2 + $0x40] sm:$0xff]
  %v1302 = vld [vmem:[#allocation2 + $0x48] sm:$0xff]
  %v1303 = vld [vmem:[#allocation2 + $0x50] sm:$0xff]
  %v1304 = vld [vmem:[#allocation2 + $0x58] sm:$0xff]
  %v1305 = vld [vmem:[#allocation2 + $0x60] sm:$0xff]
  %v1306 = vld [vmem:[#allocation2 + $0x68] sm:$0xff]
  %v1307 = vld [vmem:[#allocation2 + $0x70] sm:$0xff]
  %v1308 = vld [vmem:[#allocation2 + $0x78] sm:$0xff]
  %1309 = vmax.xlane.f32.xlu0 %v1277
  %v1310 = vpop.xlane.xlu0 %1309
  %1311 = vmax.xlane.f32.xlu0 %v1278
  %v1312 = vpop.xlane.xlu0 %1311
  %1313 = vmax.xlane.f32.xlu0 %v1279
  %v1314 = vpop.xlane.xlu0 %1313
  %1315 = vmax.xlane.f32.xlu0 %v1280
  %v1316 = vpop.xlane.xlu0 %1315
  %1317 = vmax.xlane.f32.xlu0 %v1281
  %v1318 = vpop.xlane.xlu0 %1317
  %1319 = vmax.xlane.f32.xlu0 %v1282
  %v1320 = vpop.xlane.xlu0 %1319
  %1321 = vmax.xlane.f32.xlu0 %v1283
  %v1322 = vpop.xlane.xlu0 %1321
  %1323 = vmax.xlane.f32.xlu0 %v1284
  %v1324 = vpop.xlane.xlu0 %1323
  %1325 = vmax.xlane.f32.xlu0 %v1285
  %v1326 = vpop.xlane.xlu0 %1325
  %1327 = vmax.xlane.f32.xlu0 %v1286
  %v1328 = vpop.xlane.xlu0 %1327
  %1329 = vmax.xlane.f32.xlu0 %v1287
  %v1330 = vpop.xlane.xlu0 %1329
  %1331 = vmax.xlane.f32.xlu0 %v1288
  %v1332 = vpop.xlane.xlu0 %1331
  %1333 = vmax.xlane.f32.xlu0 %v1289
  %v1334 = vpop.xlane.xlu0 %1333
  %1335 = vmax.xlane.f32.xlu0 %v1290
  %v1336 = vpop.xlane.xlu0 %1335
  %1337 = vmax.xlane.f32.xlu0 %v1291
  %v1338 = vpop.xlane.xlu0 %1337
  %1339 = vmax.xlane.f32.xlu0 %v1292
  %v1340 = vpop.xlane.xlu0 %1339
  %v1341 = vmax.f32 %v1293, %v1310
  %v1342 = vmax.f32 %v1294, %v1312
  %v1343 = vmax.f32 %v1295, %v1314
  %v1344 = vmax.f32 %v1296, %v1316
  %v1345 = vmax.f32 %v1297, %v1318
  %v1346 = vmax.f32 %v1298, %v1320
  %v1347 = vmax.f32 %v1299, %v1322
  %v1348 = vmax.f32 %v1300, %v1324
  %v1349 = vmax.f32 %v1301, %v1326
  %v1350 = vmax.f32 %v1302, %v1328
  %v1351 = vmax.f32 %v1303, %v1330
  %v1352 = vmax.f32 %v1304, %v1332
  %v1353 = vmax.f32 %v1305, %v1334
  %v1354 = vmax.f32 %v1306, %v1336
  %v1355 = vmax.f32 %v1307, %v1338
  %v1356 = vmax.f32 %v1308, %v1340
  %1358 = vset.pattern.permute.xlu0 0
  %1359 = vperm.xlu0 %1358, %v1341
  %v1360 = vpop.permute.xlu0 %1359
  %1363 = vset.pattern.permute.xlu0 0
  %1364 = vperm.xlu0 %1363, %v1342
  %v1365 = vpop.permute.xlu0 %1364
  %1368 = vset.pattern.permute.xlu0 0
  %1369 = vperm.xlu0 %1368, %v1343
  %v1370 = vpop.permute.xlu0 %1369
  %1373 = vset.pattern.permute.xlu0 0
  %1374 = vperm.xlu0 %1373, %v1344
  %v1375 = vpop.permute.xlu0 %1374
  %1378 = vset.pattern.permute.xlu0 0
  %1379 = vperm.xlu0 %1378, %v1345
  %v1380 = vpop.permute.xlu0 %1379
  %1383 = vset.pattern.permute.xlu0 0
  %1384 = vperm.xlu0 %1383, %v1346
  %v1385 = vpop.permute.xlu0 %1384
  %1388 = vset.pattern.permute.xlu0 0
  %1389 = vperm.xlu0 %1388, %v1347
  %v1390 = vpop.permute.xlu0 %1389
  %1393 = vset.pattern.permute.xlu0 0
  %1394 = vperm.xlu0 %1393, %v1348
  %v1395 = vpop.permute.xlu0 %1394
  %1398 = vset.pattern.permute.xlu0 0
  %1399 = vperm.xlu0 %1398, %v1349
  %v1400 = vpop.permute.xlu0 %1399
  %1403 = vset.pattern.permute.xlu0 0
  %1404 = vperm.xlu0 %1403, %v1350
  %v1405 = vpop.permute.xlu0 %1404
  %1408 = vset.pattern.permute.xlu0 0
  %1409 = vperm.xlu0 %1408, %v1351
  %v1410 = vpop.permute.xlu0 %1409
  %1413 = vset.pattern.permute.xlu0 0
  %1414 = vperm.xlu0 %1413, %v1352
  %v1415 = vpop.permute.xlu0 %1414
  %1418 = vset.pattern.permute.xlu0 0
  %1419 = vperm.xlu0 %1418, %v1353
  %v1420 = vpop.permute.xlu0 %1419
  %1423 = vset.pattern.permute.xlu0 0
  %1424 = vperm.xlu0 %1423, %v1354
  %v1425 = vpop.permute.xlu0 %1424
  %1428 = vset.pattern.permute.xlu0 0
  %1429 = vperm.xlu0 %1428, %v1355
  %v1430 = vpop.permute.xlu0 %1429
  %1433 = vset.pattern.permute.xlu0 0
  %1434 = vperm.xlu0 %1433, %v1356
  %v1435 = vpop.permute.xlu0 %1434
  %v1437 = vsub.f32 %v1277, %v1360
  %v1438 = vsub.f32 %v1278, %v1365
  %v1439 = vsub.f32 %v1279, %v1370
  %v1440 = vsub.f32 %v1280, %v1375
  %v1441 = vsub.f32 %v1281, %v1380
  %v1442 = vsub.f32 %v1282, %v1385
  %v1443 = vsub.f32 %v1283, %v1390
  %v1444 = vsub.f32 %v1284, %v1395
  %v1445 = vsub.f32 %v1285, %v1400
  %v1446 = vsub.f32 %v1286, %v1405
  %v1447 = vsub.f32 %v1287, %v1410
  %v1448 = vsub.f32 %v1288, %v1415
  %v1449 = vsub.f32 %v1289, %v1420
  %v1450 = vsub.f32 %v1290, %v1425
  %v1451 = vsub.f32 %v1291, %v1430
  %v1452 = vsub.f32 %v1292, %v1435
  %v1453 = vmul.f32 %v1437, 1.442695
  %v1454 = vpow.pop %v1453
  %v1455 = vmul.f32 %v1438, 1.442695
  %v1456 = vpow.pop %v1455
  %v1457 = vmul.f32 %v1439, 1.442695
  %v1458 = vpow.pop %v1457
  %v1459 = vmul.f32 %v1440, 1.442695
  %v1460 = vpow.pop %v1459
  %v1461 = vmul.f32 %v1441, 1.442695
  %v1462 = vpow.pop %v1461
  %v1463 = vmul.f32 %v1442, 1.442695
  %v1464 = vpow.pop %v1463
  %v1465 = vmul.f32 %v1443, 1.442695
  %v1466 = vpow.pop %v1465
  %v1467 = vmul.f32 %v1444, 1.442695
  %v1468 = vpow.pop %v1467
  %v1469 = vmul.f32 %v1445, 1.442695
  %v1470 = vpow.pop %v1469
  %v1471 = vmul.f32 %v1446, 1.442695
  %v1472 = vpow.pop %v1471
  %v1473 = vmul.f32 %v1447, 1.442695
  %v1474 = vpow.pop %v1473
  %v1475 = vmul.f32 %v1448, 1.442695
  %v1476 = vpow.pop %v1475
  %v1477 = vmul.f32 %v1449, 1.442695
  %v1478 = vpow.pop %v1477
  %v1479 = vmul.f32 %v1450, 1.442695
  %v1480 = vpow.pop %v1479
  %v1481 = vmul.f32 %v1451, 1.442695
  %v1482 = vpow.pop %v1481
  %v1483 = vmul.f32 %v1452, 1.442695
  %v1484 = vpow.pop %v1483
  %v1485 = vsub.f32 %v1293, %v1341
  %v1486 = vsub.f32 %v1294, %v1342
  %v1487 = vsub.f32 %v1295, %v1343
  %v1488 = vsub.f32 %v1296, %v1344
  %v1489 = vsub.f32 %v1297, %v1345
  %v1490 = vsub.f32 %v1298, %v1346
  %v1491 = vsub.f32 %v1299, %v1347
  %v1492 = vsub.f32 %v1300, %v1348
  %v1493 = vsub.f32 %v1301, %v1349
  %v1494 = vsub.f32 %v1302, %v1350
  %v1495 = vsub.f32 %v1303, %v1351
  %v1496 = vsub.f32 %v1304, %v1352
  %v1497 = vsub.f32 %v1305, %v1353
  %v1498 = vsub.f32 %v1306, %v1354
  %v1499 = vsub.f32 %v1307, %v1355
  %v1500 = vsub.f32 %v1308, %v1356
  %v1501 = vmul.f32 %v1485, 1.442695
  %v1502 = vpow.pop %v1501
  %v1503 = vmul.f32 %v1486, 1.442695
  %v1504 = vpow.pop %v1503
  %v1505 = vmul.f32 %v1487, 1.442695
  %v1506 = vpow.pop %v1505
  %v1507 = vmul.f32 %v1488, 1.442695
  %v1508 = vpow.pop %v1507
  %v1509 = vmul.f32 %v1489, 1.442695
  %v1510 = vpow.pop %v1509
  %v1511 = vmul.f32 %v1490, 1.442695
  %v1512 = vpow.pop %v1511
  %v1513 = vmul.f32 %v1491, 1.442695
  %v1514 = vpow.pop %v1513
  %v1515 = vmul.f32 %v1492, 1.442695
  %v1516 = vpow.pop %v1515
  %v1517 = vmul.f32 %v1493, 1.442695
  %v1518 = vpow.pop %v1517
  %v1519 = vmul.f32 %v1494, 1.442695
  %v1520 = vpow.pop %v1519
  %v1521 = vmul.f32 %v1495, 1.442695
  %v1522 = vpow.pop %v1521
  %v1523 = vmul.f32 %v1496, 1.442695
  %v1524 = vpow.pop %v1523
  %v1525 = vmul.f32 %v1497, 1.442695
  %v1526 = vpow.pop %v1525
  %v1527 = vmul.f32 %v1498, 1.442695
  %v1528 = vpow.pop %v1527
  %v1529 = vmul.f32 %v1499, 1.442695
  %v1530 = vpow.pop %v1529
  %v1531 = vmul.f32 %v1500, 1.442695
  %v1532 = vpow.pop %v1531
  %v1533 = vld [vmem:[#allocation3] sm:$0xff]
  %v1534 = vld [vmem:[#allocation3 + $0x8] sm:$0xff]
  %v1535 = vld [vmem:[#allocation3 + $0x10] sm:$0xff]
  %v1536 = vld [vmem:[#allocation3 + $0x18] sm:$0xff]
  %v1537 = vld [vmem:[#allocation3 + $0x20] sm:$0xff]
  %v1538 = vld [vmem:[#allocation3 + $0x28] sm:$0xff]
  %v1539 = vld [vmem:[#allocation3 + $0x30] sm:$0xff]
  %v1540 = vld [vmem:[#allocation3 + $0x38] sm:$0xff]
  %v1541 = vld [vmem:[#allocation3 + $0x40] sm:$0xff]
  %v1542 = vld [vmem:[#allocation3 + $0x48] sm:$0xff]
  %v1543 = vld [vmem:[#allocation3 + $0x50] sm:$0xff]
  %v1544 = vld [vmem:[#allocation3 + $0x58] sm:$0xff]
  %v1545 = vld [vmem:[#allocation3 + $0x60] sm:$0xff]
  %v1546 = vld [vmem:[#allocation3 + $0x68] sm:$0xff]
  %v1547 = vld [vmem:[#allocation3 + $0x70] sm:$0xff]
  %v1548 = vld [vmem:[#allocation3 + $0x78] sm:$0xff]
  %v1549 = vmul.f32 %v1502, %v1533
  %v1550 = vmul.f32 %v1504, %v1534
  %v1551 = vmul.f32 %v1506, %v1535
  %v1552 = vmul.f32 %v1508, %v1536
  %v1553 = vmul.f32 %v1510, %v1537
  %v1554 = vmul.f32 %v1512, %v1538
  %v1555 = vmul.f32 %v1514, %v1539
  %v1556 = vmul.f32 %v1516, %v1540
  %v1557 = vmul.f32 %v1518, %v1541
  %v1558 = vmul.f32 %v1520, %v1542
  %v1559 = vmul.f32 %v1522, %v1543
  %v1560 = vmul.f32 %v1524, %v1544
  %v1561 = vmul.f32 %v1526, %v1545
  %v1562 = vmul.f32 %v1528, %v1546
  %v1563 = vmul.f32 %v1530, %v1547
  %v1564 = vmul.f32 %v1532, %v1548
  %1565 = vadd.xlane.f32.xlu0 %v1454
  %v1566 = vpop.xlane.xlu0 %1565
  %1567 = vadd.xlane.f32.xlu0 %v1456
  %v1568 = vpop.xlane.xlu0 %1567
  %1569 = vadd.xlane.f32.xlu0 %v1458
  %v1570 = vpop.xlane.xlu0 %1569
  %1571 = vadd.xlane.f32.xlu0 %v1460
  %v1572 = vpop.xlane.xlu0 %1571
  %1573 = vadd.xlane.f32.xlu0 %v1462
  %v1574 = vpop.xlane.xlu0 %1573
  %1575 = vadd.xlane.f32.xlu0 %v1464
  %v1576 = vpop.xlane.xlu0 %1575
  %1577 = vadd.xlane.f32.xlu0 %v1466
  %v1578 = vpop.xlane.xlu0 %1577
  %1579 = vadd.xlane.f32.xlu0 %v1468
  %v1580 = vpop.xlane.xlu0 %1579
  %1581 = vadd.xlane.f32.xlu0 %v1470
  %v1582 = vpop.xlane.xlu0 %1581
  %1583 = vadd.xlane.f32.xlu0 %v1472
  %v1584 = vpop.xlane.xlu0 %1583
  %1585 = vadd.xlane.f32.xlu0 %v1474
  %v1586 = vpop.xlane.xlu0 %1585
  %1587 = vadd.xlane.f32.xlu0 %v1476
  %v1588 = vpop.xlane.xlu0 %1587
  %1589 = vadd.xlane.f32.xlu0 %v1478
  %v1590 = vpop.xlane.xlu0 %1589
  %1591 = vadd.xlane.f32.xlu0 %v1480
  %v1592 = vpop.xlane.xlu0 %1591
  %1593 = vadd.xlane.f32.xlu0 %v1482
  %v1594 = vpop.xlane.xlu0 %1593
  %1595 = vadd.xlane.f32.xlu0 %v1484
  %v1596 = vpop.xlane.xlu0 %1595
  %v1597 = vadd.f32 %v1549, %v1566
  %v1598 = vadd.f32 %v1550, %v1568
  %v1599 = vadd.f32 %v1551, %v1570
  %v1600 = vadd.f32 %v1552, %v1572
  %v1601 = vadd.f32 %v1553, %v1574
  %v1602 = vadd.f32 %v1554, %v1576
  %v1603 = vadd.f32 %v1555, %v1578
  %v1604 = vadd.f32 %v1556, %v1580
  %v1605 = vadd.f32 %v1557, %v1582
  %v1606 = vadd.f32 %v1558, %v1584
  %v1607 = vadd.f32 %v1559, %v1586
  %v1608 = vadd.f32 %v1560, %v1588
  %v1609 = vadd.f32 %v1561, %v1590
  %v1610 = vadd.f32 %v1562, %v1592
  %v1611 = vadd.f32 %v1563, %v1594
  %v1612 = vadd.f32 %v1564, %v1596
  %1613 = vst.msk [vmem:[#allocation3] sm:$0xff] %vm690, %v1597
  %1614 = vst.msk [vmem:[#allocation3 + $0x8] sm:$0xff] %vm690, %v1598
  %1615 = vst.msk [vmem:[#allocation3 + $0x10] sm:$0xff] %vm690, %v1599
  %1616 = vst.msk [vmem:[#allocation3 + $0x18] sm:$0xff] %vm690, %v1600
  %1617 = vst.msk [vmem:[#allocation3 + $0x20] sm:$0xff] %vm690, %v1601
  %1618 = vst.msk [vmem:[#allocation3 + $0x28] sm:$0xff] %vm690, %v1602
  %1619 = vst.msk [vmem:[#allocation3 + $0x30] sm:$0xff] %vm690, %v1603
  %1620 = vst.msk [vmem:[#allocation3 + $0x38] sm:$0xff] %vm690, %v1604
  %1621 = vst.msk [vmem:[#allocation3 + $0x40] sm:$0xff] %vm690, %v1605
  %1622 = vst.msk [vmem:[#allocation3 + $0x48] sm:$0xff] %vm690, %v1606
  %1623 = vst.msk [vmem:[#allocation3 + $0x50] sm:$0xff] %vm690, %v1607
  %1624 = vst.msk [vmem:[#allocation3 + $0x58] sm:$0xff] %vm690, %v1608
  %1625 = vst.msk [vmem:[#allocation3 + $0x60] sm:$0xff] %vm690, %v1609
  %1626 = vst.msk [vmem:[#allocation3 + $0x68] sm:$0xff] %vm690, %v1610
  %1627 = vst.msk [vmem:[#allocation3 + $0x70] sm:$0xff] %vm690, %v1611
  %1628 = vst.msk [vmem:[#allocation3 + $0x78] sm:$0xff] %vm690, %v1612
  %v1629 = vld [vmem:[#allocation4] sm:$0xff]
  %v1630 = vld [vmem:[#allocation4 + $0x8] sm:$0xff]
  %v1631 = vld [vmem:[#allocation4 + $0x10] sm:$0xff]
  %v1632 = vld [vmem:[#allocation4 + $0x18] sm:$0xff]
  %v1633 = vld [vmem:[#allocation4 + $0x20] sm:$0xff]
  %v1634 = vld [vmem:[#allocation4 + $0x28] sm:$0xff]
  %v1635 = vld [vmem:[#allocation4 + $0x30] sm:$0xff]
  %v1636 = vld [vmem:[#allocation4 + $0x38] sm:$0xff]
  %v1637 = vld [vmem:[#allocation4 + $0x40] sm:$0xff]
  %v1638 = vld [vmem:[#allocation4 + $0x48] sm:$0xff]
  %v1639 = vld [vmem:[#allocation4 + $0x50] sm:$0xff]
  %v1640 = vld [vmem:[#allocation4 + $0x58] sm:$0xff]
  %v1641 = vld [vmem:[#allocation4 + $0x60] sm:$0xff]
  %v1642 = vld [vmem:[#allocation4 + $0x68] sm:$0xff]
  %v1643 = vld [vmem:[#allocation4 + $0x70] sm:$0xff]
  %v1644 = vld [vmem:[#allocation4 + $0x78] sm:$0xff]
  %1646 = vset.pattern.permute.xlu0 0
  %1647 = vperm.xlu0 %1646, %v1502
  %v1648 = vpop.permute.xlu0 %1647
  %1651 = vset.pattern.permute.xlu0 0
  %1652 = vperm.xlu0 %1651, %v1504
  %v1653 = vpop.permute.xlu0 %1652
  %1656 = vset.pattern.permute.xlu0 0
  %1657 = vperm.xlu0 %1656, %v1506
  %v1658 = vpop.permute.xlu0 %1657
  %1661 = vset.pattern.permute.xlu0 0
  %1662 = vperm.xlu0 %1661, %v1508
  %v1663 = vpop.permute.xlu0 %1662
  %1666 = vset.pattern.permute.xlu0 0
  %1667 = vperm.xlu0 %1666, %v1510
  %v1668 = vpop.permute.xlu0 %1667
  %1671 = vset.pattern.permute.xlu0 0
  %1672 = vperm.xlu0 %1671, %v1512
  %v1673 = vpop.permute.xlu0 %1672
  %1676 = vset.pattern.permute.xlu0 0
  %1677 = vperm.xlu0 %1676, %v1514
  %v1678 = vpop.permute.xlu0 %1677
  %1681 = vset.pattern.permute.xlu0 0
  %1682 = vperm.xlu0 %1681, %v1516
  %v1683 = vpop.permute.xlu0 %1682
  %1686 = vset.pattern.permute.xlu0 0
  %1687 = vperm.xlu0 %1686, %v1518
  %v1688 = vpop.permute.xlu0 %1687
  %1691 = vset.pattern.permute.xlu0 0
  %1692 = vperm.xlu0 %1691, %v1520
  %v1693 = vpop.permute.xlu0 %1692
  %1696 = vset.pattern.permute.xlu0 0
  %1697 = vperm.xlu0 %1696, %v1522
  %v1698 = vpop.permute.xlu0 %1697
  %1701 = vset.pattern.permute.xlu0 0
  %1702 = vperm.xlu0 %1701, %v1524
  %v1703 = vpop.permute.xlu0 %1702
  %1706 = vset.pattern.permute.xlu0 0
  %1707 = vperm.xlu0 %1706, %v1526
  %v1708 = vpop.permute.xlu0 %1707
  %1711 = vset.pattern.permute.xlu0 0
  %1712 = vperm.xlu0 %1711, %v1528
  %v1713 = vpop.permute.xlu0 %1712
  %1716 = vset.pattern.permute.xlu0 0
  %1717 = vperm.xlu0 %1716, %v1530
  %v1718 = vpop.permute.xlu0 %1717
  %1721 = vset.pattern.permute.xlu0 0
  %1722 = vperm.xlu0 %1721, %v1532
  %v1723 = vpop.permute.xlu0 %1722
  %v1725 = vmul.f32 %v1648, %v1629
  %v1726 = vmul.f32 %v1653, %v1630
  %v1727 = vmul.f32 %v1658, %v1631
  %v1728 = vmul.f32 %v1663, %v1632
  %v1729 = vmul.f32 %v1668, %v1633
  %v1730 = vmul.f32 %v1673, %v1634
  %v1731 = vmul.f32 %v1678, %v1635
  %v1732 = vmul.f32 %v1683, %v1636
  %v1733 = vmul.f32 %v1688, %v1637
  %v1734 = vmul.f32 %v1693, %v1638
  %v1735 = vmul.f32 %v1698, %v1639
  %v1736 = vmul.f32 %v1703, %v1640
  %v1737 = vmul.f32 %v1708, %v1641
  %v1738 = vmul.f32 %v1713, %v1642
  %v1739 = vmul.f32 %v1718, %v1643
  %v1740 = vmul.f32 %v1723, %v1644
  %v1741 = vpack.c.bf16 %v1456, %v1454
  %v1742 = vpack.c.bf16 %v1460, %v1458
  %v1743 = vpack.c.bf16 %v1464, %v1462
  %v1744 = vpack.c.bf16 %v1468, %v1466
  %v1745 = vpack.c.bf16 %v1472, %v1470
  %v1746 = vpack.c.bf16 %v1476, %v1474
  %v1747 = vpack.c.bf16 %v1480, %v1478
  %v1748 = vpack.c.bf16 %v1484, %v1482
  %v1749 = vld [vmem:[%s3 + $0x4] sm:$0xf]
  %v1750 = vld [vmem:[%s3 + $0x10] sm:$0xf]
  %v1751 = vld [vmem:[%s3 + $0x1c] sm:$0xf]
  %v1752 = vld [vmem:[%s3 + $0x28] sm:$0xf]
  %v1753 = vld [vmem:[%s3 + $0x34] sm:$0xf]
  %v1754 = vld [vmem:[%s3 + $0x40] sm:$0xf]
  %v1755 = vld [vmem:[%s3 + $0x4c] sm:$0xf]
  %v1756 = vld [vmem:[%s3 + $0x58] sm:$0xf]
  %v1757 = vld [vmem:[%s3 + $0x64] sm:$0xf]
  %v1758 = vld [vmem:[%s3 + $0x70] sm:$0xf]
  %v1759 = vld [vmem:[%s3 + $0x7c] sm:$0xf]
  %v1760 = vld [vmem:[%s3 + $0x88] sm:$0xf]
  %v1761 = vld [vmem:[%s3 + $0x94] sm:$0xf]
  %v1762 = vld [vmem:[%s3 + $0xa0] sm:$0xf]
  %v1763 = vld [vmem:[%s3 + $0xac] sm:$0xf]
  %v1764 = vld [vmem:[%s3 + $0xb8] sm:$0xf]
  %v1781 = vunpack.c.l.b16 %v1749
  %v1782 = vunpack.c.l.b16 %v1750
  %v1783 = vunpack.c.l.b16 %v1751
  %v1784 = vunpack.c.l.b16 %v1752
  %v1785 = vunpack.c.l.b16 %v1753
  %v1786 = vunpack.c.l.b16 %v1754
  %v1787 = vunpack.c.l.b16 %v1755
  %v1788 = vunpack.c.l.b16 %v1756
  %v1789 = vunpack.c.l.b16 %v1757
  %v1790 = vunpack.c.l.b16 %v1758
  %v1791 = vunpack.c.l.b16 %v1759
  %v1792 = vunpack.c.l.b16 %v1760
  %v1793 = vunpack.c.l.b16 %v1761
  %v1794 = vunpack.c.l.b16 %v1762
  %v1795 = vunpack.c.l.b16 %v1763
  %v1796 = vunpack.c.l.b16 %v1764
  %v1797 = vpack.c.b16 %v1782, %v1781
  %v1798 = vpack.c.b16 %v1784, %v1783
  %v1799 = vpack.c.b16 %v1786, %v1785
  %v1800 = vpack.c.b16 %v1788, %v1787
  %v1801 = vpack.c.b16 %v1790, %v1789
  %v1802 = vpack.c.b16 %v1792, %v1791
  %v1803 = vpack.c.b16 %v1794, %v1793
  %v1804 = vpack.c.b16 %v1796, %v1795
  %1813 = vmatprep.subr.bf16.mxu0 0
  %1814 = vmatpush1.bf16.msra.mxu0 %v1804
  %1815 = vmatprep.subr.bf16.mxu0 0
  %1816 = vmatpush1.bf16.msra.mxu0 %v1803
  %1817 = vmatprep.subr.bf16.mxu0 0
  %1818 = vmatpush1.bf16.msra.mxu0 %v1802
  %1819 = vmatprep.subr.bf16.mxu0 0
  %1820 = vmatpush1.bf16.msra.mxu0 %v1801
  %1821 = vmatprep.subr.bf16.mxu0 0
  %1822 = vmatpush1.bf16.msra.mxu0 %v1800
  %1823 = vmatprep.subr.bf16.mxu0 0
  %1824 = vmatpush1.bf16.msra.mxu0 %v1799
  %1825 = vmatprep.subr.bf16.mxu0 0
  %1826 = vmatpush1.bf16.msra.mxu0 %v1798
  %1827 = vmatprep.subr.bf16.mxu0 0
  %1828 = vmatpush1.bf16.msra.mxu0 %v1797
  %1829 = vmatprep.subr.bf16.mxu0 0
  %1830 = vmatpush2.bf16.msra.mxu0 0
  %1831 = vmatprep.subr.bf16.mxu0 0
  %1832 = vmatpush2.bf16.msra.mxu0 0
  %1833 = vmatprep.subr.bf16.mxu0 0
  %1834 = vmatpush2.bf16.msra.mxu0 0
  %1835 = vmatprep.subr.bf16.mxu0 0
  %1836 = vmatpush2.bf16.msra.mxu0 0
  %1837 = vmatprep.subr.bf16.mxu0 0
  %1838 = vmatpush2.bf16.msra.mxu0 0
  %1839 = vmatprep.subr.bf16.mxu0 0
  %1840 = vmatpush2.bf16.msra.mxu0 0
  %1841 = vmatprep.subr.bf16.mxu0 0
  %1842 = vmatpush2.bf16.msra.mxu0 0
  %1843 = vmatprep.subr.bf16.mxu0 0
  %1844 = vmatpush2.bf16.msra.mxu0 0
  %1845 = vmatprep.mubr.bf16.mxu0 0
  %1846 = vmatmul.mubr.bf16.gmra.mxu0 %v1741
  %v1847 = vpop.f32.mrf.mxu0
  %v1848 = vadd.f32 0.0, %v1847
  %v1849 = vpop.f32.mrf.mxu0
  %v1850 = vpop.f32.mrf.mxu0
  %v1851 = vadd.f32 0.0, %v1850
  %v1852 = vpop.f32.mrf.mxu0
  %1853 = vmatprep.mubr.bf16.mxu0 0
  %1854 = vmatmul.mubr.bf16.gmra.mxu0 %v1742
  %v1855 = vpop.f32.mrf.mxu0
  %v1856 = vadd.f32 0.0, %v1855
  %v1857 = vpop.f32.mrf.mxu0
  %v1858 = vpop.f32.mrf.mxu0
  %v1859 = vadd.f32 0.0, %v1858
  %v1860 = vpop.f32.mrf.mxu0
  %1861 = vmatprep.mubr.bf16.mxu0 0
  %1862 = vmatmul.mubr.bf16.gmra.mxu0 %v1743
  %v1863 = vpop.f32.mrf.mxu0
  %v1864 = vadd.f32 0.0, %v1863
  %v1865 = vpop.f32.mrf.mxu0
  %v1866 = vpop.f32.mrf.mxu0
  %v1867 = vadd.f32 0.0, %v1866
  %v1868 = vpop.f32.mrf.mxu0
  %1869 = vmatprep.mubr.bf16.mxu0 0
  %1870 = vmatmul.mubr.bf16.gmra.mxu0 %v1744
  %v1871 = vpop.f32.mrf.mxu0
  %v1872 = vadd.f32 0.0, %v1871
  %v1873 = vpop.f32.mrf.mxu0
  %v1874 = vpop.f32.mrf.mxu0
  %v1875 = vadd.f32 0.0, %v1874
  %v1876 = vpop.f32.mrf.mxu0
  %1877 = vmatprep.mubr.bf16.mxu0 0
  %1878 = vmatmul.mubr.bf16.gmra.mxu0 %v1745
  %v1879 = vpop.f32.mrf.mxu0
  %v1880 = vadd.f32 0.0, %v1879
  %v1881 = vpop.f32.mrf.mxu0
  %v1882 = vpop.f32.mrf.mxu0
  %v1883 = vadd.f32 0.0, %v1882
  %v1884 = vpop.f32.mrf.mxu0
  %1885 = vmatprep.mubr.bf16.mxu0 0
  %1886 = vmatmul.mubr.bf16.gmra.mxu0 %v1746
  %v1887 = vpop.f32.mrf.mxu0
  %v1888 = vadd.f32 0.0, %v1887
  %v1889 = vpop.f32.mrf.mxu0
  %v1890 = vpop.f32.mrf.mxu0
  %v1891 = vadd.f32 0.0, %v1890
  %v1892 = vpop.f32.mrf.mxu0
  %1893 = vmatprep.mubr.bf16.mxu0 0
  %1894 = vmatmul.mubr.bf16.gmra.mxu0 %v1747
  %v1895 = vpop.f32.mrf.mxu0
  %v1896 = vadd.f32 0.0, %v1895
  %v1897 = vpop.f32.mrf.mxu0
  %v1898 = vpop.f32.mrf.mxu0
  %v1899 = vadd.f32 0.0, %v1898
  %v1900 = vpop.f32.mrf.mxu0
  %1901 = vmatprep.mubr.bf16.mxu0 0
  %1902 = vmatmul.mubr.bf16.gmra.mxu0 %v1748
  %v1903 = vpop.f32.mrf.mxu0
  %v1904 = vadd.f32 0.0, %v1903
  %v1905 = vpop.f32.mrf.mxu0
  %v1906 = vpop.f32.mrf.mxu0
  %v1907 = vadd.f32 0.0, %v1906
  %v1908 = vpop.f32.mrf.mxu0
  %1909 = vdwg.mxu0
  %v1910 = vadd.f32 %v1725, %v1848
  %v1911 = vadd.f32 %v1726, %v1851
  %v1912 = vadd.f32 %v1727, %v1856
  %v1913 = vadd.f32 %v1728, %v1859
  %v1914 = vadd.f32 %v1729, %v1864
  %v1915 = vadd.f32 %v1730, %v1867
  %v1916 = vadd.f32 %v1731, %v1872
  %v1917 = vadd.f32 %v1732, %v1875
  %v1918 = vadd.f32 %v1733, %v1880
  %v1919 = vadd.f32 %v1734, %v1883
  %v1920 = vadd.f32 %v1735, %v1888
  %v1921 = vadd.f32 %v1736, %v1891
  %v1922 = vadd.f32 %v1737, %v1896
  %v1923 = vadd.f32 %v1738, %v1899
  %v1924 = vadd.f32 %v1739, %v1904
  %v1925 = vadd.f32 %v1740, %v1907
  %1926 = vst [vmem:[#allocation4] sm:$0xff] %v1910
  %1927 = vst [vmem:[#allocation4 + $0x8] sm:$0xff] %v1911
  %1928 = vst [vmem:[#allocation4 + $0x10] sm:$0xff] %v1912
  %1929 = vst [vmem:[#allocation4 + $0x18] sm:$0xff] %v1913
  %1930 = vst [vmem:[#allocation4 + $0x20] sm:$0xff] %v1914
  %1931 = vst [vmem:[#allocation4 + $0x28] sm:$0xff] %v1915
  %1932 = vst [vmem:[#allocation4 + $0x30] sm:$0xff] %v1916
  %1933 = vst [vmem:[#allocation4 + $0x38] sm:$0xff] %v1917
  %1934 = vst [vmem:[#allocation4 + $0x40] sm:$0xff] %v1918
  %1935 = vst [vmem:[#allocation4 + $0x48] sm:$0xff] %v1919
  %1936 = vst [vmem:[#allocation4 + $0x50] sm:$0xff] %v1920
  %1937 = vst [vmem:[#allocation4 + $0x58] sm:$0xff] %v1921
  %1938 = vst [vmem:[#allocation4 + $0x60] sm:$0xff] %v1922
  %1939 = vst [vmem:[#allocation4 + $0x68] sm:$0xff] %v1923
  %1940 = vst [vmem:[#allocation4 + $0x70] sm:$0xff] %v1924
  %1941 = vst [vmem:[#allocation4 + $0x78] sm:$0xff] %v1925
  %1942 = vst.msk [vmem:[#allocation2] sm:$0xff] %vm690, %v1341
  %1943 = vst.msk [vmem:[#allocation2 + $0x8] sm:$0xff] %vm690, %v1342
  %1944 = vst.msk [vmem:[#allocation2 + $0x10] sm:$0xff] %vm690, %v1343
  %1945 = vst.msk [vmem:[#allocation2 + $0x18] sm:$0xff] %vm690, %v1344
  %1946 = vst.msk [vmem:[#allocation2 + $0x20] sm:$0xff] %vm690, %v1345
  %1947 = vst.msk [vmem:[#allocation2 + $0x28] sm:$0xff] %vm690, %v1346
  %1948 = vst.msk [vmem:[#allocation2 + $0x30] sm:$0xff] %vm690, %v1347
  %1949 = vst.msk [vmem:[#allocation2 + $0x38] sm:$0xff] %vm690, %v1348
  %1950 = vst.msk [vmem:[#allocation2 + $0x40] sm:$0xff] %vm690, %v1349
  %1951 = vst.msk [vmem:[#allocation2 + $0x48] sm:$0xff] %vm690, %v1350
  %1952 = vst.msk [vmem:[#allocation2 + $0x50] sm:$0xff] %vm690, %v1351
  %1953 = vst.msk [vmem:[#allocation2 + $0x58] sm:$0xff] %vm690, %v1352
  %1954 = vst.msk [vmem:[#allocation2 + $0x60] sm:$0xff] %vm690, %v1353
  %1955 = vst.msk [vmem:[#allocation2 + $0x68] sm:$0xff] %vm690, %v1354
  %1956 = vst.msk [vmem:[#allocation2 + $0x70] sm:$0xff] %vm690, %v1355
  %1957 = vst.msk [vmem:[#allocation2 + $0x78] sm:$0xff] %vm690, %v1356
  %1958 = vset.pattern.permute.xlu0 2
  %1959 = vperm.xlu0 %1958, %v81
  %v1960 = vpop.permute.xlu0 %1959
  %1962 = vset.pattern.permute.xlu0 2
  %1963 = vperm.xlu0 %1962, %v82
  %v1964 = vpop.permute.xlu0 %1963
  %1966 = vset.pattern.permute.xlu0 2
  %1967 = vperm.xlu0 %1966, %v83
  %v1968 = vpop.permute.xlu0 %1967
  %1970 = vset.pattern.permute.xlu0 2
  %1971 = vperm.xlu0 %1970, %v84
  %v1972 = vpop.permute.xlu0 %1971
  %1974 = vset.pattern.permute.xlu0 2
  %1975 = vperm.xlu0 %1974, %v85
  %v1976 = vpop.permute.xlu0 %1975
  %1978 = vset.pattern.permute.xlu0 2
  %1979 = vperm.xlu0 %1978, %v86
  %v1980 = vpop.permute.xlu0 %1979
  %1982 = vset.pattern.permute.xlu0 2
  %1983 = vperm.xlu0 %1982, %v87
  %v1984 = vpop.permute.xlu0 %1983
  %1986 = vset.pattern.permute.xlu0 2
  %1987 = vperm.xlu0 %1986, %v88
  %v1988 = vpop.permute.xlu0 %1987
  %1990 = vset.pattern.permute.xlu0 2
  %1991 = vperm.xlu0 %1990, %v89
  %v1992 = vpop.permute.xlu0 %1991
  %1994 = vset.pattern.permute.xlu0 2
  %1995 = vperm.xlu0 %1994, %v90
  %v1996 = vpop.permute.xlu0 %1995
  %1998 = vset.pattern.permute.xlu0 2
  %1999 = vperm.xlu0 %1998, %v91
  %v2000 = vpop.permute.xlu0 %1999
  %2002 = vset.pattern.permute.xlu0 2
  %2003 = vperm.xlu0 %2002, %v92
  %v2004 = vpop.permute.xlu0 %2003
  %2006 = vset.pattern.permute.xlu0 2
  %2007 = vperm.xlu0 %2006, %v93
  %v2008 = vpop.permute.xlu0 %2007
  %2010 = vset.pattern.permute.xlu0 2
  %2011 = vperm.xlu0 %2010, %v94
  %v2012 = vpop.permute.xlu0 %2011
  %2014 = vset.pattern.permute.xlu0 2
  %2015 = vperm.xlu0 %2014, %v95
  %v2016 = vpop.permute.xlu0 %2015
  %2018 = vset.pattern.permute.xlu0 2
  %2019 = vperm.xlu0 %2018, %v96
  %v2020 = vpop.permute.xlu0 %2019
  %v2022 = vlaneseq
  %v2023 = vshrl.u32 %v2022, 7
  %v2024 = vsub.s32 2, %v2023
  %v2025 = vrot.slane %v97, %v2024
  %v2026 = vadd.f32 %v1960, %v2025
  %v2027 = vadd.f32 %v1964, %v2025
  %v2028 = vadd.f32 %v1968, %v2025
  %v2029 = vadd.f32 %v1972, %v2025
  %v2030 = vadd.f32 %v1976, %v2025
  %v2031 = vadd.f32 %v1980, %v2025
  %v2032 = vadd.f32 %v1984, %v2025
  %v2033 = vadd.f32 %v1988, %v2025
  %v2034 = vadd.f32 %v1992, %v2025
  %v2035 = vadd.f32 %v1996, %v2025
  %v2036 = vadd.f32 %v2000, %v2025
  %v2037 = vadd.f32 %v2004, %v2025
  %v2038 = vadd.f32 %v2008, %v2025
  %v2039 = vadd.f32 %v2012, %v2025
  %v2040 = vadd.f32 %v2016, %v2025
  %v2041 = vadd.f32 %v2020, %v2025
  %v2042 = vmul.f32 %v2026, 0.2
  %v2043 = vmul.f32 %v2027, 0.2
  %v2044 = vmul.f32 %v2028, 0.2
  %v2045 = vmul.f32 %v2029, 0.2
  %v2046 = vmul.f32 %v2030, 0.2
  %v2047 = vmul.f32 %v2031, 0.2
  %v2048 = vmul.f32 %v2032, 0.2
  %v2049 = vmul.f32 %v2033, 0.2
  %v2050 = vmul.f32 %v2034, 0.2
  %v2051 = vmul.f32 %v2035, 0.2
  %v2052 = vmul.f32 %v2036, 0.2
  %v2053 = vmul.f32 %v2037, 0.2
  %v2054 = vmul.f32 %v2038, 0.2
  %v2055 = vmul.f32 %v2039, 0.2
  %v2056 = vmul.f32 %v2040, 0.2
  %v2057 = vmul.f32 %v2041, 0.2
  %v2058 = vmax.f32 %v2026, %v2042
  %v2059 = vmax.f32 %v2027, %v2043
  %v2060 = vmax.f32 %v2028, %v2044
  %v2061 = vmax.f32 %v2029, %v2045
  %v2062 = vmax.f32 %v2030, %v2046
  %v2063 = vmax.f32 %v2031, %v2047
  %v2064 = vmax.f32 %v2032, %v2048
  %v2065 = vmax.f32 %v2033, %v2049
  %v2066 = vmax.f32 %v2034, %v2050
  %v2067 = vmax.f32 %v2035, %v2051
  %v2068 = vmax.f32 %v2036, %v2052
  %v2069 = vmax.f32 %v2037, %v2053
  %v2070 = vmax.f32 %v2038, %v2054
  %v2071 = vmax.f32 %v2039, %v2055
  %v2072 = vmax.f32 %v2040, %v2056
  %v2073 = vmax.f32 %v2041, %v2057
  %s2074 = scalar_lea.vmem %s0, 64
  %v2075 = vld [vmem:[%s2074] sm:$0xff]
  %v2076 = vld [vmem:[%s2074 + $0x8] sm:$0xff]
  %v2077 = vld [vmem:[%s2074 + $0x10] sm:$0xff]
  %v2078 = vld [vmem:[%s2074 + $0x18] sm:$0xff]
  %vm2079 = vnez %v2075
  %vm2080 = vnez %v2076
  %vm2081 = vnez %v2077
  %vm2082 = vnez %v2078
  %v2083 = vsel %vm2079, 16843009, 0
  %v2084 = vsel %vm2080, 16843009, 0
  %v2085 = vsel %vm2081, 16843009, 0
  %v2086 = vsel %vm2082, 16843009, 0
  %v2087 = vunpack.c.0.s8 %v2083
  %v2088 = vunpack.c.1.s8 %v2083
  %v2089 = vunpack.c.2.s8 %v2083
  %v2090 = vunpack.c.3.s8 %v2083
  %v2091 = vunpack.c.0.s8 %v2084
  %v2092 = vunpack.c.1.s8 %v2084
  %v2093 = vunpack.c.2.s8 %v2084
  %v2094 = vunpack.c.3.s8 %v2084
  %v2095 = vunpack.c.0.s8 %v2085
  %v2096 = vunpack.c.1.s8 %v2085
  %v2097 = vunpack.c.2.s8 %v2085
  %v2098 = vunpack.c.3.s8 %v2085
  %v2099 = vunpack.c.0.s8 %v2086
  %v2100 = vunpack.c.1.s8 %v2086
  %v2101 = vunpack.c.2.s8 %v2086
  %v2102 = vunpack.c.3.s8 %v2086
  %v2103 = vpack.c.b16 %v2087, %v2087
  %v2104 = vpack.c.b8 %v2103, %v2103
  %v2105 = vpack.c.b16 %v2088, %v2088
  %v2106 = vpack.c.b8 %v2105, %v2105
  %v2107 = vpack.c.b16 %v2089, %v2089
  %v2108 = vpack.c.b8 %v2107, %v2107
  %v2109 = vpack.c.b16 %v2090, %v2090
  %v2110 = vpack.c.b8 %v2109, %v2109
  %v2111 = vpack.c.b16 %v2091, %v2091
  %v2112 = vpack.c.b8 %v2111, %v2111
  %v2113 = vpack.c.b16 %v2092, %v2092
  %v2114 = vpack.c.b8 %v2113, %v2113
  %v2115 = vpack.c.b16 %v2093, %v2093
  %v2116 = vpack.c.b8 %v2115, %v2115
  %v2117 = vpack.c.b16 %v2094, %v2094
  %v2118 = vpack.c.b8 %v2117, %v2117
  %v2119 = vpack.c.b16 %v2095, %v2095
  %v2120 = vpack.c.b8 %v2119, %v2119
  %v2121 = vpack.c.b16 %v2096, %v2096
  %v2122 = vpack.c.b8 %v2121, %v2121
  %v2123 = vpack.c.b16 %v2097, %v2097
  %v2124 = vpack.c.b8 %v2123, %v2123
  %v2125 = vpack.c.b16 %v2098, %v2098
  %v2126 = vpack.c.b8 %v2125, %v2125
  %v2127 = vpack.c.b16 %v2099, %v2099
  %v2128 = vpack.c.b8 %v2127, %v2127
  %v2129 = vpack.c.b16 %v2100, %v2100
  %v2130 = vpack.c.b8 %v2129, %v2129
  %v2131 = vpack.c.b16 %v2101, %v2101
  %v2132 = vpack.c.b8 %v2131, %v2131
  %v2133 = vpack.c.b16 %v2102, %v2102
  %v2134 = vpack.c.b8 %v2133, %v2133
  %vm2135 = vnez %v2104
  %vm2136 = vnez %v2106
  %vm2137 = vnez %v2108
  %vm2138 = vnez %v2110
  %vm2139 = vnez %v2112
  %vm2140 = vnez %v2114
  %vm2141 = vnez %v2116
  %vm2142 = vnez %v2118
  %vm2143 = vnez %v2120
  %vm2144 = vnez %v2122
  %vm2145 = vnez %v2124
  %vm2146 = vnez %v2126
  %vm2147 = vnez %v2128
  %vm2148 = vnez %v2130
  %vm2149 = vnez %v2132
  %vm2150 = vnez %v2134
  %v2151 = vsel %vm2135, 16843009, 0
  %v2152 = vsel %vm2136, 16843009, 0
  %v2153 = vsel %vm2137, 16843009, 0
  %v2154 = vsel %vm2138, 16843009, 0
  %v2155 = vsel %vm2139, 16843009, 0
  %v2156 = vsel %vm2140, 16843009, 0
  %v2157 = vsel %vm2141, 16843009, 0
  %v2158 = vsel %vm2142, 16843009, 0
  %v2159 = vsel %vm2143, 16843009, 0
  %v2160 = vsel %vm2144, 16843009, 0
  %v2161 = vsel %vm2145, 16843009, 0
  %v2162 = vsel %vm2146, 16843009, 0
  %v2163 = vsel %vm2147, 16843009, 0
  %v2164 = vsel %vm2148, 16843009, 0
  %v2165 = vsel %vm2149, 16843009, 0
  %v2166 = vsel %vm2150, 16843009, 0
  %v2167 = vunpack.c.0.s8 %v2151
  %v2168 = vunpack.c.0.s8 %v2152
  %v2169 = vunpack.c.0.s8 %v2153
  %v2170 = vunpack.c.0.s8 %v2154
  %v2171 = vunpack.c.0.s8 %v2155
  %v2172 = vunpack.c.0.s8 %v2156
  %v2173 = vunpack.c.0.s8 %v2157
  %v2174 = vunpack.c.0.s8 %v2158
  %v2175 = vunpack.c.0.s8 %v2159
  %v2176 = vunpack.c.0.s8 %v2160
  %v2177 = vunpack.c.0.s8 %v2161
  %v2178 = vunpack.c.0.s8 %v2162
  %v2179 = vunpack.c.0.s8 %v2163
  %v2180 = vunpack.c.0.s8 %v2164
  %v2181 = vunpack.c.0.s8 %v2165
  %v2182 = vunpack.c.0.s8 %v2166
  %vm2183 = vcmp.ne.s32.totalorder %v2167, 0
  %vm2184 = vcmp.ne.s32.totalorder %v2168, 0
  %vm2185 = vcmp.ne.s32.totalorder %v2169, 0
  %vm2186 = vcmp.ne.s32.totalorder %v2170, 0
  %vm2187 = vcmp.ne.s32.totalorder %v2171, 0
  %vm2188 = vcmp.ne.s32.totalorder %v2172, 0
  %vm2189 = vcmp.ne.s32.totalorder %v2173, 0
  %vm2190 = vcmp.ne.s32.totalorder %v2174, 0
  %vm2191 = vcmp.ne.s32.totalorder %v2175, 0
  %vm2192 = vcmp.ne.s32.totalorder %v2176, 0
  %vm2193 = vcmp.ne.s32.totalorder %v2177, 0
  %vm2194 = vcmp.ne.s32.totalorder %v2178, 0
  %vm2195 = vcmp.ne.s32.totalorder %v2179, 0
  %vm2196 = vcmp.ne.s32.totalorder %v2180, 0
  %vm2197 = vcmp.ne.s32.totalorder %v2181, 0
  %vm2198 = vcmp.ne.s32.totalorder %v2182, 0
  %v2199 = vsel %vm2183, %v2058, -1e+30
  %v2200 = vsel %vm2184, %v2059, -1e+30
  %v2201 = vsel %vm2185, %v2060, -1e+30
  %v2202 = vsel %vm2186, %v2061, -1e+30
  %v2203 = vsel %vm2187, %v2062, -1e+30
  %v2204 = vsel %vm2188, %v2063, -1e+30
  %v2205 = vsel %vm2189, %v2064, -1e+30
  %v2206 = vsel %vm2190, %v2065, -1e+30
  %v2207 = vsel %vm2191, %v2066, -1e+30
  %v2208 = vsel %vm2192, %v2067, -1e+30
  %v2209 = vsel %vm2193, %v2068, -1e+30
  %v2210 = vsel %vm2194, %v2069, -1e+30
  %v2211 = vsel %vm2195, %v2070, -1e+30
  %v2212 = vsel %vm2196, %v2071, -1e+30
  %v2213 = vsel %vm2197, %v2072, -1e+30
  %v2214 = vsel %vm2198, %v2073, -1e+30
  %v2215 = vld [vmem:[#allocation2] sm:$0xff]
  %v2216 = vld [vmem:[#allocation2 + $0x8] sm:$0xff]
  %v2217 = vld [vmem:[#allocation2 + $0x10] sm:$0xff]
  %v2218 = vld [vmem:[#allocation2 + $0x18] sm:$0xff]
  %v2219 = vld [vmem:[#allocation2 + $0x20] sm:$0xff]
  %v2220 = vld [vmem:[#allocation2 + $0x28] sm:$0xff]
  %v2221 = vld [vmem:[#allocation2 + $0x30] sm:$0xff]
  %v2222 = vld [vmem:[#allocation2 + $0x38] sm:$0xff]
  %v2223 = vld [vmem:[#allocation2 + $0x40] sm:$0xff]
  %v2224 = vld [vmem:[#allocation2 + $0x48] sm:$0xff]
  %v2225 = vld [vmem:[#allocation2 + $0x50] sm:$0xff]
  %v2226 = vld [vmem:[#allocation2 + $0x58] sm:$0xff]
  %v2227 = vld [vmem:[#allocation2 + $0x60] sm:$0xff]
  %v2228 = vld [vmem:[#allocation2 + $0x68] sm:$0xff]
  %v2229 = vld [vmem:[#allocation2 + $0x70] sm:$0xff]
  %v2230 = vld [vmem:[#allocation2 + $0x78] sm:$0xff]
  %2231 = vmax.xlane.f32.xlu0 %v2199
  %v2232 = vpop.xlane.xlu0 %2231
  %2233 = vmax.xlane.f32.xlu0 %v2200
  %v2234 = vpop.xlane.xlu0 %2233
  %2235 = vmax.xlane.f32.xlu0 %v2201
  %v2236 = vpop.xlane.xlu0 %2235
  %2237 = vmax.xlane.f32.xlu0 %v2202
  %v2238 = vpop.xlane.xlu0 %2237
  %2239 = vmax.xlane.f32.xlu0 %v2203
  %v2240 = vpop.xlane.xlu0 %2239
  %2241 = vmax.xlane.f32.xlu0 %v2204
  %v2242 = vpop.xlane.xlu0 %2241
  %2243 = vmax.xlane.f32.xlu0 %v2205
  %v2244 = vpop.xlane.xlu0 %2243
  %2245 = vmax.xlane.f32.xlu0 %v2206
  %v2246 = vpop.xlane.xlu0 %2245
  %2247 = vmax.xlane.f32.xlu0 %v2207
  %v2248 = vpop.xlane.xlu0 %2247
  %2249 = vmax.xlane.f32.xlu0 %v2208
  %v2250 = vpop.xlane.xlu0 %2249
  %2251 = vmax.xlane.f32.xlu0 %v2209
  %v2252 = vpop.xlane.xlu0 %2251
  %2253 = vmax.xlane.f32.xlu0 %v2210
  %v2254 = vpop.xlane.xlu0 %2253
  %2255 = vmax.xlane.f32.xlu0 %v2211
  %v2256 = vpop.xlane.xlu0 %2255
  %2257 = vmax.xlane.f32.xlu0 %v2212
  %v2258 = vpop.xlane.xlu0 %2257
  %2259 = vmax.xlane.f32.xlu0 %v2213
  %v2260 = vpop.xlane.xlu0 %2259
  %2261 = vmax.xlane.f32.xlu0 %v2214
  %v2262 = vpop.xlane.xlu0 %2261
  %v2263 = vmax.f32 %v2215, %v2232
  %v2264 = vmax.f32 %v2216, %v2234
  %v2265 = vmax.f32 %v2217, %v2236
  %v2266 = vmax.f32 %v2218, %v2238
  %v2267 = vmax.f32 %v2219, %v2240
  %v2268 = vmax.f32 %v2220, %v2242
  %v2269 = vmax.f32 %v2221, %v2244
  %v2270 = vmax.f32 %v2222, %v2246
  %v2271 = vmax.f32 %v2223, %v2248
  %v2272 = vmax.f32 %v2224, %v2250
  %v2273 = vmax.f32 %v2225, %v2252
  %v2274 = vmax.f32 %v2226, %v2254
  %v2275 = vmax.f32 %v2227, %v2256
  %v2276 = vmax.f32 %v2228, %v2258
  %v2277 = vmax.f32 %v2229, %v2260
  %v2278 = vmax.f32 %v2230, %v2262
  %2280 = vset.pattern.permute.xlu0 0
  %2281 = vperm.xlu0 %2280, %v2263
  %v2282 = vpop.permute.xlu0 %2281
  %2285 = vset.pattern.permute.xlu0 0
  %2286 = vperm.xlu0 %2285, %v2264
  %v2287 = vpop.permute.xlu0 %2286
  %2290 = vset.pattern.permute.xlu0 0
  %2291 = vperm.xlu0 %2290, %v2265
  %v2292 = vpop.permute.xlu0 %2291
  %2295 = vset.pattern.permute.xlu0 0
  %2296 = vperm.xlu0 %2295, %v2266
  %v2297 = vpop.permute.xlu0 %2296
  %2300 = vset.pattern.permute.xlu0 0
  %2301 = vperm.xlu0 %2300, %v2267
  %v2302 = vpop.permute.xlu0 %2301
  %2305 = vset.pattern.permute.xlu0 0
  %2306 = vperm.xlu0 %2305, %v2268
  %v2307 = vpop.permute.xlu0 %2306
  %2310 = vset.pattern.permute.xlu0 0
  %2311 = vperm.xlu0 %2310, %v2269
  %v2312 = vpop.permute.xlu0 %2311
  %2315 = vset.pattern.permute.xlu0 0
  %2316 = vperm.xlu0 %2315, %v2270
  %v2317 = vpop.permute.xlu0 %2316
  %2320 = vset.pattern.permute.xlu0 0
  %2321 = vperm.xlu0 %2320, %v2271
  %v2322 = vpop.permute.xlu0 %2321
  %2325 = vset.pattern.permute.xlu0 0
  %2326 = vperm.xlu0 %2325, %v2272
  %v2327 = vpop.permute.xlu0 %2326
  %2330 = vset.pattern.permute.xlu0 0
  %2331 = vperm.xlu0 %2330, %v2273
  %v2332 = vpop.permute.xlu0 %2331
  %2335 = vset.pattern.permute.xlu0 0
  %2336 = vperm.xlu0 %2335, %v2274
  %v2337 = vpop.permute.xlu0 %2336
  %2340 = vset.pattern.permute.xlu0 0
  %2341 = vperm.xlu0 %2340, %v2275
  %v2342 = vpop.permute.xlu0 %2341
  %2345 = vset.pattern.permute.xlu0 0
  %2346 = vperm.xlu0 %2345, %v2276
  %v2347 = vpop.permute.xlu0 %2346
  %2350 = vset.pattern.permute.xlu0 0
  %2351 = vperm.xlu0 %2350, %v2277
  %v2352 = vpop.permute.xlu0 %2351
  %2355 = vset.pattern.permute.xlu0 0
  %2356 = vperm.xlu0 %2355, %v2278
  %v2357 = vpop.permute.xlu0 %2356
  %v2359 = vsub.f32 %v2199, %v2282
  %v2360 = vsub.f32 %v2200, %v2287
  %v2361 = vsub.f32 %v2201, %v2292
  %v2362 = vsub.f32 %v2202, %v2297
  %v2363 = vsub.f32 %v2203, %v2302
  %v2364 = vsub.f32 %v2204, %v2307
  %v2365 = vsub.f32 %v2205, %v2312
  %v2366 = vsub.f32 %v2206, %v2317
  %v2367 = vsub.f32 %v2207, %v2322
  %v2368 = vsub.f32 %v2208, %v2327
  %v2369 = vsub.f32 %v2209, %v2332
  %v2370 = vsub.f32 %v2210, %v2337
  %v2371 = vsub.f32 %v2211, %v2342
  %v2372 = vsub.f32 %v2212, %v2347
  %v2373 = vsub.f32 %v2213, %v2352
  %v2374 = vsub.f32 %v2214, %v2357
  %v2375 = vmul.f32 %v2359, 1.442695
  %v2376 = vpow.pop %v2375
  %v2377 = vmul.f32 %v2360, 1.442695
  %v2378 = vpow.pop %v2377
  %v2379 = vmul.f32 %v2361, 1.442695
  %v2380 = vpow.pop %v2379
  %v2381 = vmul.f32 %v2362, 1.442695
  %v2382 = vpow.pop %v2381
  %v2383 = vmul.f32 %v2363, 1.442695
  %v2384 = vpow.pop %v2383
  %v2385 = vmul.f32 %v2364, 1.442695
  %v2386 = vpow.pop %v2385
  %v2387 = vmul.f32 %v2365, 1.442695
  %v2388 = vpow.pop %v2387
  %v2389 = vmul.f32 %v2366, 1.442695
  %v2390 = vpow.pop %v2389
  %v2391 = vmul.f32 %v2367, 1.442695
  %v2392 = vpow.pop %v2391
  %v2393 = vmul.f32 %v2368, 1.442695
  %v2394 = vpow.pop %v2393
  %v2395 = vmul.f32 %v2369, 1.442695
  %v2396 = vpow.pop %v2395
  %v2397 = vmul.f32 %v2370, 1.442695
  %v2398 = vpow.pop %v2397
  %v2399 = vmul.f32 %v2371, 1.442695
  %v2400 = vpow.pop %v2399
  %v2401 = vmul.f32 %v2372, 1.442695
  %v2402 = vpow.pop %v2401
  %v2403 = vmul.f32 %v2373, 1.442695
  %v2404 = vpow.pop %v2403
  %v2405 = vmul.f32 %v2374, 1.442695
  %v2406 = vpow.pop %v2405
  %v2407 = vsub.f32 %v2215, %v2263
  %v2408 = vsub.f32 %v2216, %v2264
  %v2409 = vsub.f32 %v2217, %v2265
  %v2410 = vsub.f32 %v2218, %v2266
  %v2411 = vsub.f32 %v2219, %v2267
  %v2412 = vsub.f32 %v2220, %v2268
  %v2413 = vsub.f32 %v2221, %v2269
  %v2414 = vsub.f32 %v2222, %v2270
  %v2415 = vsub.f32 %v2223, %v2271
  %v2416 = vsub.f32 %v2224, %v2272
  %v2417 = vsub.f32 %v2225, %v2273
  %v2418 = vsub.f32 %v2226, %v2274
  %v2419 = vsub.f32 %v2227, %v2275
  %v2420 = vsub.f32 %v2228, %v2276
  %v2421 = vsub.f32 %v2229, %v2277
  %v2422 = vsub.f32 %v2230, %v2278
  %v2423 = vmul.f32 %v2407, 1.442695
  %v2424 = vpow.pop %v2423
  %v2425 = vmul.f32 %v2408, 1.442695
  %v2426 = vpow.pop %v2425
  %v2427 = vmul.f32 %v2409, 1.442695
  %v2428 = vpow.pop %v2427
  %v2429 = vmul.f32 %v2410, 1.442695
  %v2430 = vpow.pop %v2429
  %v2431 = vmul.f32 %v2411, 1.442695
  %v2432 = vpow.pop %v2431
  %v2433 = vmul.f32 %v2412, 1.442695
  %v2434 = vpow.pop %v2433
  %v2435 = vmul.f32 %v2413, 1.442695
  %v2436 = vpow.pop %v2435
  %v2437 = vmul.f32 %v2414, 1.442695
  %v2438 = vpow.pop %v2437
  %v2439 = vmul.f32 %v2415, 1.442695
  %v2440 = vpow.pop %v2439
  %v2441 = vmul.f32 %v2416, 1.442695
  %v2442 = vpow.pop %v2441
  %v2443 = vmul.f32 %v2417, 1.442695
  %v2444 = vpow.pop %v2443
  %v2445 = vmul.f32 %v2418, 1.442695
  %v2446 = vpow.pop %v2445
  %v2447 = vmul.f32 %v2419, 1.442695
  %v2448 = vpow.pop %v2447
  %v2449 = vmul.f32 %v2420, 1.442695
  %v2450 = vpow.pop %v2449
  %v2451 = vmul.f32 %v2421, 1.442695
  %v2452 = vpow.pop %v2451
  %v2453 = vmul.f32 %v2422, 1.442695
  %v2454 = vpow.pop %v2453
  %v2455 = vld [vmem:[#allocation3] sm:$0xff]
  %v2456 = vld [vmem:[#allocation3 + $0x8] sm:$0xff]
  %v2457 = vld [vmem:[#allocation3 + $0x10] sm:$0xff]
  %v2458 = vld [vmem:[#allocation3 + $0x18] sm:$0xff]
  %v2459 = vld [vmem:[#allocation3 + $0x20] sm:$0xff]
  %v2460 = vld [vmem:[#allocation3 + $0x28] sm:$0xff]
  %v2461 = vld [vmem:[#allocation3 + $0x30] sm:$0xff]
  %v2462 = vld [vmem:[#allocation3 + $0x38] sm:$0xff]
  %v2463 = vld [vmem:[#allocation3 + $0x40] sm:$0xff]
  %v2464 = vld [vmem:[#allocation3 + $0x48] sm:$0xff]
  %v2465 = vld [vmem:[#allocation3 + $0x50] sm:$0xff]
  %v2466 = vld [vmem:[#allocation3 + $0x58] sm:$0xff]
  %v2467 = vld [vmem:[#allocation3 + $0x60] sm:$0xff]
  %v2468 = vld [vmem:[#allocation3 + $0x68] sm:$0xff]
  %v2469 = vld [vmem:[#allocation3 + $0x70] sm:$0xff]
  %v2470 = vld [vmem:[#allocation3 + $0x78] sm:$0xff]
  %v2471 = vmul.f32 %v2424, %v2455
  %v2472 = vmul.f32 %v2426, %v2456
  %v2473 = vmul.f32 %v2428, %v2457
  %v2474 = vmul.f32 %v2430, %v2458
  %v2475 = vmul.f32 %v2432, %v2459
  %v2476 = vmul.f32 %v2434, %v2460
  %v2477 = vmul.f32 %v2436, %v2461
  %v2478 = vmul.f32 %v2438, %v2462
  %v2479 = vmul.f32 %v2440, %v2463
  %v2480 = vmul.f32 %v2442, %v2464
  %v2481 = vmul.f32 %v2444, %v2465
  %v2482 = vmul.f32 %v2446, %v2466
  %v2483 = vmul.f32 %v2448, %v2467
  %v2484 = vmul.f32 %v2450, %v2468
  %v2485 = vmul.f32 %v2452, %v2469
  %v2486 = vmul.f32 %v2454, %v2470
  %2487 = vadd.xlane.f32.xlu0 %v2376
  %v2488 = vpop.xlane.xlu0 %2487
  %2489 = vadd.xlane.f32.xlu0 %v2378
  %v2490 = vpop.xlane.xlu0 %2489
  %2491 = vadd.xlane.f32.xlu0 %v2380
  %v2492 = vpop.xlane.xlu0 %2491
  %2493 = vadd.xlane.f32.xlu0 %v2382
  %v2494 = vpop.xlane.xlu0 %2493
  %2495 = vadd.xlane.f32.xlu0 %v2384
  %v2496 = vpop.xlane.xlu0 %2495
  %2497 = vadd.xlane.f32.xlu0 %v2386
  %v2498 = vpop.xlane.xlu0 %2497
  %2499 = vadd.xlane.f32.xlu0 %v2388
  %v2500 = vpop.xlane.xlu0 %2499
  %2501 = vadd.xlane.f32.xlu0 %v2390
  %v2502 = vpop.xlane.xlu0 %2501
  %2503 = vadd.xlane.f32.xlu0 %v2392
  %v2504 = vpop.xlane.xlu0 %2503
  %2505 = vadd.xlane.f32.xlu0 %v2394
  %v2506 = vpop.xlane.xlu0 %2505
  %2507 = vadd.xlane.f32.xlu0 %v2396
  %v2508 = vpop.xlane.xlu0 %2507
  %2509 = vadd.xlane.f32.xlu0 %v2398
  %v2510 = vpop.xlane.xlu0 %2509
  %2511 = vadd.xlane.f32.xlu0 %v2400
  %v2512 = vpop.xlane.xlu0 %2511
  %2513 = vadd.xlane.f32.xlu0 %v2402
  %v2514 = vpop.xlane.xlu0 %2513
  %2515 = vadd.xlane.f32.xlu0 %v2404
  %v2516 = vpop.xlane.xlu0 %2515
  %2517 = vadd.xlane.f32.xlu0 %v2406
  %v2518 = vpop.xlane.xlu0 %2517
  %v2519 = vadd.f32 %v2471, %v2488
  %v2520 = vadd.f32 %v2472, %v2490
  %v2521 = vadd.f32 %v2473, %v2492
  %v2522 = vadd.f32 %v2474, %v2494
  %v2523 = vadd.f32 %v2475, %v2496
  %v2524 = vadd.f32 %v2476, %v2498
  %v2525 = vadd.f32 %v2477, %v2500
  %v2526 = vadd.f32 %v2478, %v2502
  %v2527 = vadd.f32 %v2479, %v2504
  %v2528 = vadd.f32 %v2480, %v2506
  %v2529 = vadd.f32 %v2481, %v2508
  %v2530 = vadd.f32 %v2482, %v2510
  %v2531 = vadd.f32 %v2483, %v2512
  %v2532 = vadd.f32 %v2484, %v2514
  %v2533 = vadd.f32 %v2485, %v2516
  %v2534 = vadd.f32 %v2486, %v2518
  %2535 = vst.msk [vmem:[#allocation3] sm:$0xff] %vm690, %v2519
  %2536 = vst.msk [vmem:[#allocation3 + $0x8] sm:$0xff] %vm690, %v2520
  %2537 = vst.msk [vmem:[#allocation3 + $0x10] sm:$0xff] %vm690, %v2521
  %2538 = vst.msk [vmem:[#allocation3 + $0x18] sm:$0xff] %vm690, %v2522
  %2539 = vst.msk [vmem:[#allocation3 + $0x20] sm:$0xff] %vm690, %v2523
  %2540 = vst.msk [vmem:[#allocation3 + $0x28] sm:$0xff] %vm690, %v2524
  %2541 = vst.msk [vmem:[#allocation3 + $0x30] sm:$0xff] %vm690, %v2525
  %2542 = vst.msk [vmem:[#allocation3 + $0x38] sm:$0xff] %vm690, %v2526
  %2543 = vst.msk [vmem:[#allocation3 + $0x40] sm:$0xff] %vm690, %v2527
  %2544 = vst.msk [vmem:[#allocation3 + $0x48] sm:$0xff] %vm690, %v2528
  %2545 = vst.msk [vmem:[#allocation3 + $0x50] sm:$0xff] %vm690, %v2529
  %2546 = vst.msk [vmem:[#allocation3 + $0x58] sm:$0xff] %vm690, %v2530
  %2547 = vst.msk [vmem:[#allocation3 + $0x60] sm:$0xff] %vm690, %v2531
  %2548 = vst.msk [vmem:[#allocation3 + $0x68] sm:$0xff] %vm690, %v2532
  %2549 = vst.msk [vmem:[#allocation3 + $0x70] sm:$0xff] %vm690, %v2533
  %2550 = vst.msk [vmem:[#allocation3 + $0x78] sm:$0xff] %vm690, %v2534
  %v2551 = vld [vmem:[#allocation4] sm:$0xff]
  %v2552 = vld [vmem:[#allocation4 + $0x8] sm:$0xff]
  %v2553 = vld [vmem:[#allocation4 + $0x10] sm:$0xff]
  %v2554 = vld [vmem:[#allocation4 + $0x18] sm:$0xff]
  %v2555 = vld [vmem:[#allocation4 + $0x20] sm:$0xff]
  %v2556 = vld [vmem:[#allocation4 + $0x28] sm:$0xff]
  %v2557 = vld [vmem:[#allocation4 + $0x30] sm:$0xff]
  %v2558 = vld [vmem:[#allocation4 + $0x38] sm:$0xff]
  %v2559 = vld [vmem:[#allocation4 + $0x40] sm:$0xff]
  %v2560 = vld [vmem:[#allocation4 + $0x48] sm:$0xff]
  %v2561 = vld [vmem:[#allocation4 + $0x50] sm:$0xff]
  %v2562 = vld [vmem:[#allocation4 + $0x58] sm:$0xff]
  %v2563 = vld [vmem:[#allocation4 + $0x60] sm:$0xff]
  %v2564 = vld [vmem:[#allocation4 + $0x68] sm:$0xff]
  %v2565 = vld [vmem:[#allocation4 + $0x70] sm:$0xff]
  %v2566 = vld [vmem:[#allocation4 + $0x78] sm:$0xff]
  %2568 = vset.pattern.permute.xlu0 0
  %2569 = vperm.xlu0 %2568, %v2424
  %v2570 = vpop.permute.xlu0 %2569
  %2573 = vset.pattern.permute.xlu0 0
  %2574 = vperm.xlu0 %2573, %v2426
  %v2575 = vpop.permute.xlu0 %2574
  %2578 = vset.pattern.permute.xlu0 0
  %2579 = vperm.xlu0 %2578, %v2428
  %v2580 = vpop.permute.xlu0 %2579
  %2583 = vset.pattern.permute.xlu0 0
  %2584 = vperm.xlu0 %2583, %v2430
  %v2585 = vpop.permute.xlu0 %2584
  %2588 = vset.pattern.permute.xlu0 0
  %2589 = vperm.xlu0 %2588, %v2432
  %v2590 = vpop.permute.xlu0 %2589
  %2593 = vset.pattern.permute.xlu0 0
  %2594 = vperm.xlu0 %2593, %v2434
  %v2595 = vpop.permute.xlu0 %2594
  %2598 = vset.pattern.permute.xlu0 0
  %2599 = vperm.xlu0 %2598, %v2436
  %v2600 = vpop.permute.xlu0 %2599
  %2603 = vset.pattern.permute.xlu0 0
  %2604 = vperm.xlu0 %2603, %v2438
  %v2605 = vpop.permute.xlu0 %2604
  %2608 = vset.pattern.permute.xlu0 0
  %2609 = vperm.xlu0 %2608, %v2440
  %v2610 = vpop.permute.xlu0 %2609
  %2613 = vset.pattern.permute.xlu0 0
  %2614 = vperm.xlu0 %2613, %v2442
  %v2615 = vpop.permute.xlu0 %2614
  %2618 = vset.pattern.permute.xlu0 0
  %2619 = vperm.xlu0 %2618, %v2444
  %v2620 = vpop.permute.xlu0 %2619
  %2623 = vset.pattern.permute.xlu0 0
  %2624 = vperm.xlu0 %2623, %v2446
  %v2625 = vpop.permute.xlu0 %2624
  %2628 = vset.pattern.permute.xlu0 0
  %2629 = vperm.xlu0 %2628, %v2448
  %v2630 = vpop.permute.xlu0 %2629
  %2633 = vset.pattern.permute.xlu0 0
  %2634 = vperm.xlu0 %2633, %v2450
  %v2635 = vpop.permute.xlu0 %2634
  %2638 = vset.pattern.permute.xlu0 0
  %2639 = vperm.xlu0 %2638, %v2452
  %v2640 = vpop.permute.xlu0 %2639
  %2643 = vset.pattern.permute.xlu0 0
  %2644 = vperm.xlu0 %2643, %v2454
  %v2645 = vpop.permute.xlu0 %2644
  %v2647 = vmul.f32 %v2570, %v2551
  %v2648 = vmul.f32 %v2575, %v2552
  %v2649 = vmul.f32 %v2580, %v2553
  %v2650 = vmul.f32 %v2585, %v2554
  %v2651 = vmul.f32 %v2590, %v2555
  %v2652 = vmul.f32 %v2595, %v2556
  %v2653 = vmul.f32 %v2600, %v2557
  %v2654 = vmul.f32 %v2605, %v2558
  %v2655 = vmul.f32 %v2610, %v2559
  %v2656 = vmul.f32 %v2615, %v2560
  %v2657 = vmul.f32 %v2620, %v2561
  %v2658 = vmul.f32 %v2625, %v2562
  %v2659 = vmul.f32 %v2630, %v2563
  %v2660 = vmul.f32 %v2635, %v2564
  %v2661 = vmul.f32 %v2640, %v2565
  %v2662 = vmul.f32 %v2645, %v2566
  %v2663 = vpack.c.bf16 %v2378, %v2376
  %v2664 = vpack.c.bf16 %v2382, %v2380
  %v2665 = vpack.c.bf16 %v2386, %v2384
  %v2666 = vpack.c.bf16 %v2390, %v2388
  %v2667 = vpack.c.bf16 %v2394, %v2392
  %v2668 = vpack.c.bf16 %v2398, %v2396
  %v2669 = vpack.c.bf16 %v2402, %v2400
  %v2670 = vpack.c.bf16 %v2406, %v2404
  %v2671 = vld [vmem:[%s3 + $0x8] sm:$0xf]
  %v2672 = vld [vmem:[%s3 + $0x14] sm:$0xf]
  %v2673 = vld [vmem:[%s3 + $0x20] sm:$0xf]
  %v2674 = vld [vmem:[%s3 + $0x2c] sm:$0xf]
  %v2675 = vld [vmem:[%s3 + $0x38] sm:$0xf]
  %v2676 = vld [vmem:[%s3 + $0x44] sm:$0xf]
  %v2677 = vld [vmem:[%s3 + $0x50] sm:$0xf]
  %v2678 = vld [vmem:[%s3 + $0x5c] sm:$0xf]
  %v2679 = vld [vmem:[%s3 + $0x68] sm:$0xf]
  %v2680 = vld [vmem:[%s3 + $0x74] sm:$0xf]
  %v2681 = vld [vmem:[%s3 + $0x80] sm:$0xf]
  %v2682 = vld [vmem:[%s3 + $0x8c] sm:$0xf]
  %v2683 = vld [vmem:[%s3 + $0x98] sm:$0xf]
  %v2684 = vld [vmem:[%s3 + $0xa4] sm:$0xf]
  %v2685 = vld [vmem:[%s3 + $0xb0] sm:$0xf]
  %v2686 = vld [vmem:[%s3 + $0xbc] sm:$0xf]
  %v2703 = vunpack.c.l.b16 %v2671
  %v2704 = vunpack.c.l.b16 %v2672
  %v2705 = vunpack.c.l.b16 %v2673
  %v2706 = vunpack.c.l.b16 %v2674
  %v2707 = vunpack.c.l.b16 %v2675
  %v2708 = vunpack.c.l.b16 %v2676
  %v2709 = vunpack.c.l.b16 %v2677
  %v2710 = vunpack.c.l.b16 %v2678
  %v2711 = vunpack.c.l.b16 %v2679
  %v2712 = vunpack.c.l.b16 %v2680
  %v2713 = vunpack.c.l.b16 %v2681
  %v2714 = vunpack.c.l.b16 %v2682
  %v2715 = vunpack.c.l.b16 %v2683
  %v2716 = vunpack.c.l.b16 %v2684
  %v2717 = vunpack.c.l.b16 %v2685
  %v2718 = vunpack.c.l.b16 %v2686
  %v2719 = vpack.c.b16 %v2704, %v2703
  %v2720 = vpack.c.b16 %v2706, %v2705
  %v2721 = vpack.c.b16 %v2708, %v2707
  %v2722 = vpack.c.b16 %v2710, %v2709
  %v2723 = vpack.c.b16 %v2712, %v2711
  %v2724 = vpack.c.b16 %v2714, %v2713
  %v2725 = vpack.c.b16 %v2716, %v2715
  %v2726 = vpack.c.b16 %v2718, %v2717
  %2735 = vmatprep.subr.bf16.mxu0 0
  %2736 = vmatpush1.bf16.msra.mxu0 %v2726
  %2737 = vmatprep.subr.bf16.mxu0 0
  %2738 = vmatpush1.bf16.msra.mxu0 %v2725
  %2739 = vmatprep.subr.bf16.mxu0 0
  %2740 = vmatpush1.bf16.msra.mxu0 %v2724
  %2741 = vmatprep.subr.bf16.mxu0 0
  %2742 = vmatpush1.bf16.msra.mxu0 %v2723
  %2743 = vmatprep.subr.bf16.mxu0 0
  %2744 = vmatpush1.bf16.msra.mxu0 %v2722
  %2745 = vmatprep.subr.bf16.mxu0 0
  %2746 = vmatpush1.bf16.msra.mxu0 %v2721
  %2747 = vmatprep.subr.bf16.mxu0 0
  %2748 = vmatpush1.bf16.msra.mxu0 %v2720
  %2749 = vmatprep.subr.bf16.mxu0 0
  %2750 = vmatpush1.bf16.msra.mxu0 %v2719
  %2751 = vmatprep.subr.bf16.mxu0 0
  %2752 = vmatpush2.bf16.msra.mxu0 0
  %2753 = vmatprep.subr.bf16.mxu0 0
  %2754 = vmatpush2.bf16.msra.mxu0 0
  %2755 = vmatprep.subr.bf16.mxu0 0
  %2756 = vmatpush2.bf16.msra.mxu0 0
  %2757 = vmatprep.subr.bf16.mxu0 0
  %2758 = vmatpush2.bf16.msra.mxu0 0
  %2759 = vmatprep.subr.bf16.mxu0 0
  %2760 = vmatpush2.bf16.msra.mxu0 0
  %2761 = vmatprep.subr.bf16.mxu0 0
  %2762 = vmatpush2.bf16.msra.mxu0 0
  %2763 = vmatprep.subr.bf16.mxu0 0
  %2764 = vmatpush2.bf16.msra.mxu0 0
  %2765 = vmatprep.subr.bf16.mxu0 0
  %2766 = vmatpush2.bf16.msra.mxu0 0
  %2767 = vmatprep.mubr.bf16.mxu0 0
  %2768 = vmatmul.mubr.bf16.gmra.mxu0 %v2663
  %v2769 = vpop.f32.mrf.mxu0
  %v2770 = vadd.f32 0.0, %v2769
  %v2771 = vpop.f32.mrf.mxu0
  %v2772 = vpop.f32.mrf.mxu0
  %v2773 = vadd.f32 0.0, %v2772
  %v2774 = vpop.f32.mrf.mxu0
  %2775 = vmatprep.mubr.bf16.mxu0 0
  %2776 = vmatmul.mubr.bf16.gmra.mxu0 %v2664
  %v2777 = vpop.f32.mrf.mxu0
  %v2778 = vadd.f32 0.0, %v2777
  %v2779 = vpop.f32.mrf.mxu0
  %v2780 = vpop.f32.mrf.mxu0
  %v2781 = vadd.f32 0.0, %v2780
  %v2782 = vpop.f32.mrf.mxu0
  %2783 = vmatprep.mubr.bf16.mxu0 0
  %2784 = vmatmul.mubr.bf16.gmra.mxu0 %v2665
  %v2785 = vpop.f32.mrf.mxu0
  %v2786 = vadd.f32 0.0, %v2785
  %v2787 = vpop.f32.mrf.mxu0
  %v2788 = vpop.f32.mrf.mxu0
  %v2789 = vadd.f32 0.0, %v2788
  %v2790 = vpop.f32.mrf.mxu0
  %2791 = vmatprep.mubr.bf16.mxu0 0
  %2792 = vmatmul.mubr.bf16.gmra.mxu0 %v2666
  %v2793 = vpop.f32.mrf.mxu0
  %v2794 = vadd.f32 0.0, %v2793
  %v2795 = vpop.f32.mrf.mxu0
  %v2796 = vpop.f32.mrf.mxu0
  %v2797 = vadd.f32 0.0, %v2796
  %v2798 = vpop.f32.mrf.mxu0
  %2799 = vmatprep.mubr.bf16.mxu0 0
  %2800 = vmatmul.mubr.bf16.gmra.mxu0 %v2667
  %v2801 = vpop.f32.mrf.mxu0
  %v2802 = vadd.f32 0.0, %v2801
  %v2803 = vpop.f32.mrf.mxu0
  %v2804 = vpop.f32.mrf.mxu0
  %v2805 = vadd.f32 0.0, %v2804
  %v2806 = vpop.f32.mrf.mxu0
  %2807 = vmatprep.mubr.bf16.mxu0 0
  %2808 = vmatmul.mubr.bf16.gmra.mxu0 %v2668
  %v2809 = vpop.f32.mrf.mxu0
  %v2810 = vadd.f32 0.0, %v2809
  %v2811 = vpop.f32.mrf.mxu0
  %v2812 = vpop.f32.mrf.mxu0
  %v2813 = vadd.f32 0.0, %v2812
  %v2814 = vpop.f32.mrf.mxu0
  %2815 = vmatprep.mubr.bf16.mxu0 0
  %2816 = vmatmul.mubr.bf16.gmra.mxu0 %v2669
  %v2817 = vpop.f32.mrf.mxu0
  %v2818 = vadd.f32 0.0, %v2817
  %v2819 = vpop.f32.mrf.mxu0
  %v2820 = vpop.f32.mrf.mxu0
  %v2821 = vadd.f32 0.0, %v2820
  %v2822 = vpop.f32.mrf.mxu0
  %2823 = vmatprep.mubr.bf16.mxu0 0
  %2824 = vmatmul.mubr.bf16.gmra.mxu0 %v2670
  %v2825 = vpop.f32.mrf.mxu0
  %v2826 = vadd.f32 0.0, %v2825
  %v2827 = vpop.f32.mrf.mxu0
  %v2828 = vpop.f32.mrf.mxu0
  %v2829 = vadd.f32 0.0, %v2828
  %v2830 = vpop.f32.mrf.mxu0
  %2831 = vdwg.mxu0
  %v2832 = vadd.f32 %v2647, %v2770
  %v2833 = vadd.f32 %v2648, %v2773
  %v2834 = vadd.f32 %v2649, %v2778
  %v2835 = vadd.f32 %v2650, %v2781
  %v2836 = vadd.f32 %v2651, %v2786
  %v2837 = vadd.f32 %v2652, %v2789
  %v2838 = vadd.f32 %v2653, %v2794
  %v2839 = vadd.f32 %v2654, %v2797
  %v2840 = vadd.f32 %v2655, %v2802
  %v2841 = vadd.f32 %v2656, %v2805
  %v2842 = vadd.f32 %v2657, %v2810
  %v2843 = vadd.f32 %v2658, %v2813
  %v2844 = vadd.f32 %v2659, %v2818
  %v2845 = vadd.f32 %v2660, %v2821
  %v2846 = vadd.f32 %v2661, %v2826
  %v2847 = vadd.f32 %v2662, %v2829
  %2848 = vst [vmem:[#allocation4] sm:$0xff] %v2832
  %2849 = vst [vmem:[#allocation4 + $0x8] sm:$0xff] %v2833
  %2850 = vst [vmem:[#allocation4 + $0x10] sm:$0xff] %v2834
  %2851 = vst [vmem:[#allocation4 + $0x18] sm:$0xff] %v2835
  %2852 = vst [vmem:[#allocation4 + $0x20] sm:$0xff] %v2836
  %2853 = vst [vmem:[#allocation4 + $0x28] sm:$0xff] %v2837
  %2854 = vst [vmem:[#allocation4 + $0x30] sm:$0xff] %v2838
  %2855 = vst [vmem:[#allocation4 + $0x38] sm:$0xff] %v2839
  %2856 = vst [vmem:[#allocation4 + $0x40] sm:$0xff] %v2840
  %2857 = vst [vmem:[#allocation4 + $0x48] sm:$0xff] %v2841
  %2858 = vst [vmem:[#allocation4 + $0x50] sm:$0xff] %v2842
  %2859 = vst [vmem:[#allocation4 + $0x58] sm:$0xff] %v2843
  %2860 = vst [vmem:[#allocation4 + $0x60] sm:$0xff] %v2844
  %2861 = vst [vmem:[#allocation4 + $0x68] sm:$0xff] %v2845
  %2862 = vst [vmem:[#allocation4 + $0x70] sm:$0xff] %v2846
  %2863 = vst [vmem:[#allocation4 + $0x78] sm:$0xff] %v2847
  %2864 = vst.msk [vmem:[#allocation2] sm:$0xff] %vm690, %v2263
  %2865 = vst.msk [vmem:[#allocation2 + $0x8] sm:$0xff] %vm690, %v2264
  %2866 = vst.msk [vmem:[#allocation2 + $0x10] sm:$0xff] %vm690, %v2265
  %2867 = vst.msk [vmem:[#allocation2 + $0x18] sm:$0xff] %vm690, %v2266
  %2868 = vst.msk [vmem:[#allocation2 + $0x20] sm:$0xff] %vm690, %v2267
  %2869 = vst.msk [vmem:[#allocation2 + $0x28] sm:$0xff] %vm690, %v2268
  %2870 = vst.msk [vmem:[#allocation2 + $0x30] sm:$0xff] %vm690, %v2269
  %2871 = vst.msk [vmem:[#allocation2 + $0x38] sm:$0xff] %vm690, %v2270
  %2872 = vst.msk [vmem:[#allocation2 + $0x40] sm:$0xff] %vm690, %v2271
  %2873 = vst.msk [vmem:[#allocation2 + $0x48] sm:$0xff] %vm690, %v2272
  %2874 = vst.msk [vmem:[#allocation2 + $0x50] sm:$0xff] %vm690, %v2273
  %2875 = vst.msk [vmem:[#allocation2 + $0x58] sm:$0xff] %vm690, %v2274
  %2876 = vst.msk [vmem:[#allocation2 + $0x60] sm:$0xff] %vm690, %v2275
  %2877 = vst.msk [vmem:[#allocation2 + $0x68] sm:$0xff] %vm690, %v2276
  %2878 = vst.msk [vmem:[#allocation2 + $0x70] sm:$0xff] %vm690, %v2277
  %2879 = vst.msk [vmem:[#allocation2 + $0x78] sm:$0xff] %vm690, %v2278
  // Predicated region
  $region30: #{lm_concat_rgat_forward.4} parent=0 // pred_check
    %p2880 = pneg %p28
  $region31: #{lm_concat_rgat_forward.4} parent=0 // pred_check_branch
    %2882 = sbr.rel (%p2880) target = $region33
  $region32: #{lm_concat_rgat_forward.4} parent=0 // pred_region
    %v2883 = vld [vmem:[#allocation3] sm:$0xff]
    %v2884 = vld [vmem:[#allocation3 + $0x8] sm:$0xff]
    %v2885 = vld [vmem:[#allocation3 + $0x10] sm:$0xff]
    %v2886 = vld [vmem:[#allocation3 + $0x18] sm:$0xff]
    %v2887 = vld [vmem:[#allocation3 + $0x20] sm:$0xff]
    %v2888 = vld [vmem:[#allocation3 + $0x28] sm:$0xff]
    %v2889 = vld [vmem:[#allocation3 + $0x30] sm:$0xff]
    %v2890 = vld [vmem:[#allocation3 + $0x38] sm:$0xff]
    %v2891 = vld [vmem:[#allocation3 + $0x40] sm:$0xff]
    %v2892 = vld [vmem:[#allocation3 + $0x48] sm:$0xff]
    %v2893 = vld [vmem:[#allocation3 + $0x50] sm:$0xff]
    %v2894 = vld [vmem:[#allocation3 + $0x58] sm:$0xff]
    %v2895 = vld [vmem:[#allocation3 + $0x60] sm:$0xff]
    %v2896 = vld [vmem:[#allocation3 + $0x68] sm:$0xff]
    %v2897 = vld [vmem:[#allocation3 + $0x70] sm:$0xff]
    %v2898 = vld [vmem:[#allocation3 + $0x78] sm:$0xff]
    %vm2899 = vcmp.gt.f32.partialorder %v2883, 0.0
    %vm2900 = vcmp.gt.f32.partialorder %v2884, 0.0
    %vm2901 = vcmp.gt.f32.partialorder %v2885, 0.0
    %vm2902 = vcmp.gt.f32.partialorder %v2886, 0.0
    %vm2903 = vcmp.gt.f32.partialorder %v2887, 0.0
    %vm2904 = vcmp.gt.f32.partialorder %v2888, 0.0
    %vm2905 = vcmp.gt.f32.partialorder %v2889, 0.0
    %vm2906 = vcmp.gt.f32.partialorder %v2890, 0.0
    %vm2907 = vcmp.gt.f32.partialorder %v2891, 0.0
    %vm2908 = vcmp.gt.f32.partialorder %v2892, 0.0
    %vm2909 = vcmp.gt.f32.partialorder %v2893, 0.0
    %vm2910 = vcmp.gt.f32.partialorder %v2894, 0.0
    %vm2911 = vcmp.gt.f32.partialorder %v2895, 0.0
    %vm2912 = vcmp.gt.f32.partialorder %v2896, 0.0
    %vm2913 = vcmp.gt.f32.partialorder %v2897, 0.0
    %vm2914 = vcmp.gt.f32.partialorder %v2898, 0.0
    %v2915 = vrcp.pop %v2883
    %v2916 = vrcp.pop %v2884
    %v2917 = vrcp.pop %v2885
    %v2918 = vrcp.pop %v2886
    %v2919 = vrcp.pop %v2887
    %v2920 = vrcp.pop %v2888
    %v2921 = vrcp.pop %v2889
    %v2922 = vrcp.pop %v2890
    %v2923 = vrcp.pop %v2891
    %v2924 = vrcp.pop %v2892
    %v2925 = vrcp.pop %v2893
    %v2926 = vrcp.pop %v2894
    %v2927 = vrcp.pop %v2895
    %v2928 = vrcp.pop %v2896
    %v2929 = vrcp.pop %v2897
    %v2930 = vrcp.pop %v2898
    %v2931 = vsel %vm2899, %v2915, 0.0
    %v2932 = vsel %vm2900, %v2916, 0.0
    %v2933 = vsel %vm2901, %v2917, 0.0
    %v2934 = vsel %vm2902, %v2918, 0.0
    %v2935 = vsel %vm2903, %v2919, 0.0
    %v2936 = vsel %vm2904, %v2920, 0.0
    %v2937 = vsel %vm2905, %v2921, 0.0
    %v2938 = vsel %vm2906, %v2922, 0.0
    %v2939 = vsel %vm2907, %v2923, 0.0
    %v2940 = vsel %vm2908, %v2924, 0.0
    %v2941 = vsel %vm2909, %v2925, 0.0
    %v2942 = vsel %vm2910, %v2926, 0.0
    %v2943 = vsel %vm2911, %v2927, 0.0
    %v2944 = vsel %vm2912, %v2928, 0.0
    %v2945 = vsel %vm2913, %v2929, 0.0
    %v2946 = vsel %vm2914, %v2930, 0.0
    %v2947 = vld [vmem:[#allocation4] sm:$0xff]
    %v2948 = vld [vmem:[#allocation4 + $0x8] sm:$0xff]
    %v2949 = vld [vmem:[#allocation4 + $0x10] sm:$0xff]
    %v2950 = vld [vmem:[#allocation4 + $0x18] sm:$0xff]
    %v2951 = vld [vmem:[#allocation4 + $0x20] sm:$0xff]
    %v2952 = vld [vmem:[#allocation4 + $0x28] sm:$0xff]
    %v2953 = vld [vmem:[#allocation4 + $0x30] sm:$0xff]
    %v2954 = vld [vmem:[#allocation4 + $0x38] sm:$0xff]
    %v2955 = vld [vmem:[#allocation4 + $0x40] sm:$0xff]
    %v2956 = vld [vmem:[#allocation4 + $0x48] sm:$0xff]
    %v2957 = vld [vmem:[#allocation4 + $0x50] sm:$0xff]
    %v2958 = vld [vmem:[#allocation4 + $0x58] sm:$0xff]
    %v2959 = vld [vmem:[#allocation4 + $0x60] sm:$0xff]
    %v2960 = vld [vmem:[#allocation4 + $0x68] sm:$0xff]
    %v2961 = vld [vmem:[#allocation4 + $0x70] sm:$0xff]
    %v2962 = vld [vmem:[#allocation4 + $0x78] sm:$0xff]
    %2964 = vset.pattern.permute.xlu0 0
    %2965 = vperm.xlu0 %2964, %v2931
    %v2966 = vpop.permute.xlu0 %2965
    %2969 = vset.pattern.permute.xlu0 0
    %2970 = vperm.xlu0 %2969, %v2932
    %v2971 = vpop.permute.xlu0 %2970
    %2974 = vset.pattern.permute.xlu0 0
    %2975 = vperm.xlu0 %2974, %v2933
    %v2976 = vpop.permute.xlu0 %2975
    %2979 = vset.pattern.permute.xlu0 0
    %2980 = vperm.xlu0 %2979, %v2934
    %v2981 = vpop.permute.xlu0 %2980
    %2984 = vset.pattern.permute.xlu0 0
    %2985 = vperm.xlu0 %2984, %v2935
    %v2986 = vpop.permute.xlu0 %2985
    %2989 = vset.pattern.permute.xlu0 0
    %2990 = vperm.xlu0 %2989, %v2936
    %v2991 = vpop.permute.xlu0 %2990
    %2994 = vset.pattern.permute.xlu0 0
    %2995 = vperm.xlu0 %2994, %v2937
    %v2996 = vpop.permute.xlu0 %2995
    %2999 = vset.pattern.permute.xlu0 0
    %3000 = vperm.xlu0 %2999, %v2938
    %v3001 = vpop.permute.xlu0 %3000
    %3004 = vset.pattern.permute.xlu0 0
    %3005 = vperm.xlu0 %3004, %v2939
    %v3006 = vpop.permute.xlu0 %3005
    %3009 = vset.pattern.permute.xlu0 0
    %3010 = vperm.xlu0 %3009, %v2940
    %v3011 = vpop.permute.xlu0 %3010
    %3014 = vset.pattern.permute.xlu0 0
    %3015 = vperm.xlu0 %3014, %v2941
    %v3016 = vpop.permute.xlu0 %3015
    %3019 = vset.pattern.permute.xlu0 0
    %3020 = vperm.xlu0 %3019, %v2942
    %v3021 = vpop.permute.xlu0 %3020
    %3024 = vset.pattern.permute.xlu0 0
    %3025 = vperm.xlu0 %3024, %v2943
    %v3026 = vpop.permute.xlu0 %3025
    %3029 = vset.pattern.permute.xlu0 0
    %3030 = vperm.xlu0 %3029, %v2944
    %v3031 = vpop.permute.xlu0 %3030
    %3034 = vset.pattern.permute.xlu0 0
    %3035 = vperm.xlu0 %3034, %v2945
    %v3036 = vpop.permute.xlu0 %3035
    %3039 = vset.pattern.permute.xlu0 0
    %3040 = vperm.xlu0 %3039, %v2946
    %v3041 = vpop.permute.xlu0 %3040
    %v3043 = vmul.f32 %v2947, %v2966
    %v3044 = vmul.f32 %v2948, %v2971
    %v3045 = vmul.f32 %v2949, %v2976
    %v3046 = vmul.f32 %v2950, %v2981
    %v3047 = vmul.f32 %v2951, %v2986
    %v3048 = vmul.f32 %v2952, %v2991
    %v3049 = vmul.f32 %v2953, %v2996
    %v3050 = vmul.f32 %v2954, %v3001
    %v3051 = vmul.f32 %v2955, %v3006
    %v3052 = vmul.f32 %v2956, %v3011
    %v3053 = vmul.f32 %v2957, %v3016
    %v3054 = vmul.f32 %v2958, %v3021
    %v3055 = vmul.f32 %v2959, %v3026
    %v3056 = vmul.f32 %v2960, %v3031
    %v3057 = vmul.f32 %v2961, %v3036
    %v3058 = vmul.f32 %v2962, %v3041
    %v3059 = vld [vmem:[%s4] sm:$0x1]
    %v3061 = vlaneseq
    %v3062 = vshrl.u32 %v3061, 7
    %v3063 = vsub.s32 0, %v3062
    %v3064 = vrot.slane %v3059, %v3063
    %v3066 = vadd.f32 %v3043, %v3064
    %v3067 = vadd.f32 %v3044, %v3064
    %v3068 = vadd.f32 %v3045, %v3064
    %v3069 = vadd.f32 %v3046, %v3064
    %v3070 = vadd.f32 %v3047, %v3064
    %v3071 = vadd.f32 %v3048, %v3064
    %v3072 = vadd.f32 %v3049, %v3064
    %v3073 = vadd.f32 %v3050, %v3064
    %v3074 = vadd.f32 %v3051, %v3064
    %v3075 = vadd.f32 %v3052, %v3064
    %v3076 = vadd.f32 %v3053, %v3064
    %v3077 = vadd.f32 %v3054, %v3064
    %v3078 = vadd.f32 %v3055, %v3064
    %v3079 = vadd.f32 %v3056, %v3064
    %v3080 = vadd.f32 %v3057, %v3064
    %v3081 = vadd.f32 %v3058, %v3064
    %v3082 = vmax.f32 %v3066, 0.0
    %v3083 = vmax.f32 %v3067, 0.0
    %v3084 = vmax.f32 %v3068, 0.0
    %v3085 = vmax.f32 %v3069, 0.0
    %v3086 = vmax.f32 %v3070, 0.0
    %v3087 = vmax.f32 %v3071, 0.0
    %v3088 = vmax.f32 %v3072, 0.0
    %v3089 = vmax.f32 %v3073, 0.0
    %v3090 = vmax.f32 %v3074, 0.0
    %v3091 = vmax.f32 %v3075, 0.0
    %v3092 = vmax.f32 %v3076, 0.0
    %v3093 = vmax.f32 %v3077, 0.0
    %v3094 = vmax.f32 %v3078, 0.0
    %v3095 = vmax.f32 %v3079, 0.0
    %v3096 = vmax.f32 %v3080, 0.0
    %v3097 = vmax.f32 %v3081, 0.0
    %v3098 = vpack.c.bf16 %v3083, %v3082
    %v3099 = vpack.c.bf16 %v3085, %v3084
    %v3100 = vpack.c.bf16 %v3087, %v3086
    %v3101 = vpack.c.bf16 %v3089, %v3088
    %v3102 = vpack.c.bf16 %v3091, %v3090
    %v3103 = vpack.c.bf16 %v3093, %v3092
    %v3104 = vpack.c.bf16 %v3095, %v3094
    %v3105 = vpack.c.bf16 %v3097, %v3096
    %v3106 = vld [vmem:[%s5] sm:$0xff]
    %v3107 = vld [vmem:[%s5 + $0x8] sm:$0xff]
    %v3108 = vld [vmem:[%s5 + $0x10] sm:$0xff]
    %v3109 = vld [vmem:[%s5 + $0x18] sm:$0xff]
    %v3110 = vld [vmem:[%s5 + $0x20] sm:$0xff]
    %v3111 = vld [vmem:[%s5 + $0x28] sm:$0xff]
    %v3112 = vld [vmem:[%s5 + $0x30] sm:$0xff]
    %v3113 = vld [vmem:[%s5 + $0x38] sm:$0xff]
    %v3114 = vld [vmem:[%s5 + $0x40] sm:$0xff]
    %v3115 = vld [vmem:[%s5 + $0x48] sm:$0xff]
    %v3116 = vld [vmem:[%s5 + $0x50] sm:$0xff]
    %v3117 = vld [vmem:[%s5 + $0x58] sm:$0xff]
    %v3118 = vld [vmem:[%s5 + $0x60] sm:$0xff]
    %v3119 = vld [vmem:[%s5 + $0x68] sm:$0xff]
    %v3120 = vld [vmem:[%s5 + $0x70] sm:$0xff]
    %v3121 = vld [vmem:[%s5 + $0x78] sm:$0xff]
    %v3122 = vld [vmem:[%s5 + $0x80] sm:$0xff]
    %v3123 = vld [vmem:[%s5 + $0x88] sm:$0xff]
    %v3124 = vld [vmem:[%s5 + $0x90] sm:$0xff]
    %v3125 = vld [vmem:[%s5 + $0x98] sm:$0xff]
    %v3126 = vld [vmem:[%s5 + $0xa0] sm:$0xff]
    %v3127 = vld [vmem:[%s5 + $0xa8] sm:$0xff]
    %v3128 = vld [vmem:[%s5 + $0xb0] sm:$0xff]
    %v3129 = vld [vmem:[%s5 + $0xb8] sm:$0xff]
    %v3130 = vld [vmem:[%s5 + $0xc0] sm:$0xff]
    %v3131 = vld [vmem:[%s5 + $0xc8] sm:$0xff]
    %v3132 = vld [vmem:[%s5 + $0xd0] sm:$0xff]
    %v3133 = vld [vmem:[%s5 + $0xd8] sm:$0xff]
    %v3134 = vld [vmem:[%s5 + $0xe0] sm:$0xff]
    %v3135 = vld [vmem:[%s5 + $0xe8] sm:$0xff]
    %v3136 = vld [vmem:[%s5 + $0xf0] sm:$0xff]
    %v3137 = vld [vmem:[%s5 + $0xf8] sm:$0xff]
    %v3170 = vunpack.c.l.b16 %v3106
    %v3171 = vunpack.c.h.b16 %v3106
    %v3172 = vunpack.c.l.b16 %v3107
    %v3173 = vunpack.c.h.b16 %v3107
    %v3174 = vunpack.c.l.b16 %v3108
    %v3175 = vunpack.c.h.b16 %v3108
    %v3176 = vunpack.c.l.b16 %v3109
    %v3177 = vunpack.c.h.b16 %v3109
    %v3178 = vunpack.c.l.b16 %v3110
    %v3179 = vunpack.c.h.b16 %v3110
    %v3180 = vunpack.c.l.b16 %v3111
    %v3181 = vunpack.c.h.b16 %v3111
    %v3182 = vunpack.c.l.b16 %v3112
    %v3183 = vunpack.c.h.b16 %v3112
    %v3184 = vunpack.c.l.b16 %v3113
    %v3185 = vunpack.c.h.b16 %v3113
    %v3186 = vunpack.c.l.b16 %v3114
    %v3187 = vunpack.c.h.b16 %v3114
    %v3188 = vunpack.c.l.b16 %v3115
    %v3189 = vunpack.c.h.b16 %v3115
    %v3190 = vunpack.c.l.b16 %v3116
    %v3191 = vunpack.c.h.b16 %v3116
    %v3192 = vunpack.c.l.b16 %v3117
    %v3193 = vunpack.c.h.b16 %v3117
    %v3194 = vunpack.c.l.b16 %v3118
    %v3195 = vunpack.c.h.b16 %v3118
    %v3196 = vunpack.c.l.b16 %v3119
    %v3197 = vunpack.c.h.b16 %v3119
    %v3198 = vunpack.c.l.b16 %v3120
    %v3199 = vunpack.c.h.b16 %v3120
    %v3200 = vunpack.c.l.b16 %v3121
    %v3201 = vunpack.c.h.b16 %v3121
    %v3202 = vunpack.c.l.b16 %v3122
    %v3203 = vunpack.c.h.b16 %v3122
    %v3204 = vunpack.c.l.b16 %v3123
    %v3205 = vunpack.c.h.b16 %v3123
    %v3206 = vunpack.c.l.b16 %v3124
    %v3207 = vunpack.c.h.b16 %v3124
    %v3208 = vunpack.c.l.b16 %v3125
    %v3209 = vunpack.c.h.b16 %v3125
    %v3210 = vunpack.c.l.b16 %v3126
    %v3211 = vunpack.c.h.b16 %v3126
    %v3212 = vunpack.c.l.b16 %v3127
    %v3213 = vunpack.c.h.b16 %v3127
    %v3214 = vunpack.c.l.b16 %v3128
    %v3215 = vunpack.c.h.b16 %v3128
    %v3216 = vunpack.c.l.b16 %v3129
    %v3217 = vunpack.c.h.b16 %v3129
    %v3218 = vunpack.c.l.b16 %v3130
    %v3219 = vunpack.c.h.b16 %v3130
    %v3220 = vunpack.c.l.b16 %v3131
    %v3221 = vunpack.c.h.b16 %v3131
    %v3222 = vunpack.c.l.b16 %v3132
    %v3223 = vunpack.c.h.b16 %v3132
    %v3224 = vunpack.c.l.b16 %v3133
    %v3225 = vunpack.c.h.b16 %v3133
    %v3226 = vunpack.c.l.b16 %v3134
    %v3227 = vunpack.c.h.b16 %v3134
    %v3228 = vunpack.c.l.b16 %v3135
    %v3229 = vunpack.c.h.b16 %v3135
    %v3230 = vunpack.c.l.b16 %v3136
    %v3231 = vunpack.c.h.b16 %v3136
    %v3232 = vunpack.c.l.b16 %v3137
    %v3233 = vunpack.c.h.b16 %v3137
    %v3234 = vpack.c.b16 %v3174, %v3170
    %v3235 = vpack.c.b16 %v3175, %v3171
    %v3236 = vpack.c.b16 %v3176, %v3172
    %v3237 = vpack.c.b16 %v3177, %v3173
    %v3238 = vpack.c.b16 %v3182, %v3178
    %v3239 = vpack.c.b16 %v3183, %v3179
    %v3240 = vpack.c.b16 %v3184, %v3180
    %v3241 = vpack.c.b16 %v3185, %v3181
    %v3242 = vpack.c.b16 %v3190, %v3186
    %v3243 = vpack.c.b16 %v3191, %v3187
    %v3244 = vpack.c.b16 %v3192, %v3188
    %v3245 = vpack.c.b16 %v3193, %v3189
    %v3246 = vpack.c.b16 %v3198, %v3194
    %v3247 = vpack.c.b16 %v3199, %v3195
    %v3248 = vpack.c.b16 %v3200, %v3196
    %v3249 = vpack.c.b16 %v3201, %v3197
    %v3250 = vpack.c.b16 %v3206, %v3202
    %v3251 = vpack.c.b16 %v3207, %v3203
    %v3252 = vpack.c.b16 %v3208, %v3204
    %v3253 = vpack.c.b16 %v3209, %v3205
    %v3254 = vpack.c.b16 %v3214, %v3210
    %v3255 = vpack.c.b16 %v3215, %v3211
    %v3256 = vpack.c.b16 %v3216, %v3212
    %v3257 = vpack.c.b16 %v3217, %v3213
    %v3258 = vpack.c.b16 %v3222, %v3218
    %v3259 = vpack.c.b16 %v3223, %v3219
    %v3260 = vpack.c.b16 %v3224, %v3220
    %v3261 = vpack.c.b16 %v3225, %v3221
    %v3262 = vpack.c.b16 %v3230, %v3226
    %v3263 = vpack.c.b16 %v3231, %v3227
    %v3264 = vpack.c.b16 %v3232, %v3228
    %v3265 = vpack.c.b16 %v3233, %v3229
    %3298 = vmatprep.subr.bf16.mxu0 %v3263
    %3299 = vmatpush1.bf16.msra.mxu0 %v3262
    %3300 = vmatprep.subr.bf16.mxu0 %v3259
    %3301 = vmatpush1.bf16.msra.mxu0 %v3258
    %3302 = vmatprep.subr.bf16.mxu0 %v3255
    %3303 = vmatpush1.bf16.msra.mxu0 %v3254
    %3304 = vmatprep.subr.bf16.mxu0 %v3251
    %3305 = vmatpush1.bf16.msra.mxu0 %v3250
    %3306 = vmatprep.subr.bf16.mxu0 %v3247
    %3307 = vmatpush1.bf16.msra.mxu0 %v3246
    %3308 = vmatprep.subr.bf16.mxu0 %v3243
    %3309 = vmatpush1.bf16.msra.mxu0 %v3242
    %3310 = vmatprep.subr.bf16.mxu0 %v3239
    %3311 = vmatpush1.bf16.msra.mxu0 %v3238
    %3312 = vmatprep.subr.bf16.mxu0 %v3235
    %3313 = vmatpush1.bf16.msra.mxu0 %v3234
    %3314 = vmatprep.subr.bf16.mxu0 0
    %3315 = vmatpush2.bf16.msra.mxu0 0
    %3316 = vmatprep.subr.bf16.mxu0 0
    %3317 = vmatpush2.bf16.msra.mxu0 0
    %3318 = vmatprep.subr.bf16.mxu0 0
    %3319 = vmatpush2.bf16.msra.mxu0 0
    %3320 = vmatprep.subr.bf16.mxu0 0
    %3321 = vmatpush2.bf16.msra.mxu0 0
    %3322 = vmatprep.subr.bf16.mxu0 0
    %3323 = vmatpush2.bf16.msra.mxu0 0
    %3324 = vmatprep.subr.bf16.mxu0 0
    %3325 = vmatpush2.bf16.msra.mxu0 0
    %3326 = vmatprep.subr.bf16.mxu0 0
    %3327 = vmatpush2.bf16.msra.mxu0 0
    %3328 = vmatprep.subr.bf16.mxu0 0
    %3329 = vmatpush2.bf16.msra.mxu0 0
    %3330 = vmatprep.mubr.bf16.mxu0 0
    %3331 = vmatmul.mubr.bf16.gmra.mxu0 %v3098
    %v3332 = vpop.f32.mrf.mxu0
    %v3333 = vadd.f32 0.0, %v3332
    %v3334 = vpop.f32.mrf.mxu0
    %v3335 = vadd.f32 0.0, %v3334
    %v3336 = vpop.f32.mrf.mxu0
    %v3337 = vadd.f32 0.0, %v3336
    %v3338 = vpop.f32.mrf.mxu0
    %v3339 = vadd.f32 0.0, %v3338
    %3340 = vmatprep.mubr.bf16.mxu0 0
    %3341 = vmatmul.mubr.bf16.gmra.mxu0 %v3099
    %v3342 = vpop.f32.mrf.mxu0
    %v3343 = vadd.f32 0.0, %v3342
    %v3344 = vpop.f32.mrf.mxu0
    %v3345 = vadd.f32 0.0, %v3344
    %v3346 = vpop.f32.mrf.mxu0
    %v3347 = vadd.f32 0.0, %v3346
    %v3348 = vpop.f32.mrf.mxu0
    %v3349 = vadd.f32 0.0, %v3348
    %3350 = vmatprep.mubr.bf16.mxu0 0
    %3351 = vmatmul.mubr.bf16.gmra.mxu0 %v3100
    %v3352 = vpop.f32.mrf.mxu0
    %v3353 = vadd.f32 0.0, %v3352
    %v3354 = vpop.f32.mrf.mxu0
    %v3355 = vadd.f32 0.0, %v3354
    %v3356 = vpop.f32.mrf.mxu0
    %v3357 = vadd.f32 0.0, %v3356
    %v3358 = vpop.f32.mrf.mxu0
    %v3359 = vadd.f32 0.0, %v3358
    %3360 = vmatprep.mubr.bf16.mxu0 0
    %3361 = vmatmul.mubr.bf16.gmra.mxu0 %v3101
    %v3362 = vpop.f32.mrf.mxu0
    %v3363 = vadd.f32 0.0, %v3362
    %v3364 = vpop.f32.mrf.mxu0
    %v3365 = vadd.f32 0.0, %v3364
    %v3366 = vpop.f32.mrf.mxu0
    %v3367 = vadd.f32 0.0, %v3366
    %v3368 = vpop.f32.mrf.mxu0
    %v3369 = vadd.f32 0.0, %v3368
    %3370 = vmatprep.mubr.bf16.mxu0 0
    %3371 = vmatmul.mubr.bf16.gmra.mxu0 %v3102
    %v3372 = vpop.f32.mrf.mxu0
    %v3373 = vadd.f32 0.0, %v3372
    %v3374 = vpop.f32.mrf.mxu0
    %v3375 = vadd.f32 0.0, %v3374
    %v3376 = vpop.f32.mrf.mxu0
    %v3377 = vadd.f32 0.0, %v3376
    %v3378 = vpop.f32.mrf.mxu0
    %v3379 = vadd.f32 0.0, %v3378
    %3380 = vmatprep.mubr.bf16.mxu0 0
    %3381 = vmatmul.mubr.bf16.gmra.mxu0 %v3103
    %v3382 = vpop.f32.mrf.mxu0
    %v3383 = vadd.f32 0.0, %v3382
    %v3384 = vpop.f32.mrf.mxu0
    %v3385 = vadd.f32 0.0, %v3384
    %v3386 = vpop.f32.mrf.mxu0
    %v3387 = vadd.f32 0.0, %v3386
    %v3388 = vpop.f32.mrf.mxu0
    %v3389 = vadd.f32 0.0, %v3388
    %3390 = vmatprep.mubr.bf16.mxu0 0
    %3391 = vmatmul.mubr.bf16.gmra.mxu0 %v3104
    %v3392 = vpop.f32.mrf.mxu0
    %v3393 = vadd.f32 0.0, %v3392
    %v3394 = vpop.f32.mrf.mxu0
    %v3395 = vadd.f32 0.0, %v3394
    %v3396 = vpop.f32.mrf.mxu0
    %v3397 = vadd.f32 0.0, %v3396
    %v3398 = vpop.f32.mrf.mxu0
    %v3399 = vadd.f32 0.0, %v3398
    %3400 = vmatprep.mubr.bf16.mxu0 0
    %3401 = vmatmul.mubr.bf16.gmra.mxu0 %v3105
    %v3402 = vpop.f32.mrf.mxu0
    %v3403 = vadd.f32 0.0, %v3402
    %v3404 = vpop.f32.mrf.mxu0
    %v3405 = vadd.f32 0.0, %v3404
    %v3406 = vpop.f32.mrf.mxu0
    %v3407 = vadd.f32 0.0, %v3406
    %v3408 = vpop.f32.mrf.mxu0
    %v3409 = vadd.f32 0.0, %v3408
    %3410 = vdwg.mxu0
    %3411 = vmatprep.subr.bf16.mxu0 %v3265
    %3412 = vmatpush1.bf16.msra.mxu0 %v3264
    %3413 = vmatprep.subr.bf16.mxu0 %v3261
    %3414 = vmatpush1.bf16.msra.mxu0 %v3260
    %3415 = vmatprep.subr.bf16.mxu0 %v3257
    %3416 = vmatpush1.bf16.msra.mxu0 %v3256
    %3417 = vmatprep.subr.bf16.mxu0 %v3253
    %3418 = vmatpush1.bf16.msra.mxu0 %v3252
    %3419 = vmatprep.subr.bf16.mxu0 %v3249
    %3420 = vmatpush1.bf16.msra.mxu0 %v3248
    %3421 = vmatprep.subr.bf16.mxu0 %v3245
    %3422 = vmatpush1.bf16.msra.mxu0 %v3244
    %3423 = vmatprep.subr.bf16.mxu0 %v3241
    %3424 = vmatpush1.bf16.msra.mxu0 %v3240
    %3425 = vmatprep.subr.bf16.mxu0 %v3237
    %3426 = vmatpush1.bf16.msra.mxu0 %v3236
    %3427 = vmatprep.subr.bf16.mxu0 0
    %3428 = vmatpush2.bf16.msra.mxu0 0
    %3429 = vmatprep.subr.bf16.mxu0 0
    %3430 = vmatpush2.bf16.msra.mxu0 0
    %3431 = vmatprep.subr.bf16.mxu0 0
    %3432 = vmatpush2.bf16.msra.mxu0 0
    %3433 = vmatprep.subr.bf16.mxu0 0
    %3434 = vmatpush2.bf16.msra.mxu0 0
    %3435 = vmatprep.subr.bf16.mxu0 0
    %3436 = vmatpush2.bf16.msra.mxu0 0
    %3437 = vmatprep.subr.bf16.mxu0 0
    %3438 = vmatpush2.bf16.msra.mxu0 0
    %3439 = vmatprep.subr.bf16.mxu0 0
    %3440 = vmatpush2.bf16.msra.mxu0 0
    %3441 = vmatprep.subr.bf16.mxu0 0
    %3442 = vmatpush2.bf16.msra.mxu0 0
    %3443 = vmatprep.mubr.bf16.mxu0 0
    %3444 = vmatmul.mubr.bf16.gmra.mxu0 %v3098
    %v3445 = vpop.f32.mrf.mxu0
    %v3446 = vadd.f32 0.0, %v3445
    %v3447 = vpop.f32.mrf.mxu0
    %v3448 = vadd.f32 0.0, %v3447
    %v3449 = vpop.f32.mrf.mxu0
    %v3450 = vadd.f32 0.0, %v3449
    %v3451 = vpop.f32.mrf.mxu0
    %v3452 = vadd.f32 0.0, %v3451
    %3453 = vmatprep.mubr.bf16.mxu0 0
    %3454 = vmatmul.mubr.bf16.gmra.mxu0 %v3099
    %v3455 = vpop.f32.mrf.mxu0
    %v3456 = vadd.f32 0.0, %v3455
    %v3457 = vpop.f32.mrf.mxu0
    %v3458 = vadd.f32 0.0, %v3457
    %v3459 = vpop.f32.mrf.mxu0
    %v3460 = vadd.f32 0.0, %v3459
    %v3461 = vpop.f32.mrf.mxu0
    %v3462 = vadd.f32 0.0, %v3461
    %3463 = vmatprep.mubr.bf16.mxu0 0
    %3464 = vmatmul.mubr.bf16.gmra.mxu0 %v3100
    %v3465 = vpop.f32.mrf.mxu0
    %v3466 = vadd.f32 0.0, %v3465
    %v3467 = vpop.f32.mrf.mxu0
    %v3468 = vadd.f32 0.0, %v3467
    %v3469 = vpop.f32.mrf.mxu0
    %v3470 = vadd.f32 0.0, %v3469
    %v3471 = vpop.f32.mrf.mxu0
    %v3472 = vadd.f32 0.0, %v3471
    %3473 = vmatprep.mubr.bf16.mxu0 0
    %3474 = vmatmul.mubr.bf16.gmra.mxu0 %v3101
    %v3475 = vpop.f32.mrf.mxu0
    %v3476 = vadd.f32 0.0, %v3475
    %v3477 = vpop.f32.mrf.mxu0
    %v3478 = vadd.f32 0.0, %v3477
    %v3479 = vpop.f32.mrf.mxu0
    %v3480 = vadd.f32 0.0, %v3479
    %v3481 = vpop.f32.mrf.mxu0
    %v3482 = vadd.f32 0.0, %v3481
    %3483 = vmatprep.mubr.bf16.mxu0 0
    %3484 = vmatmul.mubr.bf16.gmra.mxu0 %v3102
    %v3485 = vpop.f32.mrf.mxu0
    %v3486 = vadd.f32 0.0, %v3485
    %v3487 = vpop.f32.mrf.mxu0
    %v3488 = vadd.f32 0.0, %v3487
    %v3489 = vpop.f32.mrf.mxu0
    %v3490 = vadd.f32 0.0, %v3489
    %v3491 = vpop.f32.mrf.mxu0
    %v3492 = vadd.f32 0.0, %v3491
    %3493 = vmatprep.mubr.bf16.mxu0 0
    %3494 = vmatmul.mubr.bf16.gmra.mxu0 %v3103
    %v3495 = vpop.f32.mrf.mxu0
    %v3496 = vadd.f32 0.0, %v3495
    %v3497 = vpop.f32.mrf.mxu0
    %v3498 = vadd.f32 0.0, %v3497
    %v3499 = vpop.f32.mrf.mxu0
    %v3500 = vadd.f32 0.0, %v3499
    %v3501 = vpop.f32.mrf.mxu0
    %v3502 = vadd.f32 0.0, %v3501
    %3503 = vmatprep.mubr.bf16.mxu0 0
    %3504 = vmatmul.mubr.bf16.gmra.mxu0 %v3104
    %v3505 = vpop.f32.mrf.mxu0
    %v3506 = vadd.f32 0.0, %v3505
    %v3507 = vpop.f32.mrf.mxu0
    %v3508 = vadd.f32 0.0, %v3507
    %v3509 = vpop.f32.mrf.mxu0
    %v3510 = vadd.f32 0.0, %v3509
    %v3511 = vpop.f32.mrf.mxu0
    %v3512 = vadd.f32 0.0, %v3511
    %3513 = vmatprep.mubr.bf16.mxu0 0
    %3514 = vmatmul.mubr.bf16.gmra.mxu0 %v3105
    %v3515 = vpop.f32.mrf.mxu0
    %v3516 = vadd.f32 0.0, %v3515
    %v3517 = vpop.f32.mrf.mxu0
    %v3518 = vadd.f32 0.0, %v3517
    %v3519 = vpop.f32.mrf.mxu0
    %v3520 = vadd.f32 0.0, %v3519
    %v3521 = vpop.f32.mrf.mxu0
    %v3522 = vadd.f32 0.0, %v3521
    %3523 = vdwg.mxu0
    %v3524 = vpack.c.bf16 %v3337, %v3333
    %v3525 = vpack.c.bf16 %v3339, %v3335
    %v3526 = vpack.c.bf16 %v3450, %v3446
    %v3527 = vpack.c.bf16 %v3347, %v3343
    %v3528 = vpack.c.bf16 %v3349, %v3345
    %v3529 = vpack.c.bf16 %v3460, %v3456
    %v3530 = vpack.c.bf16 %v3357, %v3353
    %v3531 = vpack.c.bf16 %v3359, %v3355
    %v3532 = vpack.c.bf16 %v3470, %v3466
    %v3533 = vpack.c.bf16 %v3367, %v3363
    %v3534 = vpack.c.bf16 %v3369, %v3365
    %v3535 = vpack.c.bf16 %v3480, %v3476
    %v3536 = vpack.c.bf16 %v3377, %v3373
    %v3537 = vpack.c.bf16 %v3379, %v3375
    %v3538 = vpack.c.bf16 %v3490, %v3486
    %v3539 = vpack.c.bf16 %v3387, %v3383
    %v3540 = vpack.c.bf16 %v3389, %v3385
    %v3541 = vpack.c.bf16 %v3500, %v3496
    %v3542 = vpack.c.bf16 %v3397, %v3393
    %v3543 = vpack.c.bf16 %v3399, %v3395
    %v3544 = vpack.c.bf16 %v3510, %v3506
    %v3545 = vpack.c.bf16 %v3407, %v3403
    %v3546 = vpack.c.bf16 %v3409, %v3405
    %v3547 = vpack.c.bf16 %v3520, %v3516
    %v3572 = vunpack.c.l.b16 %v3524
    %v3573 = vunpack.c.l.b16 %v3525
    %v3574 = vunpack.c.l.b16 %v3526
    %v3575 = vunpack.c.h.b16 %v3524
    %v3576 = vunpack.c.h.b16 %v3525
    %v3577 = vunpack.c.h.b16 %v3526
    %v3578 = vunpack.c.l.b16 %v3527
    %v3579 = vunpack.c.l.b16 %v3528
    %v3580 = vunpack.c.l.b16 %v3529
    %v3581 = vunpack.c.h.b16 %v3527
    %v3582 = vunpack.c.h.b16 %v3528
    %v3583 = vunpack.c.h.b16 %v3529
    %v3584 = vunpack.c.l.b16 %v3530
    %v3585 = vunpack.c.l.b16 %v3531
    %v3586 = vunpack.c.l.b16 %v3532
    %v3587 = vunpack.c.h.b16 %v3530
    %v3588 = vunpack.c.h.b16 %v3531
    %v3589 = vunpack.c.h.b16 %v3532
    %v3590 = vunpack.c.l.b16 %v3533
    %v3591 = vunpack.c.l.b16 %v3534
    %v3592 = vunpack.c.l.b16 %v3535
    %v3593 = vunpack.c.h.b16 %v3533
    %v3594 = vunpack.c.h.b16 %v3534
    %v3595 = vunpack.c.h.b16 %v3535
    %v3596 = vunpack.c.l.b16 %v3536
    %v3597 = vunpack.c.l.b16 %v3537
    %v3598 = vunpack.c.l.b16 %v3538
    %v3599 = vunpack.c.h.b16 %v3536
    %v3600 = vunpack.c.h.b16 %v3537
    %v3601 = vunpack.c.h.b16 %v3538
    %v3602 = vunpack.c.l.b16 %v3539
    %v3603 = vunpack.c.l.b16 %v3540
    %v3604 = vunpack.c.l.b16 %v3541
    %v3605 = vunpack.c.h.b16 %v3539
    %v3606 = vunpack.c.h.b16 %v3540
    %v3607 = vunpack.c.h.b16 %v3541
    %v3608 = vunpack.c.l.b16 %v3542
    %v3609 = vunpack.c.l.b16 %v3543
    %v3610 = vunpack.c.l.b16 %v3544
    %v3611 = vunpack.c.h.b16 %v3542
    %v3612 = vunpack.c.h.b16 %v3543
    %v3613 = vunpack.c.h.b16 %v3544
    %v3614 = vunpack.c.l.b16 %v3545
    %v3615 = vunpack.c.l.b16 %v3546
    %v3616 = vunpack.c.l.b16 %v3547
    %v3617 = vunpack.c.h.b16 %v3545
    %v3618 = vunpack.c.h.b16 %v3546
    %v3619 = vunpack.c.h.b16 %v3547
    %v3620 = vpack.c.b16 %v3573, %v3572
    %v3621 = vpack.c.b16 %v3574, %v3574
    %v3622 = vpack.c.b16 %v3576, %v3575
    %v3623 = vpack.c.b16 %v3577, %v3577
    %v3624 = vpack.c.b16 %v3579, %v3578
    %v3625 = vpack.c.b16 %v3580, %v3580
    %v3626 = vpack.c.b16 %v3582, %v3581
    %v3627 = vpack.c.b16 %v3583, %v3583
    %v3628 = vpack.c.b16 %v3585, %v3584
    %v3629 = vpack.c.b16 %v3586, %v3586
    %v3630 = vpack.c.b16 %v3588, %v3587
    %v3631 = vpack.c.b16 %v3589, %v3589
    %v3632 = vpack.c.b16 %v3591, %v3590
    %v3633 = vpack.c.b16 %v3592, %v3592
    %v3634 = vpack.c.b16 %v3594, %v3593
    %v3635 = vpack.c.b16 %v3595, %v3595
    %v3636 = vpack.c.b16 %v3597, %v3596
    %v3637 = vpack.c.b16 %v3598, %v3598
    %v3638 = vpack.c.b16 %v3600, %v3599
    %v3639 = vpack.c.b16 %v3601, %v3601
    %v3640 = vpack.c.b16 %v3603, %v3602
    %v3641 = vpack.c.b16 %v3604, %v3604
    %v3642 = vpack.c.b16 %v3606, %v3605
    %v3643 = vpack.c.b16 %v3607, %v3607
    %v3644 = vpack.c.b16 %v3609, %v3608
    %v3645 = vpack.c.b16 %v3610, %v3610
    %v3646 = vpack.c.b16 %v3612, %v3611
    %v3647 = vpack.c.b16 %v3613, %v3613
    %v3648 = vpack.c.b16 %v3615, %v3614
    %v3649 = vpack.c.b16 %v3616, %v3616
    %v3650 = vpack.c.b16 %v3618, %v3617
    %v3651 = vpack.c.b16 %v3619, %v3619
    %3684 = vst [vmem:[%s6] sm:$0xff] %v3620
    %3685 = vst [vmem:[%s6 + $0x8] sm:$0xf] %v3621
    %3686 = vst [vmem:[%s6 + $0xc] sm:$0xff] %v3622
    %3687 = vst [vmem:[%s6 + $0x14] sm:$0xf] %v3623
    %3688 = vst [vmem:[%s6 + $0x18] sm:$0xff] %v3624
    %3689 = vst [vmem:[%s6 + $0x20] sm:$0xf] %v3625
    %3690 = vst [vmem:[%s6 + $0x24] sm:$0xff] %v3626
    %3691 = vst [vmem:[%s6 + $0x2c] sm:$0xf] %v3627
    %3692 = vst [vmem:[%s6 + $0x30] sm:$0xff] %v3628
    %3693 = vst [vmem:[%s6 + $0x38] sm:$0xf] %v3629
    %3694 = vst [vmem:[%s6 + $0x3c] sm:$0xff] %v3630
    %3695 = vst [vmem:[%s6 + $0x44] sm:$0xf] %v3631
    %3696 = vst [vmem:[%s6 + $0x48] sm:$0xff] %v3632
    %3697 = vst [vmem:[%s6 + $0x50] sm:$0xf] %v3633
    %3698 = vst [vmem:[%s6 + $0x54] sm:$0xff] %v3634
    %3699 = vst [vmem:[%s6 + $0x5c] sm:$0xf] %v3635
    %3700 = vst [vmem:[%s6 + $0x60] sm:$0xff] %v3636
    %3701 = vst [vmem:[%s6 + $0x68] sm:$0xf] %v3637
    %3702 = vst [vmem:[%s6 + $0x6c] sm:$0xff] %v3638
    %3703 = vst [vmem:[%s6 + $0x74] sm:$0xf] %v3639
    %3704 = vst [vmem:[%s6 + $0x78] sm:$0xff] %v3640
    %3705 = vst [vmem:[%s6 + $0x80] sm:$0xf] %v3641
    %3706 = vst [vmem:[%s6 + $0x84] sm:$0xff] %v3642
    %3707 = vst [vmem:[%s6 + $0x8c] sm:$0xf] %v3643
    %3708 = vst [vmem:[%s6 + $0x90] sm:$0xff] %v3644
    %3709 = vst [vmem:[%s6 + $0x98] sm:$0xf] %v3645
    %3710 = vst [vmem:[%s6 + $0x9c] sm:$0xff] %v3646
    %3711 = vst [vmem:[%s6 + $0xa4] sm:$0xf] %v3647
    %3712 = vst [vmem:[%s6 + $0xa8] sm:$0xff] %v3648
    %3713 = vst [vmem:[%s6 + $0xb0] sm:$0xf] %v3649
    %3714 = vst [vmem:[%s6 + $0xb4] sm:$0xff] %v3650
    %3715 = vst [vmem:[%s6 + $0xbc] sm:$0xf] %v3651
    %3716 = vst [vmem:[%s7] sm:$0xff] %v3448
    %3717 = vst [vmem:[%s7 + $0x8] sm:$0xff] %v3452
    %3718 = vst [vmem:[%s7 + $0x10] sm:$0xff] %v3458
    %3719 = vst [vmem:[%s7 + $0x18] sm:$0xff] %v3462
    %3720 = vst [vmem:[%s7 + $0x20] sm:$0xff] %v3468
    %3721 = vst [vmem:[%s7 + $0x28] sm:$0xff] %v3472
    %3722 = vst [vmem:[%s7 + $0x30] sm:$0xff] %v3478
    %3723 = vst [vmem:[%s7 + $0x38] sm:$0xff] %v3482
    %3724 = vst [vmem:[%s7 + $0x40] sm:$0xff] %v3488
    %3725 = vst [vmem:[%s7 + $0x48] sm:$0xff] %v3492
    %3726 = vst [vmem:[%s7 + $0x50] sm:$0xff] %v3498
    %3727 = vst [vmem:[%s7 + $0x58] sm:$0xff] %v3502
    %3728 = vst [vmem:[%s7 + $0x60] sm:$0xff] %v3508
    %3729 = vst [vmem:[%s7 + $0x68] sm:$0xff] %v3512
    %3730 = vst [vmem:[%s7 + $0x70] sm:$0xff] %v3518
    %3731 = vst [vmem:[%s7 + $0x78] sm:$0xff] %v3522
  $region33: #{lm_concat_rgat_forward.4} parent=0 // pred_fallthru
    _
  // Predicated region
  $region34: #{lm_concat_rgat_forward.4} parent=0 // pred_check
    _
  $region35: #{lm_concat_rgat_forward.4} parent=0 // pred_check_branch
    %3733 = sbr.rel (0) target = $region37
  $region36: #{lm_concat_rgat_forward.4} parent=0 // pred_region
    _
  $region37: #{lm_concat_rgat_forward.4} parent=0 // pred_fallthru
    _
  // Predicated region
  $region38: #{lm_concat_rgat_forward.4} parent=0 // pred_check
    _
  $region39: #{lm_concat_rgat_forward.4} parent=0 // pred_check_branch
    %3735 = sbr.rel (0) target = $region41
  $region40: #{lm_concat_rgat_forward.4} parent=0 // pred_region
    _
  $region41: #{lm_concat_rgat_forward.4} parent=0 // pred_fallthru
    _
  // Predicated region
  $region42: #{lm_concat_rgat_forward.4} parent=0 // pred_check
    _
  $region43: #{lm_concat_rgat_forward.4} parent=0 // pred_check_branch
    %3737 = sbr.rel (0) target = $region45
  $region44: #{lm_concat_rgat_forward.4} parent=0 // pred_region
    _
  $region45: #{lm_concat_rgat_forward.4} parent=0 // pred_fallthru
    _
  // Predicated region
  $region46: #{lm_concat_rgat_forward.4} parent=0 // pred_check
    _
  $region47: #{lm_concat_rgat_forward.4} parent=0 // pred_check_branch
    %3739 = sbr.rel (0) target = $region49
  $region48: #{lm_concat_rgat_forward.4} parent=0 // pred_region
    _
  $region49: #{lm_concat_rgat_forward.4} parent=0 // pred_fallthru
    _

</llo_original>
